<compile_context>
chip_gen: v7x
topology: tpu7x:2x2x1
jax: 0.10.0
libtpu: 0.0.40
codegen_flags: <defaults>
</compile_context>

<pallas_src>
import jax
import jax.numpy as jnp
from jax import lax
from jax.experimental import pallas as pl
from jax.experimental.pallas import tpu as pltpu


def _round_up(x, m):
    return ((x + m - 1) // m) * m


def _dot_attention_kernel(q_ref, ctx_ref, c_ref, attn_ref):
    # q_ref:   [TB, T, D]   ctx_ref: [TB, S, D]
    q = q_ref[...]
    ctx = ctx_ref[...]

    # scores[b, t, s] = sum_d q[b, t, d] * ctx[b, s, d]   (true f32 on the MXU)
    scores = jnp.einsum(
        "btd,bsd->bts", q, ctx,
        preferred_element_type=jnp.float32,
        precision=lax.Precision.HIGHEST,
    )

    # Numerically-stable softmax over src_len (last axis), all in f32.
    m = jnp.max(scores, axis=-1, keepdims=True)
    e = jnp.exp(scores - m)
    denom = jnp.sum(e, axis=-1, keepdims=True)
    p = e / denom                                   # [TB, T, S] f32

    # c[b, t, d] = sum_s p[b, t, s] * ctx[b, s, d]
    c = jnp.einsum(
        "bts,bsd->btd", p.astype(ctx.dtype), ctx,
        preferred_element_type=jnp.float32,
        precision=lax.Precision.HIGHEST,
    )

    c_ref[...] = c.astype(c_ref.dtype)
    attn_ref[...] = p.astype(attn_ref.dtype)


def dot_attention_pallas(inp, context):
    """Forward of DotAttention (attn_type='dot', context_lengths=None)."""
    one_step = (inp.ndim == 2)
    q = inp[:, None, :] if one_step else inp

    B, T, D = q.shape
    Bc, S, Dc = context.shape
    assert B == Bc and D == Dc, "batch/dim mismatch"

    itemsize = jnp.dtype(q.dtype).itemsize
    # Batch rows per grid step: multiple of the sublane packing (8 for 32-bit,
    # 16 for 16-bit), grown while the double-buffered footprint stays small.
    base = 8 if itemsize >= 4 else 16
    row_bytes = (2 * T * D + S * D + T * S) * itemsize + 3 * T * S * 4
    tb = base
    while tb < 128 and 4 * (2 * tb) * row_bytes <= (8 << 20):
        tb *= 2
    tb = min(tb, _round_up(B, base))

    B_pad = _round_up(B, tb)
    if B_pad != B:
        pad = B_pad - B
        q = jnp.pad(q, ((0, pad), (0, 0), (0, 0)))
        ctx = jnp.pad(context, ((0, pad), (0, 0), (0, 0)))
    else:
        ctx = context

    out_dtype = inp.dtype
    vmem_limit = int(min(max(4 * tb * row_bytes + (4 << 20), 16 << 20), 64 << 20))

    c, attn = pl.pallas_call(
        _dot_attention_kernel,
        grid=(B_pad // tb,),
        in_specs=[
            pl.BlockSpec((tb, T, D), lambda b: (b, 0, 0)),
            pl.BlockSpec((tb, S, D), lambda b: (b, 0, 0)),
        ],
        out_specs=[
            pl.BlockSpec((tb, T, D), lambda b: (b, 0, 0)),
            pl.BlockSpec((tb, T, S), lambda b: (b, 0, 0)),
        ],
        out_shape=(
            jax.ShapeDtypeStruct((B_pad, T, D), out_dtype),   # c
            jax.ShapeDtypeStruct((B_pad, T, S), out_dtype),   # attention weights
        ),
        compiler_params=pltpu.CompilerParams(
            dimension_semantics=("parallel",),
            vmem_limit_bytes=vmem_limit,
        ),
    )(q, ctx)

    if B_pad != B:
        c, attn = c[:B], attn[:B]

    if one_step:
        return c[:, 0, :], attn[:, 0, :]                      # [B, dim], [B, src]
    # Match PyTorch: transpose(0, 1) -> [tgt, B, dim], [tgt, B, src]
    return jnp.transpose(c, (1, 0, 2)), jnp.transpose(attn, (1, 0, 2))


def _reference(inp, context):
    """Pure-JAX reference matching the PyTorch forward (true-f32 matmuls)."""
    one_step = (inp.ndim == 2)
    q = inp[:, None, :] if one_step else inp
    hp = lax.Precision.HIGHEST
    align = jnp.einsum("btd,bsd->bts", q, context, precision=hp)
    attn = jax.nn.softmax(align, axis=-1)
    c = jnp.einsum("bts,bsd->btd", attn, context, precision=hp)
    if one_step:
        return c[:, 0, :], attn[:, 0, :]
    return jnp.transpose(c, (1, 0, 2)), jnp.transpose(attn, (1, 0, 2))


if __name__ == "__main__":
    batch, src_len, dim, tgt_len = 2, 8, 32, 8

    key = jax.random.PRNGKey(0)
    k_q1, k_q2, k_ctx = jax.random.split(key, 3)

    context = jax.random.normal(k_ctx, (batch, src_len, dim), dtype=jnp.float32)

    # --- one-step path (2-D query, as used at decode time) ---
    query1 = jax.random.normal(k_q1, (batch, dim), dtype=jnp.float32)
    attn_h1, align1 = dot_attention_pallas(query1, context)
    jax.block_until_ready((attn_h1, align1))

    ref_h1, ref_a1 = _reference(query1, context)
    assert attn_h1.shape == (batch, dim)
    assert align1.shape == (batch, src_len)
    assert jnp.allclose(attn_h1, ref_h1, atol=2e-2, rtol=2e-2), (
        f"max diff c: {float(jnp.max(jnp.abs(attn_h1 - ref_h1)))}")
    assert jnp.allclose(align1, ref_a1, atol=2e-2, rtol=2e-2), (
        f"max diff attn: {float(jnp.max(jnp.abs(align1 - ref_a1)))}")

    # --- multi-step path (3-D query) ---
    query2 = jax.random.normal(k_q2, (batch, tgt_len, dim), dtype=jnp.float32)
    attn_h2, align2 = dot_attention_pallas(query2, context)
    jax.block_until_ready((attn_h2, align2))

    ref_h2, ref_a2 = _reference(query2, context)
    assert attn_h2.shape == (tgt_len, batch, dim)
    assert align2.shape == (tgt_len, batch, src_len)
    assert jnp.allclose(attn_h2, ref_h2, atol=2e-2, rtol=2e-2), (
        f"max diff c: {float(jnp.max(jnp.abs(attn_h2 - ref_h2)))}")
    assert jnp.allclose(align2, ref_a2, atol=2e-2, rtol=2e-2), (
        f"max diff attn: {float(jnp.max(jnp.abs(align2 - ref_a2)))}")

    print("KERNEL_OK")
</pallas_src>

<mosaic_0001>
module attributes {stable_mosaic.version = 11 : i64} {
  func.func @_dot_attention_kernel(%arg0: i32, %arg1: memref<8x1x32xf32, #tpu.memory_space<vmem>>, %arg2: memref<8x8x32xf32, #tpu.memory_space<vmem>>, %arg3: memref<8x1x32xf32, #tpu.memory_space<vmem>>, %arg4: memref<8x1x8xf32, #tpu.memory_space<vmem>>) attributes {dimension_semantics = [#tpu.dimension_semantics<parallel>], iteration_bounds = array<i64: 1>, scalar_prefetch = 0 : i64, scratch_operands = 0 : i64, tpu.core_type = #tpu.core_type<tc>, window_params = [{transform_indices = @transform_0, window_bounds = array<i64: 8, 1, 32>}, {transform_indices = @transform_1, window_bounds = array<i64: 8, 8, 32>}, {transform_indices = @transform_2, window_bounds = array<i64: 8, 1, 32>}, {transform_indices = @transform_3, window_bounds = array<i64: 8, 1, 8>}]} {
    %c0 = arith.constant 0 : index
    %c0_0 = arith.constant 0 : index
    %c0_1 = arith.constant 0 : index
    %0 = vector.load %arg1[%c0, %c0_0, %c0_1] : memref<8x1x32xf32, #tpu.memory_space<vmem>>, vector<8x1x32xf32>
    %c0_2 = arith.constant 0 : index
    %c0_3 = arith.constant 0 : index
    %c0_4 = arith.constant 0 : index
    %1 = vector.load %arg2[%c0_2, %c0_3, %c0_4] : memref<8x8x32xf32, #tpu.memory_space<vmem>>, vector<8x8x32xf32>
    "tpu.trace_start"() <{level = 10 : i32, message = "btd,bsd->bts"}> : () -> ()
    %cst = arith.constant dense<0.000000e+00> : vector<8x1x8xf32>
    %2 = tpu.matmul %0, %1, %cst {dimension_numbers = #tpu.dot_dimension_numbers<[2], [2], [1], [1], [0, 0, 0, 1, 1, 1], [0], [0]>, precision = #tpu.contract_precision<fp32>} : vector<8x1x32xf32>, vector<8x8x32xf32>, vector<8x1x8xf32> -> vector<8x1x8xf32>
    "tpu.trace_stop"() : () -> ()
    %cst_5 = arith.constant dense<0xFF800000> : vector<8x1xf32>
    %3 = vector.multi_reduction <maximumf>, %2, %cst_5 [2] : vector<8x1x8xf32> to vector<8x1xf32>
    %4 = vector.shape_cast %3 : vector<8x1xf32> to vector<8x1x1xf32>
    %5 = vector.broadcast %4 : vector<8x1x1xf32> to vector<8x1x8xf32>
    %6 = arith.subf %2, %5 : vector<8x1x8xf32>
    %7 = math.exp %6 : vector<8x1x8xf32>
    %cst_6 = arith.constant dense<0.000000e+00> : vector<8x1xf32>
    %8 = vector.multi_reduction <add>, %7, %cst_6 [2] : vector<8x1x8xf32> to vector<8x1xf32>
    %9 = vector.shape_cast %8 : vector<8x1xf32> to vector<8x1x1xf32>
    %10 = vector.broadcast %9 : vector<8x1x1xf32> to vector<8x1x8xf32>
    %11 = arith.divf %7, %10 : vector<8x1x8xf32>
    "tpu.trace_start"() <{level = 10 : i32, message = "bts,bsd->btd"}> : () -> ()
    %cst_7 = arith.constant dense<0.000000e+00> : vector<8x1x32xf32>
    %12 = tpu.matmul %11, %1, %cst_7 {dimension_numbers = #tpu.dot_dimension_numbers<[2], [1], [1], [2], [0, 0, 0, 1, 1, 2], [0], [0]>, precision = #tpu.contract_precision<fp32>} : vector<8x1x8xf32>, vector<8x8x32xf32>, vector<8x1x32xf32> -> vector<8x1x32xf32>
    "tpu.trace_stop"() : () -> ()
    %c0_8 = arith.constant 0 : index
    %c0_9 = arith.constant 0 : index
    %c0_10 = arith.constant 0 : index
    %13 = vector.load %arg3[%c0_8, %c0_9, %c0_10] : memref<8x1x32xf32, #tpu.memory_space<vmem>>, vector<8x1x32xf32>
    tpu.vector_store %arg3[%c0_8, %c0_9, %c0_10], %12 {strides = array<i32>} : memref<8x1x32xf32, #tpu.memory_space<vmem>>, vector<8x1x32xf32>,
    %c0_11 = arith.constant 0 : index
    %c0_12 = arith.constant 0 : index
    %c0_13 = arith.constant 0 : index
    %14 = vector.load %arg4[%c0_11, %c0_12, %c0_13] : memref<8x1x8xf32, #tpu.memory_space<vmem>>, vector<8x1x8xf32>
    tpu.vector_store %arg4[%c0_11, %c0_12, %c0_13], %11 {strides = array<i32>} : memref<8x1x8xf32, #tpu.memory_space<vmem>>, vector<8x1x8xf32>,
    return
  }
  func.func @transform_0(%arg0: i32) -> (i32, i32, i32) {
    %c0_i32 = arith.constant 0 : i32
    %c0_i32_0 = arith.constant 0 : i32
    %c0_i32_1 = arith.constant 0 : i32
    return %arg0, %c0_i32, %c0_i32_0 : i32, i32, i32
  }
  func.func @transform_1(%arg0: i32) -> (i32, i32, i32) {
    %c0_i32 = arith.constant 0 : i32
    %c0_i32_0 = arith.constant 0 : i32
    %c0_i32_1 = arith.constant 0 : i32
    return %arg0, %c0_i32, %c0_i32_0 : i32, i32, i32
  }
  func.func @transform_2(%arg0: i32) -> (i32, i32, i32) {
    %c0_i32 = arith.constant 0 : i32
    %c0_i32_0 = arith.constant 0 : i32
    %c0_i32_1 = arith.constant 0 : i32
    return %arg0, %c0_i32, %c0_i32_0 : i32, i32, i32
  }
  func.func @transform_3(%arg0: i32) -> (i32, i32, i32) {
    %c0_i32 = arith.constant 0 : i32
    %c0_i32_0 = arith.constant 0 : i32
    %c0_i32_1 = arith.constant 0 : i32
    return %arg0, %c0_i32, %c0_i32_0 : i32, i32, i32
  }
}

</mosaic_0001>

<llo_original>
// kernel: tpu_custom_call.1
$region0: #{tpu_custom_call.1}
  #allocation0 [shape = 'u32[]', space=smem, size = 0x4, offset = 0x4, fixed_abs, tag = 'smem constant byte address 0x4 - core index']
  #allocation1 [shape = 'u32[144,128]{1,0:T(1,128)}', space=vmem, size = 0x12000, scoped, tag = 'internal scratch']
  %s0 = inlined_call_operand.hbm [shape: f32[8,1,32], index: 0, kind: input, shape index: {}]
  %s1 = inlined_call_operand.hbm [shape: f32[8,8,32], index: 1, kind: input, shape index: {}]
  %s2 = inlined_call_operand.hbm [shape: f32[8,1,32], index: 2, kind: output, shape index: {0}]
  %s3 = inlined_call_operand.hbm [shape: f32[8,1,8], index: 3, kind: output, shape index: {1}]
  %4 = xla_tuple %s2, %s3
  %s5 = sld [smem:[#allocation0]]
  $region34: #{tpu_custom_call.1} parent=0
    _
  %s7 = ssub.s32 1, %s5
  %s8 = scalar_select 0, %s7, %s5
  $region1: #{tpu_custom_call.1} parent=0
    #allocation2 [shape = 'u8[4096]{0}', space=vmem, size = 0x1000, scoped, tag = 'input window, operand 0, single buffered']
    #allocation3 [shape = 's32[1]{0}', space=sflag, size = 0x4, scoped, tag = 'scoped memory for tpu_custom_call.1']
    #allocation4 [shape = 's32[1]{0}', space=sflag, size = 0x4, scoped, tag = 'scoped memory for tpu_custom_call.1']
    #allocation5 [shape = 'u8[32768]{0}', space=vmem, size = 0x8000, scoped, tag = 'input window, operand 1, single buffered']
    #allocation6 [shape = 's32[1]{0}', space=sflag, size = 0x4, scoped, tag = 'scoped memory for tpu_custom_call.1']
    #allocation7 [shape = 'u8[4096]{0}', space=vmem, size = 0x1000, scoped, tag = 'output window, operand 0, single buffered']
    #allocation8 [shape = 'u8[4096]{0}', space=vmem, size = 0x1000, scoped, tag = 'output window, operand 1, single buffered']
    #allocation9 [shape = 's32[1]{0}', space=sflag, size = 0x4, scoped, tag = 'scoped memory for tpu_custom_call.1']
    %9 = vsyncpa [#allocation3], 0
    %10 = vsyncpa [#allocation6], 0
    %11 = vsyncpa [#allocation4], 0
    %12 = vsyncpa [#allocation9], 0
    // Predicated region
    $region2: #{tpu_custom_call.1} parent=1 // pred_check
      _
    $region3: #{tpu_custom_call.1} parent=1 // pred_check_branch
      %14 = sbr.rel (0) target = $region5
    $region4: #{tpu_custom_call.1} parent=1 // pred_region
      %s16 = ssub.s32 128, 128
      %17 = vsyncadd [#allocation3], %s16
      %s18 = sshll.u32 [#allocation2], 4
      %s19 = int_to_ptr.vmem [resolvable:$true] %s18
      %24 = dma.hbm_to_vmem [thread:$0]  %s0, 128, %s19, [#allocation3], 16, 16, 1
    $region5: #{tpu_custom_call.1} parent=1 // pred_fallthru
      _
    // Predicated region
    $region6: #{tpu_custom_call.1} parent=1 // pred_check
      _
    $region7: #{tpu_custom_call.1} parent=1 // pred_check_branch
      %26 = sbr.rel (0) target = $region9
    $region8: #{tpu_custom_call.1} parent=1 // pred_region
      %s28 = ssub.s32 1024, 1024
      %29 = vsyncadd [#allocation6], %s28
      %s30 = sshll.u32 [#allocation5], 4
      %s31 = int_to_ptr.vmem [resolvable:$true] %s30
      %36 = dma.hbm_to_vmem [thread:$0]  %s1, 1024, %s31, [#allocation6], 128, 128, 8
    $region9: #{tpu_custom_call.1} parent=1 // pred_fallthru
      _
    // Predicated region
    $region10: #{tpu_custom_call.1} parent=1 // pred_check
      _
    $region11: #{tpu_custom_call.1} parent=1 // pred_check_branch
      %38 = sbr.rel (0) target = $region13
    $region12: #{tpu_custom_call.1} parent=1 // pred_region
      %39 = dma.done [#allocation3], 128
    $region13: #{tpu_custom_call.1} parent=1 // pred_fallthru
      _
    // Predicated region
    $region14: #{tpu_custom_call.1} parent=1 // pred_check
      _
    $region15: #{tpu_custom_call.1} parent=1 // pred_check_branch
      %41 = sbr.rel (0) target = $region17
    $region16: #{tpu_custom_call.1} parent=1 // pred_region
      %42 = dma.done [#allocation6], 1024
    $region17: #{tpu_custom_call.1} parent=1 // pred_fallthru
      _
    %v43 = vld [vmem:[#allocation2] sm:$0x1]
    %v44 = vld [vmem:[#allocation2 + $0x1] sm:$0x1]
    %v45 = vld [vmem:[#allocation2 + $0x2] sm:$0x1]
    %v46 = vld [vmem:[#allocation2 + $0x3] sm:$0x1]
    %v47 = vld [vmem:[#allocation2 + $0x4] sm:$0x1]
    %v48 = vld [vmem:[#allocation2 + $0x5] sm:$0x1]
    %v49 = vld [vmem:[#allocation2 + $0x6] sm:$0x1]
    %v50 = vld [vmem:[#allocation2 + $0x7] sm:$0x1]
    %v51 = vld [vmem:[#allocation5] sm:$0xff]
    %v52 = vld [vmem:[#allocation5 + $0x8] sm:$0xff]
    %v53 = vld [vmem:[#allocation5 + $0x10] sm:$0xff]
    %v54 = vld [vmem:[#allocation5 + $0x18] sm:$0xff]
    %v55 = vld [vmem:[#allocation5 + $0x20] sm:$0xff]
    %v56 = vld [vmem:[#allocation5 + $0x28] sm:$0xff]
    %v57 = vld [vmem:[#allocation5 + $0x30] sm:$0xff]
    %v58 = vld [vmem:[#allocation5 + $0x38] sm:$0xff]
    %vm59 = vcmask 261120
    %v61 = vsel %vm59, %v43, 0
    %v64 = vsel %vm59, %v51, 0
    %66 = vmatprep.subr.mxu0 0.0
    %v67 = vand.u32 %v64, 4294901760
    %68 = vmatpush1.xpose.msra.mxu0 %v67
    %69 = vmatprep.subr.mxu0 0.0
    %70 = vmatpush1.xpose.msra.mxu0 0.0
    %71 = vmatprep.subr.mxu0 0.0
    %72 = vmatpush1.xpose.msra.mxu0 0.0
    %73 = vmatprep.subr.mxu0 0.0
    %74 = vmatpush1.xpose.msra.mxu0 0.0
    %75 = vmatprep.subr.mxu0 0.0
    %76 = vmatpush1.xpose.msra.mxu0 0.0
    %77 = vmatprep.subr.mxu0 0.0
    %78 = vmatpush1.xpose.msra.mxu0 0.0
    %79 = vmatprep.subr.mxu0 0.0
    %80 = vmatpush1.xpose.msra.mxu0 0.0
    %81 = vmatprep.subr.mxu0 0.0
    %82 = vmatpush1.xpose.msra.mxu0 0.0
    %83 = vmatprep.subr.mxu0 0.0
    %84 = vmatpush1.xpose.msra.mxu0 0.0
    %85 = vmatprep.subr.mxu0 0.0
    %86 = vmatpush1.xpose.msra.mxu0 0.0
    %87 = vmatprep.subr.mxu0 0.0
    %88 = vmatpush1.xpose.msra.mxu0 0.0
    %89 = vmatprep.subr.mxu0 0.0
    %90 = vmatpush1.xpose.msra.mxu0 0.0
    %91 = vmatprep.subr.mxu0 0.0
    %92 = vmatpush1.xpose.msra.mxu0 0.0
    %93 = vmatprep.subr.mxu0 0.0
    %94 = vmatpush1.xpose.msra.mxu0 0.0
    %95 = vmatprep.subr.mxu0 0.0
    %96 = vmatpush1.xpose.msra.mxu0 0.0
    %97 = vmatprep.subr.mxu0 0.0
    %98 = vmatpush1.xpose.msra.mxu0 0.0
    %99 = vmatprep.subr.mxu0 0.0
    %100 = vmatpush1.xpose.msra.mxu0 0.0
    %101 = vmatprep.subr.mxu0 0.0
    %102 = vmatpush1.xpose.msra.mxu0 0.0
    %103 = vmatprep.subr.mxu0 0.0
    %104 = vmatpush1.xpose.msra.mxu0 0.0
    %105 = vmatprep.subr.mxu0 0.0
    %106 = vmatpush1.xpose.msra.mxu0 0.0
    %107 = vmatprep.subr.mxu0 0.0
    %108 = vmatpush1.xpose.msra.mxu0 0.0
    %109 = vmatprep.subr.mxu0 0.0
    %110 = vmatpush1.xpose.msra.mxu0 0.0
    %111 = vmatprep.subr.mxu0 0.0
    %112 = vmatpush1.xpose.msra.mxu0 0.0
    %113 = vmatprep.subr.mxu0 0.0
    %114 = vmatpush1.xpose.msra.mxu0 0.0
    %115 = vmatprep.subr.mxu0 0.0
    %116 = vmatpush1.xpose.msra.mxu0 0.0
    %117 = vmatprep.subr.mxu0 0.0
    %118 = vmatpush1.xpose.msra.mxu0 0.0
    %119 = vmatprep.subr.mxu0 0.0
    %120 = vmatpush1.xpose.msra.mxu0 0.0
    %121 = vmatprep.subr.mxu0 0.0
    %122 = vmatpush1.xpose.msra.mxu0 0.0
    %123 = vmatprep.subr.mxu0 0.0
    %124 = vmatpush1.xpose.msra.mxu0 0.0
    %125 = vmatprep.subr.mxu0 0.0
    %126 = vmatpush1.xpose.msra.mxu0 0.0
    %127 = vmatprep.subr.mxu0 0.0
    %128 = vmatpush1.xpose.msra.mxu0 0.0
    %129 = vmatprep.subr.mxu0 0.0
    %130 = vmatpush1.xpose.msra.mxu0 0.0
    %131 = vmatprep.mubr.f32.mxu0 0.0
    %v132 = vand.u32 %v61, 4294901760
    %v133 = vsub.f32 %v61, %v132
    %v134 = vand.u32 %v133, 4294901760
    %v135 = vsub.f32 %v133, %v134
    %v136 = vand.u32 %v135, 4294901760
    %137 = vmatmul.mubr.f32.gmra.mrb[0].mxu0 %v136
    %v138 = vpop.f32.mrb[0].mxu0
    %v139 = vadd.f32 0.0, %v138
    %v140 = vpop.f32.mrb[0].mxu0
    %141 = vdwg.mxu0
    %142 = vmatprep.subr.mxu0 0.0
    %v143 = vand.u32 %v64, 4294901760
    %v144 = vsub.f32 %v64, %v143
    %v145 = vand.u32 %v144, 4294901760
    %v146 = vsub.f32 %v144, %v145
    %v147 = vand.u32 %v146, 4294901760
    %148 = vmatpush1.xpose.msra.mxu0 %v147
    %149 = vmatprep.subr.mxu0 0.0
    %150 = vmatpush1.xpose.msra.mxu0 0.0
    %151 = vmatprep.subr.mxu0 0.0
    %152 = vmatpush1.xpose.msra.mxu0 0.0
    %153 = vmatprep.subr.mxu0 0.0
    %154 = vmatpush1.xpose.msra.mxu0 0.0
    %155 = vmatprep.subr.mxu0 0.0
    %156 = vmatpush1.xpose.msra.mxu0 0.0
    %157 = vmatprep.subr.mxu0 0.0
    %158 = vmatpush1.xpose.msra.mxu0 0.0
    %159 = vmatprep.subr.mxu0 0.0
    %160 = vmatpush1.xpose.msra.mxu0 0.0
    %161 = vmatprep.subr.mxu0 0.0
    %162 = vmatpush1.xpose.msra.mxu0 0.0
    %163 = vmatprep.subr.mxu0 0.0
    %164 = vmatpush1.xpose.msra.mxu0 0.0
    %165 = vmatprep.subr.mxu0 0.0
    %166 = vmatpush1.xpose.msra.mxu0 0.0
    %167 = vmatprep.subr.mxu0 0.0
    %168 = vmatpush1.xpose.msra.mxu0 0.0
    %169 = vmatprep.subr.mxu0 0.0
    %170 = vmatpush1.xpose.msra.mxu0 0.0
    %171 = vmatprep.subr.mxu0 0.0
    %172 = vmatpush1.xpose.msra.mxu0 0.0
    %173 = vmatprep.subr.mxu0 0.0
    %174 = vmatpush1.xpose.msra.mxu0 0.0
    %175 = vmatprep.subr.mxu0 0.0
    %176 = vmatpush1.xpose.msra.mxu0 0.0
    %177 = vmatprep.subr.mxu0 0.0
    %178 = vmatpush1.xpose.msra.mxu0 0.0
    %179 = vmatprep.subr.mxu0 0.0
    %180 = vmatpush1.xpose.msra.mxu0 0.0
    %181 = vmatprep.subr.mxu0 0.0
    %182 = vmatpush1.xpose.msra.mxu0 0.0
    %183 = vmatprep.subr.mxu0 0.0
    %184 = vmatpush1.xpose.msra.mxu0 0.0
    %185 = vmatprep.subr.mxu0 0.0
    %186 = vmatpush1.xpose.msra.mxu0 0.0
    %187 = vmatprep.subr.mxu0 0.0
    %188 = vmatpush1.xpose.msra.mxu0 0.0
    %189 = vmatprep.subr.mxu0 0.0
    %190 = vmatpush1.xpose.msra.mxu0 0.0
    %191 = vmatprep.subr.mxu0 0.0
    %192 = vmatpush1.xpose.msra.mxu0 0.0
    %193 = vmatprep.subr.mxu0 0.0
    %194 = vmatpush1.xpose.msra.mxu0 0.0
    %195 = vmatprep.subr.mxu0 0.0
    %196 = vmatpush1.xpose.msra.mxu0 0.0
    %197 = vmatprep.subr.mxu0 0.0
    %198 = vmatpush1.xpose.msra.mxu0 0.0
    %199 = vmatprep.subr.mxu0 0.0
    %200 = vmatpush1.xpose.msra.mxu0 0.0
    %201 = vmatprep.subr.mxu0 0.0
    %202 = vmatpush1.xpose.msra.mxu0 0.0
    %203 = vmatprep.subr.mxu0 0.0
    %204 = vmatpush1.xpose.msra.mxu0 0.0
    %205 = vmatprep.subr.mxu0 0.0
    %206 = vmatpush1.xpose.msra.mxu0 0.0
    %207 = vmatprep.subr.mxu0 0.0
    %208 = vmatpush1.xpose.msra.mxu0 0.0
    %209 = vmatprep.subr.mxu0 0.0
    %210 = vmatpush1.xpose.msra.mxu0 0.0
    %211 = vmatprep.mubr.f32.mxu0 0.0
    %v212 = vand.u32 %v61, 4294901760
    %213 = vmatmul.mubr.f32.gmra.mrb[0].mxu0 %v212
    %v214 = vpop.f32.mrb[0].mxu0
    %v215 = vadd.f32 %v139, %v214
    %v216 = vpop.f32.mrb[0].mxu0
    %217 = vdwg.mxu0
    %218 = vmatprep.subr.mxu0 0.0
    %v219 = vand.u32 %v64, 4294901760
    %v220 = vsub.f32 %v64, %v219
    %221 = vmatpush1.xpose.msra.mxu0 %v220
    %222 = vmatprep.subr.mxu0 0.0
    %223 = vmatpush1.xpose.msra.mxu0 0.0
    %224 = vmatprep.subr.mxu0 0.0
    %225 = vmatpush1.xpose.msra.mxu0 0.0
    %226 = vmatprep.subr.mxu0 0.0
    %227 = vmatpush1.xpose.msra.mxu0 0.0
    %228 = vmatprep.subr.mxu0 0.0
    %229 = vmatpush1.xpose.msra.mxu0 0.0
    %230 = vmatprep.subr.mxu0 0.0
    %231 = vmatpush1.xpose.msra.mxu0 0.0
    %232 = vmatprep.subr.mxu0 0.0
    %233 = vmatpush1.xpose.msra.mxu0 0.0
    %234 = vmatprep.subr.mxu0 0.0
    %235 = vmatpush1.xpose.msra.mxu0 0.0
    %236 = vmatprep.subr.mxu0 0.0
    %237 = vmatpush1.xpose.msra.mxu0 0.0
    %238 = vmatprep.subr.mxu0 0.0
    %239 = vmatpush1.xpose.msra.mxu0 0.0
    %240 = vmatprep.subr.mxu0 0.0
    %241 = vmatpush1.xpose.msra.mxu0 0.0
    %242 = vmatprep.subr.mxu0 0.0
    %243 = vmatpush1.xpose.msra.mxu0 0.0
    %244 = vmatprep.subr.mxu0 0.0
    %245 = vmatpush1.xpose.msra.mxu0 0.0
    %246 = vmatprep.subr.mxu0 0.0
    %247 = vmatpush1.xpose.msra.mxu0 0.0
    %248 = vmatprep.subr.mxu0 0.0
    %249 = vmatpush1.xpose.msra.mxu0 0.0
    %250 = vmatprep.subr.mxu0 0.0
    %251 = vmatpush1.xpose.msra.mxu0 0.0
    %252 = vmatprep.subr.mxu0 0.0
    %253 = vmatpush1.xpose.msra.mxu0 0.0
    %254 = vmatprep.subr.mxu0 0.0
    %255 = vmatpush1.xpose.msra.mxu0 0.0
    %256 = vmatprep.subr.mxu0 0.0
    %257 = vmatpush1.xpose.msra.mxu0 0.0
    %258 = vmatprep.subr.mxu0 0.0
    %259 = vmatpush1.xpose.msra.mxu0 0.0
    %260 = vmatprep.subr.mxu0 0.0
    %261 = vmatpush1.xpose.msra.mxu0 0.0
    %262 = vmatprep.subr.mxu0 0.0
    %263 = vmatpush1.xpose.msra.mxu0 0.0
    %264 = vmatprep.subr.mxu0 0.0
    %265 = vmatpush1.xpose.msra.mxu0 0.0
    %266 = vmatprep.subr.mxu0 0.0
    %267 = vmatpush1.xpose.msra.mxu0 0.0
    %268 = vmatprep.subr.mxu0 0.0
    %269 = vmatpush1.xpose.msra.mxu0 0.0
    %270 = vmatprep.subr.mxu0 0.0
    %271 = vmatpush1.xpose.msra.mxu0 0.0
    %272 = vmatprep.subr.mxu0 0.0
    %273 = vmatpush1.xpose.msra.mxu0 0.0
    %274 = vmatprep.subr.mxu0 0.0
    %275 = vmatpush1.xpose.msra.mxu0 0.0
    %276 = vmatprep.subr.mxu0 0.0
    %277 = vmatpush1.xpose.msra.mxu0 0.0
    %278 = vmatprep.subr.mxu0 0.0
    %279 = vmatpush1.xpose.msra.mxu0 0.0
    %280 = vmatprep.subr.mxu0 0.0
    %281 = vmatpush1.xpose.msra.mxu0 0.0
    %282 = vmatprep.subr.mxu0 0.0
    %283 = vmatpush1.xpose.msra.mxu0 0.0
    %284 = vmatprep.mubr.f32.mxu0 0.0
    %v285 = vand.u32 %v61, 4294901760
    %v286 = vsub.f32 %v61, %v285
    %287 = vmatmul.mubr.f32.gmra.mrb[0].mxu0 %v286
    %v288 = vpop.f32.mrb[0].mxu0
    %v289 = vadd.f32 %v215, %v288
    %v290 = vpop.f32.mrb[0].mxu0
    %291 = vdwg.mxu0
    %292 = vmatprep.subr.mxu0 0.0
    %v293 = vand.u32 %v64, 4294901760
    %294 = vmatpush1.xpose.msra.mxu0 %v293
    %295 = vmatprep.subr.mxu0 0.0
    %296 = vmatpush1.xpose.msra.mxu0 0.0
    %297 = vmatprep.subr.mxu0 0.0
    %298 = vmatpush1.xpose.msra.mxu0 0.0
    %299 = vmatprep.subr.mxu0 0.0
    %300 = vmatpush1.xpose.msra.mxu0 0.0
    %301 = vmatprep.subr.mxu0 0.0
    %302 = vmatpush1.xpose.msra.mxu0 0.0
    %303 = vmatprep.subr.mxu0 0.0
    %304 = vmatpush1.xpose.msra.mxu0 0.0
    %305 = vmatprep.subr.mxu0 0.0
    %306 = vmatpush1.xpose.msra.mxu0 0.0
    %307 = vmatprep.subr.mxu0 0.0
    %308 = vmatpush1.xpose.msra.mxu0 0.0
    %309 = vmatprep.subr.mxu0 0.0
    %310 = vmatpush1.xpose.msra.mxu0 0.0
    %311 = vmatprep.subr.mxu0 0.0
    %312 = vmatpush1.xpose.msra.mxu0 0.0
    %313 = vmatprep.subr.mxu0 0.0
    %314 = vmatpush1.xpose.msra.mxu0 0.0
    %315 = vmatprep.subr.mxu0 0.0
    %316 = vmatpush1.xpose.msra.mxu0 0.0
    %317 = vmatprep.subr.mxu0 0.0
    %318 = vmatpush1.xpose.msra.mxu0 0.0
    %319 = vmatprep.subr.mxu0 0.0
    %320 = vmatpush1.xpose.msra.mxu0 0.0
    %321 = vmatprep.subr.mxu0 0.0
    %322 = vmatpush1.xpose.msra.mxu0 0.0
    %323 = vmatprep.subr.mxu0 0.0
    %324 = vmatpush1.xpose.msra.mxu0 0.0
    %325 = vmatprep.subr.mxu0 0.0
    %326 = vmatpush1.xpose.msra.mxu0 0.0
    %327 = vmatprep.subr.mxu0 0.0
    %328 = vmatpush1.xpose.msra.mxu0 0.0
    %329 = vmatprep.subr.mxu0 0.0
    %330 = vmatpush1.xpose.msra.mxu0 0.0
    %331 = vmatprep.subr.mxu0 0.0
    %332 = vmatpush1.xpose.msra.mxu0 0.0
    %333 = vmatprep.subr.mxu0 0.0
    %334 = vmatpush1.xpose.msra.mxu0 0.0
    %335 = vmatprep.subr.mxu0 0.0
    %336 = vmatpush1.xpose.msra.mxu0 0.0
    %337 = vmatprep.subr.mxu0 0.0
    %338 = vmatpush1.xpose.msra.mxu0 0.0
    %339 = vmatprep.subr.mxu0 0.0
    %340 = vmatpush1.xpose.msra.mxu0 0.0
    %341 = vmatprep.subr.mxu0 0.0
    %342 = vmatpush1.xpose.msra.mxu0 0.0
    %343 = vmatprep.subr.mxu0 0.0
    %344 = vmatpush1.xpose.msra.mxu0 0.0
    %345 = vmatprep.subr.mxu0 0.0
    %346 = vmatpush1.xpose.msra.mxu0 0.0
    %347 = vmatprep.subr.mxu0 0.0
    %348 = vmatpush1.xpose.msra.mxu0 0.0
    %349 = vmatprep.subr.mxu0 0.0
    %350 = vmatpush1.xpose.msra.mxu0 0.0
    %351 = vmatprep.subr.mxu0 0.0
    %352 = vmatpush1.xpose.msra.mxu0 0.0
    %353 = vmatprep.subr.mxu0 0.0
    %354 = vmatpush1.xpose.msra.mxu0 0.0
    %355 = vmatprep.subr.mxu0 0.0
    %356 = vmatpush1.xpose.msra.mxu0 0.0
    %357 = vmatprep.mubr.f32.mxu0 0.0
    %v358 = vand.u32 %v61, 4294901760
    %v359 = vsub.f32 %v61, %v358
    %v360 = vand.u32 %v359, 4294901760
    %361 = vmatmul.mubr.f32.gmra.mrb[0].mxu0 %v360
    %v362 = vpop.f32.mrb[0].mxu0
    %v363 = vadd.f32 %v289, %v362
    %v364 = vpop.f32.mrb[0].mxu0
    %365 = vdwg.mxu0
    %366 = vmatprep.subr.mxu0 0.0
    %v367 = vand.u32 %v64, 4294901760
    %v368 = vsub.f32 %v64, %v367
    %v369 = vand.u32 %v368, 4294901760
    %370 = vmatpush1.xpose.msra.mxu0 %v369
    %371 = vmatprep.subr.mxu0 0.0
    %372 = vmatpush1.xpose.msra.mxu0 0.0
    %373 = vmatprep.subr.mxu0 0.0
    %374 = vmatpush1.xpose.msra.mxu0 0.0
    %375 = vmatprep.subr.mxu0 0.0
    %376 = vmatpush1.xpose.msra.mxu0 0.0
    %377 = vmatprep.subr.mxu0 0.0
    %378 = vmatpush1.xpose.msra.mxu0 0.0
    %379 = vmatprep.subr.mxu0 0.0
    %380 = vmatpush1.xpose.msra.mxu0 0.0
    %381 = vmatprep.subr.mxu0 0.0
    %382 = vmatpush1.xpose.msra.mxu0 0.0
    %383 = vmatprep.subr.mxu0 0.0
    %384 = vmatpush1.xpose.msra.mxu0 0.0
    %385 = vmatprep.subr.mxu0 0.0
    %386 = vmatpush1.xpose.msra.mxu0 0.0
    %387 = vmatprep.subr.mxu0 0.0
    %388 = vmatpush1.xpose.msra.mxu0 0.0
    %389 = vmatprep.subr.mxu0 0.0
    %390 = vmatpush1.xpose.msra.mxu0 0.0
    %391 = vmatprep.subr.mxu0 0.0
    %392 = vmatpush1.xpose.msra.mxu0 0.0
    %393 = vmatprep.subr.mxu0 0.0
    %394 = vmatpush1.xpose.msra.mxu0 0.0
    %395 = vmatprep.subr.mxu0 0.0
    %396 = vmatpush1.xpose.msra.mxu0 0.0
    %397 = vmatprep.subr.mxu0 0.0
    %398 = vmatpush1.xpose.msra.mxu0 0.0
    %399 = vmatprep.subr.mxu0 0.0
    %400 = vmatpush1.xpose.msra.mxu0 0.0
    %401 = vmatprep.subr.mxu0 0.0
    %402 = vmatpush1.xpose.msra.mxu0 0.0
    %403 = vmatprep.subr.mxu0 0.0
    %404 = vmatpush1.xpose.msra.mxu0 0.0
    %405 = vmatprep.subr.mxu0 0.0
    %406 = vmatpush1.xpose.msra.mxu0 0.0
    %407 = vmatprep.subr.mxu0 0.0
    %408 = vmatpush1.xpose.msra.mxu0 0.0
    %409 = vmatprep.subr.mxu0 0.0
    %410 = vmatpush1.xpose.msra.mxu0 0.0
    %411 = vmatprep.subr.mxu0 0.0
    %412 = vmatpush1.xpose.msra.mxu0 0.0
    %413 = vmatprep.subr.mxu0 0.0
    %414 = vmatpush1.xpose.msra.mxu0 0.0
    %415 = vmatprep.subr.mxu0 0.0
    %416 = vmatpush1.xpose.msra.mxu0 0.0
    %417 = vmatprep.subr.mxu0 0.0
    %418 = vmatpush1.xpose.msra.mxu0 0.0
    %419 = vmatprep.subr.mxu0 0.0
    %420 = vmatpush1.xpose.msra.mxu0 0.0
    %421 = vmatprep.subr.mxu0 0.0
    %422 = vmatpush1.xpose.msra.mxu0 0.0
    %423 = vmatprep.subr.mxu0 0.0
    %424 = vmatpush1.xpose.msra.mxu0 0.0
    %425 = vmatprep.subr.mxu0 0.0
    %426 = vmatpush1.xpose.msra.mxu0 0.0
    %427 = vmatprep.subr.mxu0 0.0
    %428 = vmatpush1.xpose.msra.mxu0 0.0
    %429 = vmatprep.subr.mxu0 0.0
    %430 = vmatpush1.xpose.msra.mxu0 0.0
    %431 = vmatprep.subr.mxu0 0.0
    %432 = vmatpush1.xpose.msra.mxu0 0.0
    %433 = vmatprep.mubr.f32.mxu0 0.0
    %v434 = vand.u32 %v61, 4294901760
    %435 = vmatmul.mubr.f32.gmra.mrb[0].mxu0 %v434
    %v436 = vpop.f32.mrb[0].mxu0
    %v437 = vadd.f32 %v363, %v436
    %v438 = vpop.f32.mrb[0].mxu0
    %439 = vdwg.mxu0
    %440 = vmatprep.subr.mxu0 0.0
    %v441 = vand.u32 %v64, 4294901760
    %442 = vmatpush1.xpose.msra.mxu0 %v441
    %443 = vmatprep.subr.mxu0 0.0
    %444 = vmatpush1.xpose.msra.mxu0 0.0
    %445 = vmatprep.subr.mxu0 0.0
    %446 = vmatpush1.xpose.msra.mxu0 0.0
    %447 = vmatprep.subr.mxu0 0.0
    %448 = vmatpush1.xpose.msra.mxu0 0.0
    %449 = vmatprep.subr.mxu0 0.0
    %450 = vmatpush1.xpose.msra.mxu0 0.0
    %451 = vmatprep.subr.mxu0 0.0
    %452 = vmatpush1.xpose.msra.mxu0 0.0
    %453 = vmatprep.subr.mxu0 0.0
    %454 = vmatpush1.xpose.msra.mxu0 0.0
    %455 = vmatprep.subr.mxu0 0.0
    %456 = vmatpush1.xpose.msra.mxu0 0.0
    %457 = vmatprep.subr.mxu0 0.0
    %458 = vmatpush1.xpose.msra.mxu0 0.0
    %459 = vmatprep.subr.mxu0 0.0
    %460 = vmatpush1.xpose.msra.mxu0 0.0
    %461 = vmatprep.subr.mxu0 0.0
    %462 = vmatpush1.xpose.msra.mxu0 0.0
    %463 = vmatprep.subr.mxu0 0.0
    %464 = vmatpush1.xpose.msra.mxu0 0.0
    %465 = vmatprep.subr.mxu0 0.0
    %466 = vmatpush1.xpose.msra.mxu0 0.0
    %467 = vmatprep.subr.mxu0 0.0
    %468 = vmatpush1.xpose.msra.mxu0 0.0
    %469 = vmatprep.subr.mxu0 0.0
    %470 = vmatpush1.xpose.msra.mxu0 0.0
    %471 = vmatprep.subr.mxu0 0.0
    %472 = vmatpush1.xpose.msra.mxu0 0.0
    %473 = vmatprep.subr.mxu0 0.0
    %474 = vmatpush1.xpose.msra.mxu0 0.0
    %475 = vmatprep.subr.mxu0 0.0
    %476 = vmatpush1.xpose.msra.mxu0 0.0
    %477 = vmatprep.subr.mxu0 0.0
    %478 = vmatpush1.xpose.msra.mxu0 0.0
    %479 = vmatprep.subr.mxu0 0.0
    %480 = vmatpush1.xpose.msra.mxu0 0.0
    %481 = vmatprep.subr.mxu0 0.0
    %482 = vmatpush1.xpose.msra.mxu0 0.0
    %483 = vmatprep.subr.mxu0 0.0
    %484 = vmatpush1.xpose.msra.mxu0 0.0
    %485 = vmatprep.subr.mxu0 0.0
    %486 = vmatpush1.xpose.msra.mxu0 0.0
    %487 = vmatprep.subr.mxu0 0.0
    %488 = vmatpush1.xpose.msra.mxu0 0.0
    %489 = vmatprep.subr.mxu0 0.0
    %490 = vmatpush1.xpose.msra.mxu0 0.0
    %491 = vmatprep.subr.mxu0 0.0
    %492 = vmatpush1.xpose.msra.mxu0 0.0
    %493 = vmatprep.subr.mxu0 0.0
    %494 = vmatpush1.xpose.msra.mxu0 0.0
    %495 = vmatprep.subr.mxu0 0.0
    %496 = vmatpush1.xpose.msra.mxu0 0.0
    %497 = vmatprep.subr.mxu0 0.0
    %498 = vmatpush1.xpose.msra.mxu0 0.0
    %499 = vmatprep.subr.mxu0 0.0
    %500 = vmatpush1.xpose.msra.mxu0 0.0
    %501 = vmatprep.subr.mxu0 0.0
    %502 = vmatpush1.xpose.msra.mxu0 0.0
    %503 = vmatprep.subr.mxu0 0.0
    %504 = vmatpush1.xpose.msra.mxu0 0.0
    %505 = vmatprep.mubr.f32.mxu0 0.0
    %v506 = vand.u32 %v61, 4294901760
    %507 = vmatmul.mubr.f32.gmra.mrb[0].mxu0 %v506
    %v508 = vpop.f32.mrb[0].mxu0
    %v509 = vadd.f32 %v437, %v508
    %v510 = vpop.f32.mrb[0].mxu0
    %511 = vdwg.mxu0
    %v513 = vsel %vm59, %v44, 0
    %v516 = vsel %vm59, %v52, 0
    %518 = vmatprep.subr.mxu0 0.0
    %v519 = vand.u32 %v516, 4294901760
    %520 = vmatpush1.xpose.msra.mxu0 %v519
    %521 = vmatprep.subr.mxu0 0.0
    %522 = vmatpush1.xpose.msra.mxu0 0.0
    %523 = vmatprep.subr.mxu0 0.0
    %524 = vmatpush1.xpose.msra.mxu0 0.0
    %525 = vmatprep.subr.mxu0 0.0
    %526 = vmatpush1.xpose.msra.mxu0 0.0
    %527 = vmatprep.subr.mxu0 0.0
    %528 = vmatpush1.xpose.msra.mxu0 0.0
    %529 = vmatprep.subr.mxu0 0.0
    %530 = vmatpush1.xpose.msra.mxu0 0.0
    %531 = vmatprep.subr.mxu0 0.0
    %532 = vmatpush1.xpose.msra.mxu0 0.0
    %533 = vmatprep.subr.mxu0 0.0
    %534 = vmatpush1.xpose.msra.mxu0 0.0
    %535 = vmatprep.subr.mxu0 0.0
    %536 = vmatpush1.xpose.msra.mxu0 0.0
    %537 = vmatprep.subr.mxu0 0.0
    %538 = vmatpush1.xpose.msra.mxu0 0.0
    %539 = vmatprep.subr.mxu0 0.0
    %540 = vmatpush1.xpose.msra.mxu0 0.0
    %541 = vmatprep.subr.mxu0 0.0
    %542 = vmatpush1.xpose.msra.mxu0 0.0
    %543 = vmatprep.subr.mxu0 0.0
    %544 = vmatpush1.xpose.msra.mxu0 0.0
    %545 = vmatprep.subr.mxu0 0.0
    %546 = vmatpush1.xpose.msra.mxu0 0.0
    %547 = vmatprep.subr.mxu0 0.0
    %548 = vmatpush1.xpose.msra.mxu0 0.0
    %549 = vmatprep.subr.mxu0 0.0
    %550 = vmatpush1.xpose.msra.mxu0 0.0
    %551 = vmatprep.subr.mxu0 0.0
    %552 = vmatpush1.xpose.msra.mxu0 0.0
    %553 = vmatprep.subr.mxu0 0.0
    %554 = vmatpush1.xpose.msra.mxu0 0.0
    %555 = vmatprep.subr.mxu0 0.0
    %556 = vmatpush1.xpose.msra.mxu0 0.0
    %557 = vmatprep.subr.mxu0 0.0
    %558 = vmatpush1.xpose.msra.mxu0 0.0
    %559 = vmatprep.subr.mxu0 0.0
    %560 = vmatpush1.xpose.msra.mxu0 0.0
    %561 = vmatprep.subr.mxu0 0.0
    %562 = vmatpush1.xpose.msra.mxu0 0.0
    %563 = vmatprep.subr.mxu0 0.0
    %564 = vmatpush1.xpose.msra.mxu0 0.0
    %565 = vmatprep.subr.mxu0 0.0
    %566 = vmatpush1.xpose.msra.mxu0 0.0
    %567 = vmatprep.subr.mxu0 0.0
    %568 = vmatpush1.xpose.msra.mxu0 0.0
    %569 = vmatprep.subr.mxu0 0.0
    %570 = vmatpush1.xpose.msra.mxu0 0.0
    %571 = vmatprep.subr.mxu0 0.0
    %572 = vmatpush1.xpose.msra.mxu0 0.0
    %573 = vmatprep.subr.mxu0 0.0
    %574 = vmatpush1.xpose.msra.mxu0 0.0
    %575 = vmatprep.subr.mxu0 0.0
    %576 = vmatpush1.xpose.msra.mxu0 0.0
    %577 = vmatprep.subr.mxu0 0.0
    %578 = vmatpush1.xpose.msra.mxu0 0.0
    %579 = vmatprep.subr.mxu0 0.0
    %580 = vmatpush1.xpose.msra.mxu0 0.0
    %581 = vmatprep.subr.mxu0 0.0
    %582 = vmatpush1.xpose.msra.mxu0 0.0
    %583 = vmatprep.mubr.f32.mxu0 0.0
    %v584 = vand.u32 %v513, 4294901760
    %v585 = vsub.f32 %v513, %v584
    %v586 = vand.u32 %v585, 4294901760
    %v587 = vsub.f32 %v585, %v586
    %v588 = vand.u32 %v587, 4294901760
    %589 = vmatmul.mubr.f32.gmra.mrb[0].mxu0 %v588
    %v590 = vpop.f32.mrb[0].mxu0
    %v591 = vadd.f32 0.0, %v590
    %v592 = vpop.f32.mrb[0].mxu0
    %593 = vdwg.mxu0
    %594 = vmatprep.subr.mxu0 0.0
    %v595 = vand.u32 %v516, 4294901760
    %v596 = vsub.f32 %v516, %v595
    %v597 = vand.u32 %v596, 4294901760
    %v598 = vsub.f32 %v596, %v597
    %v599 = vand.u32 %v598, 4294901760
    %600 = vmatpush1.xpose.msra.mxu0 %v599
    %601 = vmatprep.subr.mxu0 0.0
    %602 = vmatpush1.xpose.msra.mxu0 0.0
    %603 = vmatprep.subr.mxu0 0.0
    %604 = vmatpush1.xpose.msra.mxu0 0.0
    %605 = vmatprep.subr.mxu0 0.0
    %606 = vmatpush1.xpose.msra.mxu0 0.0
    %607 = vmatprep.subr.mxu0 0.0
    %608 = vmatpush1.xpose.msra.mxu0 0.0
    %609 = vmatprep.subr.mxu0 0.0
    %610 = vmatpush1.xpose.msra.mxu0 0.0
    %611 = vmatprep.subr.mxu0 0.0
    %612 = vmatpush1.xpose.msra.mxu0 0.0
    %613 = vmatprep.subr.mxu0 0.0
    %614 = vmatpush1.xpose.msra.mxu0 0.0
    %615 = vmatprep.subr.mxu0 0.0
    %616 = vmatpush1.xpose.msra.mxu0 0.0
    %617 = vmatprep.subr.mxu0 0.0
    %618 = vmatpush1.xpose.msra.mxu0 0.0
    %619 = vmatprep.subr.mxu0 0.0
    %620 = vmatpush1.xpose.msra.mxu0 0.0
    %621 = vmatprep.subr.mxu0 0.0
    %622 = vmatpush1.xpose.msra.mxu0 0.0
    %623 = vmatprep.subr.mxu0 0.0
    %624 = vmatpush1.xpose.msra.mxu0 0.0
    %625 = vmatprep.subr.mxu0 0.0
    %626 = vmatpush1.xpose.msra.mxu0 0.0
    %627 = vmatprep.subr.mxu0 0.0
    %628 = vmatpush1.xpose.msra.mxu0 0.0
    %629 = vmatprep.subr.mxu0 0.0
    %630 = vmatpush1.xpose.msra.mxu0 0.0
    %631 = vmatprep.subr.mxu0 0.0
    %632 = vmatpush1.xpose.msra.mxu0 0.0
    %633 = vmatprep.subr.mxu0 0.0
    %634 = vmatpush1.xpose.msra.mxu0 0.0
    %635 = vmatprep.subr.mxu0 0.0
    %636 = vmatpush1.xpose.msra.mxu0 0.0
    %637 = vmatprep.subr.mxu0 0.0
    %638 = vmatpush1.xpose.msra.mxu0 0.0
    %639 = vmatprep.subr.mxu0 0.0
    %640 = vmatpush1.xpose.msra.mxu0 0.0
    %641 = vmatprep.subr.mxu0 0.0
    %642 = vmatpush1.xpose.msra.mxu0 0.0
    %643 = vmatprep.subr.mxu0 0.0
    %644 = vmatpush1.xpose.msra.mxu0 0.0
    %645 = vmatprep.subr.mxu0 0.0
    %646 = vmatpush1.xpose.msra.mxu0 0.0
    %647 = vmatprep.subr.mxu0 0.0
    %648 = vmatpush1.xpose.msra.mxu0 0.0
    %649 = vmatprep.subr.mxu0 0.0
    %650 = vmatpush1.xpose.msra.mxu0 0.0
    %651 = vmatprep.subr.mxu0 0.0
    %652 = vmatpush1.xpose.msra.mxu0 0.0
    %653 = vmatprep.subr.mxu0 0.0
    %654 = vmatpush1.xpose.msra.mxu0 0.0
    %655 = vmatprep.subr.mxu0 0.0
    %656 = vmatpush1.xpose.msra.mxu0 0.0
    %657 = vmatprep.subr.mxu0 0.0
    %658 = vmatpush1.xpose.msra.mxu0 0.0
    %659 = vmatprep.subr.mxu0 0.0
    %660 = vmatpush1.xpose.msra.mxu0 0.0
    %661 = vmatprep.subr.mxu0 0.0
    %662 = vmatpush1.xpose.msra.mxu0 0.0
    %663 = vmatprep.mubr.f32.mxu0 0.0
    %v664 = vand.u32 %v513, 4294901760
    %665 = vmatmul.mubr.f32.gmra.mrb[0].mxu0 %v664
    %v666 = vpop.f32.mrb[0].mxu0
    %v667 = vadd.f32 %v591, %v666
    %v668 = vpop.f32.mrb[0].mxu0
    %669 = vdwg.mxu0
    %670 = vmatprep.subr.mxu0 0.0
    %v671 = vand.u32 %v516, 4294901760
    %v672 = vsub.f32 %v516, %v671
    %673 = vmatpush1.xpose.msra.mxu0 %v672
    %674 = vmatprep.subr.mxu0 0.0
    %675 = vmatpush1.xpose.msra.mxu0 0.0
    %676 = vmatprep.subr.mxu0 0.0
    %677 = vmatpush1.xpose.msra.mxu0 0.0
    %678 = vmatprep.subr.mxu0 0.0
    %679 = vmatpush1.xpose.msra.mxu0 0.0
    %680 = vmatprep.subr.mxu0 0.0
    %681 = vmatpush1.xpose.msra.mxu0 0.0
    %682 = vmatprep.subr.mxu0 0.0
    %683 = vmatpush1.xpose.msra.mxu0 0.0
    %684 = vmatprep.subr.mxu0 0.0
    %685 = vmatpush1.xpose.msra.mxu0 0.0
    %686 = vmatprep.subr.mxu0 0.0
    %687 = vmatpush1.xpose.msra.mxu0 0.0
    %688 = vmatprep.subr.mxu0 0.0
    %689 = vmatpush1.xpose.msra.mxu0 0.0
    %690 = vmatprep.subr.mxu0 0.0
    %691 = vmatpush1.xpose.msra.mxu0 0.0
    %692 = vmatprep.subr.mxu0 0.0
    %693 = vmatpush1.xpose.msra.mxu0 0.0
    %694 = vmatprep.subr.mxu0 0.0
    %695 = vmatpush1.xpose.msra.mxu0 0.0
    %696 = vmatprep.subr.mxu0 0.0
    %697 = vmatpush1.xpose.msra.mxu0 0.0
    %698 = vmatprep.subr.mxu0 0.0
    %699 = vmatpush1.xpose.msra.mxu0 0.0
    %700 = vmatprep.subr.mxu0 0.0
    %701 = vmatpush1.xpose.msra.mxu0 0.0
    %702 = vmatprep.subr.mxu0 0.0
    %703 = vmatpush1.xpose.msra.mxu0 0.0
    %704 = vmatprep.subr.mxu0 0.0
    %705 = vmatpush1.xpose.msra.mxu0 0.0
    %706 = vmatprep.subr.mxu0 0.0
    %707 = vmatpush1.xpose.msra.mxu0 0.0
    %708 = vmatprep.subr.mxu0 0.0
    %709 = vmatpush1.xpose.msra.mxu0 0.0
    %710 = vmatprep.subr.mxu0 0.0
    %711 = vmatpush1.xpose.msra.mxu0 0.0
    %712 = vmatprep.subr.mxu0 0.0
    %713 = vmatpush1.xpose.msra.mxu0 0.0
    %714 = vmatprep.subr.mxu0 0.0
    %715 = vmatpush1.xpose.msra.mxu0 0.0
    %716 = vmatprep.subr.mxu0 0.0
    %717 = vmatpush1.xpose.msra.mxu0 0.0
    %718 = vmatprep.subr.mxu0 0.0
    %719 = vmatpush1.xpose.msra.mxu0 0.0
    %720 = vmatprep.subr.mxu0 0.0
    %721 = vmatpush1.xpose.msra.mxu0 0.0
    %722 = vmatprep.subr.mxu0 0.0
    %723 = vmatpush1.xpose.msra.mxu0 0.0
    %724 = vmatprep.subr.mxu0 0.0
    %725 = vmatpush1.xpose.msra.mxu0 0.0
    %726 = vmatprep.subr.mxu0 0.0
    %727 = vmatpush1.xpose.msra.mxu0 0.0
    %728 = vmatprep.subr.mxu0 0.0
    %729 = vmatpush1.xpose.msra.mxu0 0.0
    %730 = vmatprep.subr.mxu0 0.0
    %731 = vmatpush1.xpose.msra.mxu0 0.0
    %732 = vmatprep.subr.mxu0 0.0
    %733 = vmatpush1.xpose.msra.mxu0 0.0
    %734 = vmatprep.subr.mxu0 0.0
    %735 = vmatpush1.xpose.msra.mxu0 0.0
    %736 = vmatprep.mubr.f32.mxu0 0.0
    %v737 = vand.u32 %v513, 4294901760
    %v738 = vsub.f32 %v513, %v737
    %739 = vmatmul.mubr.f32.gmra.mrb[0].mxu0 %v738
    %v740 = vpop.f32.mrb[0].mxu0
    %v741 = vadd.f32 %v667, %v740
    %v742 = vpop.f32.mrb[0].mxu0
    %743 = vdwg.mxu0
    %744 = vmatprep.subr.mxu0 0.0
    %v745 = vand.u32 %v516, 4294901760
    %746 = vmatpush1.xpose.msra.mxu0 %v745
    %747 = vmatprep.subr.mxu0 0.0
    %748 = vmatpush1.xpose.msra.mxu0 0.0
    %749 = vmatprep.subr.mxu0 0.0
    %750 = vmatpush1.xpose.msra.mxu0 0.0
    %751 = vmatprep.subr.mxu0 0.0
    %752 = vmatpush1.xpose.msra.mxu0 0.0
    %753 = vmatprep.subr.mxu0 0.0
    %754 = vmatpush1.xpose.msra.mxu0 0.0
    %755 = vmatprep.subr.mxu0 0.0
    %756 = vmatpush1.xpose.msra.mxu0 0.0
    %757 = vmatprep.subr.mxu0 0.0
    %758 = vmatpush1.xpose.msra.mxu0 0.0
    %759 = vmatprep.subr.mxu0 0.0
    %760 = vmatpush1.xpose.msra.mxu0 0.0
    %761 = vmatprep.subr.mxu0 0.0
    %762 = vmatpush1.xpose.msra.mxu0 0.0
    %763 = vmatprep.subr.mxu0 0.0
    %764 = vmatpush1.xpose.msra.mxu0 0.0
    %765 = vmatprep.subr.mxu0 0.0
    %766 = vmatpush1.xpose.msra.mxu0 0.0
    %767 = vmatprep.subr.mxu0 0.0
    %768 = vmatpush1.xpose.msra.mxu0 0.0
    %769 = vmatprep.subr.mxu0 0.0
    %770 = vmatpush1.xpose.msra.mxu0 0.0
    %771 = vmatprep.subr.mxu0 0.0
    %772 = vmatpush1.xpose.msra.mxu0 0.0
    %773 = vmatprep.subr.mxu0 0.0
    %774 = vmatpush1.xpose.msra.mxu0 0.0
    %775 = vmatprep.subr.mxu0 0.0
    %776 = vmatpush1.xpose.msra.mxu0 0.0
    %777 = vmatprep.subr.mxu0 0.0
    %778 = vmatpush1.xpose.msra.mxu0 0.0
    %779 = vmatprep.subr.mxu0 0.0
    %780 = vmatpush1.xpose.msra.mxu0 0.0
    %781 = vmatprep.subr.mxu0 0.0
    %782 = vmatpush1.xpose.msra.mxu0 0.0
    %783 = vmatprep.subr.mxu0 0.0
    %784 = vmatpush1.xpose.msra.mxu0 0.0
    %785 = vmatprep.subr.mxu0 0.0
    %786 = vmatpush1.xpose.msra.mxu0 0.0
    %787 = vmatprep.subr.mxu0 0.0
    %788 = vmatpush1.xpose.msra.mxu0 0.0
    %789 = vmatprep.subr.mxu0 0.0
    %790 = vmatpush1.xpose.msra.mxu0 0.0
    %791 = vmatprep.subr.mxu0 0.0
    %792 = vmatpush1.xpose.msra.mxu0 0.0
    %793 = vmatprep.subr.mxu0 0.0
    %794 = vmatpush1.xpose.msra.mxu0 0.0
    %795 = vmatprep.subr.mxu0 0.0
    %796 = vmatpush1.xpose.msra.mxu0 0.0
    %797 = vmatprep.subr.mxu0 0.0
    %798 = vmatpush1.xpose.msra.mxu0 0.0
    %799 = vmatprep.subr.mxu0 0.0
    %800 = vmatpush1.xpose.msra.mxu0 0.0
    %801 = vmatprep.subr.mxu0 0.0
    %802 = vmatpush1.xpose.msra.mxu0 0.0
    %803 = vmatprep.subr.mxu0 0.0
    %804 = vmatpush1.xpose.msra.mxu0 0.0
    %805 = vmatprep.subr.mxu0 0.0
    %806 = vmatpush1.xpose.msra.mxu0 0.0
    %807 = vmatprep.subr.mxu0 0.0
    %808 = vmatpush1.xpose.msra.mxu0 0.0
    %809 = vmatprep.mubr.f32.mxu0 0.0
    %v810 = vand.u32 %v513, 4294901760
    %v811 = vsub.f32 %v513, %v810
    %v812 = vand.u32 %v811, 4294901760
    %813 = vmatmul.mubr.f32.gmra.mrb[0].mxu0 %v812
    %v814 = vpop.f32.mrb[0].mxu0
    %v815 = vadd.f32 %v741, %v814
    %v816 = vpop.f32.mrb[0].mxu0
    %817 = vdwg.mxu0
    %818 = vmatprep.subr.mxu0 0.0
    %v819 = vand.u32 %v516, 4294901760
    %v820 = vsub.f32 %v516, %v819
    %v821 = vand.u32 %v820, 4294901760
    %822 = vmatpush1.xpose.msra.mxu0 %v821
    %823 = vmatprep.subr.mxu0 0.0
    %824 = vmatpush1.xpose.msra.mxu0 0.0
    %825 = vmatprep.subr.mxu0 0.0
    %826 = vmatpush1.xpose.msra.mxu0 0.0
    %827 = vmatprep.subr.mxu0 0.0
    %828 = vmatpush1.xpose.msra.mxu0 0.0
    %829 = vmatprep.subr.mxu0 0.0
    %830 = vmatpush1.xpose.msra.mxu0 0.0
    %831 = vmatprep.subr.mxu0 0.0
    %832 = vmatpush1.xpose.msra.mxu0 0.0
    %833 = vmatprep.subr.mxu0 0.0
    %834 = vmatpush1.xpose.msra.mxu0 0.0
    %835 = vmatprep.subr.mxu0 0.0
    %836 = vmatpush1.xpose.msra.mxu0 0.0
    %837 = vmatprep.subr.mxu0 0.0
    %838 = vmatpush1.xpose.msra.mxu0 0.0
    %839 = vmatprep.subr.mxu0 0.0
    %840 = vmatpush1.xpose.msra.mxu0 0.0
    %841 = vmatprep.subr.mxu0 0.0
    %842 = vmatpush1.xpose.msra.mxu0 0.0
    %843 = vmatprep.subr.mxu0 0.0
    %844 = vmatpush1.xpose.msra.mxu0 0.0
    %845 = vmatprep.subr.mxu0 0.0
    %846 = vmatpush1.xpose.msra.mxu0 0.0
    %847 = vmatprep.subr.mxu0 0.0
    %848 = vmatpush1.xpose.msra.mxu0 0.0
    %849 = vmatprep.subr.mxu0 0.0
    %850 = vmatpush1.xpose.msra.mxu0 0.0
    %851 = vmatprep.subr.mxu0 0.0
    %852 = vmatpush1.xpose.msra.mxu0 0.0
    %853 = vmatprep.subr.mxu0 0.0
    %854 = vmatpush1.xpose.msra.mxu0 0.0
    %855 = vmatprep.subr.mxu0 0.0
    %856 = vmatpush1.xpose.msra.mxu0 0.0
    %857 = vmatprep.subr.mxu0 0.0
    %858 = vmatpush1.xpose.msra.mxu0 0.0
    %859 = vmatprep.subr.mxu0 0.0
    %860 = vmatpush1.xpose.msra.mxu0 0.0
    %861 = vmatprep.subr.mxu0 0.0
    %862 = vmatpush1.xpose.msra.mxu0 0.0
    %863 = vmatprep.subr.mxu0 0.0
    %864 = vmatpush1.xpose.msra.mxu0 0.0
    %865 = vmatprep.subr.mxu0 0.0
    %866 = vmatpush1.xpose.msra.mxu0 0.0
    %867 = vmatprep.subr.mxu0 0.0
    %868 = vmatpush1.xpose.msra.mxu0 0.0
    %869 = vmatprep.subr.mxu0 0.0
    %870 = vmatpush1.xpose.msra.mxu0 0.0
    %871 = vmatprep.subr.mxu0 0.0
    %872 = vmatpush1.xpose.msra.mxu0 0.0
    %873 = vmatprep.subr.mxu0 0.0
    %874 = vmatpush1.xpose.msra.mxu0 0.0
    %875 = vmatprep.subr.mxu0 0.0
    %876 = vmatpush1.xpose.msra.mxu0 0.0
    %877 = vmatprep.subr.mxu0 0.0
    %878 = vmatpush1.xpose.msra.mxu0 0.0
    %879 = vmatprep.subr.mxu0 0.0
    %880 = vmatpush1.xpose.msra.mxu0 0.0
    %881 = vmatprep.subr.mxu0 0.0
    %882 = vmatpush1.xpose.msra.mxu0 0.0
    %883 = vmatprep.subr.mxu0 0.0
    %884 = vmatpush1.xpose.msra.mxu0 0.0
    %885 = vmatprep.mubr.f32.mxu0 0.0
    %v886 = vand.u32 %v513, 4294901760
    %887 = vmatmul.mubr.f32.gmra.mrb[0].mxu0 %v886
    %v888 = vpop.f32.mrb[0].mxu0
    %v889 = vadd.f32 %v815, %v888
    %v890 = vpop.f32.mrb[0].mxu0
    %891 = vdwg.mxu0
    %892 = vmatprep.subr.mxu0 0.0
    %v893 = vand.u32 %v516, 4294901760
    %894 = vmatpush1.xpose.msra.mxu0 %v893
    %895 = vmatprep.subr.mxu0 0.0
    %896 = vmatpush1.xpose.msra.mxu0 0.0
    %897 = vmatprep.subr.mxu0 0.0
    %898 = vmatpush1.xpose.msra.mxu0 0.0
    %899 = vmatprep.subr.mxu0 0.0
    %900 = vmatpush1.xpose.msra.mxu0 0.0
    %901 = vmatprep.subr.mxu0 0.0
    %902 = vmatpush1.xpose.msra.mxu0 0.0
    %903 = vmatprep.subr.mxu0 0.0
    %904 = vmatpush1.xpose.msra.mxu0 0.0
    %905 = vmatprep.subr.mxu0 0.0
    %906 = vmatpush1.xpose.msra.mxu0 0.0
    %907 = vmatprep.subr.mxu0 0.0
    %908 = vmatpush1.xpose.msra.mxu0 0.0
    %909 = vmatprep.subr.mxu0 0.0
    %910 = vmatpush1.xpose.msra.mxu0 0.0
    %911 = vmatprep.subr.mxu0 0.0
    %912 = vmatpush1.xpose.msra.mxu0 0.0
    %913 = vmatprep.subr.mxu0 0.0
    %914 = vmatpush1.xpose.msra.mxu0 0.0
    %915 = vmatprep.subr.mxu0 0.0
    %916 = vmatpush1.xpose.msra.mxu0 0.0
    %917 = vmatprep.subr.mxu0 0.0
    %918 = vmatpush1.xpose.msra.mxu0 0.0
    %919 = vmatprep.subr.mxu0 0.0
    %920 = vmatpush1.xpose.msra.mxu0 0.0
    %921 = vmatprep.subr.mxu0 0.0
    %922 = vmatpush1.xpose.msra.mxu0 0.0
    %923 = vmatprep.subr.mxu0 0.0
    %924 = vmatpush1.xpose.msra.mxu0 0.0
    %925 = vmatprep.subr.mxu0 0.0
    %926 = vmatpush1.xpose.msra.mxu0 0.0
    %927 = vmatprep.subr.mxu0 0.0
    %928 = vmatpush1.xpose.msra.mxu0 0.0
    %929 = vmatprep.subr.mxu0 0.0
    %930 = vmatpush1.xpose.msra.mxu0 0.0
    %931 = vmatprep.subr.mxu0 0.0
    %932 = vmatpush1.xpose.msra.mxu0 0.0
    %933 = vmatprep.subr.mxu0 0.0
    %934 = vmatpush1.xpose.msra.mxu0 0.0
    %935 = vmatprep.subr.mxu0 0.0
    %936 = vmatpush1.xpose.msra.mxu0 0.0
    %937 = vmatprep.subr.mxu0 0.0
    %938 = vmatpush1.xpose.msra.mxu0 0.0
    %939 = vmatprep.subr.mxu0 0.0
    %940 = vmatpush1.xpose.msra.mxu0 0.0
    %941 = vmatprep.subr.mxu0 0.0
    %942 = vmatpush1.xpose.msra.mxu0 0.0
    %943 = vmatprep.subr.mxu0 0.0
    %944 = vmatpush1.xpose.msra.mxu0 0.0
    %945 = vmatprep.subr.mxu0 0.0
    %946 = vmatpush1.xpose.msra.mxu0 0.0
    %947 = vmatprep.subr.mxu0 0.0
    %948 = vmatpush1.xpose.msra.mxu0 0.0
    %949 = vmatprep.subr.mxu0 0.0
    %950 = vmatpush1.xpose.msra.mxu0 0.0
    %951 = vmatprep.subr.mxu0 0.0
    %952 = vmatpush1.xpose.msra.mxu0 0.0
    %953 = vmatprep.subr.mxu0 0.0
    %954 = vmatpush1.xpose.msra.mxu0 0.0
    %955 = vmatprep.subr.mxu0 0.0
    %956 = vmatpush1.xpose.msra.mxu0 0.0
    %957 = vmatprep.mubr.f32.mxu0 0.0
    %v958 = vand.u32 %v513, 4294901760
    %959 = vmatmul.mubr.f32.gmra.mrb[0].mxu0 %v958
    %v960 = vpop.f32.mrb[0].mxu0
    %v961 = vadd.f32 %v889, %v960
    %v962 = vpop.f32.mrb[0].mxu0
    %963 = vdwg.mxu0
    %v965 = vsel %vm59, %v45, 0
    %v968 = vsel %vm59, %v53, 0
    %970 = vmatprep.subr.mxu0 0.0
    %v971 = vand.u32 %v968, 4294901760
    %972 = vmatpush1.xpose.msra.mxu0 %v971
    %973 = vmatprep.subr.mxu0 0.0
    %974 = vmatpush1.xpose.msra.mxu0 0.0
    %975 = vmatprep.subr.mxu0 0.0
    %976 = vmatpush1.xpose.msra.mxu0 0.0
    %977 = vmatprep.subr.mxu0 0.0
    %978 = vmatpush1.xpose.msra.mxu0 0.0
    %979 = vmatprep.subr.mxu0 0.0
    %980 = vmatpush1.xpose.msra.mxu0 0.0
    %981 = vmatprep.subr.mxu0 0.0
    %982 = vmatpush1.xpose.msra.mxu0 0.0
    %983 = vmatprep.subr.mxu0 0.0
    %984 = vmatpush1.xpose.msra.mxu0 0.0
    %985 = vmatprep.subr.mxu0 0.0
    %986 = vmatpush1.xpose.msra.mxu0 0.0
    %987 = vmatprep.subr.mxu0 0.0
    %988 = vmatpush1.xpose.msra.mxu0 0.0
    %989 = vmatprep.subr.mxu0 0.0
    %990 = vmatpush1.xpose.msra.mxu0 0.0
    %991 = vmatprep.subr.mxu0 0.0
    %992 = vmatpush1.xpose.msra.mxu0 0.0
    %993 = vmatprep.subr.mxu0 0.0
    %994 = vmatpush1.xpose.msra.mxu0 0.0
    %995 = vmatprep.subr.mxu0 0.0
    %996 = vmatpush1.xpose.msra.mxu0 0.0
    %997 = vmatprep.subr.mxu0 0.0
    %998 = vmatpush1.xpose.msra.mxu0 0.0
    %999 = vmatprep.subr.mxu0 0.0
    %1000 = vmatpush1.xpose.msra.mxu0 0.0
    %1001 = vmatprep.subr.mxu0 0.0
    %1002 = vmatpush1.xpose.msra.mxu0 0.0
    %1003 = vmatprep.subr.mxu0 0.0
    %1004 = vmatpush1.xpose.msra.mxu0 0.0
    %1005 = vmatprep.subr.mxu0 0.0
    %1006 = vmatpush1.xpose.msra.mxu0 0.0
    %1007 = vmatprep.subr.mxu0 0.0
    %1008 = vmatpush1.xpose.msra.mxu0 0.0
    %1009 = vmatprep.subr.mxu0 0.0
    %1010 = vmatpush1.xpose.msra.mxu0 0.0
    %1011 = vmatprep.subr.mxu0 0.0
    %1012 = vmatpush1.xpose.msra.mxu0 0.0
    %1013 = vmatprep.subr.mxu0 0.0
    %1014 = vmatpush1.xpose.msra.mxu0 0.0
    %1015 = vmatprep.subr.mxu0 0.0
    %1016 = vmatpush1.xpose.msra.mxu0 0.0
    %1017 = vmatprep.subr.mxu0 0.0
    %1018 = vmatpush1.xpose.msra.mxu0 0.0
    %1019 = vmatprep.subr.mxu0 0.0
    %1020 = vmatpush1.xpose.msra.mxu0 0.0
    %1021 = vmatprep.subr.mxu0 0.0
    %1022 = vmatpush1.xpose.msra.mxu0 0.0
    %1023 = vmatprep.subr.mxu0 0.0
    %1024 = vmatpush1.xpose.msra.mxu0 0.0
    %1025 = vmatprep.subr.mxu0 0.0
    %1026 = vmatpush1.xpose.msra.mxu0 0.0
    %1027 = vmatprep.subr.mxu0 0.0
    %1028 = vmatpush1.xpose.msra.mxu0 0.0
    %1029 = vmatprep.subr.mxu0 0.0
    %1030 = vmatpush1.xpose.msra.mxu0 0.0
    %1031 = vmatprep.subr.mxu0 0.0
    %1032 = vmatpush1.xpose.msra.mxu0 0.0
    %1033 = vmatprep.subr.mxu0 0.0
    %1034 = vmatpush1.xpose.msra.mxu0 0.0
    %1035 = vmatprep.mubr.f32.mxu0 0.0
    %v1036 = vand.u32 %v965, 4294901760
    %v1037 = vsub.f32 %v965, %v1036
    %v1038 = vand.u32 %v1037, 4294901760
    %v1039 = vsub.f32 %v1037, %v1038
    %v1040 = vand.u32 %v1039, 4294901760
    %1041 = vmatmul.mubr.f32.gmra.mrb[0].mxu0 %v1040
    %v1042 = vpop.f32.mrb[0].mxu0
    %v1043 = vadd.f32 0.0, %v1042
    %v1044 = vpop.f32.mrb[0].mxu0
    %1045 = vdwg.mxu0
    %1046 = vmatprep.subr.mxu0 0.0
    %v1047 = vand.u32 %v968, 4294901760
    %v1048 = vsub.f32 %v968, %v1047
    %v1049 = vand.u32 %v1048, 4294901760
    %v1050 = vsub.f32 %v1048, %v1049
    %v1051 = vand.u32 %v1050, 4294901760
    %1052 = vmatpush1.xpose.msra.mxu0 %v1051
    %1053 = vmatprep.subr.mxu0 0.0
    %1054 = vmatpush1.xpose.msra.mxu0 0.0
    %1055 = vmatprep.subr.mxu0 0.0
    %1056 = vmatpush1.xpose.msra.mxu0 0.0
    %1057 = vmatprep.subr.mxu0 0.0
    %1058 = vmatpush1.xpose.msra.mxu0 0.0
    %1059 = vmatprep.subr.mxu0 0.0
    %1060 = vmatpush1.xpose.msra.mxu0 0.0
    %1061 = vmatprep.subr.mxu0 0.0
    %1062 = vmatpush1.xpose.msra.mxu0 0.0
    %1063 = vmatprep.subr.mxu0 0.0
    %1064 = vmatpush1.xpose.msra.mxu0 0.0
    %1065 = vmatprep.subr.mxu0 0.0
    %1066 = vmatpush1.xpose.msra.mxu0 0.0
    %1067 = vmatprep.subr.mxu0 0.0
    %1068 = vmatpush1.xpose.msra.mxu0 0.0
    %1069 = vmatprep.subr.mxu0 0.0
    %1070 = vmatpush1.xpose.msra.mxu0 0.0
    %1071 = vmatprep.subr.mxu0 0.0
    %1072 = vmatpush1.xpose.msra.mxu0 0.0
    %1073 = vmatprep.subr.mxu0 0.0
    %1074 = vmatpush1.xpose.msra.mxu0 0.0
    %1075 = vmatprep.subr.mxu0 0.0
    %1076 = vmatpush1.xpose.msra.mxu0 0.0
    %1077 = vmatprep.subr.mxu0 0.0
    %1078 = vmatpush1.xpose.msra.mxu0 0.0
    %1079 = vmatprep.subr.mxu0 0.0
    %1080 = vmatpush1.xpose.msra.mxu0 0.0
    %1081 = vmatprep.subr.mxu0 0.0
    %1082 = vmatpush1.xpose.msra.mxu0 0.0
    %1083 = vmatprep.subr.mxu0 0.0
    %1084 = vmatpush1.xpose.msra.mxu0 0.0
    %1085 = vmatprep.subr.mxu0 0.0
    %1086 = vmatpush1.xpose.msra.mxu0 0.0
    %1087 = vmatprep.subr.mxu0 0.0
    %1088 = vmatpush1.xpose.msra.mxu0 0.0
    %1089 = vmatprep.subr.mxu0 0.0
    %1090 = vmatpush1.xpose.msra.mxu0 0.0
    %1091 = vmatprep.subr.mxu0 0.0
    %1092 = vmatpush1.xpose.msra.mxu0 0.0
    %1093 = vmatprep.subr.mxu0 0.0
    %1094 = vmatpush1.xpose.msra.mxu0 0.0
    %1095 = vmatprep.subr.mxu0 0.0
    %1096 = vmatpush1.xpose.msra.mxu0 0.0
    %1097 = vmatprep.subr.mxu0 0.0
    %1098 = vmatpush1.xpose.msra.mxu0 0.0
    %1099 = vmatprep.subr.mxu0 0.0
    %1100 = vmatpush1.xpose.msra.mxu0 0.0
    %1101 = vmatprep.subr.mxu0 0.0
    %1102 = vmatpush1.xpose.msra.mxu0 0.0
    %1103 = vmatprep.subr.mxu0 0.0
    %1104 = vmatpush1.xpose.msra.mxu0 0.0
    %1105 = vmatprep.subr.mxu0 0.0
    %1106 = vmatpush1.xpose.msra.mxu0 0.0
    %1107 = vmatprep.subr.mxu0 0.0
    %1108 = vmatpush1.xpose.msra.mxu0 0.0
    %1109 = vmatprep.subr.mxu0 0.0
    %1110 = vmatpush1.xpose.msra.mxu0 0.0
    %1111 = vmatprep.subr.mxu0 0.0
    %1112 = vmatpush1.xpose.msra.mxu0 0.0
    %1113 = vmatprep.subr.mxu0 0.0
    %1114 = vmatpush1.xpose.msra.mxu0 0.0
    %1115 = vmatprep.mubr.f32.mxu0 0.0
    %v1116 = vand.u32 %v965, 4294901760
    %1117 = vmatmul.mubr.f32.gmra.mrb[0].mxu0 %v1116
    %v1118 = vpop.f32.mrb[0].mxu0
    %v1119 = vadd.f32 %v1043, %v1118
    %v1120 = vpop.f32.mrb[0].mxu0
    %1121 = vdwg.mxu0
    %1122 = vmatprep.subr.mxu0 0.0
    %v1123 = vand.u32 %v968, 4294901760
    %v1124 = vsub.f32 %v968, %v1123
    %1125 = vmatpush1.xpose.msra.mxu0 %v1124
    %1126 = vmatprep.subr.mxu0 0.0
    %1127 = vmatpush1.xpose.msra.mxu0 0.0
    %1128 = vmatprep.subr.mxu0 0.0
    %1129 = vmatpush1.xpose.msra.mxu0 0.0
    %1130 = vmatprep.subr.mxu0 0.0
    %1131 = vmatpush1.xpose.msra.mxu0 0.0
    %1132 = vmatprep.subr.mxu0 0.0
    %1133 = vmatpush1.xpose.msra.mxu0 0.0
    %1134 = vmatprep.subr.mxu0 0.0
    %1135 = vmatpush1.xpose.msra.mxu0 0.0
    %1136 = vmatprep.subr.mxu0 0.0
    %1137 = vmatpush1.xpose.msra.mxu0 0.0
    %1138 = vmatprep.subr.mxu0 0.0
    %1139 = vmatpush1.xpose.msra.mxu0 0.0
    %1140 = vmatprep.subr.mxu0 0.0
    %1141 = vmatpush1.xpose.msra.mxu0 0.0
    %1142 = vmatprep.subr.mxu0 0.0
    %1143 = vmatpush1.xpose.msra.mxu0 0.0
    %1144 = vmatprep.subr.mxu0 0.0
    %1145 = vmatpush1.xpose.msra.mxu0 0.0
    %1146 = vmatprep.subr.mxu0 0.0
    %1147 = vmatpush1.xpose.msra.mxu0 0.0
    %1148 = vmatprep.subr.mxu0 0.0
    %1149 = vmatpush1.xpose.msra.mxu0 0.0
    %1150 = vmatprep.subr.mxu0 0.0
    %1151 = vmatpush1.xpose.msra.mxu0 0.0
    %1152 = vmatprep.subr.mxu0 0.0
    %1153 = vmatpush1.xpose.msra.mxu0 0.0
    %1154 = vmatprep.subr.mxu0 0.0
    %1155 = vmatpush1.xpose.msra.mxu0 0.0
    %1156 = vmatprep.subr.mxu0 0.0
    %1157 = vmatpush1.xpose.msra.mxu0 0.0
    %1158 = vmatprep.subr.mxu0 0.0
    %1159 = vmatpush1.xpose.msra.mxu0 0.0
    %1160 = vmatprep.subr.mxu0 0.0
    %1161 = vmatpush1.xpose.msra.mxu0 0.0
    %1162 = vmatprep.subr.mxu0 0.0
    %1163 = vmatpush1.xpose.msra.mxu0 0.0
    %1164 = vmatprep.subr.mxu0 0.0
    %1165 = vmatpush1.xpose.msra.mxu0 0.0
    %1166 = vmatprep.subr.mxu0 0.0
    %1167 = vmatpush1.xpose.msra.mxu0 0.0
    %1168 = vmatprep.subr.mxu0 0.0
    %1169 = vmatpush1.xpose.msra.mxu0 0.0
    %1170 = vmatprep.subr.mxu0 0.0
    %1171 = vmatpush1.xpose.msra.mxu0 0.0
    %1172 = vmatprep.subr.mxu0 0.0
    %1173 = vmatpush1.xpose.msra.mxu0 0.0
    %1174 = vmatprep.subr.mxu0 0.0
    %1175 = vmatpush1.xpose.msra.mxu0 0.0
    %1176 = vmatprep.subr.mxu0 0.0
    %1177 = vmatpush1.xpose.msra.mxu0 0.0
    %1178 = vmatprep.subr.mxu0 0.0
    %1179 = vmatpush1.xpose.msra.mxu0 0.0
    %1180 = vmatprep.subr.mxu0 0.0
    %1181 = vmatpush1.xpose.msra.mxu0 0.0
    %1182 = vmatprep.subr.mxu0 0.0
    %1183 = vmatpush1.xpose.msra.mxu0 0.0
    %1184 = vmatprep.subr.mxu0 0.0
    %1185 = vmatpush1.xpose.msra.mxu0 0.0
    %1186 = vmatprep.subr.mxu0 0.0
    %1187 = vmatpush1.xpose.msra.mxu0 0.0
    %1188 = vmatprep.mubr.f32.mxu0 0.0
    %v1189 = vand.u32 %v965, 4294901760
    %v1190 = vsub.f32 %v965, %v1189
    %1191 = vmatmul.mubr.f32.gmra.mrb[0].mxu0 %v1190
    %v1192 = vpop.f32.mrb[0].mxu0
    %v1193 = vadd.f32 %v1119, %v1192
    %v1194 = vpop.f32.mrb[0].mxu0
    %1195 = vdwg.mxu0
    %1196 = vmatprep.subr.mxu0 0.0
    %v1197 = vand.u32 %v968, 4294901760
    %1198 = vmatpush1.xpose.msra.mxu0 %v1197
    %1199 = vmatprep.subr.mxu0 0.0
    %1200 = vmatpush1.xpose.msra.mxu0 0.0
    %1201 = vmatprep.subr.mxu0 0.0
    %1202 = vmatpush1.xpose.msra.mxu0 0.0
    %1203 = vmatprep.subr.mxu0 0.0
    %1204 = vmatpush1.xpose.msra.mxu0 0.0
    %1205 = vmatprep.subr.mxu0 0.0
    %1206 = vmatpush1.xpose.msra.mxu0 0.0
    %1207 = vmatprep.subr.mxu0 0.0
    %1208 = vmatpush1.xpose.msra.mxu0 0.0
    %1209 = vmatprep.subr.mxu0 0.0
    %1210 = vmatpush1.xpose.msra.mxu0 0.0
    %1211 = vmatprep.subr.mxu0 0.0
    %1212 = vmatpush1.xpose.msra.mxu0 0.0
    %1213 = vmatprep.subr.mxu0 0.0
    %1214 = vmatpush1.xpose.msra.mxu0 0.0
    %1215 = vmatprep.subr.mxu0 0.0
    %1216 = vmatpush1.xpose.msra.mxu0 0.0
    %1217 = vmatprep.subr.mxu0 0.0
    %1218 = vmatpush1.xpose.msra.mxu0 0.0
    %1219 = vmatprep.subr.mxu0 0.0
    %1220 = vmatpush1.xpose.msra.mxu0 0.0
    %1221 = vmatprep.subr.mxu0 0.0
    %1222 = vmatpush1.xpose.msra.mxu0 0.0
    %1223 = vmatprep.subr.mxu0 0.0
    %1224 = vmatpush1.xpose.msra.mxu0 0.0
    %1225 = vmatprep.subr.mxu0 0.0
    %1226 = vmatpush1.xpose.msra.mxu0 0.0
    %1227 = vmatprep.subr.mxu0 0.0
    %1228 = vmatpush1.xpose.msra.mxu0 0.0
    %1229 = vmatprep.subr.mxu0 0.0
    %1230 = vmatpush1.xpose.msra.mxu0 0.0
    %1231 = vmatprep.subr.mxu0 0.0
    %1232 = vmatpush1.xpose.msra.mxu0 0.0
    %1233 = vmatprep.subr.mxu0 0.0
    %1234 = vmatpush1.xpose.msra.mxu0 0.0
    %1235 = vmatprep.subr.mxu0 0.0
    %1236 = vmatpush1.xpose.msra.mxu0 0.0
    %1237 = vmatprep.subr.mxu0 0.0
    %1238 = vmatpush1.xpose.msra.mxu0 0.0
    %1239 = vmatprep.subr.mxu0 0.0
    %1240 = vmatpush1.xpose.msra.mxu0 0.0
    %1241 = vmatprep.subr.mxu0 0.0
    %1242 = vmatpush1.xpose.msra.mxu0 0.0
    %1243 = vmatprep.subr.mxu0 0.0
    %1244 = vmatpush1.xpose.msra.mxu0 0.0
    %1245 = vmatprep.subr.mxu0 0.0
    %1246 = vmatpush1.xpose.msra.mxu0 0.0
    %1247 = vmatprep.subr.mxu0 0.0
    %1248 = vmatpush1.xpose.msra.mxu0 0.0
    %1249 = vmatprep.subr.mxu0 0.0
    %1250 = vmatpush1.xpose.msra.mxu0 0.0
    %1251 = vmatprep.subr.mxu0 0.0
    %1252 = vmatpush1.xpose.msra.mxu0 0.0
    %1253 = vmatprep.subr.mxu0 0.0
    %1254 = vmatpush1.xpose.msra.mxu0 0.0
    %1255 = vmatprep.subr.mxu0 0.0
    %1256 = vmatpush1.xpose.msra.mxu0 0.0
    %1257 = vmatprep.subr.mxu0 0.0
    %1258 = vmatpush1.xpose.msra.mxu0 0.0
    %1259 = vmatprep.subr.mxu0 0.0
    %1260 = vmatpush1.xpose.msra.mxu0 0.0
    %1261 = vmatprep.mubr.f32.mxu0 0.0
    %v1262 = vand.u32 %v965, 4294901760
    %v1263 = vsub.f32 %v965, %v1262
    %v1264 = vand.u32 %v1263, 4294901760
    %1265 = vmatmul.mubr.f32.gmra.mrb[0].mxu0 %v1264
    %v1266 = vpop.f32.mrb[0].mxu0
    %v1267 = vadd.f32 %v1193, %v1266
    %v1268 = vpop.f32.mrb[0].mxu0
    %1269 = vdwg.mxu0
    %1270 = vmatprep.subr.mxu0 0.0
    %v1271 = vand.u32 %v968, 4294901760
    %v1272 = vsub.f32 %v968, %v1271
    %v1273 = vand.u32 %v1272, 4294901760
    %1274 = vmatpush1.xpose.msra.mxu0 %v1273
    %1275 = vmatprep.subr.mxu0 0.0
    %1276 = vmatpush1.xpose.msra.mxu0 0.0
    %1277 = vmatprep.subr.mxu0 0.0
    %1278 = vmatpush1.xpose.msra.mxu0 0.0
    %1279 = vmatprep.subr.mxu0 0.0
    %1280 = vmatpush1.xpose.msra.mxu0 0.0
    %1281 = vmatprep.subr.mxu0 0.0
    %1282 = vmatpush1.xpose.msra.mxu0 0.0
    %1283 = vmatprep.subr.mxu0 0.0
    %1284 = vmatpush1.xpose.msra.mxu0 0.0
    %1285 = vmatprep.subr.mxu0 0.0
    %1286 = vmatpush1.xpose.msra.mxu0 0.0
    %1287 = vmatprep.subr.mxu0 0.0
    %1288 = vmatpush1.xpose.msra.mxu0 0.0
    %1289 = vmatprep.subr.mxu0 0.0
    %1290 = vmatpush1.xpose.msra.mxu0 0.0
    %1291 = vmatprep.subr.mxu0 0.0
    %1292 = vmatpush1.xpose.msra.mxu0 0.0
    %1293 = vmatprep.subr.mxu0 0.0
    %1294 = vmatpush1.xpose.msra.mxu0 0.0
    %1295 = vmatprep.subr.mxu0 0.0
    %1296 = vmatpush1.xpose.msra.mxu0 0.0
    %1297 = vmatprep.subr.mxu0 0.0
    %1298 = vmatpush1.xpose.msra.mxu0 0.0
    %1299 = vmatprep.subr.mxu0 0.0
    %1300 = vmatpush1.xpose.msra.mxu0 0.0
    %1301 = vmatprep.subr.mxu0 0.0
    %1302 = vmatpush1.xpose.msra.mxu0 0.0
    %1303 = vmatprep.subr.mxu0 0.0
    %1304 = vmatpush1.xpose.msra.mxu0 0.0
    %1305 = vmatprep.subr.mxu0 0.0
    %1306 = vmatpush1.xpose.msra.mxu0 0.0
    %1307 = vmatprep.subr.mxu0 0.0
    %1308 = vmatpush1.xpose.msra.mxu0 0.0
    %1309 = vmatprep.subr.mxu0 0.0
    %1310 = vmatpush1.xpose.msra.mxu0 0.0
    %1311 = vmatprep.subr.mxu0 0.0
    %1312 = vmatpush1.xpose.msra.mxu0 0.0
    %1313 = vmatprep.subr.mxu0 0.0
    %1314 = vmatpush1.xpose.msra.mxu0 0.0
    %1315 = vmatprep.subr.mxu0 0.0
    %1316 = vmatpush1.xpose.msra.mxu0 0.0
    %1317 = vmatprep.subr.mxu0 0.0
    %1318 = vmatpush1.xpose.msra.mxu0 0.0
    %1319 = vmatprep.subr.mxu0 0.0
    %1320 = vmatpush1.xpose.msra.mxu0 0.0
    %1321 = vmatprep.subr.mxu0 0.0
    %1322 = vmatpush1.xpose.msra.mxu0 0.0
    %1323 = vmatprep.subr.mxu0 0.0
    %1324 = vmatpush1.xpose.msra.mxu0 0.0
    %1325 = vmatprep.subr.mxu0 0.0
    %1326 = vmatpush1.xpose.msra.mxu0 0.0
    %1327 = vmatprep.subr.mxu0 0.0
    %1328 = vmatpush1.xpose.msra.mxu0 0.0
    %1329 = vmatprep.subr.mxu0 0.0
    %1330 = vmatpush1.xpose.msra.mxu0 0.0
    %1331 = vmatprep.subr.mxu0 0.0
    %1332 = vmatpush1.xpose.msra.mxu0 0.0
    %1333 = vmatprep.subr.mxu0 0.0
    %1334 = vmatpush1.xpose.msra.mxu0 0.0
    %1335 = vmatprep.subr.mxu0 0.0
    %1336 = vmatpush1.xpose.msra.mxu0 0.0
    %1337 = vmatprep.mubr.f32.mxu0 0.0
    %v1338 = vand.u32 %v965, 4294901760
    %1339 = vmatmul.mubr.f32.gmra.mrb[0].mxu0 %v1338
    %v1340 = vpop.f32.mrb[0].mxu0
    %v1341 = vadd.f32 %v1267, %v1340
    %v1342 = vpop.f32.mrb[0].mxu0
    %1343 = vdwg.mxu0
    %1344 = vmatprep.subr.mxu0 0.0
    %v1345 = vand.u32 %v968, 4294901760
    %1346 = vmatpush1.xpose.msra.mxu0 %v1345
    %1347 = vmatprep.subr.mxu0 0.0
    %1348 = vmatpush1.xpose.msra.mxu0 0.0
    %1349 = vmatprep.subr.mxu0 0.0
    %1350 = vmatpush1.xpose.msra.mxu0 0.0
    %1351 = vmatprep.subr.mxu0 0.0
    %1352 = vmatpush1.xpose.msra.mxu0 0.0
    %1353 = vmatprep.subr.mxu0 0.0
    %1354 = vmatpush1.xpose.msra.mxu0 0.0
    %1355 = vmatprep.subr.mxu0 0.0
    %1356 = vmatpush1.xpose.msra.mxu0 0.0
    %1357 = vmatprep.subr.mxu0 0.0
    %1358 = vmatpush1.xpose.msra.mxu0 0.0
    %1359 = vmatprep.subr.mxu0 0.0
    %1360 = vmatpush1.xpose.msra.mxu0 0.0
    %1361 = vmatprep.subr.mxu0 0.0
    %1362 = vmatpush1.xpose.msra.mxu0 0.0
    %1363 = vmatprep.subr.mxu0 0.0
    %1364 = vmatpush1.xpose.msra.mxu0 0.0
    %1365 = vmatprep.subr.mxu0 0.0
    %1366 = vmatpush1.xpose.msra.mxu0 0.0
    %1367 = vmatprep.subr.mxu0 0.0
    %1368 = vmatpush1.xpose.msra.mxu0 0.0
    %1369 = vmatprep.subr.mxu0 0.0
    %1370 = vmatpush1.xpose.msra.mxu0 0.0
    %1371 = vmatprep.subr.mxu0 0.0
    %1372 = vmatpush1.xpose.msra.mxu0 0.0
    %1373 = vmatprep.subr.mxu0 0.0
    %1374 = vmatpush1.xpose.msra.mxu0 0.0
    %1375 = vmatprep.subr.mxu0 0.0
    %1376 = vmatpush1.xpose.msra.mxu0 0.0
    %1377 = vmatprep.subr.mxu0 0.0
    %1378 = vmatpush1.xpose.msra.mxu0 0.0
    %1379 = vmatprep.subr.mxu0 0.0
    %1380 = vmatpush1.xpose.msra.mxu0 0.0
    %1381 = vmatprep.subr.mxu0 0.0
    %1382 = vmatpush1.xpose.msra.mxu0 0.0
    %1383 = vmatprep.subr.mxu0 0.0
    %1384 = vmatpush1.xpose.msra.mxu0 0.0
    %1385 = vmatprep.subr.mxu0 0.0
    %1386 = vmatpush1.xpose.msra.mxu0 0.0
    %1387 = vmatprep.subr.mxu0 0.0
    %1388 = vmatpush1.xpose.msra.mxu0 0.0
    %1389 = vmatprep.subr.mxu0 0.0
    %1390 = vmatpush1.xpose.msra.mxu0 0.0
    %1391 = vmatprep.subr.mxu0 0.0
    %1392 = vmatpush1.xpose.msra.mxu0 0.0
    %1393 = vmatprep.subr.mxu0 0.0
    %1394 = vmatpush1.xpose.msra.mxu0 0.0
    %1395 = vmatprep.subr.mxu0 0.0
    %1396 = vmatpush1.xpose.msra.mxu0 0.0
    %1397 = vmatprep.subr.mxu0 0.0
    %1398 = vmatpush1.xpose.msra.mxu0 0.0
    %1399 = vmatprep.subr.mxu0 0.0
    %1400 = vmatpush1.xpose.msra.mxu0 0.0
    %1401 = vmatprep.subr.mxu0 0.0
    %1402 = vmatpush1.xpose.msra.mxu0 0.0
    %1403 = vmatprep.subr.mxu0 0.0
    %1404 = vmatpush1.xpose.msra.mxu0 0.0
    %1405 = vmatprep.subr.mxu0 0.0
    %1406 = vmatpush1.xpose.msra.mxu0 0.0
    %1407 = vmatprep.subr.mxu0 0.0
    %1408 = vmatpush1.xpose.msra.mxu0 0.0
    %1409 = vmatprep.mubr.f32.mxu0 0.0
    %v1410 = vand.u32 %v965, 4294901760
    %1411 = vmatmul.mubr.f32.gmra.mrb[0].mxu0 %v1410
    %v1412 = vpop.f32.mrb[0].mxu0
    %v1413 = vadd.f32 %v1341, %v1412
    %v1414 = vpop.f32.mrb[0].mxu0
    %1415 = vdwg.mxu0
    %v1417 = vsel %vm59, %v46, 0
    %v1420 = vsel %vm59, %v54, 0
    %1422 = vmatprep.subr.mxu0 0.0
    %v1423 = vand.u32 %v1420, 4294901760
    %1424 = vmatpush1.xpose.msra.mxu0 %v1423
    %1425 = vmatprep.subr.mxu0 0.0
    %1426 = vmatpush1.xpose.msra.mxu0 0.0
    %1427 = vmatprep.subr.mxu0 0.0
    %1428 = vmatpush1.xpose.msra.mxu0 0.0
    %1429 = vmatprep.subr.mxu0 0.0
    %1430 = vmatpush1.xpose.msra.mxu0 0.0
    %1431 = vmatprep.subr.mxu0 0.0
    %1432 = vmatpush1.xpose.msra.mxu0 0.0
    %1433 = vmatprep.subr.mxu0 0.0
    %1434 = vmatpush1.xpose.msra.mxu0 0.0
    %1435 = vmatprep.subr.mxu0 0.0
    %1436 = vmatpush1.xpose.msra.mxu0 0.0
    %1437 = vmatprep.subr.mxu0 0.0
    %1438 = vmatpush1.xpose.msra.mxu0 0.0
    %1439 = vmatprep.subr.mxu0 0.0
    %1440 = vmatpush1.xpose.msra.mxu0 0.0
    %1441 = vmatprep.subr.mxu0 0.0
    %1442 = vmatpush1.xpose.msra.mxu0 0.0
    %1443 = vmatprep.subr.mxu0 0.0
    %1444 = vmatpush1.xpose.msra.mxu0 0.0
    %1445 = vmatprep.subr.mxu0 0.0
    %1446 = vmatpush1.xpose.msra.mxu0 0.0
    %1447 = vmatprep.subr.mxu0 0.0
    %1448 = vmatpush1.xpose.msra.mxu0 0.0
    %1449 = vmatprep.subr.mxu0 0.0
    %1450 = vmatpush1.xpose.msra.mxu0 0.0
    %1451 = vmatprep.subr.mxu0 0.0
    %1452 = vmatpush1.xpose.msra.mxu0 0.0
    %1453 = vmatprep.subr.mxu0 0.0
    %1454 = vmatpush1.xpose.msra.mxu0 0.0
    %1455 = vmatprep.subr.mxu0 0.0
    %1456 = vmatpush1.xpose.msra.mxu0 0.0
    %1457 = vmatprep.subr.mxu0 0.0
    %1458 = vmatpush1.xpose.msra.mxu0 0.0
    %1459 = vmatprep.subr.mxu0 0.0
    %1460 = vmatpush1.xpose.msra.mxu0 0.0
    %1461 = vmatprep.subr.mxu0 0.0
    %1462 = vmatpush1.xpose.msra.mxu0 0.0
    %1463 = vmatprep.subr.mxu0 0.0
    %1464 = vmatpush1.xpose.msra.mxu0 0.0
    %1465 = vmatprep.subr.mxu0 0.0
    %1466 = vmatpush1.xpose.msra.mxu0 0.0
    %1467 = vmatprep.subr.mxu0 0.0
    %1468 = vmatpush1.xpose.msra.mxu0 0.0
    %1469 = vmatprep.subr.mxu0 0.0
    %1470 = vmatpush1.xpose.msra.mxu0 0.0
    %1471 = vmatprep.subr.mxu0 0.0
    %1472 = vmatpush1.xpose.msra.mxu0 0.0
    %1473 = vmatprep.subr.mxu0 0.0
    %1474 = vmatpush1.xpose.msra.mxu0 0.0
    %1475 = vmatprep.subr.mxu0 0.0
    %1476 = vmatpush1.xpose.msra.mxu0 0.0
    %1477 = vmatprep.subr.mxu0 0.0
    %1478 = vmatpush1.xpose.msra.mxu0 0.0
    %1479 = vmatprep.subr.mxu0 0.0
    %1480 = vmatpush1.xpose.msra.mxu0 0.0
    %1481 = vmatprep.subr.mxu0 0.0
    %1482 = vmatpush1.xpose.msra.mxu0 0.0
    %1483 = vmatprep.subr.mxu0 0.0
    %1484 = vmatpush1.xpose.msra.mxu0 0.0
    %1485 = vmatprep.subr.mxu0 0.0
    %1486 = vmatpush1.xpose.msra.mxu0 0.0
    %1487 = vmatprep.mubr.f32.mxu0 0.0
    %v1488 = vand.u32 %v1417, 4294901760
    %v1489 = vsub.f32 %v1417, %v1488
    %v1490 = vand.u32 %v1489, 4294901760
    %v1491 = vsub.f32 %v1489, %v1490
    %v1492 = vand.u32 %v1491, 4294901760
    %1493 = vmatmul.mubr.f32.gmra.mrb[0].mxu0 %v1492
    %v1494 = vpop.f32.mrb[0].mxu0
    %v1495 = vadd.f32 0.0, %v1494
    %v1496 = vpop.f32.mrb[0].mxu0
    %1497 = vdwg.mxu0
    %1498 = vmatprep.subr.mxu0 0.0
    %v1499 = vand.u32 %v1420, 4294901760
    %v1500 = vsub.f32 %v1420, %v1499
    %v1501 = vand.u32 %v1500, 4294901760
    %v1502 = vsub.f32 %v1500, %v1501
    %v1503 = vand.u32 %v1502, 4294901760
    %1504 = vmatpush1.xpose.msra.mxu0 %v1503
    %1505 = vmatprep.subr.mxu0 0.0
    %1506 = vmatpush1.xpose.msra.mxu0 0.0
    %1507 = vmatprep.subr.mxu0 0.0
    %1508 = vmatpush1.xpose.msra.mxu0 0.0
    %1509 = vmatprep.subr.mxu0 0.0
    %1510 = vmatpush1.xpose.msra.mxu0 0.0
    %1511 = vmatprep.subr.mxu0 0.0
    %1512 = vmatpush1.xpose.msra.mxu0 0.0
    %1513 = vmatprep.subr.mxu0 0.0
    %1514 = vmatpush1.xpose.msra.mxu0 0.0
    %1515 = vmatprep.subr.mxu0 0.0
    %1516 = vmatpush1.xpose.msra.mxu0 0.0
    %1517 = vmatprep.subr.mxu0 0.0
    %1518 = vmatpush1.xpose.msra.mxu0 0.0
    %1519 = vmatprep.subr.mxu0 0.0
    %1520 = vmatpush1.xpose.msra.mxu0 0.0
    %1521 = vmatprep.subr.mxu0 0.0
    %1522 = vmatpush1.xpose.msra.mxu0 0.0
    %1523 = vmatprep.subr.mxu0 0.0
    %1524 = vmatpush1.xpose.msra.mxu0 0.0
    %1525 = vmatprep.subr.mxu0 0.0
    %1526 = vmatpush1.xpose.msra.mxu0 0.0
    %1527 = vmatprep.subr.mxu0 0.0
    %1528 = vmatpush1.xpose.msra.mxu0 0.0
    %1529 = vmatprep.subr.mxu0 0.0
    %1530 = vmatpush1.xpose.msra.mxu0 0.0
    %1531 = vmatprep.subr.mxu0 0.0
    %1532 = vmatpush1.xpose.msra.mxu0 0.0
    %1533 = vmatprep.subr.mxu0 0.0
    %1534 = vmatpush1.xpose.msra.mxu0 0.0
    %1535 = vmatprep.subr.mxu0 0.0
    %1536 = vmatpush1.xpose.msra.mxu0 0.0
    %1537 = vmatprep.subr.mxu0 0.0
    %1538 = vmatpush1.xpose.msra.mxu0 0.0
    %1539 = vmatprep.subr.mxu0 0.0
    %1540 = vmatpush1.xpose.msra.mxu0 0.0
    %1541 = vmatprep.subr.mxu0 0.0
    %1542 = vmatpush1.xpose.msra.mxu0 0.0
    %1543 = vmatprep.subr.mxu0 0.0
    %1544 = vmatpush1.xpose.msra.mxu0 0.0
    %1545 = vmatprep.subr.mxu0 0.0
    %1546 = vmatpush1.xpose.msra.mxu0 0.0
    %1547 = vmatprep.subr.mxu0 0.0
    %1548 = vmatpush1.xpose.msra.mxu0 0.0
    %1549 = vmatprep.subr.mxu0 0.0
    %1550 = vmatpush1.xpose.msra.mxu0 0.0
    %1551 = vmatprep.subr.mxu0 0.0
    %1552 = vmatpush1.xpose.msra.mxu0 0.0
    %1553 = vmatprep.subr.mxu0 0.0
    %1554 = vmatpush1.xpose.msra.mxu0 0.0
    %1555 = vmatprep.subr.mxu0 0.0
    %1556 = vmatpush1.xpose.msra.mxu0 0.0
    %1557 = vmatprep.subr.mxu0 0.0
    %1558 = vmatpush1.xpose.msra.mxu0 0.0
    %1559 = vmatprep.subr.mxu0 0.0
    %1560 = vmatpush1.xpose.msra.mxu0 0.0
    %1561 = vmatprep.subr.mxu0 0.0
    %1562 = vmatpush1.xpose.msra.mxu0 0.0
    %1563 = vmatprep.subr.mxu0 0.0
    %1564 = vmatpush1.xpose.msra.mxu0 0.0
    %1565 = vmatprep.subr.mxu0 0.0
    %1566 = vmatpush1.xpose.msra.mxu0 0.0
    %1567 = vmatprep.mubr.f32.mxu0 0.0
    %v1568 = vand.u32 %v1417, 4294901760
    %1569 = vmatmul.mubr.f32.gmra.mrb[0].mxu0 %v1568
    %v1570 = vpop.f32.mrb[0].mxu0
    %v1571 = vadd.f32 %v1495, %v1570
    %v1572 = vpop.f32.mrb[0].mxu0
    %1573 = vdwg.mxu0
    %1574 = vmatprep.subr.mxu0 0.0
    %v1575 = vand.u32 %v1420, 4294901760
    %v1576 = vsub.f32 %v1420, %v1575
    %1577 = vmatpush1.xpose.msra.mxu0 %v1576
    %1578 = vmatprep.subr.mxu0 0.0
    %1579 = vmatpush1.xpose.msra.mxu0 0.0
    %1580 = vmatprep.subr.mxu0 0.0
    %1581 = vmatpush1.xpose.msra.mxu0 0.0
    %1582 = vmatprep.subr.mxu0 0.0
    %1583 = vmatpush1.xpose.msra.mxu0 0.0
    %1584 = vmatprep.subr.mxu0 0.0
    %1585 = vmatpush1.xpose.msra.mxu0 0.0
    %1586 = vmatprep.subr.mxu0 0.0
    %1587 = vmatpush1.xpose.msra.mxu0 0.0
    %1588 = vmatprep.subr.mxu0 0.0
    %1589 = vmatpush1.xpose.msra.mxu0 0.0
    %1590 = vmatprep.subr.mxu0 0.0
    %1591 = vmatpush1.xpose.msra.mxu0 0.0
    %1592 = vmatprep.subr.mxu0 0.0
    %1593 = vmatpush1.xpose.msra.mxu0 0.0
    %1594 = vmatprep.subr.mxu0 0.0
    %1595 = vmatpush1.xpose.msra.mxu0 0.0
    %1596 = vmatprep.subr.mxu0 0.0
    %1597 = vmatpush1.xpose.msra.mxu0 0.0
    %1598 = vmatprep.subr.mxu0 0.0
    %1599 = vmatpush1.xpose.msra.mxu0 0.0
    %1600 = vmatprep.subr.mxu0 0.0
    %1601 = vmatpush1.xpose.msra.mxu0 0.0
    %1602 = vmatprep.subr.mxu0 0.0
    %1603 = vmatpush1.xpose.msra.mxu0 0.0
    %1604 = vmatprep.subr.mxu0 0.0
    %1605 = vmatpush1.xpose.msra.mxu0 0.0
    %1606 = vmatprep.subr.mxu0 0.0
    %1607 = vmatpush1.xpose.msra.mxu0 0.0
    %1608 = vmatprep.subr.mxu0 0.0
    %1609 = vmatpush1.xpose.msra.mxu0 0.0
    %1610 = vmatprep.subr.mxu0 0.0
    %1611 = vmatpush1.xpose.msra.mxu0 0.0
    %1612 = vmatprep.subr.mxu0 0.0
    %1613 = vmatpush1.xpose.msra.mxu0 0.0
    %1614 = vmatprep.subr.mxu0 0.0
    %1615 = vmatpush1.xpose.msra.mxu0 0.0
    %1616 = vmatprep.subr.mxu0 0.0
    %1617 = vmatpush1.xpose.msra.mxu0 0.0
    %1618 = vmatprep.subr.mxu0 0.0
    %1619 = vmatpush1.xpose.msra.mxu0 0.0
    %1620 = vmatprep.subr.mxu0 0.0
    %1621 = vmatpush1.xpose.msra.mxu0 0.0
    %1622 = vmatprep.subr.mxu0 0.0
    %1623 = vmatpush1.xpose.msra.mxu0 0.0
    %1624 = vmatprep.subr.mxu0 0.0
    %1625 = vmatpush1.xpose.msra.mxu0 0.0
    %1626 = vmatprep.subr.mxu0 0.0
    %1627 = vmatpush1.xpose.msra.mxu0 0.0
    %1628 = vmatprep.subr.mxu0 0.0
    %1629 = vmatpush1.xpose.msra.mxu0 0.0
    %1630 = vmatprep.subr.mxu0 0.0
    %1631 = vmatpush1.xpose.msra.mxu0 0.0
    %1632 = vmatprep.subr.mxu0 0.0
    %1633 = vmatpush1.xpose.msra.mxu0 0.0
    %1634 = vmatprep.subr.mxu0 0.0
    %1635 = vmatpush1.xpose.msra.mxu0 0.0
    %1636 = vmatprep.subr.mxu0 0.0
    %1637 = vmatpush1.xpose.msra.mxu0 0.0
    %1638 = vmatprep.subr.mxu0 0.0
    %1639 = vmatpush1.xpose.msra.mxu0 0.0
    %1640 = vmatprep.mubr.f32.mxu0 0.0
    %v1641 = vand.u32 %v1417, 4294901760
    %v1642 = vsub.f32 %v1417, %v1641
    %1643 = vmatmul.mubr.f32.gmra.mrb[0].mxu0 %v1642
    %v1644 = vpop.f32.mrb[0].mxu0
    %v1645 = vadd.f32 %v1571, %v1644
    %v1646 = vpop.f32.mrb[0].mxu0
    %1647 = vdwg.mxu0
    %1648 = vmatprep.subr.mxu0 0.0
    %v1649 = vand.u32 %v1420, 4294901760
    %1650 = vmatpush1.xpose.msra.mxu0 %v1649
    %1651 = vmatprep.subr.mxu0 0.0
    %1652 = vmatpush1.xpose.msra.mxu0 0.0
    %1653 = vmatprep.subr.mxu0 0.0
    %1654 = vmatpush1.xpose.msra.mxu0 0.0
    %1655 = vmatprep.subr.mxu0 0.0
    %1656 = vmatpush1.xpose.msra.mxu0 0.0
    %1657 = vmatprep.subr.mxu0 0.0
    %1658 = vmatpush1.xpose.msra.mxu0 0.0
    %1659 = vmatprep.subr.mxu0 0.0
    %1660 = vmatpush1.xpose.msra.mxu0 0.0
    %1661 = vmatprep.subr.mxu0 0.0
    %1662 = vmatpush1.xpose.msra.mxu0 0.0
    %1663 = vmatprep.subr.mxu0 0.0
    %1664 = vmatpush1.xpose.msra.mxu0 0.0
    %1665 = vmatprep.subr.mxu0 0.0
    %1666 = vmatpush1.xpose.msra.mxu0 0.0
    %1667 = vmatprep.subr.mxu0 0.0
    %1668 = vmatpush1.xpose.msra.mxu0 0.0
    %1669 = vmatprep.subr.mxu0 0.0
    %1670 = vmatpush1.xpose.msra.mxu0 0.0
    %1671 = vmatprep.subr.mxu0 0.0
    %1672 = vmatpush1.xpose.msra.mxu0 0.0
    %1673 = vmatprep.subr.mxu0 0.0
    %1674 = vmatpush1.xpose.msra.mxu0 0.0
    %1675 = vmatprep.subr.mxu0 0.0
    %1676 = vmatpush1.xpose.msra.mxu0 0.0
    %1677 = vmatprep.subr.mxu0 0.0
    %1678 = vmatpush1.xpose.msra.mxu0 0.0
    %1679 = vmatprep.subr.mxu0 0.0
    %1680 = vmatpush1.xpose.msra.mxu0 0.0
    %1681 = vmatprep.subr.mxu0 0.0
    %1682 = vmatpush1.xpose.msra.mxu0 0.0
    %1683 = vmatprep.subr.mxu0 0.0
    %1684 = vmatpush1.xpose.msra.mxu0 0.0
    %1685 = vmatprep.subr.mxu0 0.0
    %1686 = vmatpush1.xpose.msra.mxu0 0.0
    %1687 = vmatprep.subr.mxu0 0.0
    %1688 = vmatpush1.xpose.msra.mxu0 0.0
    %1689 = vmatprep.subr.mxu0 0.0
    %1690 = vmatpush1.xpose.msra.mxu0 0.0
    %1691 = vmatprep.subr.mxu0 0.0
    %1692 = vmatpush1.xpose.msra.mxu0 0.0
    %1693 = vmatprep.subr.mxu0 0.0
    %1694 = vmatpush1.xpose.msra.mxu0 0.0
    %1695 = vmatprep.subr.mxu0 0.0
    %1696 = vmatpush1.xpose.msra.mxu0 0.0
    %1697 = vmatprep.subr.mxu0 0.0
    %1698 = vmatpush1.xpose.msra.mxu0 0.0
    %1699 = vmatprep.subr.mxu0 0.0
    %1700 = vmatpush1.xpose.msra.mxu0 0.0
    %1701 = vmatprep.subr.mxu0 0.0
    %1702 = vmatpush1.xpose.msra.mxu0 0.0
    %1703 = vmatprep.subr.mxu0 0.0
    %1704 = vmatpush1.xpose.msra.mxu0 0.0
    %1705 = vmatprep.subr.mxu0 0.0
    %1706 = vmatpush1.xpose.msra.mxu0 0.0
    %1707 = vmatprep.subr.mxu0 0.0
    %1708 = vmatpush1.xpose.msra.mxu0 0.0
    %1709 = vmatprep.subr.mxu0 0.0
    %1710 = vmatpush1.xpose.msra.mxu0 0.0
    %1711 = vmatprep.subr.mxu0 0.0
    %1712 = vmatpush1.xpose.msra.mxu0 0.0
    %1713 = vmatprep.mubr.f32.mxu0 0.0
    %v1714 = vand.u32 %v1417, 4294901760
    %v1715 = vsub.f32 %v1417, %v1714
    %v1716 = vand.u32 %v1715, 4294901760
    %1717 = vmatmul.mubr.f32.gmra.mrb[0].mxu0 %v1716
    %v1718 = vpop.f32.mrb[0].mxu0
    %v1719 = vadd.f32 %v1645, %v1718
    %v1720 = vpop.f32.mrb[0].mxu0
    %1721 = vdwg.mxu0
    %1722 = vmatprep.subr.mxu0 0.0
    %v1723 = vand.u32 %v1420, 4294901760
    %v1724 = vsub.f32 %v1420, %v1723
    %v1725 = vand.u32 %v1724, 4294901760
    %1726 = vmatpush1.xpose.msra.mxu0 %v1725
    %1727 = vmatprep.subr.mxu0 0.0
    %1728 = vmatpush1.xpose.msra.mxu0 0.0
    %1729 = vmatprep.subr.mxu0 0.0
    %1730 = vmatpush1.xpose.msra.mxu0 0.0
    %1731 = vmatprep.subr.mxu0 0.0
    %1732 = vmatpush1.xpose.msra.mxu0 0.0
    %1733 = vmatprep.subr.mxu0 0.0
    %1734 = vmatpush1.xpose.msra.mxu0 0.0
    %1735 = vmatprep.subr.mxu0 0.0
    %1736 = vmatpush1.xpose.msra.mxu0 0.0
    %1737 = vmatprep.subr.mxu0 0.0
    %1738 = vmatpush1.xpose.msra.mxu0 0.0
    %1739 = vmatprep.subr.mxu0 0.0
    %1740 = vmatpush1.xpose.msra.mxu0 0.0
    %1741 = vmatprep.subr.mxu0 0.0
    %1742 = vmatpush1.xpose.msra.mxu0 0.0
    %1743 = vmatprep.subr.mxu0 0.0
    %1744 = vmatpush1.xpose.msra.mxu0 0.0
    %1745 = vmatprep.subr.mxu0 0.0
    %1746 = vmatpush1.xpose.msra.mxu0 0.0
    %1747 = vmatprep.subr.mxu0 0.0
    %1748 = vmatpush1.xpose.msra.mxu0 0.0
    %1749 = vmatprep.subr.mxu0 0.0
    %1750 = vmatpush1.xpose.msra.mxu0 0.0
    %1751 = vmatprep.subr.mxu0 0.0
    %1752 = vmatpush1.xpose.msra.mxu0 0.0
    %1753 = vmatprep.subr.mxu0 0.0
    %1754 = vmatpush1.xpose.msra.mxu0 0.0
    %1755 = vmatprep.subr.mxu0 0.0
    %1756 = vmatpush1.xpose.msra.mxu0 0.0
    %1757 = vmatprep.subr.mxu0 0.0
    %1758 = vmatpush1.xpose.msra.mxu0 0.0
    %1759 = vmatprep.subr.mxu0 0.0
    %1760 = vmatpush1.xpose.msra.mxu0 0.0
    %1761 = vmatprep.subr.mxu0 0.0
    %1762 = vmatpush1.xpose.msra.mxu0 0.0
    %1763 = vmatprep.subr.mxu0 0.0
    %1764 = vmatpush1.xpose.msra.mxu0 0.0
    %1765 = vmatprep.subr.mxu0 0.0
    %1766 = vmatpush1.xpose.msra.mxu0 0.0
    %1767 = vmatprep.subr.mxu0 0.0
    %1768 = vmatpush1.xpose.msra.mxu0 0.0
    %1769 = vmatprep.subr.mxu0 0.0
    %1770 = vmatpush1.xpose.msra.mxu0 0.0
    %1771 = vmatprep.subr.mxu0 0.0
    %1772 = vmatpush1.xpose.msra.mxu0 0.0
    %1773 = vmatprep.subr.mxu0 0.0
    %1774 = vmatpush1.xpose.msra.mxu0 0.0
    %1775 = vmatprep.subr.mxu0 0.0
    %1776 = vmatpush1.xpose.msra.mxu0 0.0
    %1777 = vmatprep.subr.mxu0 0.0
    %1778 = vmatpush1.xpose.msra.mxu0 0.0
    %1779 = vmatprep.subr.mxu0 0.0
    %1780 = vmatpush1.xpose.msra.mxu0 0.0
    %1781 = vmatprep.subr.mxu0 0.0
    %1782 = vmatpush1.xpose.msra.mxu0 0.0
    %1783 = vmatprep.subr.mxu0 0.0
    %1784 = vmatpush1.xpose.msra.mxu0 0.0
    %1785 = vmatprep.subr.mxu0 0.0
    %1786 = vmatpush1.xpose.msra.mxu0 0.0
    %1787 = vmatprep.subr.mxu0 0.0
    %1788 = vmatpush1.xpose.msra.mxu0 0.0
    %1789 = vmatprep.mubr.f32.mxu0 0.0
    %v1790 = vand.u32 %v1417, 4294901760
    %1791 = vmatmul.mubr.f32.gmra.mrb[0].mxu0 %v1790
    %v1792 = vpop.f32.mrb[0].mxu0
    %v1793 = vadd.f32 %v1719, %v1792
    %v1794 = vpop.f32.mrb[0].mxu0
    %1795 = vdwg.mxu0
    %1796 = vmatprep.subr.mxu0 0.0
    %v1797 = vand.u32 %v1420, 4294901760
    %1798 = vmatpush1.xpose.msra.mxu0 %v1797
    %1799 = vmatprep.subr.mxu0 0.0
    %1800 = vmatpush1.xpose.msra.mxu0 0.0
    %1801 = vmatprep.subr.mxu0 0.0
    %1802 = vmatpush1.xpose.msra.mxu0 0.0
    %1803 = vmatprep.subr.mxu0 0.0
    %1804 = vmatpush1.xpose.msra.mxu0 0.0
    %1805 = vmatprep.subr.mxu0 0.0
    %1806 = vmatpush1.xpose.msra.mxu0 0.0
    %1807 = vmatprep.subr.mxu0 0.0
    %1808 = vmatpush1.xpose.msra.mxu0 0.0
    %1809 = vmatprep.subr.mxu0 0.0
    %1810 = vmatpush1.xpose.msra.mxu0 0.0
    %1811 = vmatprep.subr.mxu0 0.0
    %1812 = vmatpush1.xpose.msra.mxu0 0.0
    %1813 = vmatprep.subr.mxu0 0.0
    %1814 = vmatpush1.xpose.msra.mxu0 0.0
    %1815 = vmatprep.subr.mxu0 0.0
    %1816 = vmatpush1.xpose.msra.mxu0 0.0
    %1817 = vmatprep.subr.mxu0 0.0
    %1818 = vmatpush1.xpose.msra.mxu0 0.0
    %1819 = vmatprep.subr.mxu0 0.0
    %1820 = vmatpush1.xpose.msra.mxu0 0.0
    %1821 = vmatprep.subr.mxu0 0.0
    %1822 = vmatpush1.xpose.msra.mxu0 0.0
    %1823 = vmatprep.subr.mxu0 0.0
    %1824 = vmatpush1.xpose.msra.mxu0 0.0
    %1825 = vmatprep.subr.mxu0 0.0
    %1826 = vmatpush1.xpose.msra.mxu0 0.0
    %1827 = vmatprep.subr.mxu0 0.0
    %1828 = vmatpush1.xpose.msra.mxu0 0.0
    %1829 = vmatprep.subr.mxu0 0.0
    %1830 = vmatpush1.xpose.msra.mxu0 0.0
    %1831 = vmatprep.subr.mxu0 0.0
    %1832 = vmatpush1.xpose.msra.mxu0 0.0
    %1833 = vmatprep.subr.mxu0 0.0
    %1834 = vmatpush1.xpose.msra.mxu0 0.0
    %1835 = vmatprep.subr.mxu0 0.0
    %1836 = vmatpush1.xpose.msra.mxu0 0.0
    %1837 = vmatprep.subr.mxu0 0.0
    %1838 = vmatpush1.xpose.msra.mxu0 0.0
    %1839 = vmatprep.subr.mxu0 0.0
    %1840 = vmatpush1.xpose.msra.mxu0 0.0
    %1841 = vmatprep.subr.mxu0 0.0
    %1842 = vmatpush1.xpose.msra.mxu0 0.0
    %1843 = vmatprep.subr.mxu0 0.0
    %1844 = vmatpush1.xpose.msra.mxu0 0.0
    %1845 = vmatprep.subr.mxu0 0.0
    %1846 = vmatpush1.xpose.msra.mxu0 0.0
    %1847 = vmatprep.subr.mxu0 0.0
    %1848 = vmatpush1.xpose.msra.mxu0 0.0
    %1849 = vmatprep.subr.mxu0 0.0
    %1850 = vmatpush1.xpose.msra.mxu0 0.0
    %1851 = vmatprep.subr.mxu0 0.0
    %1852 = vmatpush1.xpose.msra.mxu0 0.0
    %1853 = vmatprep.subr.mxu0 0.0
    %1854 = vmatpush1.xpose.msra.mxu0 0.0
    %1855 = vmatprep.subr.mxu0 0.0
    %1856 = vmatpush1.xpose.msra.mxu0 0.0
    %1857 = vmatprep.subr.mxu0 0.0
    %1858 = vmatpush1.xpose.msra.mxu0 0.0
    %1859 = vmatprep.subr.mxu0 0.0
    %1860 = vmatpush1.xpose.msra.mxu0 0.0
    %1861 = vmatprep.mubr.f32.mxu0 0.0
    %v1862 = vand.u32 %v1417, 4294901760
    %1863 = vmatmul.mubr.f32.gmra.mrb[0].mxu0 %v1862
    %v1864 = vpop.f32.mrb[0].mxu0
    %v1865 = vadd.f32 %v1793, %v1864
    %v1866 = vpop.f32.mrb[0].mxu0
    %1867 = vdwg.mxu0
    %v1869 = vsel %vm59, %v47, 0
    %v1872 = vsel %vm59, %v55, 0
    %1874 = vmatprep.subr.mxu0 0.0
    %v1875 = vand.u32 %v1872, 4294901760
    %1876 = vmatpush1.xpose.msra.mxu0 %v1875
    %1877 = vmatprep.subr.mxu0 0.0
    %1878 = vmatpush1.xpose.msra.mxu0 0.0
    %1879 = vmatprep.subr.mxu0 0.0
    %1880 = vmatpush1.xpose.msra.mxu0 0.0
    %1881 = vmatprep.subr.mxu0 0.0
    %1882 = vmatpush1.xpose.msra.mxu0 0.0
    %1883 = vmatprep.subr.mxu0 0.0
    %1884 = vmatpush1.xpose.msra.mxu0 0.0
    %1885 = vmatprep.subr.mxu0 0.0
    %1886 = vmatpush1.xpose.msra.mxu0 0.0
    %1887 = vmatprep.subr.mxu0 0.0
    %1888 = vmatpush1.xpose.msra.mxu0 0.0
    %1889 = vmatprep.subr.mxu0 0.0
    %1890 = vmatpush1.xpose.msra.mxu0 0.0
    %1891 = vmatprep.subr.mxu0 0.0
    %1892 = vmatpush1.xpose.msra.mxu0 0.0
    %1893 = vmatprep.subr.mxu0 0.0
    %1894 = vmatpush1.xpose.msra.mxu0 0.0
    %1895 = vmatprep.subr.mxu0 0.0
    %1896 = vmatpush1.xpose.msra.mxu0 0.0
    %1897 = vmatprep.subr.mxu0 0.0
    %1898 = vmatpush1.xpose.msra.mxu0 0.0
    %1899 = vmatprep.subr.mxu0 0.0
    %1900 = vmatpush1.xpose.msra.mxu0 0.0
    %1901 = vmatprep.subr.mxu0 0.0
    %1902 = vmatpush1.xpose.msra.mxu0 0.0
    %1903 = vmatprep.subr.mxu0 0.0
    %1904 = vmatpush1.xpose.msra.mxu0 0.0
    %1905 = vmatprep.subr.mxu0 0.0
    %1906 = vmatpush1.xpose.msra.mxu0 0.0
    %1907 = vmatprep.subr.mxu0 0.0
    %1908 = vmatpush1.xpose.msra.mxu0 0.0
    %1909 = vmatprep.subr.mxu0 0.0
    %1910 = vmatpush1.xpose.msra.mxu0 0.0
    %1911 = vmatprep.subr.mxu0 0.0
    %1912 = vmatpush1.xpose.msra.mxu0 0.0
    %1913 = vmatprep.subr.mxu0 0.0
    %1914 = vmatpush1.xpose.msra.mxu0 0.0
    %1915 = vmatprep.subr.mxu0 0.0
    %1916 = vmatpush1.xpose.msra.mxu0 0.0
    %1917 = vmatprep.subr.mxu0 0.0
    %1918 = vmatpush1.xpose.msra.mxu0 0.0
    %1919 = vmatprep.subr.mxu0 0.0
    %1920 = vmatpush1.xpose.msra.mxu0 0.0
    %1921 = vmatprep.subr.mxu0 0.0
    %1922 = vmatpush1.xpose.msra.mxu0 0.0
    %1923 = vmatprep.subr.mxu0 0.0
    %1924 = vmatpush1.xpose.msra.mxu0 0.0
    %1925 = vmatprep.subr.mxu0 0.0
    %1926 = vmatpush1.xpose.msra.mxu0 0.0
    %1927 = vmatprep.subr.mxu0 0.0
    %1928 = vmatpush1.xpose.msra.mxu0 0.0
    %1929 = vmatprep.subr.mxu0 0.0
    %1930 = vmatpush1.xpose.msra.mxu0 0.0
    %1931 = vmatprep.subr.mxu0 0.0
    %1932 = vmatpush1.xpose.msra.mxu0 0.0
    %1933 = vmatprep.subr.mxu0 0.0
    %1934 = vmatpush1.xpose.msra.mxu0 0.0
    %1935 = vmatprep.subr.mxu0 0.0
    %1936 = vmatpush1.xpose.msra.mxu0 0.0
    %1937 = vmatprep.subr.mxu0 0.0
    %1938 = vmatpush1.xpose.msra.mxu0 0.0
    %1939 = vmatprep.mubr.f32.mxu0 0.0
    %v1940 = vand.u32 %v1869, 4294901760
    %v1941 = vsub.f32 %v1869, %v1940
    %v1942 = vand.u32 %v1941, 4294901760
    %v1943 = vsub.f32 %v1941, %v1942
    %v1944 = vand.u32 %v1943, 4294901760
    %1945 = vmatmul.mubr.f32.gmra.mrb[0].mxu0 %v1944
    %v1946 = vpop.f32.mrb[0].mxu0
    %v1947 = vadd.f32 0.0, %v1946
    %v1948 = vpop.f32.mrb[0].mxu0
    %1949 = vdwg.mxu0
    %1950 = vmatprep.subr.mxu0 0.0
    %v1951 = vand.u32 %v1872, 4294901760
    %v1952 = vsub.f32 %v1872, %v1951
    %v1953 = vand.u32 %v1952, 4294901760
    %v1954 = vsub.f32 %v1952, %v1953
    %v1955 = vand.u32 %v1954, 4294901760
    %1956 = vmatpush1.xpose.msra.mxu0 %v1955
    %1957 = vmatprep.subr.mxu0 0.0
    %1958 = vmatpush1.xpose.msra.mxu0 0.0
    %1959 = vmatprep.subr.mxu0 0.0
    %1960 = vmatpush1.xpose.msra.mxu0 0.0
    %1961 = vmatprep.subr.mxu0 0.0
    %1962 = vmatpush1.xpose.msra.mxu0 0.0
    %1963 = vmatprep.subr.mxu0 0.0
    %1964 = vmatpush1.xpose.msra.mxu0 0.0
    %1965 = vmatprep.subr.mxu0 0.0
    %1966 = vmatpush1.xpose.msra.mxu0 0.0
    %1967 = vmatprep.subr.mxu0 0.0
    %1968 = vmatpush1.xpose.msra.mxu0 0.0
    %1969 = vmatprep.subr.mxu0 0.0
    %1970 = vmatpush1.xpose.msra.mxu0 0.0
    %1971 = vmatprep.subr.mxu0 0.0
    %1972 = vmatpush1.xpose.msra.mxu0 0.0
    %1973 = vmatprep.subr.mxu0 0.0
    %1974 = vmatpush1.xpose.msra.mxu0 0.0
    %1975 = vmatprep.subr.mxu0 0.0
    %1976 = vmatpush1.xpose.msra.mxu0 0.0
    %1977 = vmatprep.subr.mxu0 0.0
    %1978 = vmatpush1.xpose.msra.mxu0 0.0
    %1979 = vmatprep.subr.mxu0 0.0
    %1980 = vmatpush1.xpose.msra.mxu0 0.0
    %1981 = vmatprep.subr.mxu0 0.0
    %1982 = vmatpush1.xpose.msra.mxu0 0.0
    %1983 = vmatprep.subr.mxu0 0.0
    %1984 = vmatpush1.xpose.msra.mxu0 0.0
    %1985 = vmatprep.subr.mxu0 0.0
    %1986 = vmatpush1.xpose.msra.mxu0 0.0
    %1987 = vmatprep.subr.mxu0 0.0
    %1988 = vmatpush1.xpose.msra.mxu0 0.0
    %1989 = vmatprep.subr.mxu0 0.0
    %1990 = vmatpush1.xpose.msra.mxu0 0.0
    %1991 = vmatprep.subr.mxu0 0.0
    %1992 = vmatpush1.xpose.msra.mxu0 0.0
    %1993 = vmatprep.subr.mxu0 0.0
    %1994 = vmatpush1.xpose.msra.mxu0 0.0
    %1995 = vmatprep.subr.mxu0 0.0
    %1996 = vmatpush1.xpose.msra.mxu0 0.0
    %1997 = vmatprep.subr.mxu0 0.0
    %1998 = vmatpush1.xpose.msra.mxu0 0.0
    %1999 = vmatprep.subr.mxu0 0.0
    %2000 = vmatpush1.xpose.msra.mxu0 0.0
    %2001 = vmatprep.subr.mxu0 0.0
    %2002 = vmatpush1.xpose.msra.mxu0 0.0
    %2003 = vmatprep.subr.mxu0 0.0
    %2004 = vmatpush1.xpose.msra.mxu0 0.0
    %2005 = vmatprep.subr.mxu0 0.0
    %2006 = vmatpush1.xpose.msra.mxu0 0.0
    %2007 = vmatprep.subr.mxu0 0.0
    %2008 = vmatpush1.xpose.msra.mxu0 0.0
    %2009 = vmatprep.subr.mxu0 0.0
    %2010 = vmatpush1.xpose.msra.mxu0 0.0
    %2011 = vmatprep.subr.mxu0 0.0
    %2012 = vmatpush1.xpose.msra.mxu0 0.0
    %2013 = vmatprep.subr.mxu0 0.0
    %2014 = vmatpush1.xpose.msra.mxu0 0.0
    %2015 = vmatprep.subr.mxu0 0.0
    %2016 = vmatpush1.xpose.msra.mxu0 0.0
    %2017 = vmatprep.subr.mxu0 0.0
    %2018 = vmatpush1.xpose.msra.mxu0 0.0
    %2019 = vmatprep.mubr.f32.mxu0 0.0
    %v2020 = vand.u32 %v1869, 4294901760
    %2021 = vmatmul.mubr.f32.gmra.mrb[0].mxu0 %v2020
    %v2022 = vpop.f32.mrb[0].mxu0
    %v2023 = vadd.f32 %v1947, %v2022
    %v2024 = vpop.f32.mrb[0].mxu0
    %2025 = vdwg.mxu0
    %2026 = vmatprep.subr.mxu0 0.0
    %v2027 = vand.u32 %v1872, 4294901760
    %v2028 = vsub.f32 %v1872, %v2027
    %2029 = vmatpush1.xpose.msra.mxu0 %v2028
    %2030 = vmatprep.subr.mxu0 0.0
    %2031 = vmatpush1.xpose.msra.mxu0 0.0
    %2032 = vmatprep.subr.mxu0 0.0
    %2033 = vmatpush1.xpose.msra.mxu0 0.0
    %2034 = vmatprep.subr.mxu0 0.0
    %2035 = vmatpush1.xpose.msra.mxu0 0.0
    %2036 = vmatprep.subr.mxu0 0.0
    %2037 = vmatpush1.xpose.msra.mxu0 0.0
    %2038 = vmatprep.subr.mxu0 0.0
    %2039 = vmatpush1.xpose.msra.mxu0 0.0
    %2040 = vmatprep.subr.mxu0 0.0
    %2041 = vmatpush1.xpose.msra.mxu0 0.0
    %2042 = vmatprep.subr.mxu0 0.0
    %2043 = vmatpush1.xpose.msra.mxu0 0.0
    %2044 = vmatprep.subr.mxu0 0.0
    %2045 = vmatpush1.xpose.msra.mxu0 0.0
    %2046 = vmatprep.subr.mxu0 0.0
    %2047 = vmatpush1.xpose.msra.mxu0 0.0
    %2048 = vmatprep.subr.mxu0 0.0
    %2049 = vmatpush1.xpose.msra.mxu0 0.0
    %2050 = vmatprep.subr.mxu0 0.0
    %2051 = vmatpush1.xpose.msra.mxu0 0.0
    %2052 = vmatprep.subr.mxu0 0.0
    %2053 = vmatpush1.xpose.msra.mxu0 0.0
    %2054 = vmatprep.subr.mxu0 0.0
    %2055 = vmatpush1.xpose.msra.mxu0 0.0
    %2056 = vmatprep.subr.mxu0 0.0
    %2057 = vmatpush1.xpose.msra.mxu0 0.0
    %2058 = vmatprep.subr.mxu0 0.0
    %2059 = vmatpush1.xpose.msra.mxu0 0.0
    %2060 = vmatprep.subr.mxu0 0.0
    %2061 = vmatpush1.xpose.msra.mxu0 0.0
    %2062 = vmatprep.subr.mxu0 0.0
    %2063 = vmatpush1.xpose.msra.mxu0 0.0
    %2064 = vmatprep.subr.mxu0 0.0
    %2065 = vmatpush1.xpose.msra.mxu0 0.0
    %2066 = vmatprep.subr.mxu0 0.0
    %2067 = vmatpush1.xpose.msra.mxu0 0.0
    %2068 = vmatprep.subr.mxu0 0.0
    %2069 = vmatpush1.xpose.msra.mxu0 0.0
    %2070 = vmatprep.subr.mxu0 0.0
    %2071 = vmatpush1.xpose.msra.mxu0 0.0
    %2072 = vmatprep.subr.mxu0 0.0
    %2073 = vmatpush1.xpose.msra.mxu0 0.0
    %2074 = vmatprep.subr.mxu0 0.0
    %2075 = vmatpush1.xpose.msra.mxu0 0.0
    %2076 = vmatprep.subr.mxu0 0.0
    %2077 = vmatpush1.xpose.msra.mxu0 0.0
    %2078 = vmatprep.subr.mxu0 0.0
    %2079 = vmatpush1.xpose.msra.mxu0 0.0
    %2080 = vmatprep.subr.mxu0 0.0
    %2081 = vmatpush1.xpose.msra.mxu0 0.0
    %2082 = vmatprep.subr.mxu0 0.0
    %2083 = vmatpush1.xpose.msra.mxu0 0.0
    %2084 = vmatprep.subr.mxu0 0.0
    %2085 = vmatpush1.xpose.msra.mxu0 0.0
    %2086 = vmatprep.subr.mxu0 0.0
    %2087 = vmatpush1.xpose.msra.mxu0 0.0
    %2088 = vmatprep.subr.mxu0 0.0
    %2089 = vmatpush1.xpose.msra.mxu0 0.0
    %2090 = vmatprep.subr.mxu0 0.0
    %2091 = vmatpush1.xpose.msra.mxu0 0.0
    %2092 = vmatprep.mubr.f32.mxu0 0.0
    %v2093 = vand.u32 %v1869, 4294901760
    %v2094 = vsub.f32 %v1869, %v2093
    %2095 = vmatmul.mubr.f32.gmra.mrb[0].mxu0 %v2094
    %v2096 = vpop.f32.mrb[0].mxu0
    %v2097 = vadd.f32 %v2023, %v2096
    %v2098 = vpop.f32.mrb[0].mxu0
    %2099 = vdwg.mxu0
    %2100 = vmatprep.subr.mxu0 0.0
    %v2101 = vand.u32 %v1872, 4294901760
    %2102 = vmatpush1.xpose.msra.mxu0 %v2101
    %2103 = vmatprep.subr.mxu0 0.0
    %2104 = vmatpush1.xpose.msra.mxu0 0.0
    %2105 = vmatprep.subr.mxu0 0.0
    %2106 = vmatpush1.xpose.msra.mxu0 0.0
    %2107 = vmatprep.subr.mxu0 0.0
    %2108 = vmatpush1.xpose.msra.mxu0 0.0
    %2109 = vmatprep.subr.mxu0 0.0
    %2110 = vmatpush1.xpose.msra.mxu0 0.0
    %2111 = vmatprep.subr.mxu0 0.0
    %2112 = vmatpush1.xpose.msra.mxu0 0.0
    %2113 = vmatprep.subr.mxu0 0.0
    %2114 = vmatpush1.xpose.msra.mxu0 0.0
    %2115 = vmatprep.subr.mxu0 0.0
    %2116 = vmatpush1.xpose.msra.mxu0 0.0
    %2117 = vmatprep.subr.mxu0 0.0
    %2118 = vmatpush1.xpose.msra.mxu0 0.0
    %2119 = vmatprep.subr.mxu0 0.0
    %2120 = vmatpush1.xpose.msra.mxu0 0.0
    %2121 = vmatprep.subr.mxu0 0.0
    %2122 = vmatpush1.xpose.msra.mxu0 0.0
    %2123 = vmatprep.subr.mxu0 0.0
    %2124 = vmatpush1.xpose.msra.mxu0 0.0
    %2125 = vmatprep.subr.mxu0 0.0
    %2126 = vmatpush1.xpose.msra.mxu0 0.0
    %2127 = vmatprep.subr.mxu0 0.0
    %2128 = vmatpush1.xpose.msra.mxu0 0.0
    %2129 = vmatprep.subr.mxu0 0.0
    %2130 = vmatpush1.xpose.msra.mxu0 0.0
    %2131 = vmatprep.subr.mxu0 0.0
    %2132 = vmatpush1.xpose.msra.mxu0 0.0
    %2133 = vmatprep.subr.mxu0 0.0
    %2134 = vmatpush1.xpose.msra.mxu0 0.0
    %2135 = vmatprep.subr.mxu0 0.0
    %2136 = vmatpush1.xpose.msra.mxu0 0.0
    %2137 = vmatprep.subr.mxu0 0.0
    %2138 = vmatpush1.xpose.msra.mxu0 0.0
    %2139 = vmatprep.subr.mxu0 0.0
    %2140 = vmatpush1.xpose.msra.mxu0 0.0
    %2141 = vmatprep.subr.mxu0 0.0
    %2142 = vmatpush1.xpose.msra.mxu0 0.0
    %2143 = vmatprep.subr.mxu0 0.0
    %2144 = vmatpush1.xpose.msra.mxu0 0.0
    %2145 = vmatprep.subr.mxu0 0.0
    %2146 = vmatpush1.xpose.msra.mxu0 0.0
    %2147 = vmatprep.subr.mxu0 0.0
    %2148 = vmatpush1.xpose.msra.mxu0 0.0
    %2149 = vmatprep.subr.mxu0 0.0
    %2150 = vmatpush1.xpose.msra.mxu0 0.0
    %2151 = vmatprep.subr.mxu0 0.0
    %2152 = vmatpush1.xpose.msra.mxu0 0.0
    %2153 = vmatprep.subr.mxu0 0.0
    %2154 = vmatpush1.xpose.msra.mxu0 0.0
    %2155 = vmatprep.subr.mxu0 0.0
    %2156 = vmatpush1.xpose.msra.mxu0 0.0
    %2157 = vmatprep.subr.mxu0 0.0
    %2158 = vmatpush1.xpose.msra.mxu0 0.0
    %2159 = vmatprep.subr.mxu0 0.0
    %2160 = vmatpush1.xpose.msra.mxu0 0.0
    %2161 = vmatprep.subr.mxu0 0.0
    %2162 = vmatpush1.xpose.msra.mxu0 0.0
    %2163 = vmatprep.subr.mxu0 0.0
    %2164 = vmatpush1.xpose.msra.mxu0 0.0
    %2165 = vmatprep.mubr.f32.mxu0 0.0
    %v2166 = vand.u32 %v1869, 4294901760
    %v2167 = vsub.f32 %v1869, %v2166
    %v2168 = vand.u32 %v2167, 4294901760
    %2169 = vmatmul.mubr.f32.gmra.mrb[0].mxu0 %v2168
    %v2170 = vpop.f32.mrb[0].mxu0
    %v2171 = vadd.f32 %v2097, %v2170
    %v2172 = vpop.f32.mrb[0].mxu0
    %2173 = vdwg.mxu0
    %2174 = vmatprep.subr.mxu0 0.0
    %v2175 = vand.u32 %v1872, 4294901760
    %v2176 = vsub.f32 %v1872, %v2175
    %v2177 = vand.u32 %v2176, 4294901760
    %2178 = vmatpush1.xpose.msra.mxu0 %v2177
    %2179 = vmatprep.subr.mxu0 0.0
    %2180 = vmatpush1.xpose.msra.mxu0 0.0
    %2181 = vmatprep.subr.mxu0 0.0
    %2182 = vmatpush1.xpose.msra.mxu0 0.0
    %2183 = vmatprep.subr.mxu0 0.0
    %2184 = vmatpush1.xpose.msra.mxu0 0.0
    %2185 = vmatprep.subr.mxu0 0.0
    %2186 = vmatpush1.xpose.msra.mxu0 0.0
    %2187 = vmatprep.subr.mxu0 0.0
    %2188 = vmatpush1.xpose.msra.mxu0 0.0
    %2189 = vmatprep.subr.mxu0 0.0
    %2190 = vmatpush1.xpose.msra.mxu0 0.0
    %2191 = vmatprep.subr.mxu0 0.0
    %2192 = vmatpush1.xpose.msra.mxu0 0.0
    %2193 = vmatprep.subr.mxu0 0.0
    %2194 = vmatpush1.xpose.msra.mxu0 0.0
    %2195 = vmatprep.subr.mxu0 0.0
    %2196 = vmatpush1.xpose.msra.mxu0 0.0
    %2197 = vmatprep.subr.mxu0 0.0
    %2198 = vmatpush1.xpose.msra.mxu0 0.0
    %2199 = vmatprep.subr.mxu0 0.0
    %2200 = vmatpush1.xpose.msra.mxu0 0.0
    %2201 = vmatprep.subr.mxu0 0.0
    %2202 = vmatpush1.xpose.msra.mxu0 0.0
    %2203 = vmatprep.subr.mxu0 0.0
    %2204 = vmatpush1.xpose.msra.mxu0 0.0
    %2205 = vmatprep.subr.mxu0 0.0
    %2206 = vmatpush1.xpose.msra.mxu0 0.0
    %2207 = vmatprep.subr.mxu0 0.0
    %2208 = vmatpush1.xpose.msra.mxu0 0.0
    %2209 = vmatprep.subr.mxu0 0.0
    %2210 = vmatpush1.xpose.msra.mxu0 0.0
    %2211 = vmatprep.subr.mxu0 0.0
    %2212 = vmatpush1.xpose.msra.mxu0 0.0
    %2213 = vmatprep.subr.mxu0 0.0
    %2214 = vmatpush1.xpose.msra.mxu0 0.0
    %2215 = vmatprep.subr.mxu0 0.0
    %2216 = vmatpush1.xpose.msra.mxu0 0.0
    %2217 = vmatprep.subr.mxu0 0.0
    %2218 = vmatpush1.xpose.msra.mxu0 0.0
    %2219 = vmatprep.subr.mxu0 0.0
    %2220 = vmatpush1.xpose.msra.mxu0 0.0
    %2221 = vmatprep.subr.mxu0 0.0
    %2222 = vmatpush1.xpose.msra.mxu0 0.0
    %2223 = vmatprep.subr.mxu0 0.0
    %2224 = vmatpush1.xpose.msra.mxu0 0.0
    %2225 = vmatprep.subr.mxu0 0.0
    %2226 = vmatpush1.xpose.msra.mxu0 0.0
    %2227 = vmatprep.subr.mxu0 0.0
    %2228 = vmatpush1.xpose.msra.mxu0 0.0
    %2229 = vmatprep.subr.mxu0 0.0
    %2230 = vmatpush1.xpose.msra.mxu0 0.0
    %2231 = vmatprep.subr.mxu0 0.0
    %2232 = vmatpush1.xpose.msra.mxu0 0.0
    %2233 = vmatprep.subr.mxu0 0.0
    %2234 = vmatpush1.xpose.msra.mxu0 0.0
    %2235 = vmatprep.subr.mxu0 0.0
    %2236 = vmatpush1.xpose.msra.mxu0 0.0
    %2237 = vmatprep.subr.mxu0 0.0
    %2238 = vmatpush1.xpose.msra.mxu0 0.0
    %2239 = vmatprep.subr.mxu0 0.0
    %2240 = vmatpush1.xpose.msra.mxu0 0.0
    %2241 = vmatprep.mubr.f32.mxu0 0.0
    %v2242 = vand.u32 %v1869, 4294901760
    %2243 = vmatmul.mubr.f32.gmra.mrb[0].mxu0 %v2242
    %v2244 = vpop.f32.mrb[0].mxu0
    %v2245 = vadd.f32 %v2171, %v2244
    %v2246 = vpop.f32.mrb[0].mxu0
    %2247 = vdwg.mxu0
    %2248 = vmatprep.subr.mxu0 0.0
    %v2249 = vand.u32 %v1872, 4294901760
    %2250 = vmatpush1.xpose.msra.mxu0 %v2249
    %2251 = vmatprep.subr.mxu0 0.0
    %2252 = vmatpush1.xpose.msra.mxu0 0.0
    %2253 = vmatprep.subr.mxu0 0.0
    %2254 = vmatpush1.xpose.msra.mxu0 0.0
    %2255 = vmatprep.subr.mxu0 0.0
    %2256 = vmatpush1.xpose.msra.mxu0 0.0
    %2257 = vmatprep.subr.mxu0 0.0
    %2258 = vmatpush1.xpose.msra.mxu0 0.0
    %2259 = vmatprep.subr.mxu0 0.0
    %2260 = vmatpush1.xpose.msra.mxu0 0.0
    %2261 = vmatprep.subr.mxu0 0.0
    %2262 = vmatpush1.xpose.msra.mxu0 0.0
    %2263 = vmatprep.subr.mxu0 0.0
    %2264 = vmatpush1.xpose.msra.mxu0 0.0
    %2265 = vmatprep.subr.mxu0 0.0
    %2266 = vmatpush1.xpose.msra.mxu0 0.0
    %2267 = vmatprep.subr.mxu0 0.0
    %2268 = vmatpush1.xpose.msra.mxu0 0.0
    %2269 = vmatprep.subr.mxu0 0.0
    %2270 = vmatpush1.xpose.msra.mxu0 0.0
    %2271 = vmatprep.subr.mxu0 0.0
    %2272 = vmatpush1.xpose.msra.mxu0 0.0
    %2273 = vmatprep.subr.mxu0 0.0
    %2274 = vmatpush1.xpose.msra.mxu0 0.0
    %2275 = vmatprep.subr.mxu0 0.0
    %2276 = vmatpush1.xpose.msra.mxu0 0.0
    %2277 = vmatprep.subr.mxu0 0.0
    %2278 = vmatpush1.xpose.msra.mxu0 0.0
    %2279 = vmatprep.subr.mxu0 0.0
    %2280 = vmatpush1.xpose.msra.mxu0 0.0
    %2281 = vmatprep.subr.mxu0 0.0
    %2282 = vmatpush1.xpose.msra.mxu0 0.0
    %2283 = vmatprep.subr.mxu0 0.0
    %2284 = vmatpush1.xpose.msra.mxu0 0.0
    %2285 = vmatprep.subr.mxu0 0.0
    %2286 = vmatpush1.xpose.msra.mxu0 0.0
    %2287 = vmatprep.subr.mxu0 0.0
    %2288 = vmatpush1.xpose.msra.mxu0 0.0
    %2289 = vmatprep.subr.mxu0 0.0
    %2290 = vmatpush1.xpose.msra.mxu0 0.0
    %2291 = vmatprep.subr.mxu0 0.0
    %2292 = vmatpush1.xpose.msra.mxu0 0.0
    %2293 = vmatprep.subr.mxu0 0.0
    %2294 = vmatpush1.xpose.msra.mxu0 0.0
    %2295 = vmatprep.subr.mxu0 0.0
    %2296 = vmatpush1.xpose.msra.mxu0 0.0
    %2297 = vmatprep.subr.mxu0 0.0
    %2298 = vmatpush1.xpose.msra.mxu0 0.0
    %2299 = vmatprep.subr.mxu0 0.0
    %2300 = vmatpush1.xpose.msra.mxu0 0.0
    %2301 = vmatprep.subr.mxu0 0.0
    %2302 = vmatpush1.xpose.msra.mxu0 0.0
    %2303 = vmatprep.subr.mxu0 0.0
    %2304 = vmatpush1.xpose.msra.mxu0 0.0
    %2305 = vmatprep.subr.mxu0 0.0
    %2306 = vmatpush1.xpose.msra.mxu0 0.0
    %2307 = vmatprep.subr.mxu0 0.0
    %2308 = vmatpush1.xpose.msra.mxu0 0.0
    %2309 = vmatprep.subr.mxu0 0.0
    %2310 = vmatpush1.xpose.msra.mxu0 0.0
    %2311 = vmatprep.subr.mxu0 0.0
    %2312 = vmatpush1.xpose.msra.mxu0 0.0
    %2313 = vmatprep.mubr.f32.mxu0 0.0
    %v2314 = vand.u32 %v1869, 4294901760
    %2315 = vmatmul.mubr.f32.gmra.mrb[0].mxu0 %v2314
    %v2316 = vpop.f32.mrb[0].mxu0
    %v2317 = vadd.f32 %v2245, %v2316
    %v2318 = vpop.f32.mrb[0].mxu0
    %2319 = vdwg.mxu0
    %v2321 = vsel %vm59, %v48, 0
    %v2324 = vsel %vm59, %v56, 0
    %2326 = vmatprep.subr.mxu0 0.0
    %v2327 = vand.u32 %v2324, 4294901760
    %2328 = vmatpush1.xpose.msra.mxu0 %v2327
    %2329 = vmatprep.subr.mxu0 0.0
    %2330 = vmatpush1.xpose.msra.mxu0 0.0
    %2331 = vmatprep.subr.mxu0 0.0
    %2332 = vmatpush1.xpose.msra.mxu0 0.0
    %2333 = vmatprep.subr.mxu0 0.0
    %2334 = vmatpush1.xpose.msra.mxu0 0.0
    %2335 = vmatprep.subr.mxu0 0.0
    %2336 = vmatpush1.xpose.msra.mxu0 0.0
    %2337 = vmatprep.subr.mxu0 0.0
    %2338 = vmatpush1.xpose.msra.mxu0 0.0
    %2339 = vmatprep.subr.mxu0 0.0
    %2340 = vmatpush1.xpose.msra.mxu0 0.0
    %2341 = vmatprep.subr.mxu0 0.0
    %2342 = vmatpush1.xpose.msra.mxu0 0.0
    %2343 = vmatprep.subr.mxu0 0.0
    %2344 = vmatpush1.xpose.msra.mxu0 0.0
    %2345 = vmatprep.subr.mxu0 0.0
    %2346 = vmatpush1.xpose.msra.mxu0 0.0
    %2347 = vmatprep.subr.mxu0 0.0
    %2348 = vmatpush1.xpose.msra.mxu0 0.0
    %2349 = vmatprep.subr.mxu0 0.0
    %2350 = vmatpush1.xpose.msra.mxu0 0.0
    %2351 = vmatprep.subr.mxu0 0.0
    %2352 = vmatpush1.xpose.msra.mxu0 0.0
    %2353 = vmatprep.subr.mxu0 0.0
    %2354 = vmatpush1.xpose.msra.mxu0 0.0
    %2355 = vmatprep.subr.mxu0 0.0
    %2356 = vmatpush1.xpose.msra.mxu0 0.0
    %2357 = vmatprep.subr.mxu0 0.0
    %2358 = vmatpush1.xpose.msra.mxu0 0.0
    %2359 = vmatprep.subr.mxu0 0.0
    %2360 = vmatpush1.xpose.msra.mxu0 0.0
    %2361 = vmatprep.subr.mxu0 0.0
    %2362 = vmatpush1.xpose.msra.mxu0 0.0
    %2363 = vmatprep.subr.mxu0 0.0
    %2364 = vmatpush1.xpose.msra.mxu0 0.0
    %2365 = vmatprep.subr.mxu0 0.0
    %2366 = vmatpush1.xpose.msra.mxu0 0.0
    %2367 = vmatprep.subr.mxu0 0.0
    %2368 = vmatpush1.xpose.msra.mxu0 0.0
    %2369 = vmatprep.subr.mxu0 0.0
    %2370 = vmatpush1.xpose.msra.mxu0 0.0
    %2371 = vmatprep.subr.mxu0 0.0
    %2372 = vmatpush1.xpose.msra.mxu0 0.0
    %2373 = vmatprep.subr.mxu0 0.0
    %2374 = vmatpush1.xpose.msra.mxu0 0.0
    %2375 = vmatprep.subr.mxu0 0.0
    %2376 = vmatpush1.xpose.msra.mxu0 0.0
    %2377 = vmatprep.subr.mxu0 0.0
    %2378 = vmatpush1.xpose.msra.mxu0 0.0
    %2379 = vmatprep.subr.mxu0 0.0
    %2380 = vmatpush1.xpose.msra.mxu0 0.0
    %2381 = vmatprep.subr.mxu0 0.0
    %2382 = vmatpush1.xpose.msra.mxu0 0.0
    %2383 = vmatprep.subr.mxu0 0.0
    %2384 = vmatpush1.xpose.msra.mxu0 0.0
    %2385 = vmatprep.subr.mxu0 0.0
    %2386 = vmatpush1.xpose.msra.mxu0 0.0
    %2387 = vmatprep.subr.mxu0 0.0
    %2388 = vmatpush1.xpose.msra.mxu0 0.0
    %2389 = vmatprep.subr.mxu0 0.0
    %2390 = vmatpush1.xpose.msra.mxu0 0.0
    %2391 = vmatprep.mubr.f32.mxu0 0.0
    %v2392 = vand.u32 %v2321, 4294901760
    %v2393 = vsub.f32 %v2321, %v2392
    %v2394 = vand.u32 %v2393, 4294901760
    %v2395 = vsub.f32 %v2393, %v2394
    %v2396 = vand.u32 %v2395, 4294901760
    %2397 = vmatmul.mubr.f32.gmra.mrb[0].mxu0 %v2396
    %v2398 = vpop.f32.mrb[0].mxu0
    %v2399 = vadd.f32 0.0, %v2398
    %v2400 = vpop.f32.mrb[0].mxu0
    %2401 = vdwg.mxu0
    %2402 = vmatprep.subr.mxu0 0.0
    %v2403 = vand.u32 %v2324, 4294901760
    %v2404 = vsub.f32 %v2324, %v2403
    %v2405 = vand.u32 %v2404, 4294901760
    %v2406 = vsub.f32 %v2404, %v2405
    %v2407 = vand.u32 %v2406, 4294901760
    %2408 = vmatpush1.xpose.msra.mxu0 %v2407
    %2409 = vmatprep.subr.mxu0 0.0
    %2410 = vmatpush1.xpose.msra.mxu0 0.0
    %2411 = vmatprep.subr.mxu0 0.0
    %2412 = vmatpush1.xpose.msra.mxu0 0.0
    %2413 = vmatprep.subr.mxu0 0.0
    %2414 = vmatpush1.xpose.msra.mxu0 0.0
    %2415 = vmatprep.subr.mxu0 0.0
    %2416 = vmatpush1.xpose.msra.mxu0 0.0
    %2417 = vmatprep.subr.mxu0 0.0
    %2418 = vmatpush1.xpose.msra.mxu0 0.0
    %2419 = vmatprep.subr.mxu0 0.0
    %2420 = vmatpush1.xpose.msra.mxu0 0.0
    %2421 = vmatprep.subr.mxu0 0.0
    %2422 = vmatpush1.xpose.msra.mxu0 0.0
    %2423 = vmatprep.subr.mxu0 0.0
    %2424 = vmatpush1.xpose.msra.mxu0 0.0
    %2425 = vmatprep.subr.mxu0 0.0
    %2426 = vmatpush1.xpose.msra.mxu0 0.0
    %2427 = vmatprep.subr.mxu0 0.0
    %2428 = vmatpush1.xpose.msra.mxu0 0.0
    %2429 = vmatprep.subr.mxu0 0.0
    %2430 = vmatpush1.xpose.msra.mxu0 0.0
    %2431 = vmatprep.subr.mxu0 0.0
    %2432 = vmatpush1.xpose.msra.mxu0 0.0
    %2433 = vmatprep.subr.mxu0 0.0
    %2434 = vmatpush1.xpose.msra.mxu0 0.0
    %2435 = vmatprep.subr.mxu0 0.0
    %2436 = vmatpush1.xpose.msra.mxu0 0.0
    %2437 = vmatprep.subr.mxu0 0.0
    %2438 = vmatpush1.xpose.msra.mxu0 0.0
    %2439 = vmatprep.subr.mxu0 0.0
    %2440 = vmatpush1.xpose.msra.mxu0 0.0
    %2441 = vmatprep.subr.mxu0 0.0
    %2442 = vmatpush1.xpose.msra.mxu0 0.0
    %2443 = vmatprep.subr.mxu0 0.0
    %2444 = vmatpush1.xpose.msra.mxu0 0.0
    %2445 = vmatprep.subr.mxu0 0.0
    %2446 = vmatpush1.xpose.msra.mxu0 0.0
    %2447 = vmatprep.subr.mxu0 0.0
    %2448 = vmatpush1.xpose.msra.mxu0 0.0
    %2449 = vmatprep.subr.mxu0 0.0
    %2450 = vmatpush1.xpose.msra.mxu0 0.0
    %2451 = vmatprep.subr.mxu0 0.0
    %2452 = vmatpush1.xpose.msra.mxu0 0.0
    %2453 = vmatprep.subr.mxu0 0.0
    %2454 = vmatpush1.xpose.msra.mxu0 0.0
    %2455 = vmatprep.subr.mxu0 0.0
    %2456 = vmatpush1.xpose.msra.mxu0 0.0
    %2457 = vmatprep.subr.mxu0 0.0
    %2458 = vmatpush1.xpose.msra.mxu0 0.0
    %2459 = vmatprep.subr.mxu0 0.0
    %2460 = vmatpush1.xpose.msra.mxu0 0.0
    %2461 = vmatprep.subr.mxu0 0.0
    %2462 = vmatpush1.xpose.msra.mxu0 0.0
    %2463 = vmatprep.subr.mxu0 0.0
    %2464 = vmatpush1.xpose.msra.mxu0 0.0
    %2465 = vmatprep.subr.mxu0 0.0
    %2466 = vmatpush1.xpose.msra.mxu0 0.0
    %2467 = vmatprep.subr.mxu0 0.0
    %2468 = vmatpush1.xpose.msra.mxu0 0.0
    %2469 = vmatprep.subr.mxu0 0.0
    %2470 = vmatpush1.xpose.msra.mxu0 0.0
    %2471 = vmatprep.mubr.f32.mxu0 0.0
    %v2472 = vand.u32 %v2321, 4294901760
    %2473 = vmatmul.mubr.f32.gmra.mrb[0].mxu0 %v2472
    %v2474 = vpop.f32.mrb[0].mxu0
    %v2475 = vadd.f32 %v2399, %v2474
    %v2476 = vpop.f32.mrb[0].mxu0
    %2477 = vdwg.mxu0
    %2478 = vmatprep.subr.mxu0 0.0
    %v2479 = vand.u32 %v2324, 4294901760
    %v2480 = vsub.f32 %v2324, %v2479
    %2481 = vmatpush1.xpose.msra.mxu0 %v2480
    %2482 = vmatprep.subr.mxu0 0.0
    %2483 = vmatpush1.xpose.msra.mxu0 0.0
    %2484 = vmatprep.subr.mxu0 0.0
    %2485 = vmatpush1.xpose.msra.mxu0 0.0
    %2486 = vmatprep.subr.mxu0 0.0
    %2487 = vmatpush1.xpose.msra.mxu0 0.0
    %2488 = vmatprep.subr.mxu0 0.0
    %2489 = vmatpush1.xpose.msra.mxu0 0.0
    %2490 = vmatprep.subr.mxu0 0.0
    %2491 = vmatpush1.xpose.msra.mxu0 0.0
    %2492 = vmatprep.subr.mxu0 0.0
    %2493 = vmatpush1.xpose.msra.mxu0 0.0
    %2494 = vmatprep.subr.mxu0 0.0
    %2495 = vmatpush1.xpose.msra.mxu0 0.0
    %2496 = vmatprep.subr.mxu0 0.0
    %2497 = vmatpush1.xpose.msra.mxu0 0.0
    %2498 = vmatprep.subr.mxu0 0.0
    %2499 = vmatpush1.xpose.msra.mxu0 0.0
    %2500 = vmatprep.subr.mxu0 0.0
    %2501 = vmatpush1.xpose.msra.mxu0 0.0
    %2502 = vmatprep.subr.mxu0 0.0
    %2503 = vmatpush1.xpose.msra.mxu0 0.0
    %2504 = vmatprep.subr.mxu0 0.0
    %2505 = vmatpush1.xpose.msra.mxu0 0.0
    %2506 = vmatprep.subr.mxu0 0.0
    %2507 = vmatpush1.xpose.msra.mxu0 0.0
    %2508 = vmatprep.subr.mxu0 0.0
    %2509 = vmatpush1.xpose.msra.mxu0 0.0
    %2510 = vmatprep.subr.mxu0 0.0
    %2511 = vmatpush1.xpose.msra.mxu0 0.0
    %2512 = vmatprep.subr.mxu0 0.0
    %2513 = vmatpush1.xpose.msra.mxu0 0.0
    %2514 = vmatprep.subr.mxu0 0.0
    %2515 = vmatpush1.xpose.msra.mxu0 0.0
    %2516 = vmatprep.subr.mxu0 0.0
    %2517 = vmatpush1.xpose.msra.mxu0 0.0
    %2518 = vmatprep.subr.mxu0 0.0
    %2519 = vmatpush1.xpose.msra.mxu0 0.0
    %2520 = vmatprep.subr.mxu0 0.0
    %2521 = vmatpush1.xpose.msra.mxu0 0.0
    %2522 = vmatprep.subr.mxu0 0.0
    %2523 = vmatpush1.xpose.msra.mxu0 0.0
    %2524 = vmatprep.subr.mxu0 0.0
    %2525 = vmatpush1.xpose.msra.mxu0 0.0
    %2526 = vmatprep.subr.mxu0 0.0
    %2527 = vmatpush1.xpose.msra.mxu0 0.0
    %2528 = vmatprep.subr.mxu0 0.0
    %2529 = vmatpush1.xpose.msra.mxu0 0.0
    %2530 = vmatprep.subr.mxu0 0.0
    %2531 = vmatpush1.xpose.msra.mxu0 0.0
    %2532 = vmatprep.subr.mxu0 0.0
    %2533 = vmatpush1.xpose.msra.mxu0 0.0
    %2534 = vmatprep.subr.mxu0 0.0
    %2535 = vmatpush1.xpose.msra.mxu0 0.0
    %2536 = vmatprep.subr.mxu0 0.0
    %2537 = vmatpush1.xpose.msra.mxu0 0.0
    %2538 = vmatprep.subr.mxu0 0.0
    %2539 = vmatpush1.xpose.msra.mxu0 0.0
    %2540 = vmatprep.subr.mxu0 0.0
    %2541 = vmatpush1.xpose.msra.mxu0 0.0
    %2542 = vmatprep.subr.mxu0 0.0
    %2543 = vmatpush1.xpose.msra.mxu0 0.0
    %2544 = vmatprep.mubr.f32.mxu0 0.0
    %v2545 = vand.u32 %v2321, 4294901760
    %v2546 = vsub.f32 %v2321, %v2545
    %2547 = vmatmul.mubr.f32.gmra.mrb[0].mxu0 %v2546
    %v2548 = vpop.f32.mrb[0].mxu0
    %v2549 = vadd.f32 %v2475, %v2548
    %v2550 = vpop.f32.mrb[0].mxu0
    %2551 = vdwg.mxu0
    %2552 = vmatprep.subr.mxu0 0.0
    %v2553 = vand.u32 %v2324, 4294901760
    %2554 = vmatpush1.xpose.msra.mxu0 %v2553
    %2555 = vmatprep.subr.mxu0 0.0
    %2556 = vmatpush1.xpose.msra.mxu0 0.0
    %2557 = vmatprep.subr.mxu0 0.0
    %2558 = vmatpush1.xpose.msra.mxu0 0.0
    %2559 = vmatprep.subr.mxu0 0.0
    %2560 = vmatpush1.xpose.msra.mxu0 0.0
    %2561 = vmatprep.subr.mxu0 0.0
    %2562 = vmatpush1.xpose.msra.mxu0 0.0
    %2563 = vmatprep.subr.mxu0 0.0
    %2564 = vmatpush1.xpose.msra.mxu0 0.0
    %2565 = vmatprep.subr.mxu0 0.0
    %2566 = vmatpush1.xpose.msra.mxu0 0.0
    %2567 = vmatprep.subr.mxu0 0.0
    %2568 = vmatpush1.xpose.msra.mxu0 0.0
    %2569 = vmatprep.subr.mxu0 0.0
    %2570 = vmatpush1.xpose.msra.mxu0 0.0
    %2571 = vmatprep.subr.mxu0 0.0
    %2572 = vmatpush1.xpose.msra.mxu0 0.0
    %2573 = vmatprep.subr.mxu0 0.0
    %2574 = vmatpush1.xpose.msra.mxu0 0.0
    %2575 = vmatprep.subr.mxu0 0.0
    %2576 = vmatpush1.xpose.msra.mxu0 0.0
    %2577 = vmatprep.subr.mxu0 0.0
    %2578 = vmatpush1.xpose.msra.mxu0 0.0
    %2579 = vmatprep.subr.mxu0 0.0
    %2580 = vmatpush1.xpose.msra.mxu0 0.0
    %2581 = vmatprep.subr.mxu0 0.0
    %2582 = vmatpush1.xpose.msra.mxu0 0.0
    %2583 = vmatprep.subr.mxu0 0.0
    %2584 = vmatpush1.xpose.msra.mxu0 0.0
    %2585 = vmatprep.subr.mxu0 0.0
    %2586 = vmatpush1.xpose.msra.mxu0 0.0
    %2587 = vmatprep.subr.mxu0 0.0
    %2588 = vmatpush1.xpose.msra.mxu0 0.0
    %2589 = vmatprep.subr.mxu0 0.0
    %2590 = vmatpush1.xpose.msra.mxu0 0.0
    %2591 = vmatprep.subr.mxu0 0.0
    %2592 = vmatpush1.xpose.msra.mxu0 0.0
    %2593 = vmatprep.subr.mxu0 0.0
    %2594 = vmatpush1.xpose.msra.mxu0 0.0
    %2595 = vmatprep.subr.mxu0 0.0
    %2596 = vmatpush1.xpose.msra.mxu0 0.0
    %2597 = vmatprep.subr.mxu0 0.0
    %2598 = vmatpush1.xpose.msra.mxu0 0.0
    %2599 = vmatprep.subr.mxu0 0.0
    %2600 = vmatpush1.xpose.msra.mxu0 0.0
    %2601 = vmatprep.subr.mxu0 0.0
    %2602 = vmatpush1.xpose.msra.mxu0 0.0
    %2603 = vmatprep.subr.mxu0 0.0
    %2604 = vmatpush1.xpose.msra.mxu0 0.0
    %2605 = vmatprep.subr.mxu0 0.0
    %2606 = vmatpush1.xpose.msra.mxu0 0.0
    %2607 = vmatprep.subr.mxu0 0.0
    %2608 = vmatpush1.xpose.msra.mxu0 0.0
    %2609 = vmatprep.subr.mxu0 0.0
    %2610 = vmatpush1.xpose.msra.mxu0 0.0
    %2611 = vmatprep.subr.mxu0 0.0
    %2612 = vmatpush1.xpose.msra.mxu0 0.0
    %2613 = vmatprep.subr.mxu0 0.0
    %2614 = vmatpush1.xpose.msra.mxu0 0.0
    %2615 = vmatprep.subr.mxu0 0.0
    %2616 = vmatpush1.xpose.msra.mxu0 0.0
    %2617 = vmatprep.mubr.f32.mxu0 0.0
    %v2618 = vand.u32 %v2321, 4294901760
    %v2619 = vsub.f32 %v2321, %v2618
    %v2620 = vand.u32 %v2619, 4294901760
    %2621 = vmatmul.mubr.f32.gmra.mrb[0].mxu0 %v2620
    %v2622 = vpop.f32.mrb[0].mxu0
    %v2623 = vadd.f32 %v2549, %v2622
    %v2624 = vpop.f32.mrb[0].mxu0
    %2625 = vdwg.mxu0
    %2626 = vmatprep.subr.mxu0 0.0
    %v2627 = vand.u32 %v2324, 4294901760
    %v2628 = vsub.f32 %v2324, %v2627
    %v2629 = vand.u32 %v2628, 4294901760
    %2630 = vmatpush1.xpose.msra.mxu0 %v2629
    %2631 = vmatprep.subr.mxu0 0.0
    %2632 = vmatpush1.xpose.msra.mxu0 0.0
    %2633 = vmatprep.subr.mxu0 0.0
    %2634 = vmatpush1.xpose.msra.mxu0 0.0
    %2635 = vmatprep.subr.mxu0 0.0
    %2636 = vmatpush1.xpose.msra.mxu0 0.0
    %2637 = vmatprep.subr.mxu0 0.0
    %2638 = vmatpush1.xpose.msra.mxu0 0.0
    %2639 = vmatprep.subr.mxu0 0.0
    %2640 = vmatpush1.xpose.msra.mxu0 0.0
    %2641 = vmatprep.subr.mxu0 0.0
    %2642 = vmatpush1.xpose.msra.mxu0 0.0
    %2643 = vmatprep.subr.mxu0 0.0
    %2644 = vmatpush1.xpose.msra.mxu0 0.0
    %2645 = vmatprep.subr.mxu0 0.0
    %2646 = vmatpush1.xpose.msra.mxu0 0.0
    %2647 = vmatprep.subr.mxu0 0.0
    %2648 = vmatpush1.xpose.msra.mxu0 0.0
    %2649 = vmatprep.subr.mxu0 0.0
    %2650 = vmatpush1.xpose.msra.mxu0 0.0
    %2651 = vmatprep.subr.mxu0 0.0
    %2652 = vmatpush1.xpose.msra.mxu0 0.0
    %2653 = vmatprep.subr.mxu0 0.0
    %2654 = vmatpush1.xpose.msra.mxu0 0.0
    %2655 = vmatprep.subr.mxu0 0.0
    %2656 = vmatpush1.xpose.msra.mxu0 0.0
    %2657 = vmatprep.subr.mxu0 0.0
    %2658 = vmatpush1.xpose.msra.mxu0 0.0
    %2659 = vmatprep.subr.mxu0 0.0
    %2660 = vmatpush1.xpose.msra.mxu0 0.0
    %2661 = vmatprep.subr.mxu0 0.0
    %2662 = vmatpush1.xpose.msra.mxu0 0.0
    %2663 = vmatprep.subr.mxu0 0.0
    %2664 = vmatpush1.xpose.msra.mxu0 0.0
    %2665 = vmatprep.subr.mxu0 0.0
    %2666 = vmatpush1.xpose.msra.mxu0 0.0
    %2667 = vmatprep.subr.mxu0 0.0
    %2668 = vmatpush1.xpose.msra.mxu0 0.0
    %2669 = vmatprep.subr.mxu0 0.0
    %2670 = vmatpush1.xpose.msra.mxu0 0.0
    %2671 = vmatprep.subr.mxu0 0.0
    %2672 = vmatpush1.xpose.msra.mxu0 0.0
    %2673 = vmatprep.subr.mxu0 0.0
    %2674 = vmatpush1.xpose.msra.mxu0 0.0
    %2675 = vmatprep.subr.mxu0 0.0
    %2676 = vmatpush1.xpose.msra.mxu0 0.0
    %2677 = vmatprep.subr.mxu0 0.0
    %2678 = vmatpush1.xpose.msra.mxu0 0.0
    %2679 = vmatprep.subr.mxu0 0.0
    %2680 = vmatpush1.xpose.msra.mxu0 0.0
    %2681 = vmatprep.subr.mxu0 0.0
    %2682 = vmatpush1.xpose.msra.mxu0 0.0
    %2683 = vmatprep.subr.mxu0 0.0
    %2684 = vmatpush1.xpose.msra.mxu0 0.0
    %2685 = vmatprep.subr.mxu0 0.0
    %2686 = vmatpush1.xpose.msra.mxu0 0.0
    %2687 = vmatprep.subr.mxu0 0.0
    %2688 = vmatpush1.xpose.msra.mxu0 0.0
    %2689 = vmatprep.subr.mxu0 0.0
    %2690 = vmatpush1.xpose.msra.mxu0 0.0
    %2691 = vmatprep.subr.mxu0 0.0
    %2692 = vmatpush1.xpose.msra.mxu0 0.0
    %2693 = vmatprep.mubr.f32.mxu0 0.0
    %v2694 = vand.u32 %v2321, 4294901760
    %2695 = vmatmul.mubr.f32.gmra.mrb[0].mxu0 %v2694
    %v2696 = vpop.f32.mrb[0].mxu0
    %v2697 = vadd.f32 %v2623, %v2696
    %v2698 = vpop.f32.mrb[0].mxu0
    %2699 = vdwg.mxu0
    %2700 = vmatprep.subr.mxu0 0.0
    %v2701 = vand.u32 %v2324, 4294901760
    %2702 = vmatpush1.xpose.msra.mxu0 %v2701
    %2703 = vmatprep.subr.mxu0 0.0
    %2704 = vmatpush1.xpose.msra.mxu0 0.0
    %2705 = vmatprep.subr.mxu0 0.0
    %2706 = vmatpush1.xpose.msra.mxu0 0.0
    %2707 = vmatprep.subr.mxu0 0.0
    %2708 = vmatpush1.xpose.msra.mxu0 0.0
    %2709 = vmatprep.subr.mxu0 0.0
    %2710 = vmatpush1.xpose.msra.mxu0 0.0
    %2711 = vmatprep.subr.mxu0 0.0
    %2712 = vmatpush1.xpose.msra.mxu0 0.0
    %2713 = vmatprep.subr.mxu0 0.0
    %2714 = vmatpush1.xpose.msra.mxu0 0.0
    %2715 = vmatprep.subr.mxu0 0.0
    %2716 = vmatpush1.xpose.msra.mxu0 0.0
    %2717 = vmatprep.subr.mxu0 0.0
    %2718 = vmatpush1.xpose.msra.mxu0 0.0
    %2719 = vmatprep.subr.mxu0 0.0
    %2720 = vmatpush1.xpose.msra.mxu0 0.0
    %2721 = vmatprep.subr.mxu0 0.0
    %2722 = vmatpush1.xpose.msra.mxu0 0.0
    %2723 = vmatprep.subr.mxu0 0.0
    %2724 = vmatpush1.xpose.msra.mxu0 0.0
    %2725 = vmatprep.subr.mxu0 0.0
    %2726 = vmatpush1.xpose.msra.mxu0 0.0
    %2727 = vmatprep.subr.mxu0 0.0
    %2728 = vmatpush1.xpose.msra.mxu0 0.0
    %2729 = vmatprep.subr.mxu0 0.0
    %2730 = vmatpush1.xpose.msra.mxu0 0.0
    %2731 = vmatprep.subr.mxu0 0.0
    %2732 = vmatpush1.xpose.msra.mxu0 0.0
    %2733 = vmatprep.subr.mxu0 0.0
    %2734 = vmatpush1.xpose.msra.mxu0 0.0
    %2735 = vmatprep.subr.mxu0 0.0
    %2736 = vmatpush1.xpose.msra.mxu0 0.0
    %2737 = vmatprep.subr.mxu0 0.0
    %2738 = vmatpush1.xpose.msra.mxu0 0.0
    %2739 = vmatprep.subr.mxu0 0.0
    %2740 = vmatpush1.xpose.msra.mxu0 0.0
    %2741 = vmatprep.subr.mxu0 0.0
    %2742 = vmatpush1.xpose.msra.mxu0 0.0
    %2743 = vmatprep.subr.mxu0 0.0
    %2744 = vmatpush1.xpose.msra.mxu0 0.0
    %2745 = vmatprep.subr.mxu0 0.0
    %2746 = vmatpush1.xpose.msra.mxu0 0.0
    %2747 = vmatprep.subr.mxu0 0.0
    %2748 = vmatpush1.xpose.msra.mxu0 0.0
    %2749 = vmatprep.subr.mxu0 0.0
    %2750 = vmatpush1.xpose.msra.mxu0 0.0
    %2751 = vmatprep.subr.mxu0 0.0
    %2752 = vmatpush1.xpose.msra.mxu0 0.0
    %2753 = vmatprep.subr.mxu0 0.0
    %2754 = vmatpush1.xpose.msra.mxu0 0.0
    %2755 = vmatprep.subr.mxu0 0.0
    %2756 = vmatpush1.xpose.msra.mxu0 0.0
    %2757 = vmatprep.subr.mxu0 0.0
    %2758 = vmatpush1.xpose.msra.mxu0 0.0
    %2759 = vmatprep.subr.mxu0 0.0
    %2760 = vmatpush1.xpose.msra.mxu0 0.0
    %2761 = vmatprep.subr.mxu0 0.0
    %2762 = vmatpush1.xpose.msra.mxu0 0.0
    %2763 = vmatprep.subr.mxu0 0.0
    %2764 = vmatpush1.xpose.msra.mxu0 0.0
    %2765 = vmatprep.mubr.f32.mxu0 0.0
    %v2766 = vand.u32 %v2321, 4294901760
    %2767 = vmatmul.mubr.f32.gmra.mrb[0].mxu0 %v2766
    %v2768 = vpop.f32.mrb[0].mxu0
    %v2769 = vadd.f32 %v2697, %v2768
    %v2770 = vpop.f32.mrb[0].mxu0
    %2771 = vdwg.mxu0
    %v2773 = vsel %vm59, %v49, 0
    %v2776 = vsel %vm59, %v57, 0
    %2778 = vmatprep.subr.mxu0 0.0
    %v2779 = vand.u32 %v2776, 4294901760
    %2780 = vmatpush1.xpose.msra.mxu0 %v2779
    %2781 = vmatprep.subr.mxu0 0.0
    %2782 = vmatpush1.xpose.msra.mxu0 0.0
    %2783 = vmatprep.subr.mxu0 0.0
    %2784 = vmatpush1.xpose.msra.mxu0 0.0
    %2785 = vmatprep.subr.mxu0 0.0
    %2786 = vmatpush1.xpose.msra.mxu0 0.0
    %2787 = vmatprep.subr.mxu0 0.0
    %2788 = vmatpush1.xpose.msra.mxu0 0.0
    %2789 = vmatprep.subr.mxu0 0.0
    %2790 = vmatpush1.xpose.msra.mxu0 0.0
    %2791 = vmatprep.subr.mxu0 0.0
    %2792 = vmatpush1.xpose.msra.mxu0 0.0
    %2793 = vmatprep.subr.mxu0 0.0
    %2794 = vmatpush1.xpose.msra.mxu0 0.0
    %2795 = vmatprep.subr.mxu0 0.0
    %2796 = vmatpush1.xpose.msra.mxu0 0.0
    %2797 = vmatprep.subr.mxu0 0.0
    %2798 = vmatpush1.xpose.msra.mxu0 0.0
    %2799 = vmatprep.subr.mxu0 0.0
    %2800 = vmatpush1.xpose.msra.mxu0 0.0
    %2801 = vmatprep.subr.mxu0 0.0
    %2802 = vmatpush1.xpose.msra.mxu0 0.0
    %2803 = vmatprep.subr.mxu0 0.0
    %2804 = vmatpush1.xpose.msra.mxu0 0.0
    %2805 = vmatprep.subr.mxu0 0.0
    %2806 = vmatpush1.xpose.msra.mxu0 0.0
    %2807 = vmatprep.subr.mxu0 0.0
    %2808 = vmatpush1.xpose.msra.mxu0 0.0
    %2809 = vmatprep.subr.mxu0 0.0
    %2810 = vmatpush1.xpose.msra.mxu0 0.0
    %2811 = vmatprep.subr.mxu0 0.0
    %2812 = vmatpush1.xpose.msra.mxu0 0.0
    %2813 = vmatprep.subr.mxu0 0.0
    %2814 = vmatpush1.xpose.msra.mxu0 0.0
    %2815 = vmatprep.subr.mxu0 0.0
    %2816 = vmatpush1.xpose.msra.mxu0 0.0
    %2817 = vmatprep.subr.mxu0 0.0
    %2818 = vmatpush1.xpose.msra.mxu0 0.0
    %2819 = vmatprep.subr.mxu0 0.0
    %2820 = vmatpush1.xpose.msra.mxu0 0.0
    %2821 = vmatprep.subr.mxu0 0.0
    %2822 = vmatpush1.xpose.msra.mxu0 0.0
    %2823 = vmatprep.subr.mxu0 0.0
    %2824 = vmatpush1.xpose.msra.mxu0 0.0
    %2825 = vmatprep.subr.mxu0 0.0
    %2826 = vmatpush1.xpose.msra.mxu0 0.0
    %2827 = vmatprep.subr.mxu0 0.0
    %2828 = vmatpush1.xpose.msra.mxu0 0.0
    %2829 = vmatprep.subr.mxu0 0.0
    %2830 = vmatpush1.xpose.msra.mxu0 0.0
    %2831 = vmatprep.subr.mxu0 0.0
    %2832 = vmatpush1.xpose.msra.mxu0 0.0
    %2833 = vmatprep.subr.mxu0 0.0
    %2834 = vmatpush1.xpose.msra.mxu0 0.0
    %2835 = vmatprep.subr.mxu0 0.0
    %2836 = vmatpush1.xpose.msra.mxu0 0.0
    %2837 = vmatprep.subr.mxu0 0.0
    %2838 = vmatpush1.xpose.msra.mxu0 0.0
    %2839 = vmatprep.subr.mxu0 0.0
    %2840 = vmatpush1.xpose.msra.mxu0 0.0
    %2841 = vmatprep.subr.mxu0 0.0
    %2842 = vmatpush1.xpose.msra.mxu0 0.0
    %2843 = vmatprep.mubr.f32.mxu0 0.0
    %v2844 = vand.u32 %v2773, 4294901760
    %v2845 = vsub.f32 %v2773, %v2844
    %v2846 = vand.u32 %v2845, 4294901760
    %v2847 = vsub.f32 %v2845, %v2846
    %v2848 = vand.u32 %v2847, 4294901760
    %2849 = vmatmul.mubr.f32.gmra.mrb[0].mxu0 %v2848
    %v2850 = vpop.f32.mrb[0].mxu0
    %v2851 = vadd.f32 0.0, %v2850
    %v2852 = vpop.f32.mrb[0].mxu0
    %2853 = vdwg.mxu0
    %2854 = vmatprep.subr.mxu0 0.0
    %v2855 = vand.u32 %v2776, 4294901760
    %v2856 = vsub.f32 %v2776, %v2855
    %v2857 = vand.u32 %v2856, 4294901760
    %v2858 = vsub.f32 %v2856, %v2857
    %v2859 = vand.u32 %v2858, 4294901760
    %2860 = vmatpush1.xpose.msra.mxu0 %v2859
    %2861 = vmatprep.subr.mxu0 0.0
    %2862 = vmatpush1.xpose.msra.mxu0 0.0
    %2863 = vmatprep.subr.mxu0 0.0
    %2864 = vmatpush1.xpose.msra.mxu0 0.0
    %2865 = vmatprep.subr.mxu0 0.0
    %2866 = vmatpush1.xpose.msra.mxu0 0.0
    %2867 = vmatprep.subr.mxu0 0.0
    %2868 = vmatpush1.xpose.msra.mxu0 0.0
    %2869 = vmatprep.subr.mxu0 0.0
    %2870 = vmatpush1.xpose.msra.mxu0 0.0
    %2871 = vmatprep.subr.mxu0 0.0
    %2872 = vmatpush1.xpose.msra.mxu0 0.0
    %2873 = vmatprep.subr.mxu0 0.0
    %2874 = vmatpush1.xpose.msra.mxu0 0.0
    %2875 = vmatprep.subr.mxu0 0.0
    %2876 = vmatpush1.xpose.msra.mxu0 0.0
    %2877 = vmatprep.subr.mxu0 0.0
    %2878 = vmatpush1.xpose.msra.mxu0 0.0
    %2879 = vmatprep.subr.mxu0 0.0
    %2880 = vmatpush1.xpose.msra.mxu0 0.0
    %2881 = vmatprep.subr.mxu0 0.0
    %2882 = vmatpush1.xpose.msra.mxu0 0.0
    %2883 = vmatprep.subr.mxu0 0.0
    %2884 = vmatpush1.xpose.msra.mxu0 0.0
    %2885 = vmatprep.subr.mxu0 0.0
    %2886 = vmatpush1.xpose.msra.mxu0 0.0
    %2887 = vmatprep.subr.mxu0 0.0
    %2888 = vmatpush1.xpose.msra.mxu0 0.0
    %2889 = vmatprep.subr.mxu0 0.0
    %2890 = vmatpush1.xpose.msra.mxu0 0.0
    %2891 = vmatprep.subr.mxu0 0.0
    %2892 = vmatpush1.xpose.msra.mxu0 0.0
    %2893 = vmatprep.subr.mxu0 0.0
    %2894 = vmatpush1.xpose.msra.mxu0 0.0
    %2895 = vmatprep.subr.mxu0 0.0
    %2896 = vmatpush1.xpose.msra.mxu0 0.0
    %2897 = vmatprep.subr.mxu0 0.0
    %2898 = vmatpush1.xpose.msra.mxu0 0.0
    %2899 = vmatprep.subr.mxu0 0.0
    %2900 = vmatpush1.xpose.msra.mxu0 0.0
    %2901 = vmatprep.subr.mxu0 0.0
    %2902 = vmatpush1.xpose.msra.mxu0 0.0
    %2903 = vmatprep.subr.mxu0 0.0
    %2904 = vmatpush1.xpose.msra.mxu0 0.0
    %2905 = vmatprep.subr.mxu0 0.0
    %2906 = vmatpush1.xpose.msra.mxu0 0.0
    %2907 = vmatprep.subr.mxu0 0.0
    %2908 = vmatpush1.xpose.msra.mxu0 0.0
    %2909 = vmatprep.subr.mxu0 0.0
    %2910 = vmatpush1.xpose.msra.mxu0 0.0
    %2911 = vmatprep.subr.mxu0 0.0
    %2912 = vmatpush1.xpose.msra.mxu0 0.0
    %2913 = vmatprep.subr.mxu0 0.0
    %2914 = vmatpush1.xpose.msra.mxu0 0.0
    %2915 = vmatprep.subr.mxu0 0.0
    %2916 = vmatpush1.xpose.msra.mxu0 0.0
    %2917 = vmatprep.subr.mxu0 0.0
    %2918 = vmatpush1.xpose.msra.mxu0 0.0
    %2919 = vmatprep.subr.mxu0 0.0
    %2920 = vmatpush1.xpose.msra.mxu0 0.0
    %2921 = vmatprep.subr.mxu0 0.0
    %2922 = vmatpush1.xpose.msra.mxu0 0.0
    %2923 = vmatprep.mubr.f32.mxu0 0.0
    %v2924 = vand.u32 %v2773, 4294901760
    %2925 = vmatmul.mubr.f32.gmra.mrb[0].mxu0 %v2924
    %v2926 = vpop.f32.mrb[0].mxu0
    %v2927 = vadd.f32 %v2851, %v2926
    %v2928 = vpop.f32.mrb[0].mxu0
    %2929 = vdwg.mxu0
    %2930 = vmatprep.subr.mxu0 0.0
    %v2931 = vand.u32 %v2776, 4294901760
    %v2932 = vsub.f32 %v2776, %v2931
    %2933 = vmatpush1.xpose.msra.mxu0 %v2932
    %2934 = vmatprep.subr.mxu0 0.0
    %2935 = vmatpush1.xpose.msra.mxu0 0.0
    %2936 = vmatprep.subr.mxu0 0.0
    %2937 = vmatpush1.xpose.msra.mxu0 0.0
    %2938 = vmatprep.subr.mxu0 0.0
    %2939 = vmatpush1.xpose.msra.mxu0 0.0
    %2940 = vmatprep.subr.mxu0 0.0
    %2941 = vmatpush1.xpose.msra.mxu0 0.0
    %2942 = vmatprep.subr.mxu0 0.0
    %2943 = vmatpush1.xpose.msra.mxu0 0.0
    %2944 = vmatprep.subr.mxu0 0.0
    %2945 = vmatpush1.xpose.msra.mxu0 0.0
    %2946 = vmatprep.subr.mxu0 0.0
    %2947 = vmatpush1.xpose.msra.mxu0 0.0
    %2948 = vmatprep.subr.mxu0 0.0
    %2949 = vmatpush1.xpose.msra.mxu0 0.0
    %2950 = vmatprep.subr.mxu0 0.0
    %2951 = vmatpush1.xpose.msra.mxu0 0.0
    %2952 = vmatprep.subr.mxu0 0.0
    %2953 = vmatpush1.xpose.msra.mxu0 0.0
    %2954 = vmatprep.subr.mxu0 0.0
    %2955 = vmatpush1.xpose.msra.mxu0 0.0
    %2956 = vmatprep.subr.mxu0 0.0
    %2957 = vmatpush1.xpose.msra.mxu0 0.0
    %2958 = vmatprep.subr.mxu0 0.0
    %2959 = vmatpush1.xpose.msra.mxu0 0.0
    %2960 = vmatprep.subr.mxu0 0.0
    %2961 = vmatpush1.xpose.msra.mxu0 0.0
    %2962 = vmatprep.subr.mxu0 0.0
    %2963 = vmatpush1.xpose.msra.mxu0 0.0
    %2964 = vmatprep.subr.mxu0 0.0
    %2965 = vmatpush1.xpose.msra.mxu0 0.0
    %2966 = vmatprep.subr.mxu0 0.0
    %2967 = vmatpush1.xpose.msra.mxu0 0.0
    %2968 = vmatprep.subr.mxu0 0.0
    %2969 = vmatpush1.xpose.msra.mxu0 0.0
    %2970 = vmatprep.subr.mxu0 0.0
    %2971 = vmatpush1.xpose.msra.mxu0 0.0
    %2972 = vmatprep.subr.mxu0 0.0
    %2973 = vmatpush1.xpose.msra.mxu0 0.0
    %2974 = vmatprep.subr.mxu0 0.0
    %2975 = vmatpush1.xpose.msra.mxu0 0.0
    %2976 = vmatprep.subr.mxu0 0.0
    %2977 = vmatpush1.xpose.msra.mxu0 0.0
    %2978 = vmatprep.subr.mxu0 0.0
    %2979 = vmatpush1.xpose.msra.mxu0 0.0
    %2980 = vmatprep.subr.mxu0 0.0
    %2981 = vmatpush1.xpose.msra.mxu0 0.0
    %2982 = vmatprep.subr.mxu0 0.0
    %2983 = vmatpush1.xpose.msra.mxu0 0.0
    %2984 = vmatprep.subr.mxu0 0.0
    %2985 = vmatpush1.xpose.msra.mxu0 0.0
    %2986 = vmatprep.subr.mxu0 0.0
    %2987 = vmatpush1.xpose.msra.mxu0 0.0
    %2988 = vmatprep.subr.mxu0 0.0
    %2989 = vmatpush1.xpose.msra.mxu0 0.0
    %2990 = vmatprep.subr.mxu0 0.0
    %2991 = vmatpush1.xpose.msra.mxu0 0.0
    %2992 = vmatprep.subr.mxu0 0.0
    %2993 = vmatpush1.xpose.msra.mxu0 0.0
    %2994 = vmatprep.subr.mxu0 0.0
    %2995 = vmatpush1.xpose.msra.mxu0 0.0
    %2996 = vmatprep.mubr.f32.mxu0 0.0
    %v2997 = vand.u32 %v2773, 4294901760
    %v2998 = vsub.f32 %v2773, %v2997
    %2999 = vmatmul.mubr.f32.gmra.mrb[0].mxu0 %v2998
    %v3000 = vpop.f32.mrb[0].mxu0
    %v3001 = vadd.f32 %v2927, %v3000
    %v3002 = vpop.f32.mrb[0].mxu0
    %3003 = vdwg.mxu0
    %3004 = vmatprep.subr.mxu0 0.0
    %v3005 = vand.u32 %v2776, 4294901760
    %3006 = vmatpush1.xpose.msra.mxu0 %v3005
    %3007 = vmatprep.subr.mxu0 0.0
    %3008 = vmatpush1.xpose.msra.mxu0 0.0
    %3009 = vmatprep.subr.mxu0 0.0
    %3010 = vmatpush1.xpose.msra.mxu0 0.0
    %3011 = vmatprep.subr.mxu0 0.0
    %3012 = vmatpush1.xpose.msra.mxu0 0.0
    %3013 = vmatprep.subr.mxu0 0.0
    %3014 = vmatpush1.xpose.msra.mxu0 0.0
    %3015 = vmatprep.subr.mxu0 0.0
    %3016 = vmatpush1.xpose.msra.mxu0 0.0
    %3017 = vmatprep.subr.mxu0 0.0
    %3018 = vmatpush1.xpose.msra.mxu0 0.0
    %3019 = vmatprep.subr.mxu0 0.0
    %3020 = vmatpush1.xpose.msra.mxu0 0.0
    %3021 = vmatprep.subr.mxu0 0.0
    %3022 = vmatpush1.xpose.msra.mxu0 0.0
    %3023 = vmatprep.subr.mxu0 0.0
    %3024 = vmatpush1.xpose.msra.mxu0 0.0
    %3025 = vmatprep.subr.mxu0 0.0
    %3026 = vmatpush1.xpose.msra.mxu0 0.0
    %3027 = vmatprep.subr.mxu0 0.0
    %3028 = vmatpush1.xpose.msra.mxu0 0.0
    %3029 = vmatprep.subr.mxu0 0.0
    %3030 = vmatpush1.xpose.msra.mxu0 0.0
    %3031 = vmatprep.subr.mxu0 0.0
    %3032 = vmatpush1.xpose.msra.mxu0 0.0
    %3033 = vmatprep.subr.mxu0 0.0
    %3034 = vmatpush1.xpose.msra.mxu0 0.0
    %3035 = vmatprep.subr.mxu0 0.0
    %3036 = vmatpush1.xpose.msra.mxu0 0.0
    %3037 = vmatprep.subr.mxu0 0.0
    %3038 = vmatpush1.xpose.msra.mxu0 0.0
    %3039 = vmatprep.subr.mxu0 0.0
    %3040 = vmatpush1.xpose.msra.mxu0 0.0
    %3041 = vmatprep.subr.mxu0 0.0
    %3042 = vmatpush1.xpose.msra.mxu0 0.0
    %3043 = vmatprep.subr.mxu0 0.0
    %3044 = vmatpush1.xpose.msra.mxu0 0.0
    %3045 = vmatprep.subr.mxu0 0.0
    %3046 = vmatpush1.xpose.msra.mxu0 0.0
    %3047 = vmatprep.subr.mxu0 0.0
    %3048 = vmatpush1.xpose.msra.mxu0 0.0
    %3049 = vmatprep.subr.mxu0 0.0
    %3050 = vmatpush1.xpose.msra.mxu0 0.0
    %3051 = vmatprep.subr.mxu0 0.0
    %3052 = vmatpush1.xpose.msra.mxu0 0.0
    %3053 = vmatprep.subr.mxu0 0.0
    %3054 = vmatpush1.xpose.msra.mxu0 0.0
    %3055 = vmatprep.subr.mxu0 0.0
    %3056 = vmatpush1.xpose.msra.mxu0 0.0
    %3057 = vmatprep.subr.mxu0 0.0
    %3058 = vmatpush1.xpose.msra.mxu0 0.0
    %3059 = vmatprep.subr.mxu0 0.0
    %3060 = vmatpush1.xpose.msra.mxu0 0.0
    %3061 = vmatprep.subr.mxu0 0.0
    %3062 = vmatpush1.xpose.msra.mxu0 0.0
    %3063 = vmatprep.subr.mxu0 0.0
    %3064 = vmatpush1.xpose.msra.mxu0 0.0
    %3065 = vmatprep.subr.mxu0 0.0
    %3066 = vmatpush1.xpose.msra.mxu0 0.0
    %3067 = vmatprep.subr.mxu0 0.0
    %3068 = vmatpush1.xpose.msra.mxu0 0.0
    %3069 = vmatprep.mubr.f32.mxu0 0.0
    %v3070 = vand.u32 %v2773, 4294901760
    %v3071 = vsub.f32 %v2773, %v3070
    %v3072 = vand.u32 %v3071, 4294901760
    %3073 = vmatmul.mubr.f32.gmra.mrb[0].mxu0 %v3072
    %v3074 = vpop.f32.mrb[0].mxu0
    %v3075 = vadd.f32 %v3001, %v3074
    %v3076 = vpop.f32.mrb[0].mxu0
    %3077 = vdwg.mxu0
    %3078 = vmatprep.subr.mxu0 0.0
    %v3079 = vand.u32 %v2776, 4294901760
    %v3080 = vsub.f32 %v2776, %v3079
    %v3081 = vand.u32 %v3080, 4294901760
    %3082 = vmatpush1.xpose.msra.mxu0 %v3081
    %3083 = vmatprep.subr.mxu0 0.0
    %3084 = vmatpush1.xpose.msra.mxu0 0.0
    %3085 = vmatprep.subr.mxu0 0.0
    %3086 = vmatpush1.xpose.msra.mxu0 0.0
    %3087 = vmatprep.subr.mxu0 0.0
    %3088 = vmatpush1.xpose.msra.mxu0 0.0
    %3089 = vmatprep.subr.mxu0 0.0
    %3090 = vmatpush1.xpose.msra.mxu0 0.0
    %3091 = vmatprep.subr.mxu0 0.0
    %3092 = vmatpush1.xpose.msra.mxu0 0.0
    %3093 = vmatprep.subr.mxu0 0.0
    %3094 = vmatpush1.xpose.msra.mxu0 0.0
    %3095 = vmatprep.subr.mxu0 0.0
    %3096 = vmatpush1.xpose.msra.mxu0 0.0
    %3097 = vmatprep.subr.mxu0 0.0
    %3098 = vmatpush1.xpose.msra.mxu0 0.0
    %3099 = vmatprep.subr.mxu0 0.0
    %3100 = vmatpush1.xpose.msra.mxu0 0.0
    %3101 = vmatprep.subr.mxu0 0.0
    %3102 = vmatpush1.xpose.msra.mxu0 0.0
    %3103 = vmatprep.subr.mxu0 0.0
    %3104 = vmatpush1.xpose.msra.mxu0 0.0
    %3105 = vmatprep.subr.mxu0 0.0
    %3106 = vmatpush1.xpose.msra.mxu0 0.0
    %3107 = vmatprep.subr.mxu0 0.0
    %3108 = vmatpush1.xpose.msra.mxu0 0.0
    %3109 = vmatprep.subr.mxu0 0.0
    %3110 = vmatpush1.xpose.msra.mxu0 0.0
    %3111 = vmatprep.subr.mxu0 0.0
    %3112 = vmatpush1.xpose.msra.mxu0 0.0
    %3113 = vmatprep.subr.mxu0 0.0
    %3114 = vmatpush1.xpose.msra.mxu0 0.0
    %3115 = vmatprep.subr.mxu0 0.0
    %3116 = vmatpush1.xpose.msra.mxu0 0.0
    %3117 = vmatprep.subr.mxu0 0.0
    %3118 = vmatpush1.xpose.msra.mxu0 0.0
    %3119 = vmatprep.subr.mxu0 0.0
    %3120 = vmatpush1.xpose.msra.mxu0 0.0
    %3121 = vmatprep.subr.mxu0 0.0
    %3122 = vmatpush1.xpose.msra.mxu0 0.0
    %3123 = vmatprep.subr.mxu0 0.0
    %3124 = vmatpush1.xpose.msra.mxu0 0.0
    %3125 = vmatprep.subr.mxu0 0.0
    %3126 = vmatpush1.xpose.msra.mxu0 0.0
    %3127 = vmatprep.subr.mxu0 0.0
    %3128 = vmatpush1.xpose.msra.mxu0 0.0
    %3129 = vmatprep.subr.mxu0 0.0
    %3130 = vmatpush1.xpose.msra.mxu0 0.0
    %3131 = vmatprep.subr.mxu0 0.0
    %3132 = vmatpush1.xpose.msra.mxu0 0.0
    %3133 = vmatprep.subr.mxu0 0.0
    %3134 = vmatpush1.xpose.msra.mxu0 0.0
    %3135 = vmatprep.subr.mxu0 0.0
    %3136 = vmatpush1.xpose.msra.mxu0 0.0
    %3137 = vmatprep.subr.mxu0 0.0
    %3138 = vmatpush1.xpose.msra.mxu0 0.0
    %3139 = vmatprep.subr.mxu0 0.0
    %3140 = vmatpush1.xpose.msra.mxu0 0.0
    %3141 = vmatprep.subr.mxu0 0.0
    %3142 = vmatpush1.xpose.msra.mxu0 0.0
    %3143 = vmatprep.subr.mxu0 0.0
    %3144 = vmatpush1.xpose.msra.mxu0 0.0
    %3145 = vmatprep.mubr.f32.mxu0 0.0
    %v3146 = vand.u32 %v2773, 4294901760
    %3147 = vmatmul.mubr.f32.gmra.mrb[0].mxu0 %v3146
    %v3148 = vpop.f32.mrb[0].mxu0
    %v3149 = vadd.f32 %v3075, %v3148
    %v3150 = vpop.f32.mrb[0].mxu0
    %3151 = vdwg.mxu0
    %3152 = vmatprep.subr.mxu0 0.0
    %v3153 = vand.u32 %v2776, 4294901760
    %3154 = vmatpush1.xpose.msra.mxu0 %v3153
    %3155 = vmatprep.subr.mxu0 0.0
    %3156 = vmatpush1.xpose.msra.mxu0 0.0
    %3157 = vmatprep.subr.mxu0 0.0
    %3158 = vmatpush1.xpose.msra.mxu0 0.0
    %3159 = vmatprep.subr.mxu0 0.0
    %3160 = vmatpush1.xpose.msra.mxu0 0.0
    %3161 = vmatprep.subr.mxu0 0.0
    %3162 = vmatpush1.xpose.msra.mxu0 0.0
    %3163 = vmatprep.subr.mxu0 0.0
    %3164 = vmatpush1.xpose.msra.mxu0 0.0
    %3165 = vmatprep.subr.mxu0 0.0
    %3166 = vmatpush1.xpose.msra.mxu0 0.0
    %3167 = vmatprep.subr.mxu0 0.0
    %3168 = vmatpush1.xpose.msra.mxu0 0.0
    %3169 = vmatprep.subr.mxu0 0.0
    %3170 = vmatpush1.xpose.msra.mxu0 0.0
    %3171 = vmatprep.subr.mxu0 0.0
    %3172 = vmatpush1.xpose.msra.mxu0 0.0
    %3173 = vmatprep.subr.mxu0 0.0
    %3174 = vmatpush1.xpose.msra.mxu0 0.0
    %3175 = vmatprep.subr.mxu0 0.0
    %3176 = vmatpush1.xpose.msra.mxu0 0.0
    %3177 = vmatprep.subr.mxu0 0.0
    %3178 = vmatpush1.xpose.msra.mxu0 0.0
    %3179 = vmatprep.subr.mxu0 0.0
    %3180 = vmatpush1.xpose.msra.mxu0 0.0
    %3181 = vmatprep.subr.mxu0 0.0
    %3182 = vmatpush1.xpose.msra.mxu0 0.0
    %3183 = vmatprep.subr.mxu0 0.0
    %3184 = vmatpush1.xpose.msra.mxu0 0.0
    %3185 = vmatprep.subr.mxu0 0.0
    %3186 = vmatpush1.xpose.msra.mxu0 0.0
    %3187 = vmatprep.subr.mxu0 0.0
    %3188 = vmatpush1.xpose.msra.mxu0 0.0
    %3189 = vmatprep.subr.mxu0 0.0
    %3190 = vmatpush1.xpose.msra.mxu0 0.0
    %3191 = vmatprep.subr.mxu0 0.0
    %3192 = vmatpush1.xpose.msra.mxu0 0.0
    %3193 = vmatprep.subr.mxu0 0.0
    %3194 = vmatpush1.xpose.msra.mxu0 0.0
    %3195 = vmatprep.subr.mxu0 0.0
    %3196 = vmatpush1.xpose.msra.mxu0 0.0
    %3197 = vmatprep.subr.mxu0 0.0
    %3198 = vmatpush1.xpose.msra.mxu0 0.0
    %3199 = vmatprep.subr.mxu0 0.0
    %3200 = vmatpush1.xpose.msra.mxu0 0.0
    %3201 = vmatprep.subr.mxu0 0.0
    %3202 = vmatpush1.xpose.msra.mxu0 0.0
    %3203 = vmatprep.subr.mxu0 0.0
    %3204 = vmatpush1.xpose.msra.mxu0 0.0
    %3205 = vmatprep.subr.mxu0 0.0
    %3206 = vmatpush1.xpose.msra.mxu0 0.0
    %3207 = vmatprep.subr.mxu0 0.0
    %3208 = vmatpush1.xpose.msra.mxu0 0.0
    %3209 = vmatprep.subr.mxu0 0.0
    %3210 = vmatpush1.xpose.msra.mxu0 0.0
    %3211 = vmatprep.subr.mxu0 0.0
    %3212 = vmatpush1.xpose.msra.mxu0 0.0
    %3213 = vmatprep.subr.mxu0 0.0
    %3214 = vmatpush1.xpose.msra.mxu0 0.0
    %3215 = vmatprep.subr.mxu0 0.0
    %3216 = vmatpush1.xpose.msra.mxu0 0.0
    %3217 = vmatprep.mubr.f32.mxu0 0.0
    %v3218 = vand.u32 %v2773, 4294901760
    %3219 = vmatmul.mubr.f32.gmra.mrb[0].mxu0 %v3218
    %v3220 = vpop.f32.mrb[0].mxu0
    %v3221 = vadd.f32 %v3149, %v3220
    %v3222 = vpop.f32.mrb[0].mxu0
    %3223 = vdwg.mxu0
    %v3225 = vsel %vm59, %v50, 0
    %v3228 = vsel %vm59, %v58, 0
    %3230 = vmatprep.subr.mxu0 0.0
    %v3231 = vand.u32 %v3228, 4294901760
    %3232 = vmatpush1.xpose.msra.mxu0 %v3231
    %3233 = vmatprep.subr.mxu0 0.0
    %3234 = vmatpush1.xpose.msra.mxu0 0.0
    %3235 = vmatprep.subr.mxu0 0.0
    %3236 = vmatpush1.xpose.msra.mxu0 0.0
    %3237 = vmatprep.subr.mxu0 0.0
    %3238 = vmatpush1.xpose.msra.mxu0 0.0
    %3239 = vmatprep.subr.mxu0 0.0
    %3240 = vmatpush1.xpose.msra.mxu0 0.0
    %3241 = vmatprep.subr.mxu0 0.0
    %3242 = vmatpush1.xpose.msra.mxu0 0.0
    %3243 = vmatprep.subr.mxu0 0.0
    %3244 = vmatpush1.xpose.msra.mxu0 0.0
    %3245 = vmatprep.subr.mxu0 0.0
    %3246 = vmatpush1.xpose.msra.mxu0 0.0
    %3247 = vmatprep.subr.mxu0 0.0
    %3248 = vmatpush1.xpose.msra.mxu0 0.0
    %3249 = vmatprep.subr.mxu0 0.0
    %3250 = vmatpush1.xpose.msra.mxu0 0.0
    %3251 = vmatprep.subr.mxu0 0.0
    %3252 = vmatpush1.xpose.msra.mxu0 0.0
    %3253 = vmatprep.subr.mxu0 0.0
    %3254 = vmatpush1.xpose.msra.mxu0 0.0
    %3255 = vmatprep.subr.mxu0 0.0
    %3256 = vmatpush1.xpose.msra.mxu0 0.0
    %3257 = vmatprep.subr.mxu0 0.0
    %3258 = vmatpush1.xpose.msra.mxu0 0.0
    %3259 = vmatprep.subr.mxu0 0.0
    %3260 = vmatpush1.xpose.msra.mxu0 0.0
    %3261 = vmatprep.subr.mxu0 0.0
    %3262 = vmatpush1.xpose.msra.mxu0 0.0
    %3263 = vmatprep.subr.mxu0 0.0
    %3264 = vmatpush1.xpose.msra.mxu0 0.0
    %3265 = vmatprep.subr.mxu0 0.0
    %3266 = vmatpush1.xpose.msra.mxu0 0.0
    %3267 = vmatprep.subr.mxu0 0.0
    %3268 = vmatpush1.xpose.msra.mxu0 0.0
    %3269 = vmatprep.subr.mxu0 0.0
    %3270 = vmatpush1.xpose.msra.mxu0 0.0
    %3271 = vmatprep.subr.mxu0 0.0
    %3272 = vmatpush1.xpose.msra.mxu0 0.0
    %3273 = vmatprep.subr.mxu0 0.0
    %3274 = vmatpush1.xpose.msra.mxu0 0.0
    %3275 = vmatprep.subr.mxu0 0.0
    %3276 = vmatpush1.xpose.msra.mxu0 0.0
    %3277 = vmatprep.subr.mxu0 0.0
    %3278 = vmatpush1.xpose.msra.mxu0 0.0
    %3279 = vmatprep.subr.mxu0 0.0
    %3280 = vmatpush1.xpose.msra.mxu0 0.0
    %3281 = vmatprep.subr.mxu0 0.0
    %3282 = vmatpush1.xpose.msra.mxu0 0.0
    %3283 = vmatprep.subr.mxu0 0.0
    %3284 = vmatpush1.xpose.msra.mxu0 0.0
    %3285 = vmatprep.subr.mxu0 0.0
    %3286 = vmatpush1.xpose.msra.mxu0 0.0
    %3287 = vmatprep.subr.mxu0 0.0
    %3288 = vmatpush1.xpose.msra.mxu0 0.0
    %3289 = vmatprep.subr.mxu0 0.0
    %3290 = vmatpush1.xpose.msra.mxu0 0.0
    %3291 = vmatprep.subr.mxu0 0.0
    %3292 = vmatpush1.xpose.msra.mxu0 0.0
    %3293 = vmatprep.subr.mxu0 0.0
    %3294 = vmatpush1.xpose.msra.mxu0 0.0
    %3295 = vmatprep.mubr.f32.mxu0 0.0
    %v3296 = vand.u32 %v3225, 4294901760
    %v3297 = vsub.f32 %v3225, %v3296
    %v3298 = vand.u32 %v3297, 4294901760
    %v3299 = vsub.f32 %v3297, %v3298
    %v3300 = vand.u32 %v3299, 4294901760
    %3301 = vmatmul.mubr.f32.gmra.mrb[0].mxu0 %v3300
    %v3302 = vpop.f32.mrb[0].mxu0
    %v3303 = vadd.f32 0.0, %v3302
    %v3304 = vpop.f32.mrb[0].mxu0
    %3305 = vdwg.mxu0
    %3306 = vmatprep.subr.mxu0 0.0
    %v3307 = vand.u32 %v3228, 4294901760
    %v3308 = vsub.f32 %v3228, %v3307
    %v3309 = vand.u32 %v3308, 4294901760
    %v3310 = vsub.f32 %v3308, %v3309
    %v3311 = vand.u32 %v3310, 4294901760
    %3312 = vmatpush1.xpose.msra.mxu0 %v3311
    %3313 = vmatprep.subr.mxu0 0.0
    %3314 = vmatpush1.xpose.msra.mxu0 0.0
    %3315 = vmatprep.subr.mxu0 0.0
    %3316 = vmatpush1.xpose.msra.mxu0 0.0
    %3317 = vmatprep.subr.mxu0 0.0
    %3318 = vmatpush1.xpose.msra.mxu0 0.0
    %3319 = vmatprep.subr.mxu0 0.0
    %3320 = vmatpush1.xpose.msra.mxu0 0.0
    %3321 = vmatprep.subr.mxu0 0.0
    %3322 = vmatpush1.xpose.msra.mxu0 0.0
    %3323 = vmatprep.subr.mxu0 0.0
    %3324 = vmatpush1.xpose.msra.mxu0 0.0
    %3325 = vmatprep.subr.mxu0 0.0
    %3326 = vmatpush1.xpose.msra.mxu0 0.0
    %3327 = vmatprep.subr.mxu0 0.0
    %3328 = vmatpush1.xpose.msra.mxu0 0.0
    %3329 = vmatprep.subr.mxu0 0.0
    %3330 = vmatpush1.xpose.msra.mxu0 0.0
    %3331 = vmatprep.subr.mxu0 0.0
    %3332 = vmatpush1.xpose.msra.mxu0 0.0
    %3333 = vmatprep.subr.mxu0 0.0
    %3334 = vmatpush1.xpose.msra.mxu0 0.0
    %3335 = vmatprep.subr.mxu0 0.0
    %3336 = vmatpush1.xpose.msra.mxu0 0.0
    %3337 = vmatprep.subr.mxu0 0.0
    %3338 = vmatpush1.xpose.msra.mxu0 0.0
    %3339 = vmatprep.subr.mxu0 0.0
    %3340 = vmatpush1.xpose.msra.mxu0 0.0
    %3341 = vmatprep.subr.mxu0 0.0
    %3342 = vmatpush1.xpose.msra.mxu0 0.0
    %3343 = vmatprep.subr.mxu0 0.0
    %3344 = vmatpush1.xpose.msra.mxu0 0.0
    %3345 = vmatprep.subr.mxu0 0.0
    %3346 = vmatpush1.xpose.msra.mxu0 0.0
    %3347 = vmatprep.subr.mxu0 0.0
    %3348 = vmatpush1.xpose.msra.mxu0 0.0
    %3349 = vmatprep.subr.mxu0 0.0
    %3350 = vmatpush1.xpose.msra.mxu0 0.0
    %3351 = vmatprep.subr.mxu0 0.0
    %3352 = vmatpush1.xpose.msra.mxu0 0.0
    %3353 = vmatprep.subr.mxu0 0.0
    %3354 = vmatpush1.xpose.msra.mxu0 0.0
    %3355 = vmatprep.subr.mxu0 0.0
    %3356 = vmatpush1.xpose.msra.mxu0 0.0
    %3357 = vmatprep.subr.mxu0 0.0
    %3358 = vmatpush1.xpose.msra.mxu0 0.0
    %3359 = vmatprep.subr.mxu0 0.0
    %3360 = vmatpush1.xpose.msra.mxu0 0.0
    %3361 = vmatprep.subr.mxu0 0.0
    %3362 = vmatpush1.xpose.msra.mxu0 0.0
    %3363 = vmatprep.subr.mxu0 0.0
    %3364 = vmatpush1.xpose.msra.mxu0 0.0
    %3365 = vmatprep.subr.mxu0 0.0
    %3366 = vmatpush1.xpose.msra.mxu0 0.0
    %3367 = vmatprep.subr.mxu0 0.0
    %3368 = vmatpush1.xpose.msra.mxu0 0.0
    %3369 = vmatprep.subr.mxu0 0.0
    %3370 = vmatpush1.xpose.msra.mxu0 0.0
    %3371 = vmatprep.subr.mxu0 0.0
    %3372 = vmatpush1.xpose.msra.mxu0 0.0
    %3373 = vmatprep.subr.mxu0 0.0
    %3374 = vmatpush1.xpose.msra.mxu0 0.0
    %3375 = vmatprep.mubr.f32.mxu0 0.0
    %v3376 = vand.u32 %v3225, 4294901760
    %3377 = vmatmul.mubr.f32.gmra.mrb[0].mxu0 %v3376
    %v3378 = vpop.f32.mrb[0].mxu0
    %v3379 = vadd.f32 %v3303, %v3378
    %v3380 = vpop.f32.mrb[0].mxu0
    %3381 = vdwg.mxu0
    %3382 = vmatprep.subr.mxu0 0.0
    %v3383 = vand.u32 %v3228, 4294901760
    %v3384 = vsub.f32 %v3228, %v3383
    %3385 = vmatpush1.xpose.msra.mxu0 %v3384
    %3386 = vmatprep.subr.mxu0 0.0
    %3387 = vmatpush1.xpose.msra.mxu0 0.0
    %3388 = vmatprep.subr.mxu0 0.0
    %3389 = vmatpush1.xpose.msra.mxu0 0.0
    %3390 = vmatprep.subr.mxu0 0.0
    %3391 = vmatpush1.xpose.msra.mxu0 0.0
    %3392 = vmatprep.subr.mxu0 0.0
    %3393 = vmatpush1.xpose.msra.mxu0 0.0
    %3394 = vmatprep.subr.mxu0 0.0
    %3395 = vmatpush1.xpose.msra.mxu0 0.0
    %3396 = vmatprep.subr.mxu0 0.0
    %3397 = vmatpush1.xpose.msra.mxu0 0.0
    %3398 = vmatprep.subr.mxu0 0.0
    %3399 = vmatpush1.xpose.msra.mxu0 0.0
    %3400 = vmatprep.subr.mxu0 0.0
    %3401 = vmatpush1.xpose.msra.mxu0 0.0
    %3402 = vmatprep.subr.mxu0 0.0
    %3403 = vmatpush1.xpose.msra.mxu0 0.0
    %3404 = vmatprep.subr.mxu0 0.0
    %3405 = vmatpush1.xpose.msra.mxu0 0.0
    %3406 = vmatprep.subr.mxu0 0.0
    %3407 = vmatpush1.xpose.msra.mxu0 0.0
    %3408 = vmatprep.subr.mxu0 0.0
    %3409 = vmatpush1.xpose.msra.mxu0 0.0
    %3410 = vmatprep.subr.mxu0 0.0
    %3411 = vmatpush1.xpose.msra.mxu0 0.0
    %3412 = vmatprep.subr.mxu0 0.0
    %3413 = vmatpush1.xpose.msra.mxu0 0.0
    %3414 = vmatprep.subr.mxu0 0.0
    %3415 = vmatpush1.xpose.msra.mxu0 0.0
    %3416 = vmatprep.subr.mxu0 0.0
    %3417 = vmatpush1.xpose.msra.mxu0 0.0
    %3418 = vmatprep.subr.mxu0 0.0
    %3419 = vmatpush1.xpose.msra.mxu0 0.0
    %3420 = vmatprep.subr.mxu0 0.0
    %3421 = vmatpush1.xpose.msra.mxu0 0.0
    %3422 = vmatprep.subr.mxu0 0.0
    %3423 = vmatpush1.xpose.msra.mxu0 0.0
    %3424 = vmatprep.subr.mxu0 0.0
    %3425 = vmatpush1.xpose.msra.mxu0 0.0
    %3426 = vmatprep.subr.mxu0 0.0
    %3427 = vmatpush1.xpose.msra.mxu0 0.0
    %3428 = vmatprep.subr.mxu0 0.0
    %3429 = vmatpush1.xpose.msra.mxu0 0.0
    %3430 = vmatprep.subr.mxu0 0.0
    %3431 = vmatpush1.xpose.msra.mxu0 0.0
    %3432 = vmatprep.subr.mxu0 0.0
    %3433 = vmatpush1.xpose.msra.mxu0 0.0
    %3434 = vmatprep.subr.mxu0 0.0
    %3435 = vmatpush1.xpose.msra.mxu0 0.0
    %3436 = vmatprep.subr.mxu0 0.0
    %3437 = vmatpush1.xpose.msra.mxu0 0.0
    %3438 = vmatprep.subr.mxu0 0.0
    %3439 = vmatpush1.xpose.msra.mxu0 0.0
    %3440 = vmatprep.subr.mxu0 0.0
    %3441 = vmatpush1.xpose.msra.mxu0 0.0
    %3442 = vmatprep.subr.mxu0 0.0
    %3443 = vmatpush1.xpose.msra.mxu0 0.0
    %3444 = vmatprep.subr.mxu0 0.0
    %3445 = vmatpush1.xpose.msra.mxu0 0.0
    %3446 = vmatprep.subr.mxu0 0.0
    %3447 = vmatpush1.xpose.msra.mxu0 0.0
    %3448 = vmatprep.mubr.f32.mxu0 0.0
    %v3449 = vand.u32 %v3225, 4294901760
    %v3450 = vsub.f32 %v3225, %v3449
    %3451 = vmatmul.mubr.f32.gmra.mrb[0].mxu0 %v3450
    %v3452 = vpop.f32.mrb[0].mxu0
    %v3453 = vadd.f32 %v3379, %v3452
    %v3454 = vpop.f32.mrb[0].mxu0
    %3455 = vdwg.mxu0
    %3456 = vmatprep.subr.mxu0 0.0
    %v3457 = vand.u32 %v3228, 4294901760
    %3458 = vmatpush1.xpose.msra.mxu0 %v3457
    %3459 = vmatprep.subr.mxu0 0.0
    %3460 = vmatpush1.xpose.msra.mxu0 0.0
    %3461 = vmatprep.subr.mxu0 0.0
    %3462 = vmatpush1.xpose.msra.mxu0 0.0
    %3463 = vmatprep.subr.mxu0 0.0
    %3464 = vmatpush1.xpose.msra.mxu0 0.0
    %3465 = vmatprep.subr.mxu0 0.0
    %3466 = vmatpush1.xpose.msra.mxu0 0.0
    %3467 = vmatprep.subr.mxu0 0.0
    %3468 = vmatpush1.xpose.msra.mxu0 0.0
    %3469 = vmatprep.subr.mxu0 0.0
    %3470 = vmatpush1.xpose.msra.mxu0 0.0
    %3471 = vmatprep.subr.mxu0 0.0
    %3472 = vmatpush1.xpose.msra.mxu0 0.0
    %3473 = vmatprep.subr.mxu0 0.0
    %3474 = vmatpush1.xpose.msra.mxu0 0.0
    %3475 = vmatprep.subr.mxu0 0.0
    %3476 = vmatpush1.xpose.msra.mxu0 0.0
    %3477 = vmatprep.subr.mxu0 0.0
    %3478 = vmatpush1.xpose.msra.mxu0 0.0
    %3479 = vmatprep.subr.mxu0 0.0
    %3480 = vmatpush1.xpose.msra.mxu0 0.0
    %3481 = vmatprep.subr.mxu0 0.0
    %3482 = vmatpush1.xpose.msra.mxu0 0.0
    %3483 = vmatprep.subr.mxu0 0.0
    %3484 = vmatpush1.xpose.msra.mxu0 0.0
    %3485 = vmatprep.subr.mxu0 0.0
    %3486 = vmatpush1.xpose.msra.mxu0 0.0
    %3487 = vmatprep.subr.mxu0 0.0
    %3488 = vmatpush1.xpose.msra.mxu0 0.0
    %3489 = vmatprep.subr.mxu0 0.0
    %3490 = vmatpush1.xpose.msra.mxu0 0.0
    %3491 = vmatprep.subr.mxu0 0.0
    %3492 = vmatpush1.xpose.msra.mxu0 0.0
    %3493 = vmatprep.subr.mxu0 0.0
    %3494 = vmatpush1.xpose.msra.mxu0 0.0
    %3495 = vmatprep.subr.mxu0 0.0
    %3496 = vmatpush1.xpose.msra.mxu0 0.0
    %3497 = vmatprep.subr.mxu0 0.0
    %3498 = vmatpush1.xpose.msra.mxu0 0.0
    %3499 = vmatprep.subr.mxu0 0.0
    %3500 = vmatpush1.xpose.msra.mxu0 0.0
    %3501 = vmatprep.subr.mxu0 0.0
    %3502 = vmatpush1.xpose.msra.mxu0 0.0
    %3503 = vmatprep.subr.mxu0 0.0
    %3504 = vmatpush1.xpose.msra.mxu0 0.0
    %3505 = vmatprep.subr.mxu0 0.0
    %3506 = vmatpush1.xpose.msra.mxu0 0.0
    %3507 = vmatprep.subr.mxu0 0.0
    %3508 = vmatpush1.xpose.msra.mxu0 0.0
    %3509 = vmatprep.subr.mxu0 0.0
    %3510 = vmatpush1.xpose.msra.mxu0 0.0
    %3511 = vmatprep.subr.mxu0 0.0
    %3512 = vmatpush1.xpose.msra.mxu0 0.0
    %3513 = vmatprep.subr.mxu0 0.0
    %3514 = vmatpush1.xpose.msra.mxu0 0.0
    %3515 = vmatprep.subr.mxu0 0.0
    %3516 = vmatpush1.xpose.msra.mxu0 0.0
    %3517 = vmatprep.subr.mxu0 0.0
    %3518 = vmatpush1.xpose.msra.mxu0 0.0
    %3519 = vmatprep.subr.mxu0 0.0
    %3520 = vmatpush1.xpose.msra.mxu0 0.0
    %3521 = vmatprep.mubr.f32.mxu0 0.0
    %v3522 = vand.u32 %v3225, 4294901760
    %v3523 = vsub.f32 %v3225, %v3522
    %v3524 = vand.u32 %v3523, 4294901760
    %3525 = vmatmul.mubr.f32.gmra.mrb[0].mxu0 %v3524
    %v3526 = vpop.f32.mrb[0].mxu0
    %v3527 = vadd.f32 %v3453, %v3526
    %v3528 = vpop.f32.mrb[0].mxu0
    %3529 = vdwg.mxu0
    %3530 = vmatprep.subr.mxu0 0.0
    %v3531 = vand.u32 %v3228, 4294901760
    %v3532 = vsub.f32 %v3228, %v3531
    %v3533 = vand.u32 %v3532, 4294901760
    %3534 = vmatpush1.xpose.msra.mxu0 %v3533
    %3535 = vmatprep.subr.mxu0 0.0
    %3536 = vmatpush1.xpose.msra.mxu0 0.0
    %3537 = vmatprep.subr.mxu0 0.0
    %3538 = vmatpush1.xpose.msra.mxu0 0.0
    %3539 = vmatprep.subr.mxu0 0.0
    %3540 = vmatpush1.xpose.msra.mxu0 0.0
    %3541 = vmatprep.subr.mxu0 0.0
    %3542 = vmatpush1.xpose.msra.mxu0 0.0
    %3543 = vmatprep.subr.mxu0 0.0
    %3544 = vmatpush1.xpose.msra.mxu0 0.0
    %3545 = vmatprep.subr.mxu0 0.0
    %3546 = vmatpush1.xpose.msra.mxu0 0.0
    %3547 = vmatprep.subr.mxu0 0.0
    %3548 = vmatpush1.xpose.msra.mxu0 0.0
    %3549 = vmatprep.subr.mxu0 0.0
    %3550 = vmatpush1.xpose.msra.mxu0 0.0
    %3551 = vmatprep.subr.mxu0 0.0
    %3552 = vmatpush1.xpose.msra.mxu0 0.0
    %3553 = vmatprep.subr.mxu0 0.0
    %3554 = vmatpush1.xpose.msra.mxu0 0.0
    %3555 = vmatprep.subr.mxu0 0.0
    %3556 = vmatpush1.xpose.msra.mxu0 0.0
    %3557 = vmatprep.subr.mxu0 0.0
    %3558 = vmatpush1.xpose.msra.mxu0 0.0
    %3559 = vmatprep.subr.mxu0 0.0
    %3560 = vmatpush1.xpose.msra.mxu0 0.0
    %3561 = vmatprep.subr.mxu0 0.0
    %3562 = vmatpush1.xpose.msra.mxu0 0.0
    %3563 = vmatprep.subr.mxu0 0.0
    %3564 = vmatpush1.xpose.msra.mxu0 0.0
    %3565 = vmatprep.subr.mxu0 0.0
    %3566 = vmatpush1.xpose.msra.mxu0 0.0
    %3567 = vmatprep.subr.mxu0 0.0
    %3568 = vmatpush1.xpose.msra.mxu0 0.0
    %3569 = vmatprep.subr.mxu0 0.0
    %3570 = vmatpush1.xpose.msra.mxu0 0.0
    %3571 = vmatprep.subr.mxu0 0.0
    %3572 = vmatpush1.xpose.msra.mxu0 0.0
    %3573 = vmatprep.subr.mxu0 0.0
    %3574 = vmatpush1.xpose.msra.mxu0 0.0
    %3575 = vmatprep.subr.mxu0 0.0
    %3576 = vmatpush1.xpose.msra.mxu0 0.0
    %3577 = vmatprep.subr.mxu0 0.0
    %3578 = vmatpush1.xpose.msra.mxu0 0.0
    %3579 = vmatprep.subr.mxu0 0.0
    %3580 = vmatpush1.xpose.msra.mxu0 0.0
    %3581 = vmatprep.subr.mxu0 0.0
    %3582 = vmatpush1.xpose.msra.mxu0 0.0
    %3583 = vmatprep.subr.mxu0 0.0
    %3584 = vmatpush1.xpose.msra.mxu0 0.0
    %3585 = vmatprep.subr.mxu0 0.0
    %3586 = vmatpush1.xpose.msra.mxu0 0.0
    %3587 = vmatprep.subr.mxu0 0.0
    %3588 = vmatpush1.xpose.msra.mxu0 0.0
    %3589 = vmatprep.subr.mxu0 0.0
    %3590 = vmatpush1.xpose.msra.mxu0 0.0
    %3591 = vmatprep.subr.mxu0 0.0
    %3592 = vmatpush1.xpose.msra.mxu0 0.0
    %3593 = vmatprep.subr.mxu0 0.0
    %3594 = vmatpush1.xpose.msra.mxu0 0.0
    %3595 = vmatprep.subr.mxu0 0.0
    %3596 = vmatpush1.xpose.msra.mxu0 0.0
    %3597 = vmatprep.mubr.f32.mxu0 0.0
    %v3598 = vand.u32 %v3225, 4294901760
    %3599 = vmatmul.mubr.f32.gmra.mrb[0].mxu0 %v3598
    %v3600 = vpop.f32.mrb[0].mxu0
    %v3601 = vadd.f32 %v3527, %v3600
    %v3602 = vpop.f32.mrb[0].mxu0
    %3603 = vdwg.mxu0
    %3604 = vmatprep.subr.mxu0 0.0
    %v3605 = vand.u32 %v3228, 4294901760
    %3606 = vmatpush1.xpose.msra.mxu0 %v3605
    %3607 = vmatprep.subr.mxu0 0.0
    %3608 = vmatpush1.xpose.msra.mxu0 0.0
    %3609 = vmatprep.subr.mxu0 0.0
    %3610 = vmatpush1.xpose.msra.mxu0 0.0
    %3611 = vmatprep.subr.mxu0 0.0
    %3612 = vmatpush1.xpose.msra.mxu0 0.0
    %3613 = vmatprep.subr.mxu0 0.0
    %3614 = vmatpush1.xpose.msra.mxu0 0.0
    %3615 = vmatprep.subr.mxu0 0.0
    %3616 = vmatpush1.xpose.msra.mxu0 0.0
    %3617 = vmatprep.subr.mxu0 0.0
    %3618 = vmatpush1.xpose.msra.mxu0 0.0
    %3619 = vmatprep.subr.mxu0 0.0
    %3620 = vmatpush1.xpose.msra.mxu0 0.0
    %3621 = vmatprep.subr.mxu0 0.0
    %3622 = vmatpush1.xpose.msra.mxu0 0.0
    %3623 = vmatprep.subr.mxu0 0.0
    %3624 = vmatpush1.xpose.msra.mxu0 0.0
    %3625 = vmatprep.subr.mxu0 0.0
    %3626 = vmatpush1.xpose.msra.mxu0 0.0
    %3627 = vmatprep.subr.mxu0 0.0
    %3628 = vmatpush1.xpose.msra.mxu0 0.0
    %3629 = vmatprep.subr.mxu0 0.0
    %3630 = vmatpush1.xpose.msra.mxu0 0.0
    %3631 = vmatprep.subr.mxu0 0.0
    %3632 = vmatpush1.xpose.msra.mxu0 0.0
    %3633 = vmatprep.subr.mxu0 0.0
    %3634 = vmatpush1.xpose.msra.mxu0 0.0
    %3635 = vmatprep.subr.mxu0 0.0
    %3636 = vmatpush1.xpose.msra.mxu0 0.0
    %3637 = vmatprep.subr.mxu0 0.0
    %3638 = vmatpush1.xpose.msra.mxu0 0.0
    %3639 = vmatprep.subr.mxu0 0.0
    %3640 = vmatpush1.xpose.msra.mxu0 0.0
    %3641 = vmatprep.subr.mxu0 0.0
    %3642 = vmatpush1.xpose.msra.mxu0 0.0
    %3643 = vmatprep.subr.mxu0 0.0
    %3644 = vmatpush1.xpose.msra.mxu0 0.0
    %3645 = vmatprep.subr.mxu0 0.0
    %3646 = vmatpush1.xpose.msra.mxu0 0.0
    %3647 = vmatprep.subr.mxu0 0.0
    %3648 = vmatpush1.xpose.msra.mxu0 0.0
    %3649 = vmatprep.subr.mxu0 0.0
    %3650 = vmatpush1.xpose.msra.mxu0 0.0
    %3651 = vmatprep.subr.mxu0 0.0
    %3652 = vmatpush1.xpose.msra.mxu0 0.0
    %3653 = vmatprep.subr.mxu0 0.0
    %3654 = vmatpush1.xpose.msra.mxu0 0.0
    %3655 = vmatprep.subr.mxu0 0.0
    %3656 = vmatpush1.xpose.msra.mxu0 0.0
    %3657 = vmatprep.subr.mxu0 0.0
    %3658 = vmatpush1.xpose.msra.mxu0 0.0
    %3659 = vmatprep.subr.mxu0 0.0
    %3660 = vmatpush1.xpose.msra.mxu0 0.0
    %3661 = vmatprep.subr.mxu0 0.0
    %3662 = vmatpush1.xpose.msra.mxu0 0.0
    %3663 = vmatprep.subr.mxu0 0.0
    %3664 = vmatpush1.xpose.msra.mxu0 0.0
    %3665 = vmatprep.subr.mxu0 0.0
    %3666 = vmatpush1.xpose.msra.mxu0 0.0
    %3667 = vmatprep.subr.mxu0 0.0
    %3668 = vmatpush1.xpose.msra.mxu0 0.0
    %3669 = vmatprep.mubr.f32.mxu0 0.0
    %v3670 = vand.u32 %v3225, 4294901760
    %3671 = vmatmul.mubr.f32.gmra.mrb[0].mxu0 %v3670
    %v3672 = vpop.f32.mrb[0].mxu0
    %v3673 = vadd.f32 %v3601, %v3672
    %v3674 = vpop.f32.mrb[0].mxu0
    %3675 = vdwg.mxu0
    %vm3676 = vcmask 57344
    %v3677 = vsel %vm3676, %v509, -inf
    %3678 = vmax.xlane.f32.xlu0 %v3677
    %v3679 = vpop.xlane.xlu0 %3678
    %v3680 = vsel %vm3676, %v961, -inf
    %3681 = vmax.xlane.f32.xlu0 %v3680
    %v3682 = vpop.xlane.xlu0 %3681
    %v3683 = vsel %vm3676, %v1413, -inf
    %3684 = vmax.xlane.f32.xlu0 %v3683
    %v3685 = vpop.xlane.xlu0 %3684
    %v3686 = vsel %vm3676, %v1865, -inf
    %3687 = vmax.xlane.f32.xlu0 %v3686
    %v3688 = vpop.xlane.xlu0 %3687
    %v3689 = vsel %vm3676, %v2317, -inf
    %3690 = vmax.xlane.f32.xlu0 %v3689
    %v3691 = vpop.xlane.xlu0 %3690
    %v3692 = vsel %vm3676, %v2769, -inf
    %3693 = vmax.xlane.f32.xlu0 %v3692
    %v3694 = vpop.xlane.xlu0 %3693
    %v3695 = vsel %vm3676, %v3221, -inf
    %3696 = vmax.xlane.f32.xlu0 %v3695
    %v3697 = vpop.xlane.xlu0 %3696
    %v3698 = vsel %vm3676, %v3673, -inf
    %3699 = vmax.xlane.f32.xlu0 %v3698
    %v3700 = vpop.xlane.xlu0 %3699
    %v3701 = vsub.f32 %v509, %v3679
    %v3702 = vsub.f32 %v961, %v3682
    %v3703 = vsub.f32 %v1413, %v3685
    %v3704 = vsub.f32 %v1865, %v3688
    %v3705 = vsub.f32 %v2317, %v3691
    %v3706 = vsub.f32 %v2769, %v3694
    %v3707 = vsub.f32 %v3221, %v3697
    %v3708 = vsub.f32 %v3673, %v3700
    %v3709 = vmul.f32 %v3701, 1.442695
    %v3710 = vpow.pop %v3709
    %v3711 = vmul.f32 %v3702, 1.442695
    %v3712 = vpow.pop %v3711
    %v3713 = vmul.f32 %v3703, 1.442695
    %v3714 = vpow.pop %v3713
    %v3715 = vmul.f32 %v3704, 1.442695
    %v3716 = vpow.pop %v3715
    %v3717 = vmul.f32 %v3705, 1.442695
    %v3718 = vpow.pop %v3717
    %v3719 = vmul.f32 %v3706, 1.442695
    %v3720 = vpow.pop %v3719
    %v3721 = vmul.f32 %v3707, 1.442695
    %v3722 = vpow.pop %v3721
    %v3723 = vmul.f32 %v3708, 1.442695
    %v3724 = vpow.pop %v3723
    %v3725 = vsel %vm3676, %v3710, 0.0
    %3726 = vadd.xlane.f32.xlu0 %v3725
    %v3727 = vpop.xlane.xlu0 %3726
    %v3728 = vsel %vm3676, %v3712, 0.0
    %3729 = vadd.xlane.f32.xlu0 %v3728
    %v3730 = vpop.xlane.xlu0 %3729
    %v3731 = vsel %vm3676, %v3714, 0.0
    %3732 = vadd.xlane.f32.xlu0 %v3731
    %v3733 = vpop.xlane.xlu0 %3732
    %v3734 = vsel %vm3676, %v3716, 0.0
    %3735 = vadd.xlane.f32.xlu0 %v3734
    %v3736 = vpop.xlane.xlu0 %3735
    %v3737 = vsel %vm3676, %v3718, 0.0
    %3738 = vadd.xlane.f32.xlu0 %v3737
    %v3739 = vpop.xlane.xlu0 %3738
    %v3740 = vsel %vm3676, %v3720, 0.0
    %3741 = vadd.xlane.f32.xlu0 %v3740
    %v3742 = vpop.xlane.xlu0 %3741
    %v3743 = vsel %vm3676, %v3722, 0.0
    %3744 = vadd.xlane.f32.xlu0 %v3743
    %v3745 = vpop.xlane.xlu0 %3744
    %v3746 = vsel %vm3676, %v3724, 0.0
    %3747 = vadd.xlane.f32.xlu0 %v3746
    %v3748 = vpop.xlane.xlu0 %3747
    %v3749 = vrcp.pop %v3727
    %v3750 = vmul.f32 %v3710, %v3749
    %v3751 = vrcp.pop %v3730
    %v3752 = vmul.f32 %v3712, %v3751
    %v3753 = vrcp.pop %v3733
    %v3754 = vmul.f32 %v3714, %v3753
    %v3755 = vrcp.pop %v3736
    %v3756 = vmul.f32 %v3716, %v3755
    %v3757 = vrcp.pop %v3739
    %v3758 = vmul.f32 %v3718, %v3757
    %v3759 = vrcp.pop %v3742
    %v3760 = vmul.f32 %v3720, %v3759
    %v3761 = vrcp.pop %v3745
    %v3762 = vmul.f32 %v3722, %v3761
    %v3763 = vrcp.pop %v3748
    %v3764 = vmul.f32 %v3724, %v3763
    %vm3765 = vcmask 64512
    %v3767 = vsel %vm3765, %v3750, 0
    %3769 = vmatprep.subr.mxu0 0.0
    %v3770 = vand.u32 %v51, 4294901760
    %3771 = vmatpush1.msra.mxu0 %v3770
    %3772 = vmatprep.subr.mxu0 0.0
    %3773 = vmatpush1.msra.mxu0 0.0
    %3774 = vmatprep.subr.mxu0 0.0
    %3775 = vmatpush1.msra.mxu0 0.0
    %3776 = vmatprep.subr.mxu0 0.0
    %3777 = vmatpush1.msra.mxu0 0.0
    %3778 = vmatprep.subr.mxu0 0.0
    %3779 = vmatpush1.msra.mxu0 0.0
    %3780 = vmatprep.subr.mxu0 0.0
    %3781 = vmatpush1.msra.mxu0 0.0
    %3782 = vmatprep.subr.mxu0 0.0
    %3783 = vmatpush1.msra.mxu0 0.0
    %3784 = vmatprep.subr.mxu0 0.0
    %3785 = vmatpush1.msra.mxu0 0.0
    %3786 = vmatprep.subr.mxu0 0.0
    %3787 = vmatpush1.msra.mxu0 0.0
    %3788 = vmatprep.subr.mxu0 0.0
    %3789 = vmatpush1.msra.mxu0 0.0
    %3790 = vmatprep.subr.mxu0 0.0
    %3791 = vmatpush1.msra.mxu0 0.0
    %3792 = vmatprep.subr.mxu0 0.0
    %3793 = vmatpush1.msra.mxu0 0.0
    %3794 = vmatprep.subr.mxu0 0.0
    %3795 = vmatpush1.msra.mxu0 0.0
    %3796 = vmatprep.subr.mxu0 0.0
    %3797 = vmatpush1.msra.mxu0 0.0
    %3798 = vmatprep.subr.mxu0 0.0
    %3799 = vmatpush1.msra.mxu0 0.0
    %3800 = vmatprep.subr.mxu0 0.0
    %3801 = vmatpush1.msra.mxu0 0.0
    %3802 = vmatprep.subr.mxu0 0.0
    %3803 = vmatpush1.msra.mxu0 0.0
    %3804 = vmatprep.subr.mxu0 0.0
    %3805 = vmatpush1.msra.mxu0 0.0
    %3806 = vmatprep.subr.mxu0 0.0
    %3807 = vmatpush1.msra.mxu0 0.0
    %3808 = vmatprep.subr.mxu0 0.0
    %3809 = vmatpush1.msra.mxu0 0.0
    %3810 = vmatprep.subr.mxu0 0.0
    %3811 = vmatpush1.msra.mxu0 0.0
    %3812 = vmatprep.subr.mxu0 0.0
    %3813 = vmatpush1.msra.mxu0 0.0
    %3814 = vmatprep.subr.mxu0 0.0
    %3815 = vmatpush1.msra.mxu0 0.0
    %3816 = vmatprep.subr.mxu0 0.0
    %3817 = vmatpush1.msra.mxu0 0.0
    %3818 = vmatprep.subr.mxu0 0.0
    %3819 = vmatpush1.msra.mxu0 0.0
    %3820 = vmatprep.subr.mxu0 0.0
    %3821 = vmatpush1.msra.mxu0 0.0
    %3822 = vmatprep.subr.mxu0 0.0
    %3823 = vmatpush1.msra.mxu0 0.0
    %3824 = vmatprep.subr.mxu0 0.0
    %3825 = vmatpush1.msra.mxu0 0.0
    %3826 = vmatprep.subr.mxu0 0.0
    %3827 = vmatpush1.msra.mxu0 0.0
    %3828 = vmatprep.subr.mxu0 0.0
    %3829 = vmatpush1.msra.mxu0 0.0
    %3830 = vmatprep.subr.mxu0 0.0
    %3831 = vmatpush1.msra.mxu0 0.0
    %3832 = vmatprep.subr.mxu0 0.0
    %3833 = vmatpush1.msra.mxu0 0.0
    %3834 = vmatprep.mubr.f32.mxu0 0.0
    %v3835 = vand.u32 %v3767, 4294901760
    %v3836 = vsub.f32 %v3767, %v3835
    %v3837 = vand.u32 %v3836, 4294901760
    %v3838 = vsub.f32 %v3836, %v3837
    %v3839 = vand.u32 %v3838, 4294901760
    %3840 = vmatmul.mubr.f32.gmra.mrb[0].mxu0 %v3839
    %v3841 = vpop.f32.mrb[0].mxu0
    %v3842 = vadd.f32 0.0, %v3841
    %v3843 = vpop.f32.mrb[0].mxu0
    %3844 = vdwg.mxu0
    %3845 = vmatprep.subr.mxu0 0.0
    %v3846 = vand.u32 %v51, 4294901760
    %v3847 = vsub.f32 %v51, %v3846
    %v3848 = vand.u32 %v3847, 4294901760
    %v3849 = vsub.f32 %v3847, %v3848
    %v3850 = vand.u32 %v3849, 4294901760
    %3851 = vmatpush1.msra.mxu0 %v3850
    %3852 = vmatprep.subr.mxu0 0.0
    %3853 = vmatpush1.msra.mxu0 0.0
    %3854 = vmatprep.subr.mxu0 0.0
    %3855 = vmatpush1.msra.mxu0 0.0
    %3856 = vmatprep.subr.mxu0 0.0
    %3857 = vmatpush1.msra.mxu0 0.0
    %3858 = vmatprep.subr.mxu0 0.0
    %3859 = vmatpush1.msra.mxu0 0.0
    %3860 = vmatprep.subr.mxu0 0.0
    %3861 = vmatpush1.msra.mxu0 0.0
    %3862 = vmatprep.subr.mxu0 0.0
    %3863 = vmatpush1.msra.mxu0 0.0
    %3864 = vmatprep.subr.mxu0 0.0
    %3865 = vmatpush1.msra.mxu0 0.0
    %3866 = vmatprep.subr.mxu0 0.0
    %3867 = vmatpush1.msra.mxu0 0.0
    %3868 = vmatprep.subr.mxu0 0.0
    %3869 = vmatpush1.msra.mxu0 0.0
    %3870 = vmatprep.subr.mxu0 0.0
    %3871 = vmatpush1.msra.mxu0 0.0
    %3872 = vmatprep.subr.mxu0 0.0
    %3873 = vmatpush1.msra.mxu0 0.0
    %3874 = vmatprep.subr.mxu0 0.0
    %3875 = vmatpush1.msra.mxu0 0.0
    %3876 = vmatprep.subr.mxu0 0.0
    %3877 = vmatpush1.msra.mxu0 0.0
    %3878 = vmatprep.subr.mxu0 0.0
    %3879 = vmatpush1.msra.mxu0 0.0
    %3880 = vmatprep.subr.mxu0 0.0
    %3881 = vmatpush1.msra.mxu0 0.0
    %3882 = vmatprep.subr.mxu0 0.0
    %3883 = vmatpush1.msra.mxu0 0.0
    %3884 = vmatprep.subr.mxu0 0.0
    %3885 = vmatpush1.msra.mxu0 0.0
    %3886 = vmatprep.subr.mxu0 0.0
    %3887 = vmatpush1.msra.mxu0 0.0
    %3888 = vmatprep.subr.mxu0 0.0
    %3889 = vmatpush1.msra.mxu0 0.0
    %3890 = vmatprep.subr.mxu0 0.0
    %3891 = vmatpush1.msra.mxu0 0.0
    %3892 = vmatprep.subr.mxu0 0.0
    %3893 = vmatpush1.msra.mxu0 0.0
    %3894 = vmatprep.subr.mxu0 0.0
    %3895 = vmatpush1.msra.mxu0 0.0
    %3896 = vmatprep.subr.mxu0 0.0
    %3897 = vmatpush1.msra.mxu0 0.0
    %3898 = vmatprep.subr.mxu0 0.0
    %3899 = vmatpush1.msra.mxu0 0.0
    %3900 = vmatprep.subr.mxu0 0.0
    %3901 = vmatpush1.msra.mxu0 0.0
    %3902 = vmatprep.subr.mxu0 0.0
    %3903 = vmatpush1.msra.mxu0 0.0
    %3904 = vmatprep.subr.mxu0 0.0
    %3905 = vmatpush1.msra.mxu0 0.0
    %3906 = vmatprep.subr.mxu0 0.0
    %3907 = vmatpush1.msra.mxu0 0.0
    %3908 = vmatprep.subr.mxu0 0.0
    %3909 = vmatpush1.msra.mxu0 0.0
    %3910 = vmatprep.subr.mxu0 0.0
    %3911 = vmatpush1.msra.mxu0 0.0
    %3912 = vmatprep.subr.mxu0 0.0
    %3913 = vmatpush1.msra.mxu0 0.0
    %3914 = vmatprep.mubr.f32.mxu0 0.0
    %v3915 = vand.u32 %v3767, 4294901760
    %3916 = vmatmul.mubr.f32.gmra.mrb[0].mxu0 %v3915
    %v3917 = vpop.f32.mrb[0].mxu0
    %v3918 = vadd.f32 %v3842, %v3917
    %v3919 = vpop.f32.mrb[0].mxu0
    %3920 = vdwg.mxu0
    %3921 = vmatprep.subr.mxu0 0.0
    %v3922 = vand.u32 %v51, 4294901760
    %v3923 = vsub.f32 %v51, %v3922
    %3924 = vmatpush1.msra.mxu0 %v3923
    %3925 = vmatprep.subr.mxu0 0.0
    %3926 = vmatpush1.msra.mxu0 0.0
    %3927 = vmatprep.subr.mxu0 0.0
    %3928 = vmatpush1.msra.mxu0 0.0
    %3929 = vmatprep.subr.mxu0 0.0
    %3930 = vmatpush1.msra.mxu0 0.0
    %3931 = vmatprep.subr.mxu0 0.0
    %3932 = vmatpush1.msra.mxu0 0.0
    %3933 = vmatprep.subr.mxu0 0.0
    %3934 = vmatpush1.msra.mxu0 0.0
    %3935 = vmatprep.subr.mxu0 0.0
    %3936 = vmatpush1.msra.mxu0 0.0
    %3937 = vmatprep.subr.mxu0 0.0
    %3938 = vmatpush1.msra.mxu0 0.0
    %3939 = vmatprep.subr.mxu0 0.0
    %3940 = vmatpush1.msra.mxu0 0.0
    %3941 = vmatprep.subr.mxu0 0.0
    %3942 = vmatpush1.msra.mxu0 0.0
    %3943 = vmatprep.subr.mxu0 0.0
    %3944 = vmatpush1.msra.mxu0 0.0
    %3945 = vmatprep.subr.mxu0 0.0
    %3946 = vmatpush1.msra.mxu0 0.0
    %3947 = vmatprep.subr.mxu0 0.0
    %3948 = vmatpush1.msra.mxu0 0.0
    %3949 = vmatprep.subr.mxu0 0.0
    %3950 = vmatpush1.msra.mxu0 0.0
    %3951 = vmatprep.subr.mxu0 0.0
    %3952 = vmatpush1.msra.mxu0 0.0
    %3953 = vmatprep.subr.mxu0 0.0
    %3954 = vmatpush1.msra.mxu0 0.0
    %3955 = vmatprep.subr.mxu0 0.0
    %3956 = vmatpush1.msra.mxu0 0.0
    %3957 = vmatprep.subr.mxu0 0.0
    %3958 = vmatpush1.msra.mxu0 0.0
    %3959 = vmatprep.subr.mxu0 0.0
    %3960 = vmatpush1.msra.mxu0 0.0
    %3961 = vmatprep.subr.mxu0 0.0
    %3962 = vmatpush1.msra.mxu0 0.0
    %3963 = vmatprep.subr.mxu0 0.0
    %3964 = vmatpush1.msra.mxu0 0.0
    %3965 = vmatprep.subr.mxu0 0.0
    %3966 = vmatpush1.msra.mxu0 0.0
    %3967 = vmatprep.subr.mxu0 0.0
    %3968 = vmatpush1.msra.mxu0 0.0
    %3969 = vmatprep.subr.mxu0 0.0
    %3970 = vmatpush1.msra.mxu0 0.0
    %3971 = vmatprep.subr.mxu0 0.0
    %3972 = vmatpush1.msra.mxu0 0.0
    %3973 = vmatprep.subr.mxu0 0.0
    %3974 = vmatpush1.msra.mxu0 0.0
    %3975 = vmatprep.subr.mxu0 0.0
    %3976 = vmatpush1.msra.mxu0 0.0
    %3977 = vmatprep.subr.mxu0 0.0
    %3978 = vmatpush1.msra.mxu0 0.0
    %3979 = vmatprep.subr.mxu0 0.0
    %3980 = vmatpush1.msra.mxu0 0.0
    %3981 = vmatprep.subr.mxu0 0.0
    %3982 = vmatpush1.msra.mxu0 0.0
    %3983 = vmatprep.subr.mxu0 0.0
    %3984 = vmatpush1.msra.mxu0 0.0
    %3985 = vmatprep.subr.mxu0 0.0
    %3986 = vmatpush1.msra.mxu0 0.0
    %3987 = vmatprep.mubr.f32.mxu0 0.0
    %v3988 = vand.u32 %v3767, 4294901760
    %v3989 = vsub.f32 %v3767, %v3988
    %3990 = vmatmul.mubr.f32.gmra.mrb[0].mxu0 %v3989
    %v3991 = vpop.f32.mrb[0].mxu0
    %v3992 = vadd.f32 %v3918, %v3991
    %v3993 = vpop.f32.mrb[0].mxu0
    %3994 = vdwg.mxu0
    %3995 = vmatprep.subr.mxu0 0.0
    %v3996 = vand.u32 %v51, 4294901760
    %3997 = vmatpush1.msra.mxu0 %v3996
    %3998 = vmatprep.subr.mxu0 0.0
    %3999 = vmatpush1.msra.mxu0 0.0
    %4000 = vmatprep.subr.mxu0 0.0
    %4001 = vmatpush1.msra.mxu0 0.0
    %4002 = vmatprep.subr.mxu0 0.0
    %4003 = vmatpush1.msra.mxu0 0.0
    %4004 = vmatprep.subr.mxu0 0.0
    %4005 = vmatpush1.msra.mxu0 0.0
    %4006 = vmatprep.subr.mxu0 0.0
    %4007 = vmatpush1.msra.mxu0 0.0
    %4008 = vmatprep.subr.mxu0 0.0
    %4009 = vmatpush1.msra.mxu0 0.0
    %4010 = vmatprep.subr.mxu0 0.0
    %4011 = vmatpush1.msra.mxu0 0.0
    %4012 = vmatprep.subr.mxu0 0.0
    %4013 = vmatpush1.msra.mxu0 0.0
    %4014 = vmatprep.subr.mxu0 0.0
    %4015 = vmatpush1.msra.mxu0 0.0
    %4016 = vmatprep.subr.mxu0 0.0
    %4017 = vmatpush1.msra.mxu0 0.0
    %4018 = vmatprep.subr.mxu0 0.0
    %4019 = vmatpush1.msra.mxu0 0.0
    %4020 = vmatprep.subr.mxu0 0.0
    %4021 = vmatpush1.msra.mxu0 0.0
    %4022 = vmatprep.subr.mxu0 0.0
    %4023 = vmatpush1.msra.mxu0 0.0
    %4024 = vmatprep.subr.mxu0 0.0
    %4025 = vmatpush1.msra.mxu0 0.0
    %4026 = vmatprep.subr.mxu0 0.0
    %4027 = vmatpush1.msra.mxu0 0.0
    %4028 = vmatprep.subr.mxu0 0.0
    %4029 = vmatpush1.msra.mxu0 0.0
    %4030 = vmatprep.subr.mxu0 0.0
    %4031 = vmatpush1.msra.mxu0 0.0
    %4032 = vmatprep.subr.mxu0 0.0
    %4033 = vmatpush1.msra.mxu0 0.0
    %4034 = vmatprep.subr.mxu0 0.0
    %4035 = vmatpush1.msra.mxu0 0.0
    %4036 = vmatprep.subr.mxu0 0.0
    %4037 = vmatpush1.msra.mxu0 0.0
    %4038 = vmatprep.subr.mxu0 0.0
    %4039 = vmatpush1.msra.mxu0 0.0
    %4040 = vmatprep.subr.mxu0 0.0
    %4041 = vmatpush1.msra.mxu0 0.0
    %4042 = vmatprep.subr.mxu0 0.0
    %4043 = vmatpush1.msra.mxu0 0.0
    %4044 = vmatprep.subr.mxu0 0.0
    %4045 = vmatpush1.msra.mxu0 0.0
    %4046 = vmatprep.subr.mxu0 0.0
    %4047 = vmatpush1.msra.mxu0 0.0
    %4048 = vmatprep.subr.mxu0 0.0
    %4049 = vmatpush1.msra.mxu0 0.0
    %4050 = vmatprep.subr.mxu0 0.0
    %4051 = vmatpush1.msra.mxu0 0.0
    %4052 = vmatprep.subr.mxu0 0.0
    %4053 = vmatpush1.msra.mxu0 0.0
    %4054 = vmatprep.subr.mxu0 0.0
    %4055 = vmatpush1.msra.mxu0 0.0
    %4056 = vmatprep.subr.mxu0 0.0
    %4057 = vmatpush1.msra.mxu0 0.0
    %4058 = vmatprep.subr.mxu0 0.0
    %4059 = vmatpush1.msra.mxu0 0.0
    %4060 = vmatprep.mubr.f32.mxu0 0.0
    %v4061 = vand.u32 %v3767, 4294901760
    %v4062 = vsub.f32 %v3767, %v4061
    %v4063 = vand.u32 %v4062, 4294901760
    %4064 = vmatmul.mubr.f32.gmra.mrb[0].mxu0 %v4063
    %v4065 = vpop.f32.mrb[0].mxu0
    %v4066 = vadd.f32 %v3992, %v4065
    %v4067 = vpop.f32.mrb[0].mxu0
    %4068 = vdwg.mxu0
    %4069 = vmatprep.subr.mxu0 0.0
    %v4070 = vand.u32 %v51, 4294901760
    %v4071 = vsub.f32 %v51, %v4070
    %v4072 = vand.u32 %v4071, 4294901760
    %4073 = vmatpush1.msra.mxu0 %v4072
    %4074 = vmatprep.subr.mxu0 0.0
    %4075 = vmatpush1.msra.mxu0 0.0
    %4076 = vmatprep.subr.mxu0 0.0
    %4077 = vmatpush1.msra.mxu0 0.0
    %4078 = vmatprep.subr.mxu0 0.0
    %4079 = vmatpush1.msra.mxu0 0.0
    %4080 = vmatprep.subr.mxu0 0.0
    %4081 = vmatpush1.msra.mxu0 0.0
    %4082 = vmatprep.subr.mxu0 0.0
    %4083 = vmatpush1.msra.mxu0 0.0
    %4084 = vmatprep.subr.mxu0 0.0
    %4085 = vmatpush1.msra.mxu0 0.0
    %4086 = vmatprep.subr.mxu0 0.0
    %4087 = vmatpush1.msra.mxu0 0.0
    %4088 = vmatprep.subr.mxu0 0.0
    %4089 = vmatpush1.msra.mxu0 0.0
    %4090 = vmatprep.subr.mxu0 0.0
    %4091 = vmatpush1.msra.mxu0 0.0
    %4092 = vmatprep.subr.mxu0 0.0
    %4093 = vmatpush1.msra.mxu0 0.0
    %4094 = vmatprep.subr.mxu0 0.0
    %4095 = vmatpush1.msra.mxu0 0.0
    %4096 = vmatprep.subr.mxu0 0.0
    %4097 = vmatpush1.msra.mxu0 0.0
    %4098 = vmatprep.subr.mxu0 0.0
    %4099 = vmatpush1.msra.mxu0 0.0
    %4100 = vmatprep.subr.mxu0 0.0
    %4101 = vmatpush1.msra.mxu0 0.0
    %4102 = vmatprep.subr.mxu0 0.0
    %4103 = vmatpush1.msra.mxu0 0.0
    %4104 = vmatprep.subr.mxu0 0.0
    %4105 = vmatpush1.msra.mxu0 0.0
    %4106 = vmatprep.subr.mxu0 0.0
    %4107 = vmatpush1.msra.mxu0 0.0
    %4108 = vmatprep.subr.mxu0 0.0
    %4109 = vmatpush1.msra.mxu0 0.0
    %4110 = vmatprep.subr.mxu0 0.0
    %4111 = vmatpush1.msra.mxu0 0.0
    %4112 = vmatprep.subr.mxu0 0.0
    %4113 = vmatpush1.msra.mxu0 0.0
    %4114 = vmatprep.subr.mxu0 0.0
    %4115 = vmatpush1.msra.mxu0 0.0
    %4116 = vmatprep.subr.mxu0 0.0
    %4117 = vmatpush1.msra.mxu0 0.0
    %4118 = vmatprep.subr.mxu0 0.0
    %4119 = vmatpush1.msra.mxu0 0.0
    %4120 = vmatprep.subr.mxu0 0.0
    %4121 = vmatpush1.msra.mxu0 0.0
    %4122 = vmatprep.subr.mxu0 0.0
    %4123 = vmatpush1.msra.mxu0 0.0
    %4124 = vmatprep.subr.mxu0 0.0
    %4125 = vmatpush1.msra.mxu0 0.0
    %4126 = vmatprep.subr.mxu0 0.0
    %4127 = vmatpush1.msra.mxu0 0.0
    %4128 = vmatprep.subr.mxu0 0.0
    %4129 = vmatpush1.msra.mxu0 0.0
    %4130 = vmatprep.subr.mxu0 0.0
    %4131 = vmatpush1.msra.mxu0 0.0
    %4132 = vmatprep.subr.mxu0 0.0
    %4133 = vmatpush1.msra.mxu0 0.0
    %4134 = vmatprep.subr.mxu0 0.0
    %4135 = vmatpush1.msra.mxu0 0.0
    %4136 = vmatprep.mubr.f32.mxu0 0.0
    %v4137 = vand.u32 %v3767, 4294901760
    %4138 = vmatmul.mubr.f32.gmra.mrb[0].mxu0 %v4137
    %v4139 = vpop.f32.mrb[0].mxu0
    %v4140 = vadd.f32 %v4066, %v4139
    %v4141 = vpop.f32.mrb[0].mxu0
    %4142 = vdwg.mxu0
    %4143 = vmatprep.subr.mxu0 0.0
    %v4144 = vand.u32 %v51, 4294901760
    %4145 = vmatpush1.msra.mxu0 %v4144
    %4146 = vmatprep.subr.mxu0 0.0
    %4147 = vmatpush1.msra.mxu0 0.0
    %4148 = vmatprep.subr.mxu0 0.0
    %4149 = vmatpush1.msra.mxu0 0.0
    %4150 = vmatprep.subr.mxu0 0.0
    %4151 = vmatpush1.msra.mxu0 0.0
    %4152 = vmatprep.subr.mxu0 0.0
    %4153 = vmatpush1.msra.mxu0 0.0
    %4154 = vmatprep.subr.mxu0 0.0
    %4155 = vmatpush1.msra.mxu0 0.0
    %4156 = vmatprep.subr.mxu0 0.0
    %4157 = vmatpush1.msra.mxu0 0.0
    %4158 = vmatprep.subr.mxu0 0.0
    %4159 = vmatpush1.msra.mxu0 0.0
    %4160 = vmatprep.subr.mxu0 0.0
    %4161 = vmatpush1.msra.mxu0 0.0
    %4162 = vmatprep.subr.mxu0 0.0
    %4163 = vmatpush1.msra.mxu0 0.0
    %4164 = vmatprep.subr.mxu0 0.0
    %4165 = vmatpush1.msra.mxu0 0.0
    %4166 = vmatprep.subr.mxu0 0.0
    %4167 = vmatpush1.msra.mxu0 0.0
    %4168 = vmatprep.subr.mxu0 0.0
    %4169 = vmatpush1.msra.mxu0 0.0
    %4170 = vmatprep.subr.mxu0 0.0
    %4171 = vmatpush1.msra.mxu0 0.0
    %4172 = vmatprep.subr.mxu0 0.0
    %4173 = vmatpush1.msra.mxu0 0.0
    %4174 = vmatprep.subr.mxu0 0.0
    %4175 = vmatpush1.msra.mxu0 0.0
    %4176 = vmatprep.subr.mxu0 0.0
    %4177 = vmatpush1.msra.mxu0 0.0
    %4178 = vmatprep.subr.mxu0 0.0
    %4179 = vmatpush1.msra.mxu0 0.0
    %4180 = vmatprep.subr.mxu0 0.0
    %4181 = vmatpush1.msra.mxu0 0.0
    %4182 = vmatprep.subr.mxu0 0.0
    %4183 = vmatpush1.msra.mxu0 0.0
    %4184 = vmatprep.subr.mxu0 0.0
    %4185 = vmatpush1.msra.mxu0 0.0
    %4186 = vmatprep.subr.mxu0 0.0
    %4187 = vmatpush1.msra.mxu0 0.0
    %4188 = vmatprep.subr.mxu0 0.0
    %4189 = vmatpush1.msra.mxu0 0.0
    %4190 = vmatprep.subr.mxu0 0.0
    %4191 = vmatpush1.msra.mxu0 0.0
    %4192 = vmatprep.subr.mxu0 0.0
    %4193 = vmatpush1.msra.mxu0 0.0
    %4194 = vmatprep.subr.mxu0 0.0
    %4195 = vmatpush1.msra.mxu0 0.0
    %4196 = vmatprep.subr.mxu0 0.0
    %4197 = vmatpush1.msra.mxu0 0.0
    %4198 = vmatprep.subr.mxu0 0.0
    %4199 = vmatpush1.msra.mxu0 0.0
    %4200 = vmatprep.subr.mxu0 0.0
    %4201 = vmatpush1.msra.mxu0 0.0
    %4202 = vmatprep.subr.mxu0 0.0
    %4203 = vmatpush1.msra.mxu0 0.0
    %4204 = vmatprep.subr.mxu0 0.0
    %4205 = vmatpush1.msra.mxu0 0.0
    %4206 = vmatprep.subr.mxu0 0.0
    %4207 = vmatpush1.msra.mxu0 0.0
    %4208 = vmatprep.mubr.f32.mxu0 0.0
    %v4209 = vand.u32 %v3767, 4294901760
    %4210 = vmatmul.mubr.f32.gmra.mrb[0].mxu0 %v4209
    %v4211 = vpop.f32.mrb[0].mxu0
    %v4212 = vadd.f32 %v4140, %v4211
    %v4213 = vpop.f32.mrb[0].mxu0
    %4214 = vdwg.mxu0
    %v4216 = vsel %vm3765, %v3752, 0
    %4218 = vmatprep.subr.mxu0 0.0
    %v4219 = vand.u32 %v52, 4294901760
    %4220 = vmatpush1.msra.mxu0 %v4219
    %4221 = vmatprep.subr.mxu0 0.0
    %4222 = vmatpush1.msra.mxu0 0.0
    %4223 = vmatprep.subr.mxu0 0.0
    %4224 = vmatpush1.msra.mxu0 0.0
    %4225 = vmatprep.subr.mxu0 0.0
    %4226 = vmatpush1.msra.mxu0 0.0
    %4227 = vmatprep.subr.mxu0 0.0
    %4228 = vmatpush1.msra.mxu0 0.0
    %4229 = vmatprep.subr.mxu0 0.0
    %4230 = vmatpush1.msra.mxu0 0.0
    %4231 = vmatprep.subr.mxu0 0.0
    %4232 = vmatpush1.msra.mxu0 0.0
    %4233 = vmatprep.subr.mxu0 0.0
    %4234 = vmatpush1.msra.mxu0 0.0
    %4235 = vmatprep.subr.mxu0 0.0
    %4236 = vmatpush1.msra.mxu0 0.0
    %4237 = vmatprep.subr.mxu0 0.0
    %4238 = vmatpush1.msra.mxu0 0.0
    %4239 = vmatprep.subr.mxu0 0.0
    %4240 = vmatpush1.msra.mxu0 0.0
    %4241 = vmatprep.subr.mxu0 0.0
    %4242 = vmatpush1.msra.mxu0 0.0
    %4243 = vmatprep.subr.mxu0 0.0
    %4244 = vmatpush1.msra.mxu0 0.0
    %4245 = vmatprep.subr.mxu0 0.0
    %4246 = vmatpush1.msra.mxu0 0.0
    %4247 = vmatprep.subr.mxu0 0.0
    %4248 = vmatpush1.msra.mxu0 0.0
    %4249 = vmatprep.subr.mxu0 0.0
    %4250 = vmatpush1.msra.mxu0 0.0
    %4251 = vmatprep.subr.mxu0 0.0
    %4252 = vmatpush1.msra.mxu0 0.0
    %4253 = vmatprep.subr.mxu0 0.0
    %4254 = vmatpush1.msra.mxu0 0.0
    %4255 = vmatprep.subr.mxu0 0.0
    %4256 = vmatpush1.msra.mxu0 0.0
    %4257 = vmatprep.subr.mxu0 0.0
    %4258 = vmatpush1.msra.mxu0 0.0
    %4259 = vmatprep.subr.mxu0 0.0
    %4260 = vmatpush1.msra.mxu0 0.0
    %4261 = vmatprep.subr.mxu0 0.0
    %4262 = vmatpush1.msra.mxu0 0.0
    %4263 = vmatprep.subr.mxu0 0.0
    %4264 = vmatpush1.msra.mxu0 0.0
    %4265 = vmatprep.subr.mxu0 0.0
    %4266 = vmatpush1.msra.mxu0 0.0
    %4267 = vmatprep.subr.mxu0 0.0
    %4268 = vmatpush1.msra.mxu0 0.0
    %4269 = vmatprep.subr.mxu0 0.0
    %4270 = vmatpush1.msra.mxu0 0.0
    %4271 = vmatprep.subr.mxu0 0.0
    %4272 = vmatpush1.msra.mxu0 0.0
    %4273 = vmatprep.subr.mxu0 0.0
    %4274 = vmatpush1.msra.mxu0 0.0
    %4275 = vmatprep.subr.mxu0 0.0
    %4276 = vmatpush1.msra.mxu0 0.0
    %4277 = vmatprep.subr.mxu0 0.0
    %4278 = vmatpush1.msra.mxu0 0.0
    %4279 = vmatprep.subr.mxu0 0.0
    %4280 = vmatpush1.msra.mxu0 0.0
    %4281 = vmatprep.subr.mxu0 0.0
    %4282 = vmatpush1.msra.mxu0 0.0
    %4283 = vmatprep.mubr.f32.mxu0 0.0
    %v4284 = vand.u32 %v4216, 4294901760
    %v4285 = vsub.f32 %v4216, %v4284
    %v4286 = vand.u32 %v4285, 4294901760
    %v4287 = vsub.f32 %v4285, %v4286
    %v4288 = vand.u32 %v4287, 4294901760
    %4289 = vmatmul.mubr.f32.gmra.mrb[0].mxu0 %v4288
    %v4290 = vpop.f32.mrb[0].mxu0
    %v4291 = vadd.f32 0.0, %v4290
    %v4292 = vpop.f32.mrb[0].mxu0
    %4293 = vdwg.mxu0
    %4294 = vmatprep.subr.mxu0 0.0
    %v4295 = vand.u32 %v52, 4294901760
    %v4296 = vsub.f32 %v52, %v4295
    %v4297 = vand.u32 %v4296, 4294901760
    %v4298 = vsub.f32 %v4296, %v4297
    %v4299 = vand.u32 %v4298, 4294901760
    %4300 = vmatpush1.msra.mxu0 %v4299
    %4301 = vmatprep.subr.mxu0 0.0
    %4302 = vmatpush1.msra.mxu0 0.0
    %4303 = vmatprep.subr.mxu0 0.0
    %4304 = vmatpush1.msra.mxu0 0.0
    %4305 = vmatprep.subr.mxu0 0.0
    %4306 = vmatpush1.msra.mxu0 0.0
    %4307 = vmatprep.subr.mxu0 0.0
    %4308 = vmatpush1.msra.mxu0 0.0
    %4309 = vmatprep.subr.mxu0 0.0
    %4310 = vmatpush1.msra.mxu0 0.0
    %4311 = vmatprep.subr.mxu0 0.0
    %4312 = vmatpush1.msra.mxu0 0.0
    %4313 = vmatprep.subr.mxu0 0.0
    %4314 = vmatpush1.msra.mxu0 0.0
    %4315 = vmatprep.subr.mxu0 0.0
    %4316 = vmatpush1.msra.mxu0 0.0
    %4317 = vmatprep.subr.mxu0 0.0
    %4318 = vmatpush1.msra.mxu0 0.0
    %4319 = vmatprep.subr.mxu0 0.0
    %4320 = vmatpush1.msra.mxu0 0.0
    %4321 = vmatprep.subr.mxu0 0.0
    %4322 = vmatpush1.msra.mxu0 0.0
    %4323 = vmatprep.subr.mxu0 0.0
    %4324 = vmatpush1.msra.mxu0 0.0
    %4325 = vmatprep.subr.mxu0 0.0
    %4326 = vmatpush1.msra.mxu0 0.0
    %4327 = vmatprep.subr.mxu0 0.0
    %4328 = vmatpush1.msra.mxu0 0.0
    %4329 = vmatprep.subr.mxu0 0.0
    %4330 = vmatpush1.msra.mxu0 0.0
    %4331 = vmatprep.subr.mxu0 0.0
    %4332 = vmatpush1.msra.mxu0 0.0
    %4333 = vmatprep.subr.mxu0 0.0
    %4334 = vmatpush1.msra.mxu0 0.0
    %4335 = vmatprep.subr.mxu0 0.0
    %4336 = vmatpush1.msra.mxu0 0.0
    %4337 = vmatprep.subr.mxu0 0.0
    %4338 = vmatpush1.msra.mxu0 0.0
    %4339 = vmatprep.subr.mxu0 0.0
    %4340 = vmatpush1.msra.mxu0 0.0
    %4341 = vmatprep.subr.mxu0 0.0
    %4342 = vmatpush1.msra.mxu0 0.0
    %4343 = vmatprep.subr.mxu0 0.0
    %4344 = vmatpush1.msra.mxu0 0.0
    %4345 = vmatprep.subr.mxu0 0.0
    %4346 = vmatpush1.msra.mxu0 0.0
    %4347 = vmatprep.subr.mxu0 0.0
    %4348 = vmatpush1.msra.mxu0 0.0
    %4349 = vmatprep.subr.mxu0 0.0
    %4350 = vmatpush1.msra.mxu0 0.0
    %4351 = vmatprep.subr.mxu0 0.0
    %4352 = vmatpush1.msra.mxu0 0.0
    %4353 = vmatprep.subr.mxu0 0.0
    %4354 = vmatpush1.msra.mxu0 0.0
    %4355 = vmatprep.subr.mxu0 0.0
    %4356 = vmatpush1.msra.mxu0 0.0
    %4357 = vmatprep.subr.mxu0 0.0
    %4358 = vmatpush1.msra.mxu0 0.0
    %4359 = vmatprep.subr.mxu0 0.0
    %4360 = vmatpush1.msra.mxu0 0.0
    %4361 = vmatprep.subr.mxu0 0.0
    %4362 = vmatpush1.msra.mxu0 0.0
    %4363 = vmatprep.mubr.f32.mxu0 0.0
    %v4364 = vand.u32 %v4216, 4294901760
    %4365 = vmatmul.mubr.f32.gmra.mrb[0].mxu0 %v4364
    %v4366 = vpop.f32.mrb[0].mxu0
    %v4367 = vadd.f32 %v4291, %v4366
    %v4368 = vpop.f32.mrb[0].mxu0
    %4369 = vdwg.mxu0
    %4370 = vmatprep.subr.mxu0 0.0
    %v4371 = vand.u32 %v52, 4294901760
    %v4372 = vsub.f32 %v52, %v4371
    %4373 = vmatpush1.msra.mxu0 %v4372
    %4374 = vmatprep.subr.mxu0 0.0
    %4375 = vmatpush1.msra.mxu0 0.0
    %4376 = vmatprep.subr.mxu0 0.0
    %4377 = vmatpush1.msra.mxu0 0.0
    %4378 = vmatprep.subr.mxu0 0.0
    %4379 = vmatpush1.msra.mxu0 0.0
    %4380 = vmatprep.subr.mxu0 0.0
    %4381 = vmatpush1.msra.mxu0 0.0
    %4382 = vmatprep.subr.mxu0 0.0
    %4383 = vmatpush1.msra.mxu0 0.0
    %4384 = vmatprep.subr.mxu0 0.0
    %4385 = vmatpush1.msra.mxu0 0.0
    %4386 = vmatprep.subr.mxu0 0.0
    %4387 = vmatpush1.msra.mxu0 0.0
    %4388 = vmatprep.subr.mxu0 0.0
    %4389 = vmatpush1.msra.mxu0 0.0
    %4390 = vmatprep.subr.mxu0 0.0
    %4391 = vmatpush1.msra.mxu0 0.0
    %4392 = vmatprep.subr.mxu0 0.0
    %4393 = vmatpush1.msra.mxu0 0.0
    %4394 = vmatprep.subr.mxu0 0.0
    %4395 = vmatpush1.msra.mxu0 0.0
    %4396 = vmatprep.subr.mxu0 0.0
    %4397 = vmatpush1.msra.mxu0 0.0
    %4398 = vmatprep.subr.mxu0 0.0
    %4399 = vmatpush1.msra.mxu0 0.0
    %4400 = vmatprep.subr.mxu0 0.0
    %4401 = vmatpush1.msra.mxu0 0.0
    %4402 = vmatprep.subr.mxu0 0.0
    %4403 = vmatpush1.msra.mxu0 0.0
    %4404 = vmatprep.subr.mxu0 0.0
    %4405 = vmatpush1.msra.mxu0 0.0
    %4406 = vmatprep.subr.mxu0 0.0
    %4407 = vmatpush1.msra.mxu0 0.0
    %4408 = vmatprep.subr.mxu0 0.0
    %4409 = vmatpush1.msra.mxu0 0.0
    %4410 = vmatprep.subr.mxu0 0.0
    %4411 = vmatpush1.msra.mxu0 0.0
    %4412 = vmatprep.subr.mxu0 0.0
    %4413 = vmatpush1.msra.mxu0 0.0
    %4414 = vmatprep.subr.mxu0 0.0
    %4415 = vmatpush1.msra.mxu0 0.0
    %4416 = vmatprep.subr.mxu0 0.0
    %4417 = vmatpush1.msra.mxu0 0.0
    %4418 = vmatprep.subr.mxu0 0.0
    %4419 = vmatpush1.msra.mxu0 0.0
    %4420 = vmatprep.subr.mxu0 0.0
    %4421 = vmatpush1.msra.mxu0 0.0
    %4422 = vmatprep.subr.mxu0 0.0
    %4423 = vmatpush1.msra.mxu0 0.0
    %4424 = vmatprep.subr.mxu0 0.0
    %4425 = vmatpush1.msra.mxu0 0.0
    %4426 = vmatprep.subr.mxu0 0.0
    %4427 = vmatpush1.msra.mxu0 0.0
    %4428 = vmatprep.subr.mxu0 0.0
    %4429 = vmatpush1.msra.mxu0 0.0
    %4430 = vmatprep.subr.mxu0 0.0
    %4431 = vmatpush1.msra.mxu0 0.0
    %4432 = vmatprep.subr.mxu0 0.0
    %4433 = vmatpush1.msra.mxu0 0.0
    %4434 = vmatprep.subr.mxu0 0.0
    %4435 = vmatpush1.msra.mxu0 0.0
    %4436 = vmatprep.mubr.f32.mxu0 0.0
    %v4437 = vand.u32 %v4216, 4294901760
    %v4438 = vsub.f32 %v4216, %v4437
    %4439 = vmatmul.mubr.f32.gmra.mrb[0].mxu0 %v4438
    %v4440 = vpop.f32.mrb[0].mxu0
    %v4441 = vadd.f32 %v4367, %v4440
    %v4442 = vpop.f32.mrb[0].mxu0
    %4443 = vdwg.mxu0
    %4444 = vmatprep.subr.mxu0 0.0
    %v4445 = vand.u32 %v52, 4294901760
    %4446 = vmatpush1.msra.mxu0 %v4445
    %4447 = vmatprep.subr.mxu0 0.0
    %4448 = vmatpush1.msra.mxu0 0.0
    %4449 = vmatprep.subr.mxu0 0.0
    %4450 = vmatpush1.msra.mxu0 0.0
    %4451 = vmatprep.subr.mxu0 0.0
    %4452 = vmatpush1.msra.mxu0 0.0
    %4453 = vmatprep.subr.mxu0 0.0
    %4454 = vmatpush1.msra.mxu0 0.0
    %4455 = vmatprep.subr.mxu0 0.0
    %4456 = vmatpush1.msra.mxu0 0.0
    %4457 = vmatprep.subr.mxu0 0.0
    %4458 = vmatpush1.msra.mxu0 0.0
    %4459 = vmatprep.subr.mxu0 0.0
    %4460 = vmatpush1.msra.mxu0 0.0
    %4461 = vmatprep.subr.mxu0 0.0
    %4462 = vmatpush1.msra.mxu0 0.0
    %4463 = vmatprep.subr.mxu0 0.0
    %4464 = vmatpush1.msra.mxu0 0.0
    %4465 = vmatprep.subr.mxu0 0.0
    %4466 = vmatpush1.msra.mxu0 0.0
    %4467 = vmatprep.subr.mxu0 0.0
    %4468 = vmatpush1.msra.mxu0 0.0
    %4469 = vmatprep.subr.mxu0 0.0
    %4470 = vmatpush1.msra.mxu0 0.0
    %4471 = vmatprep.subr.mxu0 0.0
    %4472 = vmatpush1.msra.mxu0 0.0
    %4473 = vmatprep.subr.mxu0 0.0
    %4474 = vmatpush1.msra.mxu0 0.0
    %4475 = vmatprep.subr.mxu0 0.0
    %4476 = vmatpush1.msra.mxu0 0.0
    %4477 = vmatprep.subr.mxu0 0.0
    %4478 = vmatpush1.msra.mxu0 0.0
    %4479 = vmatprep.subr.mxu0 0.0
    %4480 = vmatpush1.msra.mxu0 0.0
    %4481 = vmatprep.subr.mxu0 0.0
    %4482 = vmatpush1.msra.mxu0 0.0
    %4483 = vmatprep.subr.mxu0 0.0
    %4484 = vmatpush1.msra.mxu0 0.0
    %4485 = vmatprep.subr.mxu0 0.0
    %4486 = vmatpush1.msra.mxu0 0.0
    %4487 = vmatprep.subr.mxu0 0.0
    %4488 = vmatpush1.msra.mxu0 0.0
    %4489 = vmatprep.subr.mxu0 0.0
    %4490 = vmatpush1.msra.mxu0 0.0
    %4491 = vmatprep.subr.mxu0 0.0
    %4492 = vmatpush1.msra.mxu0 0.0
    %4493 = vmatprep.subr.mxu0 0.0
    %4494 = vmatpush1.msra.mxu0 0.0
    %4495 = vmatprep.subr.mxu0 0.0
    %4496 = vmatpush1.msra.mxu0 0.0
    %4497 = vmatprep.subr.mxu0 0.0
    %4498 = vmatpush1.msra.mxu0 0.0
    %4499 = vmatprep.subr.mxu0 0.0
    %4500 = vmatpush1.msra.mxu0 0.0
    %4501 = vmatprep.subr.mxu0 0.0
    %4502 = vmatpush1.msra.mxu0 0.0
    %4503 = vmatprep.subr.mxu0 0.0
    %4504 = vmatpush1.msra.mxu0 0.0
    %4505 = vmatprep.subr.mxu0 0.0
    %4506 = vmatpush1.msra.mxu0 0.0
    %4507 = vmatprep.subr.mxu0 0.0
    %4508 = vmatpush1.msra.mxu0 0.0
    %4509 = vmatprep.mubr.f32.mxu0 0.0
    %v4510 = vand.u32 %v4216, 4294901760
    %v4511 = vsub.f32 %v4216, %v4510
    %v4512 = vand.u32 %v4511, 4294901760
    %4513 = vmatmul.mubr.f32.gmra.mrb[0].mxu0 %v4512
    %v4514 = vpop.f32.mrb[0].mxu0
    %v4515 = vadd.f32 %v4441, %v4514
    %v4516 = vpop.f32.mrb[0].mxu0
    %4517 = vdwg.mxu0
    %4518 = vmatprep.subr.mxu0 0.0
    %v4519 = vand.u32 %v52, 4294901760
    %v4520 = vsub.f32 %v52, %v4519
    %v4521 = vand.u32 %v4520, 4294901760
    %4522 = vmatpush1.msra.mxu0 %v4521
    %4523 = vmatprep.subr.mxu0 0.0
    %4524 = vmatpush1.msra.mxu0 0.0
    %4525 = vmatprep.subr.mxu0 0.0
    %4526 = vmatpush1.msra.mxu0 0.0
    %4527 = vmatprep.subr.mxu0 0.0
    %4528 = vmatpush1.msra.mxu0 0.0
    %4529 = vmatprep.subr.mxu0 0.0
    %4530 = vmatpush1.msra.mxu0 0.0
    %4531 = vmatprep.subr.mxu0 0.0
    %4532 = vmatpush1.msra.mxu0 0.0
    %4533 = vmatprep.subr.mxu0 0.0
    %4534 = vmatpush1.msra.mxu0 0.0
    %4535 = vmatprep.subr.mxu0 0.0
    %4536 = vmatpush1.msra.mxu0 0.0
    %4537 = vmatprep.subr.mxu0 0.0
    %4538 = vmatpush1.msra.mxu0 0.0
    %4539 = vmatprep.subr.mxu0 0.0
    %4540 = vmatpush1.msra.mxu0 0.0
    %4541 = vmatprep.subr.mxu0 0.0
    %4542 = vmatpush1.msra.mxu0 0.0
    %4543 = vmatprep.subr.mxu0 0.0
    %4544 = vmatpush1.msra.mxu0 0.0
    %4545 = vmatprep.subr.mxu0 0.0
    %4546 = vmatpush1.msra.mxu0 0.0
    %4547 = vmatprep.subr.mxu0 0.0
    %4548 = vmatpush1.msra.mxu0 0.0
    %4549 = vmatprep.subr.mxu0 0.0
    %4550 = vmatpush1.msra.mxu0 0.0
    %4551 = vmatprep.subr.mxu0 0.0
    %4552 = vmatpush1.msra.mxu0 0.0
    %4553 = vmatprep.subr.mxu0 0.0
    %4554 = vmatpush1.msra.mxu0 0.0
    %4555 = vmatprep.subr.mxu0 0.0
    %4556 = vmatpush1.msra.mxu0 0.0
    %4557 = vmatprep.subr.mxu0 0.0
    %4558 = vmatpush1.msra.mxu0 0.0
    %4559 = vmatprep.subr.mxu0 0.0
    %4560 = vmatpush1.msra.mxu0 0.0
    %4561 = vmatprep.subr.mxu0 0.0
    %4562 = vmatpush1.msra.mxu0 0.0
    %4563 = vmatprep.subr.mxu0 0.0
    %4564 = vmatpush1.msra.mxu0 0.0
    %4565 = vmatprep.subr.mxu0 0.0
    %4566 = vmatpush1.msra.mxu0 0.0
    %4567 = vmatprep.subr.mxu0 0.0
    %4568 = vmatpush1.msra.mxu0 0.0
    %4569 = vmatprep.subr.mxu0 0.0
    %4570 = vmatpush1.msra.mxu0 0.0
    %4571 = vmatprep.subr.mxu0 0.0
    %4572 = vmatpush1.msra.mxu0 0.0
    %4573 = vmatprep.subr.mxu0 0.0
    %4574 = vmatpush1.msra.mxu0 0.0
    %4575 = vmatprep.subr.mxu0 0.0
    %4576 = vmatpush1.msra.mxu0 0.0
    %4577 = vmatprep.subr.mxu0 0.0
    %4578 = vmatpush1.msra.mxu0 0.0
    %4579 = vmatprep.subr.mxu0 0.0
    %4580 = vmatpush1.msra.mxu0 0.0
    %4581 = vmatprep.subr.mxu0 0.0
    %4582 = vmatpush1.msra.mxu0 0.0
    %4583 = vmatprep.subr.mxu0 0.0
    %4584 = vmatpush1.msra.mxu0 0.0
    %4585 = vmatprep.mubr.f32.mxu0 0.0
    %v4586 = vand.u32 %v4216, 4294901760
    %4587 = vmatmul.mubr.f32.gmra.mrb[0].mxu0 %v4586
    %v4588 = vpop.f32.mrb[0].mxu0
    %v4589 = vadd.f32 %v4515, %v4588
    %v4590 = vpop.f32.mrb[0].mxu0
    %4591 = vdwg.mxu0
    %4592 = vmatprep.subr.mxu0 0.0
    %v4593 = vand.u32 %v52, 4294901760
    %4594 = vmatpush1.msra.mxu0 %v4593
    %4595 = vmatprep.subr.mxu0 0.0
    %4596 = vmatpush1.msra.mxu0 0.0
    %4597 = vmatprep.subr.mxu0 0.0
    %4598 = vmatpush1.msra.mxu0 0.0
    %4599 = vmatprep.subr.mxu0 0.0
    %4600 = vmatpush1.msra.mxu0 0.0
    %4601 = vmatprep.subr.mxu0 0.0
    %4602 = vmatpush1.msra.mxu0 0.0
    %4603 = vmatprep.subr.mxu0 0.0
    %4604 = vmatpush1.msra.mxu0 0.0
    %4605 = vmatprep.subr.mxu0 0.0
    %4606 = vmatpush1.msra.mxu0 0.0
    %4607 = vmatprep.subr.mxu0 0.0
    %4608 = vmatpush1.msra.mxu0 0.0
    %4609 = vmatprep.subr.mxu0 0.0
    %4610 = vmatpush1.msra.mxu0 0.0
    %4611 = vmatprep.subr.mxu0 0.0
    %4612 = vmatpush1.msra.mxu0 0.0
    %4613 = vmatprep.subr.mxu0 0.0
    %4614 = vmatpush1.msra.mxu0 0.0
    %4615 = vmatprep.subr.mxu0 0.0
    %4616 = vmatpush1.msra.mxu0 0.0
    %4617 = vmatprep.subr.mxu0 0.0
    %4618 = vmatpush1.msra.mxu0 0.0
    %4619 = vmatprep.subr.mxu0 0.0
    %4620 = vmatpush1.msra.mxu0 0.0
    %4621 = vmatprep.subr.mxu0 0.0
    %4622 = vmatpush1.msra.mxu0 0.0
    %4623 = vmatprep.subr.mxu0 0.0
    %4624 = vmatpush1.msra.mxu0 0.0
    %4625 = vmatprep.subr.mxu0 0.0
    %4626 = vmatpush1.msra.mxu0 0.0
    %4627 = vmatprep.subr.mxu0 0.0
    %4628 = vmatpush1.msra.mxu0 0.0
    %4629 = vmatprep.subr.mxu0 0.0
    %4630 = vmatpush1.msra.mxu0 0.0
    %4631 = vmatprep.subr.mxu0 0.0
    %4632 = vmatpush1.msra.mxu0 0.0
    %4633 = vmatprep.subr.mxu0 0.0
    %4634 = vmatpush1.msra.mxu0 0.0
    %4635 = vmatprep.subr.mxu0 0.0
    %4636 = vmatpush1.msra.mxu0 0.0
    %4637 = vmatprep.subr.mxu0 0.0
    %4638 = vmatpush1.msra.mxu0 0.0
    %4639 = vmatprep.subr.mxu0 0.0
    %4640 = vmatpush1.msra.mxu0 0.0
    %4641 = vmatprep.subr.mxu0 0.0
    %4642 = vmatpush1.msra.mxu0 0.0
    %4643 = vmatprep.subr.mxu0 0.0
    %4644 = vmatpush1.msra.mxu0 0.0
    %4645 = vmatprep.subr.mxu0 0.0
    %4646 = vmatpush1.msra.mxu0 0.0
    %4647 = vmatprep.subr.mxu0 0.0
    %4648 = vmatpush1.msra.mxu0 0.0
    %4649 = vmatprep.subr.mxu0 0.0
    %4650 = vmatpush1.msra.mxu0 0.0
    %4651 = vmatprep.subr.mxu0 0.0
    %4652 = vmatpush1.msra.mxu0 0.0
    %4653 = vmatprep.subr.mxu0 0.0
    %4654 = vmatpush1.msra.mxu0 0.0
    %4655 = vmatprep.subr.mxu0 0.0
    %4656 = vmatpush1.msra.mxu0 0.0
    %4657 = vmatprep.mubr.f32.mxu0 0.0
    %v4658 = vand.u32 %v4216, 4294901760
    %4659 = vmatmul.mubr.f32.gmra.mrb[0].mxu0 %v4658
    %v4660 = vpop.f32.mrb[0].mxu0
    %v4661 = vadd.f32 %v4589, %v4660
    %v4662 = vpop.f32.mrb[0].mxu0
    %4663 = vdwg.mxu0
    %v4665 = vsel %vm3765, %v3754, 0
    %4667 = vmatprep.subr.mxu0 0.0
    %v4668 = vand.u32 %v53, 4294901760
    %4669 = vmatpush1.msra.mxu0 %v4668
    %4670 = vmatprep.subr.mxu0 0.0
    %4671 = vmatpush1.msra.mxu0 0.0
    %4672 = vmatprep.subr.mxu0 0.0
    %4673 = vmatpush1.msra.mxu0 0.0
    %4674 = vmatprep.subr.mxu0 0.0
    %4675 = vmatpush1.msra.mxu0 0.0
    %4676 = vmatprep.subr.mxu0 0.0
    %4677 = vmatpush1.msra.mxu0 0.0
    %4678 = vmatprep.subr.mxu0 0.0
    %4679 = vmatpush1.msra.mxu0 0.0
    %4680 = vmatprep.subr.mxu0 0.0
    %4681 = vmatpush1.msra.mxu0 0.0
    %4682 = vmatprep.subr.mxu0 0.0
    %4683 = vmatpush1.msra.mxu0 0.0
    %4684 = vmatprep.subr.mxu0 0.0
    %4685 = vmatpush1.msra.mxu0 0.0
    %4686 = vmatprep.subr.mxu0 0.0
    %4687 = vmatpush1.msra.mxu0 0.0
    %4688 = vmatprep.subr.mxu0 0.0
    %4689 = vmatpush1.msra.mxu0 0.0
    %4690 = vmatprep.subr.mxu0 0.0
    %4691 = vmatpush1.msra.mxu0 0.0
    %4692 = vmatprep.subr.mxu0 0.0
    %4693 = vmatpush1.msra.mxu0 0.0
    %4694 = vmatprep.subr.mxu0 0.0
    %4695 = vmatpush1.msra.mxu0 0.0
    %4696 = vmatprep.subr.mxu0 0.0
    %4697 = vmatpush1.msra.mxu0 0.0
    %4698 = vmatprep.subr.mxu0 0.0
    %4699 = vmatpush1.msra.mxu0 0.0
    %4700 = vmatprep.subr.mxu0 0.0
    %4701 = vmatpush1.msra.mxu0 0.0
    %4702 = vmatprep.subr.mxu0 0.0
    %4703 = vmatpush1.msra.mxu0 0.0
    %4704 = vmatprep.subr.mxu0 0.0
    %4705 = vmatpush1.msra.mxu0 0.0
    %4706 = vmatprep.subr.mxu0 0.0
    %4707 = vmatpush1.msra.mxu0 0.0
    %4708 = vmatprep.subr.mxu0 0.0
    %4709 = vmatpush1.msra.mxu0 0.0
    %4710 = vmatprep.subr.mxu0 0.0
    %4711 = vmatpush1.msra.mxu0 0.0
    %4712 = vmatprep.subr.mxu0 0.0
    %4713 = vmatpush1.msra.mxu0 0.0
    %4714 = vmatprep.subr.mxu0 0.0
    %4715 = vmatpush1.msra.mxu0 0.0
    %4716 = vmatprep.subr.mxu0 0.0
    %4717 = vmatpush1.msra.mxu0 0.0
    %4718 = vmatprep.subr.mxu0 0.0
    %4719 = vmatpush1.msra.mxu0 0.0
    %4720 = vmatprep.subr.mxu0 0.0
    %4721 = vmatpush1.msra.mxu0 0.0
    %4722 = vmatprep.subr.mxu0 0.0
    %4723 = vmatpush1.msra.mxu0 0.0
    %4724 = vmatprep.subr.mxu0 0.0
    %4725 = vmatpush1.msra.mxu0 0.0
    %4726 = vmatprep.subr.mxu0 0.0
    %4727 = vmatpush1.msra.mxu0 0.0
    %4728 = vmatprep.subr.mxu0 0.0
    %4729 = vmatpush1.msra.mxu0 0.0
    %4730 = vmatprep.subr.mxu0 0.0
    %4731 = vmatpush1.msra.mxu0 0.0
    %4732 = vmatprep.mubr.f32.mxu0 0.0
    %v4733 = vand.u32 %v4665, 4294901760
    %v4734 = vsub.f32 %v4665, %v4733
    %v4735 = vand.u32 %v4734, 4294901760
    %v4736 = vsub.f32 %v4734, %v4735
    %v4737 = vand.u32 %v4736, 4294901760
    %4738 = vmatmul.mubr.f32.gmra.mrb[0].mxu0 %v4737
    %v4739 = vpop.f32.mrb[0].mxu0
    %v4740 = vadd.f32 0.0, %v4739
    %v4741 = vpop.f32.mrb[0].mxu0
    %4742 = vdwg.mxu0
    %4743 = vmatprep.subr.mxu0 0.0
    %v4744 = vand.u32 %v53, 4294901760
    %v4745 = vsub.f32 %v53, %v4744
    %v4746 = vand.u32 %v4745, 4294901760
    %v4747 = vsub.f32 %v4745, %v4746
    %v4748 = vand.u32 %v4747, 4294901760
    %4749 = vmatpush1.msra.mxu0 %v4748
    %4750 = vmatprep.subr.mxu0 0.0
    %4751 = vmatpush1.msra.mxu0 0.0
    %4752 = vmatprep.subr.mxu0 0.0
    %4753 = vmatpush1.msra.mxu0 0.0
    %4754 = vmatprep.subr.mxu0 0.0
    %4755 = vmatpush1.msra.mxu0 0.0
    %4756 = vmatprep.subr.mxu0 0.0
    %4757 = vmatpush1.msra.mxu0 0.0
    %4758 = vmatprep.subr.mxu0 0.0
    %4759 = vmatpush1.msra.mxu0 0.0
    %4760 = vmatprep.subr.mxu0 0.0
    %4761 = vmatpush1.msra.mxu0 0.0
    %4762 = vmatprep.subr.mxu0 0.0
    %4763 = vmatpush1.msra.mxu0 0.0
    %4764 = vmatprep.subr.mxu0 0.0
    %4765 = vmatpush1.msra.mxu0 0.0
    %4766 = vmatprep.subr.mxu0 0.0
    %4767 = vmatpush1.msra.mxu0 0.0
    %4768 = vmatprep.subr.mxu0 0.0
    %4769 = vmatpush1.msra.mxu0 0.0
    %4770 = vmatprep.subr.mxu0 0.0
    %4771 = vmatpush1.msra.mxu0 0.0
    %4772 = vmatprep.subr.mxu0 0.0
    %4773 = vmatpush1.msra.mxu0 0.0
    %4774 = vmatprep.subr.mxu0 0.0
    %4775 = vmatpush1.msra.mxu0 0.0
    %4776 = vmatprep.subr.mxu0 0.0
    %4777 = vmatpush1.msra.mxu0 0.0
    %4778 = vmatprep.subr.mxu0 0.0
    %4779 = vmatpush1.msra.mxu0 0.0
    %4780 = vmatprep.subr.mxu0 0.0
    %4781 = vmatpush1.msra.mxu0 0.0
    %4782 = vmatprep.subr.mxu0 0.0
    %4783 = vmatpush1.msra.mxu0 0.0
    %4784 = vmatprep.subr.mxu0 0.0
    %4785 = vmatpush1.msra.mxu0 0.0
    %4786 = vmatprep.subr.mxu0 0.0
    %4787 = vmatpush1.msra.mxu0 0.0
    %4788 = vmatprep.subr.mxu0 0.0
    %4789 = vmatpush1.msra.mxu0 0.0
    %4790 = vmatprep.subr.mxu0 0.0
    %4791 = vmatpush1.msra.mxu0 0.0
    %4792 = vmatprep.subr.mxu0 0.0
    %4793 = vmatpush1.msra.mxu0 0.0
    %4794 = vmatprep.subr.mxu0 0.0
    %4795 = vmatpush1.msra.mxu0 0.0
    %4796 = vmatprep.subr.mxu0 0.0
    %4797 = vmatpush1.msra.mxu0 0.0
    %4798 = vmatprep.subr.mxu0 0.0
    %4799 = vmatpush1.msra.mxu0 0.0
    %4800 = vmatprep.subr.mxu0 0.0
    %4801 = vmatpush1.msra.mxu0 0.0
    %4802 = vmatprep.subr.mxu0 0.0
    %4803 = vmatpush1.msra.mxu0 0.0
    %4804 = vmatprep.subr.mxu0 0.0
    %4805 = vmatpush1.msra.mxu0 0.0
    %4806 = vmatprep.subr.mxu0 0.0
    %4807 = vmatpush1.msra.mxu0 0.0
    %4808 = vmatprep.subr.mxu0 0.0
    %4809 = vmatpush1.msra.mxu0 0.0
    %4810 = vmatprep.subr.mxu0 0.0
    %4811 = vmatpush1.msra.mxu0 0.0
    %4812 = vmatprep.mubr.f32.mxu0 0.0
    %v4813 = vand.u32 %v4665, 4294901760
    %4814 = vmatmul.mubr.f32.gmra.mrb[0].mxu0 %v4813
    %v4815 = vpop.f32.mrb[0].mxu0
    %v4816 = vadd.f32 %v4740, %v4815
    %v4817 = vpop.f32.mrb[0].mxu0
    %4818 = vdwg.mxu0
    %4819 = vmatprep.subr.mxu0 0.0
    %v4820 = vand.u32 %v53, 4294901760
    %v4821 = vsub.f32 %v53, %v4820
    %4822 = vmatpush1.msra.mxu0 %v4821
    %4823 = vmatprep.subr.mxu0 0.0
    %4824 = vmatpush1.msra.mxu0 0.0
    %4825 = vmatprep.subr.mxu0 0.0
    %4826 = vmatpush1.msra.mxu0 0.0
    %4827 = vmatprep.subr.mxu0 0.0
    %4828 = vmatpush1.msra.mxu0 0.0
    %4829 = vmatprep.subr.mxu0 0.0
    %4830 = vmatpush1.msra.mxu0 0.0
    %4831 = vmatprep.subr.mxu0 0.0
    %4832 = vmatpush1.msra.mxu0 0.0
    %4833 = vmatprep.subr.mxu0 0.0
    %4834 = vmatpush1.msra.mxu0 0.0
    %4835 = vmatprep.subr.mxu0 0.0
    %4836 = vmatpush1.msra.mxu0 0.0
    %4837 = vmatprep.subr.mxu0 0.0
    %4838 = vmatpush1.msra.mxu0 0.0
    %4839 = vmatprep.subr.mxu0 0.0
    %4840 = vmatpush1.msra.mxu0 0.0
    %4841 = vmatprep.subr.mxu0 0.0
    %4842 = vmatpush1.msra.mxu0 0.0
    %4843 = vmatprep.subr.mxu0 0.0
    %4844 = vmatpush1.msra.mxu0 0.0
    %4845 = vmatprep.subr.mxu0 0.0
    %4846 = vmatpush1.msra.mxu0 0.0
    %4847 = vmatprep.subr.mxu0 0.0
    %4848 = vmatpush1.msra.mxu0 0.0
    %4849 = vmatprep.subr.mxu0 0.0
    %4850 = vmatpush1.msra.mxu0 0.0
    %4851 = vmatprep.subr.mxu0 0.0
    %4852 = vmatpush1.msra.mxu0 0.0
    %4853 = vmatprep.subr.mxu0 0.0
    %4854 = vmatpush1.msra.mxu0 0.0
    %4855 = vmatprep.subr.mxu0 0.0
    %4856 = vmatpush1.msra.mxu0 0.0
    %4857 = vmatprep.subr.mxu0 0.0
    %4858 = vmatpush1.msra.mxu0 0.0
    %4859 = vmatprep.subr.mxu0 0.0
    %4860 = vmatpush1.msra.mxu0 0.0
    %4861 = vmatprep.subr.mxu0 0.0
    %4862 = vmatpush1.msra.mxu0 0.0
    %4863 = vmatprep.subr.mxu0 0.0
    %4864 = vmatpush1.msra.mxu0 0.0
    %4865 = vmatprep.subr.mxu0 0.0
    %4866 = vmatpush1.msra.mxu0 0.0
    %4867 = vmatprep.subr.mxu0 0.0
    %4868 = vmatpush1.msra.mxu0 0.0
    %4869 = vmatprep.subr.mxu0 0.0
    %4870 = vmatpush1.msra.mxu0 0.0
    %4871 = vmatprep.subr.mxu0 0.0
    %4872 = vmatpush1.msra.mxu0 0.0
    %4873 = vmatprep.subr.mxu0 0.0
    %4874 = vmatpush1.msra.mxu0 0.0
    %4875 = vmatprep.subr.mxu0 0.0
    %4876 = vmatpush1.msra.mxu0 0.0
    %4877 = vmatprep.subr.mxu0 0.0
    %4878 = vmatpush1.msra.mxu0 0.0
    %4879 = vmatprep.subr.mxu0 0.0
    %4880 = vmatpush1.msra.mxu0 0.0
    %4881 = vmatprep.subr.mxu0 0.0
    %4882 = vmatpush1.msra.mxu0 0.0
    %4883 = vmatprep.subr.mxu0 0.0
    %4884 = vmatpush1.msra.mxu0 0.0
    %4885 = vmatprep.mubr.f32.mxu0 0.0
    %v4886 = vand.u32 %v4665, 4294901760
    %v4887 = vsub.f32 %v4665, %v4886
    %4888 = vmatmul.mubr.f32.gmra.mrb[0].mxu0 %v4887
    %v4889 = vpop.f32.mrb[0].mxu0
    %v4890 = vadd.f32 %v4816, %v4889
    %v4891 = vpop.f32.mrb[0].mxu0
    %4892 = vdwg.mxu0
    %4893 = vmatprep.subr.mxu0 0.0
    %v4894 = vand.u32 %v53, 4294901760
    %4895 = vmatpush1.msra.mxu0 %v4894
    %4896 = vmatprep.subr.mxu0 0.0
    %4897 = vmatpush1.msra.mxu0 0.0
    %4898 = vmatprep.subr.mxu0 0.0
    %4899 = vmatpush1.msra.mxu0 0.0
    %4900 = vmatprep.subr.mxu0 0.0
    %4901 = vmatpush1.msra.mxu0 0.0
    %4902 = vmatprep.subr.mxu0 0.0
    %4903 = vmatpush1.msra.mxu0 0.0
    %4904 = vmatprep.subr.mxu0 0.0
    %4905 = vmatpush1.msra.mxu0 0.0
    %4906 = vmatprep.subr.mxu0 0.0
    %4907 = vmatpush1.msra.mxu0 0.0
    %4908 = vmatprep.subr.mxu0 0.0
    %4909 = vmatpush1.msra.mxu0 0.0
    %4910 = vmatprep.subr.mxu0 0.0
    %4911 = vmatpush1.msra.mxu0 0.0
    %4912 = vmatprep.subr.mxu0 0.0
    %4913 = vmatpush1.msra.mxu0 0.0
    %4914 = vmatprep.subr.mxu0 0.0
    %4915 = vmatpush1.msra.mxu0 0.0
    %4916 = vmatprep.subr.mxu0 0.0
    %4917 = vmatpush1.msra.mxu0 0.0
    %4918 = vmatprep.subr.mxu0 0.0
    %4919 = vmatpush1.msra.mxu0 0.0
    %4920 = vmatprep.subr.mxu0 0.0
    %4921 = vmatpush1.msra.mxu0 0.0
    %4922 = vmatprep.subr.mxu0 0.0
    %4923 = vmatpush1.msra.mxu0 0.0
    %4924 = vmatprep.subr.mxu0 0.0
    %4925 = vmatpush1.msra.mxu0 0.0
    %4926 = vmatprep.subr.mxu0 0.0
    %4927 = vmatpush1.msra.mxu0 0.0
    %4928 = vmatprep.subr.mxu0 0.0
    %4929 = vmatpush1.msra.mxu0 0.0
    %4930 = vmatprep.subr.mxu0 0.0
    %4931 = vmatpush1.msra.mxu0 0.0
    %4932 = vmatprep.subr.mxu0 0.0
    %4933 = vmatpush1.msra.mxu0 0.0
    %4934 = vmatprep.subr.mxu0 0.0
    %4935 = vmatpush1.msra.mxu0 0.0
    %4936 = vmatprep.subr.mxu0 0.0
    %4937 = vmatpush1.msra.mxu0 0.0
    %4938 = vmatprep.subr.mxu0 0.0
    %4939 = vmatpush1.msra.mxu0 0.0
    %4940 = vmatprep.subr.mxu0 0.0
    %4941 = vmatpush1.msra.mxu0 0.0
    %4942 = vmatprep.subr.mxu0 0.0
    %4943 = vmatpush1.msra.mxu0 0.0
    %4944 = vmatprep.subr.mxu0 0.0
    %4945 = vmatpush1.msra.mxu0 0.0
    %4946 = vmatprep.subr.mxu0 0.0
    %4947 = vmatpush1.msra.mxu0 0.0
    %4948 = vmatprep.subr.mxu0 0.0
    %4949 = vmatpush1.msra.mxu0 0.0
    %4950 = vmatprep.subr.mxu0 0.0
    %4951 = vmatpush1.msra.mxu0 0.0
    %4952 = vmatprep.subr.mxu0 0.0
    %4953 = vmatpush1.msra.mxu0 0.0
    %4954 = vmatprep.subr.mxu0 0.0
    %4955 = vmatpush1.msra.mxu0 0.0
    %4956 = vmatprep.subr.mxu0 0.0
    %4957 = vmatpush1.msra.mxu0 0.0
    %4958 = vmatprep.mubr.f32.mxu0 0.0
    %v4959 = vand.u32 %v4665, 4294901760
    %v4960 = vsub.f32 %v4665, %v4959
    %v4961 = vand.u32 %v4960, 4294901760
    %4962 = vmatmul.mubr.f32.gmra.mrb[0].mxu0 %v4961
    %v4963 = vpop.f32.mrb[0].mxu0
    %v4964 = vadd.f32 %v4890, %v4963
    %v4965 = vpop.f32.mrb[0].mxu0
    %4966 = vdwg.mxu0
    %4967 = vmatprep.subr.mxu0 0.0
    %v4968 = vand.u32 %v53, 4294901760
    %v4969 = vsub.f32 %v53, %v4968
    %v4970 = vand.u32 %v4969, 4294901760
    %4971 = vmatpush1.msra.mxu0 %v4970
    %4972 = vmatprep.subr.mxu0 0.0
    %4973 = vmatpush1.msra.mxu0 0.0
    %4974 = vmatprep.subr.mxu0 0.0
    %4975 = vmatpush1.msra.mxu0 0.0
    %4976 = vmatprep.subr.mxu0 0.0
    %4977 = vmatpush1.msra.mxu0 0.0
    %4978 = vmatprep.subr.mxu0 0.0
    %4979 = vmatpush1.msra.mxu0 0.0
    %4980 = vmatprep.subr.mxu0 0.0
    %4981 = vmatpush1.msra.mxu0 0.0
    %4982 = vmatprep.subr.mxu0 0.0
    %4983 = vmatpush1.msra.mxu0 0.0
    %4984 = vmatprep.subr.mxu0 0.0
    %4985 = vmatpush1.msra.mxu0 0.0
    %4986 = vmatprep.subr.mxu0 0.0
    %4987 = vmatpush1.msra.mxu0 0.0
    %4988 = vmatprep.subr.mxu0 0.0
    %4989 = vmatpush1.msra.mxu0 0.0
    %4990 = vmatprep.subr.mxu0 0.0
    %4991 = vmatpush1.msra.mxu0 0.0
    %4992 = vmatprep.subr.mxu0 0.0
    %4993 = vmatpush1.msra.mxu0 0.0
    %4994 = vmatprep.subr.mxu0 0.0
    %4995 = vmatpush1.msra.mxu0 0.0
    %4996 = vmatprep.subr.mxu0 0.0
    %4997 = vmatpush1.msra.mxu0 0.0
    %4998 = vmatprep.subr.mxu0 0.0
    %4999 = vmatpush1.msra.mxu0 0.0
    %5000 = vmatprep.subr.mxu0 0.0
    %5001 = vmatpush1.msra.mxu0 0.0
    %5002 = vmatprep.subr.mxu0 0.0
    %5003 = vmatpush1.msra.mxu0 0.0
    %5004 = vmatprep.subr.mxu0 0.0
    %5005 = vmatpush1.msra.mxu0 0.0
    %5006 = vmatprep.subr.mxu0 0.0
    %5007 = vmatpush1.msra.mxu0 0.0
    %5008 = vmatprep.subr.mxu0 0.0
    %5009 = vmatpush1.msra.mxu0 0.0
    %5010 = vmatprep.subr.mxu0 0.0
    %5011 = vmatpush1.msra.mxu0 0.0
    %5012 = vmatprep.subr.mxu0 0.0
    %5013 = vmatpush1.msra.mxu0 0.0
    %5014 = vmatprep.subr.mxu0 0.0
    %5015 = vmatpush1.msra.mxu0 0.0
    %5016 = vmatprep.subr.mxu0 0.0
    %5017 = vmatpush1.msra.mxu0 0.0
    %5018 = vmatprep.subr.mxu0 0.0
    %5019 = vmatpush1.msra.mxu0 0.0
    %5020 = vmatprep.subr.mxu0 0.0
    %5021 = vmatpush1.msra.mxu0 0.0
    %5022 = vmatprep.subr.mxu0 0.0
    %5023 = vmatpush1.msra.mxu0 0.0
    %5024 = vmatprep.subr.mxu0 0.0
    %5025 = vmatpush1.msra.mxu0 0.0
    %5026 = vmatprep.subr.mxu0 0.0
    %5027 = vmatpush1.msra.mxu0 0.0
    %5028 = vmatprep.subr.mxu0 0.0
    %5029 = vmatpush1.msra.mxu0 0.0
    %5030 = vmatprep.subr.mxu0 0.0
    %5031 = vmatpush1.msra.mxu0 0.0
    %5032 = vmatprep.subr.mxu0 0.0
    %5033 = vmatpush1.msra.mxu0 0.0
    %5034 = vmatprep.mubr.f32.mxu0 0.0
    %v5035 = vand.u32 %v4665, 4294901760
    %5036 = vmatmul.mubr.f32.gmra.mrb[0].mxu0 %v5035
    %v5037 = vpop.f32.mrb[0].mxu0
    %v5038 = vadd.f32 %v4964, %v5037
    %v5039 = vpop.f32.mrb[0].mxu0
    %5040 = vdwg.mxu0
    %5041 = vmatprep.subr.mxu0 0.0
    %v5042 = vand.u32 %v53, 4294901760
    %5043 = vmatpush1.msra.mxu0 %v5042
    %5044 = vmatprep.subr.mxu0 0.0
    %5045 = vmatpush1.msra.mxu0 0.0
    %5046 = vmatprep.subr.mxu0 0.0
    %5047 = vmatpush1.msra.mxu0 0.0
    %5048 = vmatprep.subr.mxu0 0.0
    %5049 = vmatpush1.msra.mxu0 0.0
    %5050 = vmatprep.subr.mxu0 0.0
    %5051 = vmatpush1.msra.mxu0 0.0
    %5052 = vmatprep.subr.mxu0 0.0
    %5053 = vmatpush1.msra.mxu0 0.0
    %5054 = vmatprep.subr.mxu0 0.0
    %5055 = vmatpush1.msra.mxu0 0.0
    %5056 = vmatprep.subr.mxu0 0.0
    %5057 = vmatpush1.msra.mxu0 0.0
    %5058 = vmatprep.subr.mxu0 0.0
    %5059 = vmatpush1.msra.mxu0 0.0
    %5060 = vmatprep.subr.mxu0 0.0
    %5061 = vmatpush1.msra.mxu0 0.0
    %5062 = vmatprep.subr.mxu0 0.0
    %5063 = vmatpush1.msra.mxu0 0.0
    %5064 = vmatprep.subr.mxu0 0.0
    %5065 = vmatpush1.msra.mxu0 0.0
    %5066 = vmatprep.subr.mxu0 0.0
    %5067 = vmatpush1.msra.mxu0 0.0
    %5068 = vmatprep.subr.mxu0 0.0
    %5069 = vmatpush1.msra.mxu0 0.0
    %5070 = vmatprep.subr.mxu0 0.0
    %5071 = vmatpush1.msra.mxu0 0.0
    %5072 = vmatprep.subr.mxu0 0.0
    %5073 = vmatpush1.msra.mxu0 0.0
    %5074 = vmatprep.subr.mxu0 0.0
    %5075 = vmatpush1.msra.mxu0 0.0
    %5076 = vmatprep.subr.mxu0 0.0
    %5077 = vmatpush1.msra.mxu0 0.0
    %5078 = vmatprep.subr.mxu0 0.0
    %5079 = vmatpush1.msra.mxu0 0.0
    %5080 = vmatprep.subr.mxu0 0.0
    %5081 = vmatpush1.msra.mxu0 0.0
    %5082 = vmatprep.subr.mxu0 0.0
    %5083 = vmatpush1.msra.mxu0 0.0
    %5084 = vmatprep.subr.mxu0 0.0
    %5085 = vmatpush1.msra.mxu0 0.0
    %5086 = vmatprep.subr.mxu0 0.0
    %5087 = vmatpush1.msra.mxu0 0.0
    %5088 = vmatprep.subr.mxu0 0.0
    %5089 = vmatpush1.msra.mxu0 0.0
    %5090 = vmatprep.subr.mxu0 0.0
    %5091 = vmatpush1.msra.mxu0 0.0
    %5092 = vmatprep.subr.mxu0 0.0
    %5093 = vmatpush1.msra.mxu0 0.0
    %5094 = vmatprep.subr.mxu0 0.0
    %5095 = vmatpush1.msra.mxu0 0.0
    %5096 = vmatprep.subr.mxu0 0.0
    %5097 = vmatpush1.msra.mxu0 0.0
    %5098 = vmatprep.subr.mxu0 0.0
    %5099 = vmatpush1.msra.mxu0 0.0
    %5100 = vmatprep.subr.mxu0 0.0
    %5101 = vmatpush1.msra.mxu0 0.0
    %5102 = vmatprep.subr.mxu0 0.0
    %5103 = vmatpush1.msra.mxu0 0.0
    %5104 = vmatprep.subr.mxu0 0.0
    %5105 = vmatpush1.msra.mxu0 0.0
    %5106 = vmatprep.mubr.f32.mxu0 0.0
    %v5107 = vand.u32 %v4665, 4294901760
    %5108 = vmatmul.mubr.f32.gmra.mrb[0].mxu0 %v5107
    %v5109 = vpop.f32.mrb[0].mxu0
    %v5110 = vadd.f32 %v5038, %v5109
    %v5111 = vpop.f32.mrb[0].mxu0
    %5112 = vdwg.mxu0
    %v5114 = vsel %vm3765, %v3756, 0
    %5116 = vmatprep.subr.mxu0 0.0
    %v5117 = vand.u32 %v54, 4294901760
    %5118 = vmatpush1.msra.mxu0 %v5117
    %5119 = vmatprep.subr.mxu0 0.0
    %5120 = vmatpush1.msra.mxu0 0.0
    %5121 = vmatprep.subr.mxu0 0.0
    %5122 = vmatpush1.msra.mxu0 0.0
    %5123 = vmatprep.subr.mxu0 0.0
    %5124 = vmatpush1.msra.mxu0 0.0
    %5125 = vmatprep.subr.mxu0 0.0
    %5126 = vmatpush1.msra.mxu0 0.0
    %5127 = vmatprep.subr.mxu0 0.0
    %5128 = vmatpush1.msra.mxu0 0.0
    %5129 = vmatprep.subr.mxu0 0.0
    %5130 = vmatpush1.msra.mxu0 0.0
    %5131 = vmatprep.subr.mxu0 0.0
    %5132 = vmatpush1.msra.mxu0 0.0
    %5133 = vmatprep.subr.mxu0 0.0
    %5134 = vmatpush1.msra.mxu0 0.0
    %5135 = vmatprep.subr.mxu0 0.0
    %5136 = vmatpush1.msra.mxu0 0.0
    %5137 = vmatprep.subr.mxu0 0.0
    %5138 = vmatpush1.msra.mxu0 0.0
    %5139 = vmatprep.subr.mxu0 0.0
    %5140 = vmatpush1.msra.mxu0 0.0
    %5141 = vmatprep.subr.mxu0 0.0
    %5142 = vmatpush1.msra.mxu0 0.0
    %5143 = vmatprep.subr.mxu0 0.0
    %5144 = vmatpush1.msra.mxu0 0.0
    %5145 = vmatprep.subr.mxu0 0.0
    %5146 = vmatpush1.msra.mxu0 0.0
    %5147 = vmatprep.subr.mxu0 0.0
    %5148 = vmatpush1.msra.mxu0 0.0
    %5149 = vmatprep.subr.mxu0 0.0
    %5150 = vmatpush1.msra.mxu0 0.0
    %5151 = vmatprep.subr.mxu0 0.0
    %5152 = vmatpush1.msra.mxu0 0.0
    %5153 = vmatprep.subr.mxu0 0.0
    %5154 = vmatpush1.msra.mxu0 0.0
    %5155 = vmatprep.subr.mxu0 0.0
    %5156 = vmatpush1.msra.mxu0 0.0
    %5157 = vmatprep.subr.mxu0 0.0
    %5158 = vmatpush1.msra.mxu0 0.0
    %5159 = vmatprep.subr.mxu0 0.0
    %5160 = vmatpush1.msra.mxu0 0.0
    %5161 = vmatprep.subr.mxu0 0.0
    %5162 = vmatpush1.msra.mxu0 0.0
    %5163 = vmatprep.subr.mxu0 0.0
    %5164 = vmatpush1.msra.mxu0 0.0
    %5165 = vmatprep.subr.mxu0 0.0
    %5166 = vmatpush1.msra.mxu0 0.0
    %5167 = vmatprep.subr.mxu0 0.0
    %5168 = vmatpush1.msra.mxu0 0.0
    %5169 = vmatprep.subr.mxu0 0.0
    %5170 = vmatpush1.msra.mxu0 0.0
    %5171 = vmatprep.subr.mxu0 0.0
    %5172 = vmatpush1.msra.mxu0 0.0
    %5173 = vmatprep.subr.mxu0 0.0
    %5174 = vmatpush1.msra.mxu0 0.0
    %5175 = vmatprep.subr.mxu0 0.0
    %5176 = vmatpush1.msra.mxu0 0.0
    %5177 = vmatprep.subr.mxu0 0.0
    %5178 = vmatpush1.msra.mxu0 0.0
    %5179 = vmatprep.subr.mxu0 0.0
    %5180 = vmatpush1.msra.mxu0 0.0
    %5181 = vmatprep.mubr.f32.mxu0 0.0
    %v5182 = vand.u32 %v5114, 4294901760
    %v5183 = vsub.f32 %v5114, %v5182
    %v5184 = vand.u32 %v5183, 4294901760
    %v5185 = vsub.f32 %v5183, %v5184
    %v5186 = vand.u32 %v5185, 4294901760
    %5187 = vmatmul.mubr.f32.gmra.mrb[0].mxu0 %v5186
    %v5188 = vpop.f32.mrb[0].mxu0
    %v5189 = vadd.f32 0.0, %v5188
    %v5190 = vpop.f32.mrb[0].mxu0
    %5191 = vdwg.mxu0
    %5192 = vmatprep.subr.mxu0 0.0
    %v5193 = vand.u32 %v54, 4294901760
    %v5194 = vsub.f32 %v54, %v5193
    %v5195 = vand.u32 %v5194, 4294901760
    %v5196 = vsub.f32 %v5194, %v5195
    %v5197 = vand.u32 %v5196, 4294901760
    %5198 = vmatpush1.msra.mxu0 %v5197
    %5199 = vmatprep.subr.mxu0 0.0
    %5200 = vmatpush1.msra.mxu0 0.0
    %5201 = vmatprep.subr.mxu0 0.0
    %5202 = vmatpush1.msra.mxu0 0.0
    %5203 = vmatprep.subr.mxu0 0.0
    %5204 = vmatpush1.msra.mxu0 0.0
    %5205 = vmatprep.subr.mxu0 0.0
    %5206 = vmatpush1.msra.mxu0 0.0
    %5207 = vmatprep.subr.mxu0 0.0
    %5208 = vmatpush1.msra.mxu0 0.0
    %5209 = vmatprep.subr.mxu0 0.0
    %5210 = vmatpush1.msra.mxu0 0.0
    %5211 = vmatprep.subr.mxu0 0.0
    %5212 = vmatpush1.msra.mxu0 0.0
    %5213 = vmatprep.subr.mxu0 0.0
    %5214 = vmatpush1.msra.mxu0 0.0
    %5215 = vmatprep.subr.mxu0 0.0
    %5216 = vmatpush1.msra.mxu0 0.0
    %5217 = vmatprep.subr.mxu0 0.0
    %5218 = vmatpush1.msra.mxu0 0.0
    %5219 = vmatprep.subr.mxu0 0.0
    %5220 = vmatpush1.msra.mxu0 0.0
    %5221 = vmatprep.subr.mxu0 0.0
    %5222 = vmatpush1.msra.mxu0 0.0
    %5223 = vmatprep.subr.mxu0 0.0
    %5224 = vmatpush1.msra.mxu0 0.0
    %5225 = vmatprep.subr.mxu0 0.0
    %5226 = vmatpush1.msra.mxu0 0.0
    %5227 = vmatprep.subr.mxu0 0.0
    %5228 = vmatpush1.msra.mxu0 0.0
    %5229 = vmatprep.subr.mxu0 0.0
    %5230 = vmatpush1.msra.mxu0 0.0
    %5231 = vmatprep.subr.mxu0 0.0
    %5232 = vmatpush1.msra.mxu0 0.0
    %5233 = vmatprep.subr.mxu0 0.0
    %5234 = vmatpush1.msra.mxu0 0.0
    %5235 = vmatprep.subr.mxu0 0.0
    %5236 = vmatpush1.msra.mxu0 0.0
    %5237 = vmatprep.subr.mxu0 0.0
    %5238 = vmatpush1.msra.mxu0 0.0
    %5239 = vmatprep.subr.mxu0 0.0
    %5240 = vmatpush1.msra.mxu0 0.0
    %5241 = vmatprep.subr.mxu0 0.0
    %5242 = vmatpush1.msra.mxu0 0.0
    %5243 = vmatprep.subr.mxu0 0.0
    %5244 = vmatpush1.msra.mxu0 0.0
    %5245 = vmatprep.subr.mxu0 0.0
    %5246 = vmatpush1.msra.mxu0 0.0
    %5247 = vmatprep.subr.mxu0 0.0
    %5248 = vmatpush1.msra.mxu0 0.0
    %5249 = vmatprep.subr.mxu0 0.0
    %5250 = vmatpush1.msra.mxu0 0.0
    %5251 = vmatprep.subr.mxu0 0.0
    %5252 = vmatpush1.msra.mxu0 0.0
    %5253 = vmatprep.subr.mxu0 0.0
    %5254 = vmatpush1.msra.mxu0 0.0
    %5255 = vmatprep.subr.mxu0 0.0
    %5256 = vmatpush1.msra.mxu0 0.0
    %5257 = vmatprep.subr.mxu0 0.0
    %5258 = vmatpush1.msra.mxu0 0.0
    %5259 = vmatprep.subr.mxu0 0.0
    %5260 = vmatpush1.msra.mxu0 0.0
    %5261 = vmatprep.mubr.f32.mxu0 0.0
    %v5262 = vand.u32 %v5114, 4294901760
    %5263 = vmatmul.mubr.f32.gmra.mrb[0].mxu0 %v5262
    %v5264 = vpop.f32.mrb[0].mxu0
    %v5265 = vadd.f32 %v5189, %v5264
    %v5266 = vpop.f32.mrb[0].mxu0
    %5267 = vdwg.mxu0
    %5268 = vmatprep.subr.mxu0 0.0
    %v5269 = vand.u32 %v54, 4294901760
    %v5270 = vsub.f32 %v54, %v5269
    %5271 = vmatpush1.msra.mxu0 %v5270
    %5272 = vmatprep.subr.mxu0 0.0
    %5273 = vmatpush1.msra.mxu0 0.0
    %5274 = vmatprep.subr.mxu0 0.0
    %5275 = vmatpush1.msra.mxu0 0.0
    %5276 = vmatprep.subr.mxu0 0.0
    %5277 = vmatpush1.msra.mxu0 0.0
    %5278 = vmatprep.subr.mxu0 0.0
    %5279 = vmatpush1.msra.mxu0 0.0
    %5280 = vmatprep.subr.mxu0 0.0
    %5281 = vmatpush1.msra.mxu0 0.0
    %5282 = vmatprep.subr.mxu0 0.0
    %5283 = vmatpush1.msra.mxu0 0.0
    %5284 = vmatprep.subr.mxu0 0.0
    %5285 = vmatpush1.msra.mxu0 0.0
    %5286 = vmatprep.subr.mxu0 0.0
    %5287 = vmatpush1.msra.mxu0 0.0
    %5288 = vmatprep.subr.mxu0 0.0
    %5289 = vmatpush1.msra.mxu0 0.0
    %5290 = vmatprep.subr.mxu0 0.0
    %5291 = vmatpush1.msra.mxu0 0.0
    %5292 = vmatprep.subr.mxu0 0.0
    %5293 = vmatpush1.msra.mxu0 0.0
    %5294 = vmatprep.subr.mxu0 0.0
    %5295 = vmatpush1.msra.mxu0 0.0
    %5296 = vmatprep.subr.mxu0 0.0
    %5297 = vmatpush1.msra.mxu0 0.0
    %5298 = vmatprep.subr.mxu0 0.0
    %5299 = vmatpush1.msra.mxu0 0.0
    %5300 = vmatprep.subr.mxu0 0.0
    %5301 = vmatpush1.msra.mxu0 0.0
    %5302 = vmatprep.subr.mxu0 0.0
    %5303 = vmatpush1.msra.mxu0 0.0
    %5304 = vmatprep.subr.mxu0 0.0
    %5305 = vmatpush1.msra.mxu0 0.0
    %5306 = vmatprep.subr.mxu0 0.0
    %5307 = vmatpush1.msra.mxu0 0.0
    %5308 = vmatprep.subr.mxu0 0.0
    %5309 = vmatpush1.msra.mxu0 0.0
    %5310 = vmatprep.subr.mxu0 0.0
    %5311 = vmatpush1.msra.mxu0 0.0
    %5312 = vmatprep.subr.mxu0 0.0
    %5313 = vmatpush1.msra.mxu0 0.0
    %5314 = vmatprep.subr.mxu0 0.0
    %5315 = vmatpush1.msra.mxu0 0.0
    %5316 = vmatprep.subr.mxu0 0.0
    %5317 = vmatpush1.msra.mxu0 0.0
    %5318 = vmatprep.subr.mxu0 0.0
    %5319 = vmatpush1.msra.mxu0 0.0
    %5320 = vmatprep.subr.mxu0 0.0
    %5321 = vmatpush1.msra.mxu0 0.0
    %5322 = vmatprep.subr.mxu0 0.0
    %5323 = vmatpush1.msra.mxu0 0.0
    %5324 = vmatprep.subr.mxu0 0.0
    %5325 = vmatpush1.msra.mxu0 0.0
    %5326 = vmatprep.subr.mxu0 0.0
    %5327 = vmatpush1.msra.mxu0 0.0
    %5328 = vmatprep.subr.mxu0 0.0
    %5329 = vmatpush1.msra.mxu0 0.0
    %5330 = vmatprep.subr.mxu0 0.0
    %5331 = vmatpush1.msra.mxu0 0.0
    %5332 = vmatprep.subr.mxu0 0.0
    %5333 = vmatpush1.msra.mxu0 0.0
    %5334 = vmatprep.mubr.f32.mxu0 0.0
    %v5335 = vand.u32 %v5114, 4294901760
    %v5336 = vsub.f32 %v5114, %v5335
    %5337 = vmatmul.mubr.f32.gmra.mrb[0].mxu0 %v5336
    %v5338 = vpop.f32.mrb[0].mxu0
    %v5339 = vadd.f32 %v5265, %v5338
    %v5340 = vpop.f32.mrb[0].mxu0
    %5341 = vdwg.mxu0
    %5342 = vmatprep.subr.mxu0 0.0
    %v5343 = vand.u32 %v54, 4294901760
    %5344 = vmatpush1.msra.mxu0 %v5343
    %5345 = vmatprep.subr.mxu0 0.0
    %5346 = vmatpush1.msra.mxu0 0.0
    %5347 = vmatprep.subr.mxu0 0.0
    %5348 = vmatpush1.msra.mxu0 0.0
    %5349 = vmatprep.subr.mxu0 0.0
    %5350 = vmatpush1.msra.mxu0 0.0
    %5351 = vmatprep.subr.mxu0 0.0
    %5352 = vmatpush1.msra.mxu0 0.0
    %5353 = vmatprep.subr.mxu0 0.0
    %5354 = vmatpush1.msra.mxu0 0.0
    %5355 = vmatprep.subr.mxu0 0.0
    %5356 = vmatpush1.msra.mxu0 0.0
    %5357 = vmatprep.subr.mxu0 0.0
    %5358 = vmatpush1.msra.mxu0 0.0
    %5359 = vmatprep.subr.mxu0 0.0
    %5360 = vmatpush1.msra.mxu0 0.0
    %5361 = vmatprep.subr.mxu0 0.0
    %5362 = vmatpush1.msra.mxu0 0.0
    %5363 = vmatprep.subr.mxu0 0.0
    %5364 = vmatpush1.msra.mxu0 0.0
    %5365 = vmatprep.subr.mxu0 0.0
    %5366 = vmatpush1.msra.mxu0 0.0
    %5367 = vmatprep.subr.mxu0 0.0
    %5368 = vmatpush1.msra.mxu0 0.0
    %5369 = vmatprep.subr.mxu0 0.0
    %5370 = vmatpush1.msra.mxu0 0.0
    %5371 = vmatprep.subr.mxu0 0.0
    %5372 = vmatpush1.msra.mxu0 0.0
    %5373 = vmatprep.subr.mxu0 0.0
    %5374 = vmatpush1.msra.mxu0 0.0
    %5375 = vmatprep.subr.mxu0 0.0
    %5376 = vmatpush1.msra.mxu0 0.0
    %5377 = vmatprep.subr.mxu0 0.0
    %5378 = vmatpush1.msra.mxu0 0.0
    %5379 = vmatprep.subr.mxu0 0.0
    %5380 = vmatpush1.msra.mxu0 0.0
    %5381 = vmatprep.subr.mxu0 0.0
    %5382 = vmatpush1.msra.mxu0 0.0
    %5383 = vmatprep.subr.mxu0 0.0
    %5384 = vmatpush1.msra.mxu0 0.0
    %5385 = vmatprep.subr.mxu0 0.0
    %5386 = vmatpush1.msra.mxu0 0.0
    %5387 = vmatprep.subr.mxu0 0.0
    %5388 = vmatpush1.msra.mxu0 0.0
    %5389 = vmatprep.subr.mxu0 0.0
    %5390 = vmatpush1.msra.mxu0 0.0
    %5391 = vmatprep.subr.mxu0 0.0
    %5392 = vmatpush1.msra.mxu0 0.0
    %5393 = vmatprep.subr.mxu0 0.0
    %5394 = vmatpush1.msra.mxu0 0.0
    %5395 = vmatprep.subr.mxu0 0.0
    %5396 = vmatpush1.msra.mxu0 0.0
    %5397 = vmatprep.subr.mxu0 0.0
    %5398 = vmatpush1.msra.mxu0 0.0
    %5399 = vmatprep.subr.mxu0 0.0
    %5400 = vmatpush1.msra.mxu0 0.0
    %5401 = vmatprep.subr.mxu0 0.0
    %5402 = vmatpush1.msra.mxu0 0.0
    %5403 = vmatprep.subr.mxu0 0.0
    %5404 = vmatpush1.msra.mxu0 0.0
    %5405 = vmatprep.subr.mxu0 0.0
    %5406 = vmatpush1.msra.mxu0 0.0
    %5407 = vmatprep.mubr.f32.mxu0 0.0
    %v5408 = vand.u32 %v5114, 4294901760
    %v5409 = vsub.f32 %v5114, %v5408
    %v5410 = vand.u32 %v5409, 4294901760
    %5411 = vmatmul.mubr.f32.gmra.mrb[0].mxu0 %v5410
    %v5412 = vpop.f32.mrb[0].mxu0
    %v5413 = vadd.f32 %v5339, %v5412
    %v5414 = vpop.f32.mrb[0].mxu0
    %5415 = vdwg.mxu0
    %5416 = vmatprep.subr.mxu0 0.0
    %v5417 = vand.u32 %v54, 4294901760
    %v5418 = vsub.f32 %v54, %v5417
    %v5419 = vand.u32 %v5418, 4294901760
    %5420 = vmatpush1.msra.mxu0 %v5419
    %5421 = vmatprep.subr.mxu0 0.0
    %5422 = vmatpush1.msra.mxu0 0.0
    %5423 = vmatprep.subr.mxu0 0.0
    %5424 = vmatpush1.msra.mxu0 0.0
    %5425 = vmatprep.subr.mxu0 0.0
    %5426 = vmatpush1.msra.mxu0 0.0
    %5427 = vmatprep.subr.mxu0 0.0
    %5428 = vmatpush1.msra.mxu0 0.0
    %5429 = vmatprep.subr.mxu0 0.0
    %5430 = vmatpush1.msra.mxu0 0.0
    %5431 = vmatprep.subr.mxu0 0.0
    %5432 = vmatpush1.msra.mxu0 0.0
    %5433 = vmatprep.subr.mxu0 0.0
    %5434 = vmatpush1.msra.mxu0 0.0
    %5435 = vmatprep.subr.mxu0 0.0
    %5436 = vmatpush1.msra.mxu0 0.0
    %5437 = vmatprep.subr.mxu0 0.0
    %5438 = vmatpush1.msra.mxu0 0.0
    %5439 = vmatprep.subr.mxu0 0.0
    %5440 = vmatpush1.msra.mxu0 0.0
    %5441 = vmatprep.subr.mxu0 0.0
    %5442 = vmatpush1.msra.mxu0 0.0
    %5443 = vmatprep.subr.mxu0 0.0
    %5444 = vmatpush1.msra.mxu0 0.0
    %5445 = vmatprep.subr.mxu0 0.0
    %5446 = vmatpush1.msra.mxu0 0.0
    %5447 = vmatprep.subr.mxu0 0.0
    %5448 = vmatpush1.msra.mxu0 0.0
    %5449 = vmatprep.subr.mxu0 0.0
    %5450 = vmatpush1.msra.mxu0 0.0
    %5451 = vmatprep.subr.mxu0 0.0
    %5452 = vmatpush1.msra.mxu0 0.0
    %5453 = vmatprep.subr.mxu0 0.0
    %5454 = vmatpush1.msra.mxu0 0.0
    %5455 = vmatprep.subr.mxu0 0.0
    %5456 = vmatpush1.msra.mxu0 0.0
    %5457 = vmatprep.subr.mxu0 0.0
    %5458 = vmatpush1.msra.mxu0 0.0
    %5459 = vmatprep.subr.mxu0 0.0
    %5460 = vmatpush1.msra.mxu0 0.0
    %5461 = vmatprep.subr.mxu0 0.0
    %5462 = vmatpush1.msra.mxu0 0.0
    %5463 = vmatprep.subr.mxu0 0.0
    %5464 = vmatpush1.msra.mxu0 0.0
    %5465 = vmatprep.subr.mxu0 0.0
    %5466 = vmatpush1.msra.mxu0 0.0
    %5467 = vmatprep.subr.mxu0 0.0
    %5468 = vmatpush1.msra.mxu0 0.0
    %5469 = vmatprep.subr.mxu0 0.0
    %5470 = vmatpush1.msra.mxu0 0.0
    %5471 = vmatprep.subr.mxu0 0.0
    %5472 = vmatpush1.msra.mxu0 0.0
    %5473 = vmatprep.subr.mxu0 0.0
    %5474 = vmatpush1.msra.mxu0 0.0
    %5475 = vmatprep.subr.mxu0 0.0
    %5476 = vmatpush1.msra.mxu0 0.0
    %5477 = vmatprep.subr.mxu0 0.0
    %5478 = vmatpush1.msra.mxu0 0.0
    %5479 = vmatprep.subr.mxu0 0.0
    %5480 = vmatpush1.msra.mxu0 0.0
    %5481 = vmatprep.subr.mxu0 0.0
    %5482 = vmatpush1.msra.mxu0 0.0
    %5483 = vmatprep.mubr.f32.mxu0 0.0
    %v5484 = vand.u32 %v5114, 4294901760
    %5485 = vmatmul.mubr.f32.gmra.mrb[0].mxu0 %v5484
    %v5486 = vpop.f32.mrb[0].mxu0
    %v5487 = vadd.f32 %v5413, %v5486
    %v5488 = vpop.f32.mrb[0].mxu0
    %5489 = vdwg.mxu0
    %5490 = vmatprep.subr.mxu0 0.0
    %v5491 = vand.u32 %v54, 4294901760
    %5492 = vmatpush1.msra.mxu0 %v5491
    %5493 = vmatprep.subr.mxu0 0.0
    %5494 = vmatpush1.msra.mxu0 0.0
    %5495 = vmatprep.subr.mxu0 0.0
    %5496 = vmatpush1.msra.mxu0 0.0
    %5497 = vmatprep.subr.mxu0 0.0
    %5498 = vmatpush1.msra.mxu0 0.0
    %5499 = vmatprep.subr.mxu0 0.0
    %5500 = vmatpush1.msra.mxu0 0.0
    %5501 = vmatprep.subr.mxu0 0.0
    %5502 = vmatpush1.msra.mxu0 0.0
    %5503 = vmatprep.subr.mxu0 0.0
    %5504 = vmatpush1.msra.mxu0 0.0
    %5505 = vmatprep.subr.mxu0 0.0
    %5506 = vmatpush1.msra.mxu0 0.0
    %5507 = vmatprep.subr.mxu0 0.0
    %5508 = vmatpush1.msra.mxu0 0.0
    %5509 = vmatprep.subr.mxu0 0.0
    %5510 = vmatpush1.msra.mxu0 0.0
    %5511 = vmatprep.subr.mxu0 0.0
    %5512 = vmatpush1.msra.mxu0 0.0
    %5513 = vmatprep.subr.mxu0 0.0
    %5514 = vmatpush1.msra.mxu0 0.0
    %5515 = vmatprep.subr.mxu0 0.0
    %5516 = vmatpush1.msra.mxu0 0.0
    %5517 = vmatprep.subr.mxu0 0.0
    %5518 = vmatpush1.msra.mxu0 0.0
    %5519 = vmatprep.subr.mxu0 0.0
    %5520 = vmatpush1.msra.mxu0 0.0
    %5521 = vmatprep.subr.mxu0 0.0
    %5522 = vmatpush1.msra.mxu0 0.0
    %5523 = vmatprep.subr.mxu0 0.0
    %5524 = vmatpush1.msra.mxu0 0.0
    %5525 = vmatprep.subr.mxu0 0.0
    %5526 = vmatpush1.msra.mxu0 0.0
    %5527 = vmatprep.subr.mxu0 0.0
    %5528 = vmatpush1.msra.mxu0 0.0
    %5529 = vmatprep.subr.mxu0 0.0
    %5530 = vmatpush1.msra.mxu0 0.0
    %5531 = vmatprep.subr.mxu0 0.0
    %5532 = vmatpush1.msra.mxu0 0.0
    %5533 = vmatprep.subr.mxu0 0.0
    %5534 = vmatpush1.msra.mxu0 0.0
    %5535 = vmatprep.subr.mxu0 0.0
    %5536 = vmatpush1.msra.mxu0 0.0
    %5537 = vmatprep.subr.mxu0 0.0
    %5538 = vmatpush1.msra.mxu0 0.0
    %5539 = vmatprep.subr.mxu0 0.0
    %5540 = vmatpush1.msra.mxu0 0.0
    %5541 = vmatprep.subr.mxu0 0.0
    %5542 = vmatpush1.msra.mxu0 0.0
    %5543 = vmatprep.subr.mxu0 0.0
    %5544 = vmatpush1.msra.mxu0 0.0
    %5545 = vmatprep.subr.mxu0 0.0
    %5546 = vmatpush1.msra.mxu0 0.0
    %5547 = vmatprep.subr.mxu0 0.0
    %5548 = vmatpush1.msra.mxu0 0.0
    %5549 = vmatprep.subr.mxu0 0.0
    %5550 = vmatpush1.msra.mxu0 0.0
    %5551 = vmatprep.subr.mxu0 0.0
    %5552 = vmatpush1.msra.mxu0 0.0
    %5553 = vmatprep.subr.mxu0 0.0
    %5554 = vmatpush1.msra.mxu0 0.0
    %5555 = vmatprep.mubr.f32.mxu0 0.0
    %v5556 = vand.u32 %v5114, 4294901760
    %5557 = vmatmul.mubr.f32.gmra.mrb[0].mxu0 %v5556
    %v5558 = vpop.f32.mrb[0].mxu0
    %v5559 = vadd.f32 %v5487, %v5558
    %v5560 = vpop.f32.mrb[0].mxu0
    %5561 = vdwg.mxu0
    %v5563 = vsel %vm3765, %v3758, 0
    %5565 = vmatprep.subr.mxu0 0.0
    %v5566 = vand.u32 %v55, 4294901760
    %5567 = vmatpush1.msra.mxu0 %v5566
    %5568 = vmatprep.subr.mxu0 0.0
    %5569 = vmatpush1.msra.mxu0 0.0
    %5570 = vmatprep.subr.mxu0 0.0
    %5571 = vmatpush1.msra.mxu0 0.0
    %5572 = vmatprep.subr.mxu0 0.0
    %5573 = vmatpush1.msra.mxu0 0.0
    %5574 = vmatprep.subr.mxu0 0.0
    %5575 = vmatpush1.msra.mxu0 0.0
    %5576 = vmatprep.subr.mxu0 0.0
    %5577 = vmatpush1.msra.mxu0 0.0
    %5578 = vmatprep.subr.mxu0 0.0
    %5579 = vmatpush1.msra.mxu0 0.0
    %5580 = vmatprep.subr.mxu0 0.0
    %5581 = vmatpush1.msra.mxu0 0.0
    %5582 = vmatprep.subr.mxu0 0.0
    %5583 = vmatpush1.msra.mxu0 0.0
    %5584 = vmatprep.subr.mxu0 0.0
    %5585 = vmatpush1.msra.mxu0 0.0
    %5586 = vmatprep.subr.mxu0 0.0
    %5587 = vmatpush1.msra.mxu0 0.0
    %5588 = vmatprep.subr.mxu0 0.0
    %5589 = vmatpush1.msra.mxu0 0.0
    %5590 = vmatprep.subr.mxu0 0.0
    %5591 = vmatpush1.msra.mxu0 0.0
    %5592 = vmatprep.subr.mxu0 0.0
    %5593 = vmatpush1.msra.mxu0 0.0
    %5594 = vmatprep.subr.mxu0 0.0
    %5595 = vmatpush1.msra.mxu0 0.0
    %5596 = vmatprep.subr.mxu0 0.0
    %5597 = vmatpush1.msra.mxu0 0.0
    %5598 = vmatprep.subr.mxu0 0.0
    %5599 = vmatpush1.msra.mxu0 0.0
    %5600 = vmatprep.subr.mxu0 0.0
    %5601 = vmatpush1.msra.mxu0 0.0
    %5602 = vmatprep.subr.mxu0 0.0
    %5603 = vmatpush1.msra.mxu0 0.0
    %5604 = vmatprep.subr.mxu0 0.0
    %5605 = vmatpush1.msra.mxu0 0.0
    %5606 = vmatprep.subr.mxu0 0.0
    %5607 = vmatpush1.msra.mxu0 0.0
    %5608 = vmatprep.subr.mxu0 0.0
    %5609 = vmatpush1.msra.mxu0 0.0
    %5610 = vmatprep.subr.mxu0 0.0
    %5611 = vmatpush1.msra.mxu0 0.0
    %5612 = vmatprep.subr.mxu0 0.0
    %5613 = vmatpush1.msra.mxu0 0.0
    %5614 = vmatprep.subr.mxu0 0.0
    %5615 = vmatpush1.msra.mxu0 0.0
    %5616 = vmatprep.subr.mxu0 0.0
    %5617 = vmatpush1.msra.mxu0 0.0
    %5618 = vmatprep.subr.mxu0 0.0
    %5619 = vmatpush1.msra.mxu0 0.0
    %5620 = vmatprep.subr.mxu0 0.0
    %5621 = vmatpush1.msra.mxu0 0.0
    %5622 = vmatprep.subr.mxu0 0.0
    %5623 = vmatpush1.msra.mxu0 0.0
    %5624 = vmatprep.subr.mxu0 0.0
    %5625 = vmatpush1.msra.mxu0 0.0
    %5626 = vmatprep.subr.mxu0 0.0
    %5627 = vmatpush1.msra.mxu0 0.0
    %5628 = vmatprep.subr.mxu0 0.0
    %5629 = vmatpush1.msra.mxu0 0.0
    %5630 = vmatprep.mubr.f32.mxu0 0.0
    %v5631 = vand.u32 %v5563, 4294901760
    %v5632 = vsub.f32 %v5563, %v5631
    %v5633 = vand.u32 %v5632, 4294901760
    %v5634 = vsub.f32 %v5632, %v5633
    %v5635 = vand.u32 %v5634, 4294901760
    %5636 = vmatmul.mubr.f32.gmra.mrb[0].mxu0 %v5635
    %v5637 = vpop.f32.mrb[0].mxu0
    %v5638 = vadd.f32 0.0, %v5637
    %v5639 = vpop.f32.mrb[0].mxu0
    %5640 = vdwg.mxu0
    %5641 = vmatprep.subr.mxu0 0.0
    %v5642 = vand.u32 %v55, 4294901760
    %v5643 = vsub.f32 %v55, %v5642
    %v5644 = vand.u32 %v5643, 4294901760
    %v5645 = vsub.f32 %v5643, %v5644
    %v5646 = vand.u32 %v5645, 4294901760
    %5647 = vmatpush1.msra.mxu0 %v5646
    %5648 = vmatprep.subr.mxu0 0.0
    %5649 = vmatpush1.msra.mxu0 0.0
    %5650 = vmatprep.subr.mxu0 0.0
    %5651 = vmatpush1.msra.mxu0 0.0
    %5652 = vmatprep.subr.mxu0 0.0
    %5653 = vmatpush1.msra.mxu0 0.0
    %5654 = vmatprep.subr.mxu0 0.0
    %5655 = vmatpush1.msra.mxu0 0.0
    %5656 = vmatprep.subr.mxu0 0.0
    %5657 = vmatpush1.msra.mxu0 0.0
    %5658 = vmatprep.subr.mxu0 0.0
    %5659 = vmatpush1.msra.mxu0 0.0
    %5660 = vmatprep.subr.mxu0 0.0
    %5661 = vmatpush1.msra.mxu0 0.0
    %5662 = vmatprep.subr.mxu0 0.0
    %5663 = vmatpush1.msra.mxu0 0.0
    %5664 = vmatprep.subr.mxu0 0.0
    %5665 = vmatpush1.msra.mxu0 0.0
    %5666 = vmatprep.subr.mxu0 0.0
    %5667 = vmatpush1.msra.mxu0 0.0
    %5668 = vmatprep.subr.mxu0 0.0
    %5669 = vmatpush1.msra.mxu0 0.0
    %5670 = vmatprep.subr.mxu0 0.0
    %5671 = vmatpush1.msra.mxu0 0.0
    %5672 = vmatprep.subr.mxu0 0.0
    %5673 = vmatpush1.msra.mxu0 0.0
    %5674 = vmatprep.subr.mxu0 0.0
    %5675 = vmatpush1.msra.mxu0 0.0
    %5676 = vmatprep.subr.mxu0 0.0
    %5677 = vmatpush1.msra.mxu0 0.0
    %5678 = vmatprep.subr.mxu0 0.0
    %5679 = vmatpush1.msra.mxu0 0.0
    %5680 = vmatprep.subr.mxu0 0.0
    %5681 = vmatpush1.msra.mxu0 0.0
    %5682 = vmatprep.subr.mxu0 0.0
    %5683 = vmatpush1.msra.mxu0 0.0
    %5684 = vmatprep.subr.mxu0 0.0
    %5685 = vmatpush1.msra.mxu0 0.0
    %5686 = vmatprep.subr.mxu0 0.0
    %5687 = vmatpush1.msra.mxu0 0.0
    %5688 = vmatprep.subr.mxu0 0.0
    %5689 = vmatpush1.msra.mxu0 0.0
    %5690 = vmatprep.subr.mxu0 0.0
    %5691 = vmatpush1.msra.mxu0 0.0
    %5692 = vmatprep.subr.mxu0 0.0
    %5693 = vmatpush1.msra.mxu0 0.0
    %5694 = vmatprep.subr.mxu0 0.0
    %5695 = vmatpush1.msra.mxu0 0.0
    %5696 = vmatprep.subr.mxu0 0.0
    %5697 = vmatpush1.msra.mxu0 0.0
    %5698 = vmatprep.subr.mxu0 0.0
    %5699 = vmatpush1.msra.mxu0 0.0
    %5700 = vmatprep.subr.mxu0 0.0
    %5701 = vmatpush1.msra.mxu0 0.0
    %5702 = vmatprep.subr.mxu0 0.0
    %5703 = vmatpush1.msra.mxu0 0.0
    %5704 = vmatprep.subr.mxu0 0.0
    %5705 = vmatpush1.msra.mxu0 0.0
    %5706 = vmatprep.subr.mxu0 0.0
    %5707 = vmatpush1.msra.mxu0 0.0
    %5708 = vmatprep.subr.mxu0 0.0
    %5709 = vmatpush1.msra.mxu0 0.0
    %5710 = vmatprep.mubr.f32.mxu0 0.0
    %v5711 = vand.u32 %v5563, 4294901760
    %5712 = vmatmul.mubr.f32.gmra.mrb[0].mxu0 %v5711
    %v5713 = vpop.f32.mrb[0].mxu0
    %v5714 = vadd.f32 %v5638, %v5713
    %v5715 = vpop.f32.mrb[0].mxu0
    %5716 = vdwg.mxu0
    %5717 = vmatprep.subr.mxu0 0.0
    %v5718 = vand.u32 %v55, 4294901760
    %v5719 = vsub.f32 %v55, %v5718
    %5720 = vmatpush1.msra.mxu0 %v5719
    %5721 = vmatprep.subr.mxu0 0.0
    %5722 = vmatpush1.msra.mxu0 0.0
    %5723 = vmatprep.subr.mxu0 0.0
    %5724 = vmatpush1.msra.mxu0 0.0
    %5725 = vmatprep.subr.mxu0 0.0
    %5726 = vmatpush1.msra.mxu0 0.0
    %5727 = vmatprep.subr.mxu0 0.0
    %5728 = vmatpush1.msra.mxu0 0.0
    %5729 = vmatprep.subr.mxu0 0.0
    %5730 = vmatpush1.msra.mxu0 0.0
    %5731 = vmatprep.subr.mxu0 0.0
    %5732 = vmatpush1.msra.mxu0 0.0
    %5733 = vmatprep.subr.mxu0 0.0
    %5734 = vmatpush1.msra.mxu0 0.0
    %5735 = vmatprep.subr.mxu0 0.0
    %5736 = vmatpush1.msra.mxu0 0.0
    %5737 = vmatprep.subr.mxu0 0.0
    %5738 = vmatpush1.msra.mxu0 0.0
    %5739 = vmatprep.subr.mxu0 0.0
    %5740 = vmatpush1.msra.mxu0 0.0
    %5741 = vmatprep.subr.mxu0 0.0
    %5742 = vmatpush1.msra.mxu0 0.0
    %5743 = vmatprep.subr.mxu0 0.0
    %5744 = vmatpush1.msra.mxu0 0.0
    %5745 = vmatprep.subr.mxu0 0.0
    %5746 = vmatpush1.msra.mxu0 0.0
    %5747 = vmatprep.subr.mxu0 0.0
    %5748 = vmatpush1.msra.mxu0 0.0
    %5749 = vmatprep.subr.mxu0 0.0
    %5750 = vmatpush1.msra.mxu0 0.0
    %5751 = vmatprep.subr.mxu0 0.0
    %5752 = vmatpush1.msra.mxu0 0.0
    %5753 = vmatprep.subr.mxu0 0.0
    %5754 = vmatpush1.msra.mxu0 0.0
    %5755 = vmatprep.subr.mxu0 0.0
    %5756 = vmatpush1.msra.mxu0 0.0
    %5757 = vmatprep.subr.mxu0 0.0
    %5758 = vmatpush1.msra.mxu0 0.0
    %5759 = vmatprep.subr.mxu0 0.0
    %5760 = vmatpush1.msra.mxu0 0.0
    %5761 = vmatprep.subr.mxu0 0.0
    %5762 = vmatpush1.msra.mxu0 0.0
    %5763 = vmatprep.subr.mxu0 0.0
    %5764 = vmatpush1.msra.mxu0 0.0
    %5765 = vmatprep.subr.mxu0 0.0
    %5766 = vmatpush1.msra.mxu0 0.0
    %5767 = vmatprep.subr.mxu0 0.0
    %5768 = vmatpush1.msra.mxu0 0.0
    %5769 = vmatprep.subr.mxu0 0.0
    %5770 = vmatpush1.msra.mxu0 0.0
    %5771 = vmatprep.subr.mxu0 0.0
    %5772 = vmatpush1.msra.mxu0 0.0
    %5773 = vmatprep.subr.mxu0 0.0
    %5774 = vmatpush1.msra.mxu0 0.0
    %5775 = vmatprep.subr.mxu0 0.0
    %5776 = vmatpush1.msra.mxu0 0.0
    %5777 = vmatprep.subr.mxu0 0.0
    %5778 = vmatpush1.msra.mxu0 0.0
    %5779 = vmatprep.subr.mxu0 0.0
    %5780 = vmatpush1.msra.mxu0 0.0
    %5781 = vmatprep.subr.mxu0 0.0
    %5782 = vmatpush1.msra.mxu0 0.0
    %5783 = vmatprep.mubr.f32.mxu0 0.0
    %v5784 = vand.u32 %v5563, 4294901760
    %v5785 = vsub.f32 %v5563, %v5784
    %5786 = vmatmul.mubr.f32.gmra.mrb[0].mxu0 %v5785
    %v5787 = vpop.f32.mrb[0].mxu0
    %v5788 = vadd.f32 %v5714, %v5787
    %v5789 = vpop.f32.mrb[0].mxu0
    %5790 = vdwg.mxu0
    %5791 = vmatprep.subr.mxu0 0.0
    %v5792 = vand.u32 %v55, 4294901760
    %5793 = vmatpush1.msra.mxu0 %v5792
    %5794 = vmatprep.subr.mxu0 0.0
    %5795 = vmatpush1.msra.mxu0 0.0
    %5796 = vmatprep.subr.mxu0 0.0
    %5797 = vmatpush1.msra.mxu0 0.0
    %5798 = vmatprep.subr.mxu0 0.0
    %5799 = vmatpush1.msra.mxu0 0.0
    %5800 = vmatprep.subr.mxu0 0.0
    %5801 = vmatpush1.msra.mxu0 0.0
    %5802 = vmatprep.subr.mxu0 0.0
    %5803 = vmatpush1.msra.mxu0 0.0
    %5804 = vmatprep.subr.mxu0 0.0
    %5805 = vmatpush1.msra.mxu0 0.0
    %5806 = vmatprep.subr.mxu0 0.0
    %5807 = vmatpush1.msra.mxu0 0.0
    %5808 = vmatprep.subr.mxu0 0.0
    %5809 = vmatpush1.msra.mxu0 0.0
    %5810 = vmatprep.subr.mxu0 0.0
    %5811 = vmatpush1.msra.mxu0 0.0
    %5812 = vmatprep.subr.mxu0 0.0
    %5813 = vmatpush1.msra.mxu0 0.0
    %5814 = vmatprep.subr.mxu0 0.0
    %5815 = vmatpush1.msra.mxu0 0.0
    %5816 = vmatprep.subr.mxu0 0.0
    %5817 = vmatpush1.msra.mxu0 0.0
    %5818 = vmatprep.subr.mxu0 0.0
    %5819 = vmatpush1.msra.mxu0 0.0
    %5820 = vmatprep.subr.mxu0 0.0
    %5821 = vmatpush1.msra.mxu0 0.0
    %5822 = vmatprep.subr.mxu0 0.0
    %5823 = vmatpush1.msra.mxu0 0.0
    %5824 = vmatprep.subr.mxu0 0.0
    %5825 = vmatpush1.msra.mxu0 0.0
    %5826 = vmatprep.subr.mxu0 0.0
    %5827 = vmatpush1.msra.mxu0 0.0
    %5828 = vmatprep.subr.mxu0 0.0
    %5829 = vmatpush1.msra.mxu0 0.0
    %5830 = vmatprep.subr.mxu0 0.0
    %5831 = vmatpush1.msra.mxu0 0.0
    %5832 = vmatprep.subr.mxu0 0.0
    %5833 = vmatpush1.msra.mxu0 0.0
    %5834 = vmatprep.subr.mxu0 0.0
    %5835 = vmatpush1.msra.mxu0 0.0
    %5836 = vmatprep.subr.mxu0 0.0
    %5837 = vmatpush1.msra.mxu0 0.0
    %5838 = vmatprep.subr.mxu0 0.0
    %5839 = vmatpush1.msra.mxu0 0.0
    %5840 = vmatprep.subr.mxu0 0.0
    %5841 = vmatpush1.msra.mxu0 0.0
    %5842 = vmatprep.subr.mxu0 0.0
    %5843 = vmatpush1.msra.mxu0 0.0
    %5844 = vmatprep.subr.mxu0 0.0
    %5845 = vmatpush1.msra.mxu0 0.0
    %5846 = vmatprep.subr.mxu0 0.0
    %5847 = vmatpush1.msra.mxu0 0.0
    %5848 = vmatprep.subr.mxu0 0.0
    %5849 = vmatpush1.msra.mxu0 0.0
    %5850 = vmatprep.subr.mxu0 0.0
    %5851 = vmatpush1.msra.mxu0 0.0
    %5852 = vmatprep.subr.mxu0 0.0
    %5853 = vmatpush1.msra.mxu0 0.0
    %5854 = vmatprep.subr.mxu0 0.0
    %5855 = vmatpush1.msra.mxu0 0.0
    %5856 = vmatprep.mubr.f32.mxu0 0.0
    %v5857 = vand.u32 %v5563, 4294901760
    %v5858 = vsub.f32 %v5563, %v5857
    %v5859 = vand.u32 %v5858, 4294901760
    %5860 = vmatmul.mubr.f32.gmra.mrb[0].mxu0 %v5859
    %v5861 = vpop.f32.mrb[0].mxu0
    %v5862 = vadd.f32 %v5788, %v5861
    %v5863 = vpop.f32.mrb[0].mxu0
    %5864 = vdwg.mxu0
    %5865 = vmatprep.subr.mxu0 0.0
    %v5866 = vand.u32 %v55, 4294901760
    %v5867 = vsub.f32 %v55, %v5866
    %v5868 = vand.u32 %v5867, 4294901760
    %5869 = vmatpush1.msra.mxu0 %v5868
    %5870 = vmatprep.subr.mxu0 0.0
    %5871 = vmatpush1.msra.mxu0 0.0
    %5872 = vmatprep.subr.mxu0 0.0
    %5873 = vmatpush1.msra.mxu0 0.0
    %5874 = vmatprep.subr.mxu0 0.0
    %5875 = vmatpush1.msra.mxu0 0.0
    %5876 = vmatprep.subr.mxu0 0.0
    %5877 = vmatpush1.msra.mxu0 0.0
    %5878 = vmatprep.subr.mxu0 0.0
    %5879 = vmatpush1.msra.mxu0 0.0
    %5880 = vmatprep.subr.mxu0 0.0
    %5881 = vmatpush1.msra.mxu0 0.0
    %5882 = vmatprep.subr.mxu0 0.0
    %5883 = vmatpush1.msra.mxu0 0.0
    %5884 = vmatprep.subr.mxu0 0.0
    %5885 = vmatpush1.msra.mxu0 0.0
    %5886 = vmatprep.subr.mxu0 0.0
    %5887 = vmatpush1.msra.mxu0 0.0
    %5888 = vmatprep.subr.mxu0 0.0
    %5889 = vmatpush1.msra.mxu0 0.0
    %5890 = vmatprep.subr.mxu0 0.0
    %5891 = vmatpush1.msra.mxu0 0.0
    %5892 = vmatprep.subr.mxu0 0.0
    %5893 = vmatpush1.msra.mxu0 0.0
    %5894 = vmatprep.subr.mxu0 0.0
    %5895 = vmatpush1.msra.mxu0 0.0
    %5896 = vmatprep.subr.mxu0 0.0
    %5897 = vmatpush1.msra.mxu0 0.0
    %5898 = vmatprep.subr.mxu0 0.0
    %5899 = vmatpush1.msra.mxu0 0.0
    %5900 = vmatprep.subr.mxu0 0.0
    %5901 = vmatpush1.msra.mxu0 0.0
    %5902 = vmatprep.subr.mxu0 0.0
    %5903 = vmatpush1.msra.mxu0 0.0
    %5904 = vmatprep.subr.mxu0 0.0
    %5905 = vmatpush1.msra.mxu0 0.0
    %5906 = vmatprep.subr.mxu0 0.0
    %5907 = vmatpush1.msra.mxu0 0.0
    %5908 = vmatprep.subr.mxu0 0.0
    %5909 = vmatpush1.msra.mxu0 0.0
    %5910 = vmatprep.subr.mxu0 0.0
    %5911 = vmatpush1.msra.mxu0 0.0
    %5912 = vmatprep.subr.mxu0 0.0
    %5913 = vmatpush1.msra.mxu0 0.0
    %5914 = vmatprep.subr.mxu0 0.0
    %5915 = vmatpush1.msra.mxu0 0.0
    %5916 = vmatprep.subr.mxu0 0.0
    %5917 = vmatpush1.msra.mxu0 0.0
    %5918 = vmatprep.subr.mxu0 0.0
    %5919 = vmatpush1.msra.mxu0 0.0
    %5920 = vmatprep.subr.mxu0 0.0
    %5921 = vmatpush1.msra.mxu0 0.0
    %5922 = vmatprep.subr.mxu0 0.0
    %5923 = vmatpush1.msra.mxu0 0.0
    %5924 = vmatprep.subr.mxu0 0.0
    %5925 = vmatpush1.msra.mxu0 0.0
    %5926 = vmatprep.subr.mxu0 0.0
    %5927 = vmatpush1.msra.mxu0 0.0
    %5928 = vmatprep.subr.mxu0 0.0
    %5929 = vmatpush1.msra.mxu0 0.0
    %5930 = vmatprep.subr.mxu0 0.0
    %5931 = vmatpush1.msra.mxu0 0.0
    %5932 = vmatprep.mubr.f32.mxu0 0.0
    %v5933 = vand.u32 %v5563, 4294901760
    %5934 = vmatmul.mubr.f32.gmra.mrb[0].mxu0 %v5933
    %v5935 = vpop.f32.mrb[0].mxu0
    %v5936 = vadd.f32 %v5862, %v5935
    %v5937 = vpop.f32.mrb[0].mxu0
    %5938 = vdwg.mxu0
    %5939 = vmatprep.subr.mxu0 0.0
    %v5940 = vand.u32 %v55, 4294901760
    %5941 = vmatpush1.msra.mxu0 %v5940
    %5942 = vmatprep.subr.mxu0 0.0
    %5943 = vmatpush1.msra.mxu0 0.0
    %5944 = vmatprep.subr.mxu0 0.0
    %5945 = vmatpush1.msra.mxu0 0.0
    %5946 = vmatprep.subr.mxu0 0.0
    %5947 = vmatpush1.msra.mxu0 0.0
    %5948 = vmatprep.subr.mxu0 0.0
    %5949 = vmatpush1.msra.mxu0 0.0
    %5950 = vmatprep.subr.mxu0 0.0
    %5951 = vmatpush1.msra.mxu0 0.0
    %5952 = vmatprep.subr.mxu0 0.0
    %5953 = vmatpush1.msra.mxu0 0.0
    %5954 = vmatprep.subr.mxu0 0.0
    %5955 = vmatpush1.msra.mxu0 0.0
    %5956 = vmatprep.subr.mxu0 0.0
    %5957 = vmatpush1.msra.mxu0 0.0
    %5958 = vmatprep.subr.mxu0 0.0
    %5959 = vmatpush1.msra.mxu0 0.0
    %5960 = vmatprep.subr.mxu0 0.0
    %5961 = vmatpush1.msra.mxu0 0.0
    %5962 = vmatprep.subr.mxu0 0.0
    %5963 = vmatpush1.msra.mxu0 0.0
    %5964 = vmatprep.subr.mxu0 0.0
    %5965 = vmatpush1.msra.mxu0 0.0
    %5966 = vmatprep.subr.mxu0 0.0
    %5967 = vmatpush1.msra.mxu0 0.0
    %5968 = vmatprep.subr.mxu0 0.0
    %5969 = vmatpush1.msra.mxu0 0.0
    %5970 = vmatprep.subr.mxu0 0.0
    %5971 = vmatpush1.msra.mxu0 0.0
    %5972 = vmatprep.subr.mxu0 0.0
    %5973 = vmatpush1.msra.mxu0 0.0
    %5974 = vmatprep.subr.mxu0 0.0
    %5975 = vmatpush1.msra.mxu0 0.0
    %5976 = vmatprep.subr.mxu0 0.0
    %5977 = vmatpush1.msra.mxu0 0.0
    %5978 = vmatprep.subr.mxu0 0.0
    %5979 = vmatpush1.msra.mxu0 0.0
    %5980 = vmatprep.subr.mxu0 0.0
    %5981 = vmatpush1.msra.mxu0 0.0
    %5982 = vmatprep.subr.mxu0 0.0
    %5983 = vmatpush1.msra.mxu0 0.0
    %5984 = vmatprep.subr.mxu0 0.0
    %5985 = vmatpush1.msra.mxu0 0.0
    %5986 = vmatprep.subr.mxu0 0.0
    %5987 = vmatpush1.msra.mxu0 0.0
    %5988 = vmatprep.subr.mxu0 0.0
    %5989 = vmatpush1.msra.mxu0 0.0
    %5990 = vmatprep.subr.mxu0 0.0
    %5991 = vmatpush1.msra.mxu0 0.0
    %5992 = vmatprep.subr.mxu0 0.0
    %5993 = vmatpush1.msra.mxu0 0.0
    %5994 = vmatprep.subr.mxu0 0.0
    %5995 = vmatpush1.msra.mxu0 0.0
    %5996 = vmatprep.subr.mxu0 0.0
    %5997 = vmatpush1.msra.mxu0 0.0
    %5998 = vmatprep.subr.mxu0 0.0
    %5999 = vmatpush1.msra.mxu0 0.0
    %6000 = vmatprep.subr.mxu0 0.0
    %6001 = vmatpush1.msra.mxu0 0.0
    %6002 = vmatprep.subr.mxu0 0.0
    %6003 = vmatpush1.msra.mxu0 0.0
    %6004 = vmatprep.mubr.f32.mxu0 0.0
    %v6005 = vand.u32 %v5563, 4294901760
    %6006 = vmatmul.mubr.f32.gmra.mrb[0].mxu0 %v6005
    %v6007 = vpop.f32.mrb[0].mxu0
    %v6008 = vadd.f32 %v5936, %v6007
    %v6009 = vpop.f32.mrb[0].mxu0
    %6010 = vdwg.mxu0
    %v6012 = vsel %vm3765, %v3760, 0
    %6014 = vmatprep.subr.mxu0 0.0
    %v6015 = vand.u32 %v56, 4294901760
    %6016 = vmatpush1.msra.mxu0 %v6015
    %6017 = vmatprep.subr.mxu0 0.0
    %6018 = vmatpush1.msra.mxu0 0.0
    %6019 = vmatprep.subr.mxu0 0.0
    %6020 = vmatpush1.msra.mxu0 0.0
    %6021 = vmatprep.subr.mxu0 0.0
    %6022 = vmatpush1.msra.mxu0 0.0
    %6023 = vmatprep.subr.mxu0 0.0
    %6024 = vmatpush1.msra.mxu0 0.0
    %6025 = vmatprep.subr.mxu0 0.0
    %6026 = vmatpush1.msra.mxu0 0.0
    %6027 = vmatprep.subr.mxu0 0.0
    %6028 = vmatpush1.msra.mxu0 0.0
    %6029 = vmatprep.subr.mxu0 0.0
    %6030 = vmatpush1.msra.mxu0 0.0
    %6031 = vmatprep.subr.mxu0 0.0
    %6032 = vmatpush1.msra.mxu0 0.0
    %6033 = vmatprep.subr.mxu0 0.0
    %6034 = vmatpush1.msra.mxu0 0.0
    %6035 = vmatprep.subr.mxu0 0.0
    %6036 = vmatpush1.msra.mxu0 0.0
    %6037 = vmatprep.subr.mxu0 0.0
    %6038 = vmatpush1.msra.mxu0 0.0
    %6039 = vmatprep.subr.mxu0 0.0
    %6040 = vmatpush1.msra.mxu0 0.0
    %6041 = vmatprep.subr.mxu0 0.0
    %6042 = vmatpush1.msra.mxu0 0.0
    %6043 = vmatprep.subr.mxu0 0.0
    %6044 = vmatpush1.msra.mxu0 0.0
    %6045 = vmatprep.subr.mxu0 0.0
    %6046 = vmatpush1.msra.mxu0 0.0
    %6047 = vmatprep.subr.mxu0 0.0
    %6048 = vmatpush1.msra.mxu0 0.0
    %6049 = vmatprep.subr.mxu0 0.0
    %6050 = vmatpush1.msra.mxu0 0.0
    %6051 = vmatprep.subr.mxu0 0.0
    %6052 = vmatpush1.msra.mxu0 0.0
    %6053 = vmatprep.subr.mxu0 0.0
    %6054 = vmatpush1.msra.mxu0 0.0
    %6055 = vmatprep.subr.mxu0 0.0
    %6056 = vmatpush1.msra.mxu0 0.0
    %6057 = vmatprep.subr.mxu0 0.0
    %6058 = vmatpush1.msra.mxu0 0.0
    %6059 = vmatprep.subr.mxu0 0.0
    %6060 = vmatpush1.msra.mxu0 0.0
    %6061 = vmatprep.subr.mxu0 0.0
    %6062 = vmatpush1.msra.mxu0 0.0
    %6063 = vmatprep.subr.mxu0 0.0
    %6064 = vmatpush1.msra.mxu0 0.0
    %6065 = vmatprep.subr.mxu0 0.0
    %6066 = vmatpush1.msra.mxu0 0.0
    %6067 = vmatprep.subr.mxu0 0.0
    %6068 = vmatpush1.msra.mxu0 0.0
    %6069 = vmatprep.subr.mxu0 0.0
    %6070 = vmatpush1.msra.mxu0 0.0
    %6071 = vmatprep.subr.mxu0 0.0
    %6072 = vmatpush1.msra.mxu0 0.0
    %6073 = vmatprep.subr.mxu0 0.0
    %6074 = vmatpush1.msra.mxu0 0.0
    %6075 = vmatprep.subr.mxu0 0.0
    %6076 = vmatpush1.msra.mxu0 0.0
    %6077 = vmatprep.subr.mxu0 0.0
    %6078 = vmatpush1.msra.mxu0 0.0
    %6079 = vmatprep.mubr.f32.mxu0 0.0
    %v6080 = vand.u32 %v6012, 4294901760
    %v6081 = vsub.f32 %v6012, %v6080
    %v6082 = vand.u32 %v6081, 4294901760
    %v6083 = vsub.f32 %v6081, %v6082
    %v6084 = vand.u32 %v6083, 4294901760
    %6085 = vmatmul.mubr.f32.gmra.mrb[0].mxu0 %v6084
    %v6086 = vpop.f32.mrb[0].mxu0
    %v6087 = vadd.f32 0.0, %v6086
    %v6088 = vpop.f32.mrb[0].mxu0
    %6089 = vdwg.mxu0
    %6090 = vmatprep.subr.mxu0 0.0
    %v6091 = vand.u32 %v56, 4294901760
    %v6092 = vsub.f32 %v56, %v6091
    %v6093 = vand.u32 %v6092, 4294901760
    %v6094 = vsub.f32 %v6092, %v6093
    %v6095 = vand.u32 %v6094, 4294901760
    %6096 = vmatpush1.msra.mxu0 %v6095
    %6097 = vmatprep.subr.mxu0 0.0
    %6098 = vmatpush1.msra.mxu0 0.0
    %6099 = vmatprep.subr.mxu0 0.0
    %6100 = vmatpush1.msra.mxu0 0.0
    %6101 = vmatprep.subr.mxu0 0.0
    %6102 = vmatpush1.msra.mxu0 0.0
    %6103 = vmatprep.subr.mxu0 0.0
    %6104 = vmatpush1.msra.mxu0 0.0
    %6105 = vmatprep.subr.mxu0 0.0
    %6106 = vmatpush1.msra.mxu0 0.0
    %6107 = vmatprep.subr.mxu0 0.0
    %6108 = vmatpush1.msra.mxu0 0.0
    %6109 = vmatprep.subr.mxu0 0.0
    %6110 = vmatpush1.msra.mxu0 0.0
    %6111 = vmatprep.subr.mxu0 0.0
    %6112 = vmatpush1.msra.mxu0 0.0
    %6113 = vmatprep.subr.mxu0 0.0
    %6114 = vmatpush1.msra.mxu0 0.0
    %6115 = vmatprep.subr.mxu0 0.0
    %6116 = vmatpush1.msra.mxu0 0.0
    %6117 = vmatprep.subr.mxu0 0.0
    %6118 = vmatpush1.msra.mxu0 0.0
    %6119 = vmatprep.subr.mxu0 0.0
    %6120 = vmatpush1.msra.mxu0 0.0
    %6121 = vmatprep.subr.mxu0 0.0
    %6122 = vmatpush1.msra.mxu0 0.0
    %6123 = vmatprep.subr.mxu0 0.0
    %6124 = vmatpush1.msra.mxu0 0.0
    %6125 = vmatprep.subr.mxu0 0.0
    %6126 = vmatpush1.msra.mxu0 0.0
    %6127 = vmatprep.subr.mxu0 0.0
    %6128 = vmatpush1.msra.mxu0 0.0
    %6129 = vmatprep.subr.mxu0 0.0
    %6130 = vmatpush1.msra.mxu0 0.0
    %6131 = vmatprep.subr.mxu0 0.0
    %6132 = vmatpush1.msra.mxu0 0.0
    %6133 = vmatprep.subr.mxu0 0.0
    %6134 = vmatpush1.msra.mxu0 0.0
    %6135 = vmatprep.subr.mxu0 0.0
    %6136 = vmatpush1.msra.mxu0 0.0
    %6137 = vmatprep.subr.mxu0 0.0
    %6138 = vmatpush1.msra.mxu0 0.0
    %6139 = vmatprep.subr.mxu0 0.0
    %6140 = vmatpush1.msra.mxu0 0.0
    %6141 = vmatprep.subr.mxu0 0.0
    %6142 = vmatpush1.msra.mxu0 0.0
    %6143 = vmatprep.subr.mxu0 0.0
    %6144 = vmatpush1.msra.mxu0 0.0
    %6145 = vmatprep.subr.mxu0 0.0
    %6146 = vmatpush1.msra.mxu0 0.0
    %6147 = vmatprep.subr.mxu0 0.0
    %6148 = vmatpush1.msra.mxu0 0.0
    %6149 = vmatprep.subr.mxu0 0.0
    %6150 = vmatpush1.msra.mxu0 0.0
    %6151 = vmatprep.subr.mxu0 0.0
    %6152 = vmatpush1.msra.mxu0 0.0
    %6153 = vmatprep.subr.mxu0 0.0
    %6154 = vmatpush1.msra.mxu0 0.0
    %6155 = vmatprep.subr.mxu0 0.0
    %6156 = vmatpush1.msra.mxu0 0.0
    %6157 = vmatprep.subr.mxu0 0.0
    %6158 = vmatpush1.msra.mxu0 0.0
    %6159 = vmatprep.mubr.f32.mxu0 0.0
    %v6160 = vand.u32 %v6012, 4294901760
    %6161 = vmatmul.mubr.f32.gmra.mrb[0].mxu0 %v6160
    %v6162 = vpop.f32.mrb[0].mxu0
    %v6163 = vadd.f32 %v6087, %v6162
    %v6164 = vpop.f32.mrb[0].mxu0
    %6165 = vdwg.mxu0
    %6166 = vmatprep.subr.mxu0 0.0
    %v6167 = vand.u32 %v56, 4294901760
    %v6168 = vsub.f32 %v56, %v6167
    %6169 = vmatpush1.msra.mxu0 %v6168
    %6170 = vmatprep.subr.mxu0 0.0
    %6171 = vmatpush1.msra.mxu0 0.0
    %6172 = vmatprep.subr.mxu0 0.0
    %6173 = vmatpush1.msra.mxu0 0.0
    %6174 = vmatprep.subr.mxu0 0.0
    %6175 = vmatpush1.msra.mxu0 0.0
    %6176 = vmatprep.subr.mxu0 0.0
    %6177 = vmatpush1.msra.mxu0 0.0
    %6178 = vmatprep.subr.mxu0 0.0
    %6179 = vmatpush1.msra.mxu0 0.0
    %6180 = vmatprep.subr.mxu0 0.0
    %6181 = vmatpush1.msra.mxu0 0.0
    %6182 = vmatprep.subr.mxu0 0.0
    %6183 = vmatpush1.msra.mxu0 0.0
    %6184 = vmatprep.subr.mxu0 0.0
    %6185 = vmatpush1.msra.mxu0 0.0
    %6186 = vmatprep.subr.mxu0 0.0
    %6187 = vmatpush1.msra.mxu0 0.0
    %6188 = vmatprep.subr.mxu0 0.0
    %6189 = vmatpush1.msra.mxu0 0.0
    %6190 = vmatprep.subr.mxu0 0.0
    %6191 = vmatpush1.msra.mxu0 0.0
    %6192 = vmatprep.subr.mxu0 0.0
    %6193 = vmatpush1.msra.mxu0 0.0
    %6194 = vmatprep.subr.mxu0 0.0
    %6195 = vmatpush1.msra.mxu0 0.0
    %6196 = vmatprep.subr.mxu0 0.0
    %6197 = vmatpush1.msra.mxu0 0.0
    %6198 = vmatprep.subr.mxu0 0.0
    %6199 = vmatpush1.msra.mxu0 0.0
    %6200 = vmatprep.subr.mxu0 0.0
    %6201 = vmatpush1.msra.mxu0 0.0
    %6202 = vmatprep.subr.mxu0 0.0
    %6203 = vmatpush1.msra.mxu0 0.0
    %6204 = vmatprep.subr.mxu0 0.0
    %6205 = vmatpush1.msra.mxu0 0.0
    %6206 = vmatprep.subr.mxu0 0.0
    %6207 = vmatpush1.msra.mxu0 0.0
    %6208 = vmatprep.subr.mxu0 0.0
    %6209 = vmatpush1.msra.mxu0 0.0
    %6210 = vmatprep.subr.mxu0 0.0
    %6211 = vmatpush1.msra.mxu0 0.0
    %6212 = vmatprep.subr.mxu0 0.0
    %6213 = vmatpush1.msra.mxu0 0.0
    %6214 = vmatprep.subr.mxu0 0.0
    %6215 = vmatpush1.msra.mxu0 0.0
    %6216 = vmatprep.subr.mxu0 0.0
    %6217 = vmatpush1.msra.mxu0 0.0
    %6218 = vmatprep.subr.mxu0 0.0
    %6219 = vmatpush1.msra.mxu0 0.0
    %6220 = vmatprep.subr.mxu0 0.0
    %6221 = vmatpush1.msra.mxu0 0.0
    %6222 = vmatprep.subr.mxu0 0.0
    %6223 = vmatpush1.msra.mxu0 0.0
    %6224 = vmatprep.subr.mxu0 0.0
    %6225 = vmatpush1.msra.mxu0 0.0
    %6226 = vmatprep.subr.mxu0 0.0
    %6227 = vmatpush1.msra.mxu0 0.0
    %6228 = vmatprep.subr.mxu0 0.0
    %6229 = vmatpush1.msra.mxu0 0.0
    %6230 = vmatprep.subr.mxu0 0.0
    %6231 = vmatpush1.msra.mxu0 0.0
    %6232 = vmatprep.mubr.f32.mxu0 0.0
    %v6233 = vand.u32 %v6012, 4294901760
    %v6234 = vsub.f32 %v6012, %v6233
    %6235 = vmatmul.mubr.f32.gmra.mrb[0].mxu0 %v6234
    %v6236 = vpop.f32.mrb[0].mxu0
    %v6237 = vadd.f32 %v6163, %v6236
    %v6238 = vpop.f32.mrb[0].mxu0
    %6239 = vdwg.mxu0
    %6240 = vmatprep.subr.mxu0 0.0
    %v6241 = vand.u32 %v56, 4294901760
    %6242 = vmatpush1.msra.mxu0 %v6241
    %6243 = vmatprep.subr.mxu0 0.0
    %6244 = vmatpush1.msra.mxu0 0.0
    %6245 = vmatprep.subr.mxu0 0.0
    %6246 = vmatpush1.msra.mxu0 0.0
    %6247 = vmatprep.subr.mxu0 0.0
    %6248 = vmatpush1.msra.mxu0 0.0
    %6249 = vmatprep.subr.mxu0 0.0
    %6250 = vmatpush1.msra.mxu0 0.0
    %6251 = vmatprep.subr.mxu0 0.0
    %6252 = vmatpush1.msra.mxu0 0.0
    %6253 = vmatprep.subr.mxu0 0.0
    %6254 = vmatpush1.msra.mxu0 0.0
    %6255 = vmatprep.subr.mxu0 0.0
    %6256 = vmatpush1.msra.mxu0 0.0
    %6257 = vmatprep.subr.mxu0 0.0
    %6258 = vmatpush1.msra.mxu0 0.0
    %6259 = vmatprep.subr.mxu0 0.0
    %6260 = vmatpush1.msra.mxu0 0.0
    %6261 = vmatprep.subr.mxu0 0.0
    %6262 = vmatpush1.msra.mxu0 0.0
    %6263 = vmatprep.subr.mxu0 0.0
    %6264 = vmatpush1.msra.mxu0 0.0
    %6265 = vmatprep.subr.mxu0 0.0
    %6266 = vmatpush1.msra.mxu0 0.0
    %6267 = vmatprep.subr.mxu0 0.0
    %6268 = vmatpush1.msra.mxu0 0.0
    %6269 = vmatprep.subr.mxu0 0.0
    %6270 = vmatpush1.msra.mxu0 0.0
    %6271 = vmatprep.subr.mxu0 0.0
    %6272 = vmatpush1.msra.mxu0 0.0
    %6273 = vmatprep.subr.mxu0 0.0
    %6274 = vmatpush1.msra.mxu0 0.0
    %6275 = vmatprep.subr.mxu0 0.0
    %6276 = vmatpush1.msra.mxu0 0.0
    %6277 = vmatprep.subr.mxu0 0.0
    %6278 = vmatpush1.msra.mxu0 0.0
    %6279 = vmatprep.subr.mxu0 0.0
    %6280 = vmatpush1.msra.mxu0 0.0
    %6281 = vmatprep.subr.mxu0 0.0
    %6282 = vmatpush1.msra.mxu0 0.0
    %6283 = vmatprep.subr.mxu0 0.0
    %6284 = vmatpush1.msra.mxu0 0.0
    %6285 = vmatprep.subr.mxu0 0.0
    %6286 = vmatpush1.msra.mxu0 0.0
    %6287 = vmatprep.subr.mxu0 0.0
    %6288 = vmatpush1.msra.mxu0 0.0
    %6289 = vmatprep.subr.mxu0 0.0
    %6290 = vmatpush1.msra.mxu0 0.0
    %6291 = vmatprep.subr.mxu0 0.0
    %6292 = vmatpush1.msra.mxu0 0.0
    %6293 = vmatprep.subr.mxu0 0.0
    %6294 = vmatpush1.msra.mxu0 0.0
    %6295 = vmatprep.subr.mxu0 0.0
    %6296 = vmatpush1.msra.mxu0 0.0
    %6297 = vmatprep.subr.mxu0 0.0
    %6298 = vmatpush1.msra.mxu0 0.0
    %6299 = vmatprep.subr.mxu0 0.0
    %6300 = vmatpush1.msra.mxu0 0.0
    %6301 = vmatprep.subr.mxu0 0.0
    %6302 = vmatpush1.msra.mxu0 0.0
    %6303 = vmatprep.subr.mxu0 0.0
    %6304 = vmatpush1.msra.mxu0 0.0
    %6305 = vmatprep.mubr.f32.mxu0 0.0
    %v6306 = vand.u32 %v6012, 4294901760
    %v6307 = vsub.f32 %v6012, %v6306
    %v6308 = vand.u32 %v6307, 4294901760
    %6309 = vmatmul.mubr.f32.gmra.mrb[0].mxu0 %v6308
    %v6310 = vpop.f32.mrb[0].mxu0
    %v6311 = vadd.f32 %v6237, %v6310
    %v6312 = vpop.f32.mrb[0].mxu0
    %6313 = vdwg.mxu0
    %6314 = vmatprep.subr.mxu0 0.0
    %v6315 = vand.u32 %v56, 4294901760
    %v6316 = vsub.f32 %v56, %v6315
    %v6317 = vand.u32 %v6316, 4294901760
    %6318 = vmatpush1.msra.mxu0 %v6317
    %6319 = vmatprep.subr.mxu0 0.0
    %6320 = vmatpush1.msra.mxu0 0.0
    %6321 = vmatprep.subr.mxu0 0.0
    %6322 = vmatpush1.msra.mxu0 0.0
    %6323 = vmatprep.subr.mxu0 0.0
    %6324 = vmatpush1.msra.mxu0 0.0
    %6325 = vmatprep.subr.mxu0 0.0
    %6326 = vmatpush1.msra.mxu0 0.0
    %6327 = vmatprep.subr.mxu0 0.0
    %6328 = vmatpush1.msra.mxu0 0.0
    %6329 = vmatprep.subr.mxu0 0.0
    %6330 = vmatpush1.msra.mxu0 0.0
    %6331 = vmatprep.subr.mxu0 0.0
    %6332 = vmatpush1.msra.mxu0 0.0
    %6333 = vmatprep.subr.mxu0 0.0
    %6334 = vmatpush1.msra.mxu0 0.0
    %6335 = vmatprep.subr.mxu0 0.0
    %6336 = vmatpush1.msra.mxu0 0.0
    %6337 = vmatprep.subr.mxu0 0.0
    %6338 = vmatpush1.msra.mxu0 0.0
    %6339 = vmatprep.subr.mxu0 0.0
    %6340 = vmatpush1.msra.mxu0 0.0
    %6341 = vmatprep.subr.mxu0 0.0
    %6342 = vmatpush1.msra.mxu0 0.0
    %6343 = vmatprep.subr.mxu0 0.0
    %6344 = vmatpush1.msra.mxu0 0.0
    %6345 = vmatprep.subr.mxu0 0.0
    %6346 = vmatpush1.msra.mxu0 0.0
    %6347 = vmatprep.subr.mxu0 0.0
    %6348 = vmatpush1.msra.mxu0 0.0
    %6349 = vmatprep.subr.mxu0 0.0
    %6350 = vmatpush1.msra.mxu0 0.0
    %6351 = vmatprep.subr.mxu0 0.0
    %6352 = vmatpush1.msra.mxu0 0.0
    %6353 = vmatprep.subr.mxu0 0.0
    %6354 = vmatpush1.msra.mxu0 0.0
    %6355 = vmatprep.subr.mxu0 0.0
    %6356 = vmatpush1.msra.mxu0 0.0
    %6357 = vmatprep.subr.mxu0 0.0
    %6358 = vmatpush1.msra.mxu0 0.0
    %6359 = vmatprep.subr.mxu0 0.0
    %6360 = vmatpush1.msra.mxu0 0.0
    %6361 = vmatprep.subr.mxu0 0.0
    %6362 = vmatpush1.msra.mxu0 0.0
    %6363 = vmatprep.subr.mxu0 0.0
    %6364 = vmatpush1.msra.mxu0 0.0
    %6365 = vmatprep.subr.mxu0 0.0
    %6366 = vmatpush1.msra.mxu0 0.0
    %6367 = vmatprep.subr.mxu0 0.0
    %6368 = vmatpush1.msra.mxu0 0.0
    %6369 = vmatprep.subr.mxu0 0.0
    %6370 = vmatpush1.msra.mxu0 0.0
    %6371 = vmatprep.subr.mxu0 0.0
    %6372 = vmatpush1.msra.mxu0 0.0
    %6373 = vmatprep.subr.mxu0 0.0
    %6374 = vmatpush1.msra.mxu0 0.0
    %6375 = vmatprep.subr.mxu0 0.0
    %6376 = vmatpush1.msra.mxu0 0.0
    %6377 = vmatprep.subr.mxu0 0.0
    %6378 = vmatpush1.msra.mxu0 0.0
    %6379 = vmatprep.subr.mxu0 0.0
    %6380 = vmatpush1.msra.mxu0 0.0
    %6381 = vmatprep.mubr.f32.mxu0 0.0
    %v6382 = vand.u32 %v6012, 4294901760
    %6383 = vmatmul.mubr.f32.gmra.mrb[0].mxu0 %v6382
    %v6384 = vpop.f32.mrb[0].mxu0
    %v6385 = vadd.f32 %v6311, %v6384
    %v6386 = vpop.f32.mrb[0].mxu0
    %6387 = vdwg.mxu0
    %6388 = vmatprep.subr.mxu0 0.0
    %v6389 = vand.u32 %v56, 4294901760
    %6390 = vmatpush1.msra.mxu0 %v6389
    %6391 = vmatprep.subr.mxu0 0.0
    %6392 = vmatpush1.msra.mxu0 0.0
    %6393 = vmatprep.subr.mxu0 0.0
    %6394 = vmatpush1.msra.mxu0 0.0
    %6395 = vmatprep.subr.mxu0 0.0
    %6396 = vmatpush1.msra.mxu0 0.0
    %6397 = vmatprep.subr.mxu0 0.0
    %6398 = vmatpush1.msra.mxu0 0.0
    %6399 = vmatprep.subr.mxu0 0.0
    %6400 = vmatpush1.msra.mxu0 0.0
    %6401 = vmatprep.subr.mxu0 0.0
    %6402 = vmatpush1.msra.mxu0 0.0
    %6403 = vmatprep.subr.mxu0 0.0
    %6404 = vmatpush1.msra.mxu0 0.0
    %6405 = vmatprep.subr.mxu0 0.0
    %6406 = vmatpush1.msra.mxu0 0.0
    %6407 = vmatprep.subr.mxu0 0.0
    %6408 = vmatpush1.msra.mxu0 0.0
    %6409 = vmatprep.subr.mxu0 0.0
    %6410 = vmatpush1.msra.mxu0 0.0
    %6411 = vmatprep.subr.mxu0 0.0
    %6412 = vmatpush1.msra.mxu0 0.0
    %6413 = vmatprep.subr.mxu0 0.0
    %6414 = vmatpush1.msra.mxu0 0.0
    %6415 = vmatprep.subr.mxu0 0.0
    %6416 = vmatpush1.msra.mxu0 0.0
    %6417 = vmatprep.subr.mxu0 0.0
    %6418 = vmatpush1.msra.mxu0 0.0
    %6419 = vmatprep.subr.mxu0 0.0
    %6420 = vmatpush1.msra.mxu0 0.0
    %6421 = vmatprep.subr.mxu0 0.0
    %6422 = vmatpush1.msra.mxu0 0.0
    %6423 = vmatprep.subr.mxu0 0.0
    %6424 = vmatpush1.msra.mxu0 0.0
    %6425 = vmatprep.subr.mxu0 0.0
    %6426 = vmatpush1.msra.mxu0 0.0
    %6427 = vmatprep.subr.mxu0 0.0
    %6428 = vmatpush1.msra.mxu0 0.0
    %6429 = vmatprep.subr.mxu0 0.0
    %6430 = vmatpush1.msra.mxu0 0.0
    %6431 = vmatprep.subr.mxu0 0.0
    %6432 = vmatpush1.msra.mxu0 0.0
    %6433 = vmatprep.subr.mxu0 0.0
    %6434 = vmatpush1.msra.mxu0 0.0
    %6435 = vmatprep.subr.mxu0 0.0
    %6436 = vmatpush1.msra.mxu0 0.0
    %6437 = vmatprep.subr.mxu0 0.0
    %6438 = vmatpush1.msra.mxu0 0.0
    %6439 = vmatprep.subr.mxu0 0.0
    %6440 = vmatpush1.msra.mxu0 0.0
    %6441 = vmatprep.subr.mxu0 0.0
    %6442 = vmatpush1.msra.mxu0 0.0
    %6443 = vmatprep.subr.mxu0 0.0
    %6444 = vmatpush1.msra.mxu0 0.0
    %6445 = vmatprep.subr.mxu0 0.0
    %6446 = vmatpush1.msra.mxu0 0.0
    %6447 = vmatprep.subr.mxu0 0.0
    %6448 = vmatpush1.msra.mxu0 0.0
    %6449 = vmatprep.subr.mxu0 0.0
    %6450 = vmatpush1.msra.mxu0 0.0
    %6451 = vmatprep.subr.mxu0 0.0
    %6452 = vmatpush1.msra.mxu0 0.0
    %6453 = vmatprep.mubr.f32.mxu0 0.0
    %v6454 = vand.u32 %v6012, 4294901760
    %6455 = vmatmul.mubr.f32.gmra.mrb[0].mxu0 %v6454
    %v6456 = vpop.f32.mrb[0].mxu0
    %v6457 = vadd.f32 %v6385, %v6456
    %v6458 = vpop.f32.mrb[0].mxu0
    %6459 = vdwg.mxu0
    %v6461 = vsel %vm3765, %v3762, 0
    %6463 = vmatprep.subr.mxu0 0.0
    %v6464 = vand.u32 %v57, 4294901760
    %6465 = vmatpush1.msra.mxu0 %v6464
    %6466 = vmatprep.subr.mxu0 0.0
    %6467 = vmatpush1.msra.mxu0 0.0
    %6468 = vmatprep.subr.mxu0 0.0
    %6469 = vmatpush1.msra.mxu0 0.0
    %6470 = vmatprep.subr.mxu0 0.0
    %6471 = vmatpush1.msra.mxu0 0.0
    %6472 = vmatprep.subr.mxu0 0.0
    %6473 = vmatpush1.msra.mxu0 0.0
    %6474 = vmatprep.subr.mxu0 0.0
    %6475 = vmatpush1.msra.mxu0 0.0
    %6476 = vmatprep.subr.mxu0 0.0
    %6477 = vmatpush1.msra.mxu0 0.0
    %6478 = vmatprep.subr.mxu0 0.0
    %6479 = vmatpush1.msra.mxu0 0.0
    %6480 = vmatprep.subr.mxu0 0.0
    %6481 = vmatpush1.msra.mxu0 0.0
    %6482 = vmatprep.subr.mxu0 0.0
    %6483 = vmatpush1.msra.mxu0 0.0
    %6484 = vmatprep.subr.mxu0 0.0
    %6485 = vmatpush1.msra.mxu0 0.0
    %6486 = vmatprep.subr.mxu0 0.0
    %6487 = vmatpush1.msra.mxu0 0.0
    %6488 = vmatprep.subr.mxu0 0.0
    %6489 = vmatpush1.msra.mxu0 0.0
    %6490 = vmatprep.subr.mxu0 0.0
    %6491 = vmatpush1.msra.mxu0 0.0
    %6492 = vmatprep.subr.mxu0 0.0
    %6493 = vmatpush1.msra.mxu0 0.0
    %6494 = vmatprep.subr.mxu0 0.0
    %6495 = vmatpush1.msra.mxu0 0.0
    %6496 = vmatprep.subr.mxu0 0.0
    %6497 = vmatpush1.msra.mxu0 0.0
    %6498 = vmatprep.subr.mxu0 0.0
    %6499 = vmatpush1.msra.mxu0 0.0
    %6500 = vmatprep.subr.mxu0 0.0
    %6501 = vmatpush1.msra.mxu0 0.0
    %6502 = vmatprep.subr.mxu0 0.0
    %6503 = vmatpush1.msra.mxu0 0.0
    %6504 = vmatprep.subr.mxu0 0.0
    %6505 = vmatpush1.msra.mxu0 0.0
    %6506 = vmatprep.subr.mxu0 0.0
    %6507 = vmatpush1.msra.mxu0 0.0
    %6508 = vmatprep.subr.mxu0 0.0
    %6509 = vmatpush1.msra.mxu0 0.0
    %6510 = vmatprep.subr.mxu0 0.0
    %6511 = vmatpush1.msra.mxu0 0.0
    %6512 = vmatprep.subr.mxu0 0.0
    %6513 = vmatpush1.msra.mxu0 0.0
    %6514 = vmatprep.subr.mxu0 0.0
    %6515 = vmatpush1.msra.mxu0 0.0
    %6516 = vmatprep.subr.mxu0 0.0
    %6517 = vmatpush1.msra.mxu0 0.0
    %6518 = vmatprep.subr.mxu0 0.0
    %6519 = vmatpush1.msra.mxu0 0.0
    %6520 = vmatprep.subr.mxu0 0.0
    %6521 = vmatpush1.msra.mxu0 0.0
    %6522 = vmatprep.subr.mxu0 0.0
    %6523 = vmatpush1.msra.mxu0 0.0
    %6524 = vmatprep.subr.mxu0 0.0
    %6525 = vmatpush1.msra.mxu0 0.0
    %6526 = vmatprep.subr.mxu0 0.0
    %6527 = vmatpush1.msra.mxu0 0.0
    %6528 = vmatprep.mubr.f32.mxu0 0.0
    %v6529 = vand.u32 %v6461, 4294901760
    %v6530 = vsub.f32 %v6461, %v6529
    %v6531 = vand.u32 %v6530, 4294901760
    %v6532 = vsub.f32 %v6530, %v6531
    %v6533 = vand.u32 %v6532, 4294901760
    %6534 = vmatmul.mubr.f32.gmra.mrb[0].mxu0 %v6533
    %v6535 = vpop.f32.mrb[0].mxu0
    %v6536 = vadd.f32 0.0, %v6535
    %v6537 = vpop.f32.mrb[0].mxu0
    %6538 = vdwg.mxu0
    %6539 = vmatprep.subr.mxu0 0.0
    %v6540 = vand.u32 %v57, 4294901760
    %v6541 = vsub.f32 %v57, %v6540
    %v6542 = vand.u32 %v6541, 4294901760
    %v6543 = vsub.f32 %v6541, %v6542
    %v6544 = vand.u32 %v6543, 4294901760
    %6545 = vmatpush1.msra.mxu0 %v6544
    %6546 = vmatprep.subr.mxu0 0.0
    %6547 = vmatpush1.msra.mxu0 0.0
    %6548 = vmatprep.subr.mxu0 0.0
    %6549 = vmatpush1.msra.mxu0 0.0
    %6550 = vmatprep.subr.mxu0 0.0
    %6551 = vmatpush1.msra.mxu0 0.0
    %6552 = vmatprep.subr.mxu0 0.0
    %6553 = vmatpush1.msra.mxu0 0.0
    %6554 = vmatprep.subr.mxu0 0.0
    %6555 = vmatpush1.msra.mxu0 0.0
    %6556 = vmatprep.subr.mxu0 0.0
    %6557 = vmatpush1.msra.mxu0 0.0
    %6558 = vmatprep.subr.mxu0 0.0
    %6559 = vmatpush1.msra.mxu0 0.0
    %6560 = vmatprep.subr.mxu0 0.0
    %6561 = vmatpush1.msra.mxu0 0.0
    %6562 = vmatprep.subr.mxu0 0.0
    %6563 = vmatpush1.msra.mxu0 0.0
    %6564 = vmatprep.subr.mxu0 0.0
    %6565 = vmatpush1.msra.mxu0 0.0
    %6566 = vmatprep.subr.mxu0 0.0
    %6567 = vmatpush1.msra.mxu0 0.0
    %6568 = vmatprep.subr.mxu0 0.0
    %6569 = vmatpush1.msra.mxu0 0.0
    %6570 = vmatprep.subr.mxu0 0.0
    %6571 = vmatpush1.msra.mxu0 0.0
    %6572 = vmatprep.subr.mxu0 0.0
    %6573 = vmatpush1.msra.mxu0 0.0
    %6574 = vmatprep.subr.mxu0 0.0
    %6575 = vmatpush1.msra.mxu0 0.0
    %6576 = vmatprep.subr.mxu0 0.0
    %6577 = vmatpush1.msra.mxu0 0.0
    %6578 = vmatprep.subr.mxu0 0.0
    %6579 = vmatpush1.msra.mxu0 0.0
    %6580 = vmatprep.subr.mxu0 0.0
    %6581 = vmatpush1.msra.mxu0 0.0
    %6582 = vmatprep.subr.mxu0 0.0
    %6583 = vmatpush1.msra.mxu0 0.0
    %6584 = vmatprep.subr.mxu0 0.0
    %6585 = vmatpush1.msra.mxu0 0.0
    %6586 = vmatprep.subr.mxu0 0.0
    %6587 = vmatpush1.msra.mxu0 0.0
    %6588 = vmatprep.subr.mxu0 0.0
    %6589 = vmatpush1.msra.mxu0 0.0
    %6590 = vmatprep.subr.mxu0 0.0
    %6591 = vmatpush1.msra.mxu0 0.0
    %6592 = vmatprep.subr.mxu0 0.0
    %6593 = vmatpush1.msra.mxu0 0.0
    %6594 = vmatprep.subr.mxu0 0.0
    %6595 = vmatpush1.msra.mxu0 0.0
    %6596 = vmatprep.subr.mxu0 0.0
    %6597 = vmatpush1.msra.mxu0 0.0
    %6598 = vmatprep.subr.mxu0 0.0
    %6599 = vmatpush1.msra.mxu0 0.0
    %6600 = vmatprep.subr.mxu0 0.0
    %6601 = vmatpush1.msra.mxu0 0.0
    %6602 = vmatprep.subr.mxu0 0.0
    %6603 = vmatpush1.msra.mxu0 0.0
    %6604 = vmatprep.subr.mxu0 0.0
    %6605 = vmatpush1.msra.mxu0 0.0
    %6606 = vmatprep.subr.mxu0 0.0
    %6607 = vmatpush1.msra.mxu0 0.0
    %6608 = vmatprep.mubr.f32.mxu0 0.0
    %v6609 = vand.u32 %v6461, 4294901760
    %6610 = vmatmul.mubr.f32.gmra.mrb[0].mxu0 %v6609
    %v6611 = vpop.f32.mrb[0].mxu0
    %v6612 = vadd.f32 %v6536, %v6611
    %v6613 = vpop.f32.mrb[0].mxu0
    %6614 = vdwg.mxu0
    %6615 = vmatprep.subr.mxu0 0.0
    %v6616 = vand.u32 %v57, 4294901760
    %v6617 = vsub.f32 %v57, %v6616
    %6618 = vmatpush1.msra.mxu0 %v6617
    %6619 = vmatprep.subr.mxu0 0.0
    %6620 = vmatpush1.msra.mxu0 0.0
    %6621 = vmatprep.subr.mxu0 0.0
    %6622 = vmatpush1.msra.mxu0 0.0
    %6623 = vmatprep.subr.mxu0 0.0
    %6624 = vmatpush1.msra.mxu0 0.0
    %6625 = vmatprep.subr.mxu0 0.0
    %6626 = vmatpush1.msra.mxu0 0.0
    %6627 = vmatprep.subr.mxu0 0.0
    %6628 = vmatpush1.msra.mxu0 0.0
    %6629 = vmatprep.subr.mxu0 0.0
    %6630 = vmatpush1.msra.mxu0 0.0
    %6631 = vmatprep.subr.mxu0 0.0
    %6632 = vmatpush1.msra.mxu0 0.0
    %6633 = vmatprep.subr.mxu0 0.0
    %6634 = vmatpush1.msra.mxu0 0.0
    %6635 = vmatprep.subr.mxu0 0.0
    %6636 = vmatpush1.msra.mxu0 0.0
    %6637 = vmatprep.subr.mxu0 0.0
    %6638 = vmatpush1.msra.mxu0 0.0
    %6639 = vmatprep.subr.mxu0 0.0
    %6640 = vmatpush1.msra.mxu0 0.0
    %6641 = vmatprep.subr.mxu0 0.0
    %6642 = vmatpush1.msra.mxu0 0.0
    %6643 = vmatprep.subr.mxu0 0.0
    %6644 = vmatpush1.msra.mxu0 0.0
    %6645 = vmatprep.subr.mxu0 0.0
    %6646 = vmatpush1.msra.mxu0 0.0
    %6647 = vmatprep.subr.mxu0 0.0
    %6648 = vmatpush1.msra.mxu0 0.0
    %6649 = vmatprep.subr.mxu0 0.0
    %6650 = vmatpush1.msra.mxu0 0.0
    %6651 = vmatprep.subr.mxu0 0.0
    %6652 = vmatpush1.msra.mxu0 0.0
    %6653 = vmatprep.subr.mxu0 0.0
    %6654 = vmatpush1.msra.mxu0 0.0
    %6655 = vmatprep.subr.mxu0 0.0
    %6656 = vmatpush1.msra.mxu0 0.0
    %6657 = vmatprep.subr.mxu0 0.0
    %6658 = vmatpush1.msra.mxu0 0.0
    %6659 = vmatprep.subr.mxu0 0.0
    %6660 = vmatpush1.msra.mxu0 0.0
    %6661 = vmatprep.subr.mxu0 0.0
    %6662 = vmatpush1.msra.mxu0 0.0
    %6663 = vmatprep.subr.mxu0 0.0
    %6664 = vmatpush1.msra.mxu0 0.0
    %6665 = vmatprep.subr.mxu0 0.0
    %6666 = vmatpush1.msra.mxu0 0.0
    %6667 = vmatprep.subr.mxu0 0.0
    %6668 = vmatpush1.msra.mxu0 0.0
    %6669 = vmatprep.subr.mxu0 0.0
    %6670 = vmatpush1.msra.mxu0 0.0
    %6671 = vmatprep.subr.mxu0 0.0
    %6672 = vmatpush1.msra.mxu0 0.0
    %6673 = vmatprep.subr.mxu0 0.0
    %6674 = vmatpush1.msra.mxu0 0.0
    %6675 = vmatprep.subr.mxu0 0.0
    %6676 = vmatpush1.msra.mxu0 0.0
    %6677 = vmatprep.subr.mxu0 0.0
    %6678 = vmatpush1.msra.mxu0 0.0
    %6679 = vmatprep.subr.mxu0 0.0
    %6680 = vmatpush1.msra.mxu0 0.0
    %6681 = vmatprep.mubr.f32.mxu0 0.0
    %v6682 = vand.u32 %v6461, 4294901760
    %v6683 = vsub.f32 %v6461, %v6682
    %6684 = vmatmul.mubr.f32.gmra.mrb[0].mxu0 %v6683
    %v6685 = vpop.f32.mrb[0].mxu0
    %v6686 = vadd.f32 %v6612, %v6685
    %v6687 = vpop.f32.mrb[0].mxu0
    %6688 = vdwg.mxu0
    %6689 = vmatprep.subr.mxu0 0.0
    %v6690 = vand.u32 %v57, 4294901760
    %6691 = vmatpush1.msra.mxu0 %v6690
    %6692 = vmatprep.subr.mxu0 0.0
    %6693 = vmatpush1.msra.mxu0 0.0
    %6694 = vmatprep.subr.mxu0 0.0
    %6695 = vmatpush1.msra.mxu0 0.0
    %6696 = vmatprep.subr.mxu0 0.0
    %6697 = vmatpush1.msra.mxu0 0.0
    %6698 = vmatprep.subr.mxu0 0.0
    %6699 = vmatpush1.msra.mxu0 0.0
    %6700 = vmatprep.subr.mxu0 0.0
    %6701 = vmatpush1.msra.mxu0 0.0
    %6702 = vmatprep.subr.mxu0 0.0
    %6703 = vmatpush1.msra.mxu0 0.0
    %6704 = vmatprep.subr.mxu0 0.0
    %6705 = vmatpush1.msra.mxu0 0.0
    %6706 = vmatprep.subr.mxu0 0.0
    %6707 = vmatpush1.msra.mxu0 0.0
    %6708 = vmatprep.subr.mxu0 0.0
    %6709 = vmatpush1.msra.mxu0 0.0
    %6710 = vmatprep.subr.mxu0 0.0
    %6711 = vmatpush1.msra.mxu0 0.0
    %6712 = vmatprep.subr.mxu0 0.0
    %6713 = vmatpush1.msra.mxu0 0.0
    %6714 = vmatprep.subr.mxu0 0.0
    %6715 = vmatpush1.msra.mxu0 0.0
    %6716 = vmatprep.subr.mxu0 0.0
    %6717 = vmatpush1.msra.mxu0 0.0
    %6718 = vmatprep.subr.mxu0 0.0
    %6719 = vmatpush1.msra.mxu0 0.0
    %6720 = vmatprep.subr.mxu0 0.0
    %6721 = vmatpush1.msra.mxu0 0.0
    %6722 = vmatprep.subr.mxu0 0.0
    %6723 = vmatpush1.msra.mxu0 0.0
    %6724 = vmatprep.subr.mxu0 0.0
    %6725 = vmatpush1.msra.mxu0 0.0
    %6726 = vmatprep.subr.mxu0 0.0
    %6727 = vmatpush1.msra.mxu0 0.0
    %6728 = vmatprep.subr.mxu0 0.0
    %6729 = vmatpush1.msra.mxu0 0.0
    %6730 = vmatprep.subr.mxu0 0.0
    %6731 = vmatpush1.msra.mxu0 0.0
    %6732 = vmatprep.subr.mxu0 0.0
    %6733 = vmatpush1.msra.mxu0 0.0
    %6734 = vmatprep.subr.mxu0 0.0
    %6735 = vmatpush1.msra.mxu0 0.0
    %6736 = vmatprep.subr.mxu0 0.0
    %6737 = vmatpush1.msra.mxu0 0.0
    %6738 = vmatprep.subr.mxu0 0.0
    %6739 = vmatpush1.msra.mxu0 0.0
    %6740 = vmatprep.subr.mxu0 0.0
    %6741 = vmatpush1.msra.mxu0 0.0
    %6742 = vmatprep.subr.mxu0 0.0
    %6743 = vmatpush1.msra.mxu0 0.0
    %6744 = vmatprep.subr.mxu0 0.0
    %6745 = vmatpush1.msra.mxu0 0.0
    %6746 = vmatprep.subr.mxu0 0.0
    %6747 = vmatpush1.msra.mxu0 0.0
    %6748 = vmatprep.subr.mxu0 0.0
    %6749 = vmatpush1.msra.mxu0 0.0
    %6750 = vmatprep.subr.mxu0 0.0
    %6751 = vmatpush1.msra.mxu0 0.0
    %6752 = vmatprep.subr.mxu0 0.0
    %6753 = vmatpush1.msra.mxu0 0.0
    %6754 = vmatprep.mubr.f32.mxu0 0.0
    %v6755 = vand.u32 %v6461, 4294901760
    %v6756 = vsub.f32 %v6461, %v6755
    %v6757 = vand.u32 %v6756, 4294901760
    %6758 = vmatmul.mubr.f32.gmra.mrb[0].mxu0 %v6757
    %v6759 = vpop.f32.mrb[0].mxu0
    %v6760 = vadd.f32 %v6686, %v6759
    %v6761 = vpop.f32.mrb[0].mxu0
    %6762 = vdwg.mxu0
    %6763 = vmatprep.subr.mxu0 0.0
    %v6764 = vand.u32 %v57, 4294901760
    %v6765 = vsub.f32 %v57, %v6764
    %v6766 = vand.u32 %v6765, 4294901760
    %6767 = vmatpush1.msra.mxu0 %v6766
    %6768 = vmatprep.subr.mxu0 0.0
    %6769 = vmatpush1.msra.mxu0 0.0
    %6770 = vmatprep.subr.mxu0 0.0
    %6771 = vmatpush1.msra.mxu0 0.0
    %6772 = vmatprep.subr.mxu0 0.0
    %6773 = vmatpush1.msra.mxu0 0.0
    %6774 = vmatprep.subr.mxu0 0.0
    %6775 = vmatpush1.msra.mxu0 0.0
    %6776 = vmatprep.subr.mxu0 0.0
    %6777 = vmatpush1.msra.mxu0 0.0
    %6778 = vmatprep.subr.mxu0 0.0
    %6779 = vmatpush1.msra.mxu0 0.0
    %6780 = vmatprep.subr.mxu0 0.0
    %6781 = vmatpush1.msra.mxu0 0.0
    %6782 = vmatprep.subr.mxu0 0.0
    %6783 = vmatpush1.msra.mxu0 0.0
    %6784 = vmatprep.subr.mxu0 0.0
    %6785 = vmatpush1.msra.mxu0 0.0
    %6786 = vmatprep.subr.mxu0 0.0
    %6787 = vmatpush1.msra.mxu0 0.0
    %6788 = vmatprep.subr.mxu0 0.0
    %6789 = vmatpush1.msra.mxu0 0.0
    %6790 = vmatprep.subr.mxu0 0.0
    %6791 = vmatpush1.msra.mxu0 0.0
    %6792 = vmatprep.subr.mxu0 0.0
    %6793 = vmatpush1.msra.mxu0 0.0
    %6794 = vmatprep.subr.mxu0 0.0
    %6795 = vmatpush1.msra.mxu0 0.0
    %6796 = vmatprep.subr.mxu0 0.0
    %6797 = vmatpush1.msra.mxu0 0.0
    %6798 = vmatprep.subr.mxu0 0.0
    %6799 = vmatpush1.msra.mxu0 0.0
    %6800 = vmatprep.subr.mxu0 0.0
    %6801 = vmatpush1.msra.mxu0 0.0
    %6802 = vmatprep.subr.mxu0 0.0
    %6803 = vmatpush1.msra.mxu0 0.0
    %6804 = vmatprep.subr.mxu0 0.0
    %6805 = vmatpush1.msra.mxu0 0.0
    %6806 = vmatprep.subr.mxu0 0.0
    %6807 = vmatpush1.msra.mxu0 0.0
    %6808 = vmatprep.subr.mxu0 0.0
    %6809 = vmatpush1.msra.mxu0 0.0
    %6810 = vmatprep.subr.mxu0 0.0
    %6811 = vmatpush1.msra.mxu0 0.0
    %6812 = vmatprep.subr.mxu0 0.0
    %6813 = vmatpush1.msra.mxu0 0.0
    %6814 = vmatprep.subr.mxu0 0.0
    %6815 = vmatpush1.msra.mxu0 0.0
    %6816 = vmatprep.subr.mxu0 0.0
    %6817 = vmatpush1.msra.mxu0 0.0
    %6818 = vmatprep.subr.mxu0 0.0
    %6819 = vmatpush1.msra.mxu0 0.0
    %6820 = vmatprep.subr.mxu0 0.0
    %6821 = vmatpush1.msra.mxu0 0.0
    %6822 = vmatprep.subr.mxu0 0.0
    %6823 = vmatpush1.msra.mxu0 0.0
    %6824 = vmatprep.subr.mxu0 0.0
    %6825 = vmatpush1.msra.mxu0 0.0
    %6826 = vmatprep.subr.mxu0 0.0
    %6827 = vmatpush1.msra.mxu0 0.0
    %6828 = vmatprep.subr.mxu0 0.0
    %6829 = vmatpush1.msra.mxu0 0.0
    %6830 = vmatprep.mubr.f32.mxu0 0.0
    %v6831 = vand.u32 %v6461, 4294901760
    %6832 = vmatmul.mubr.f32.gmra.mrb[0].mxu0 %v6831
    %v6833 = vpop.f32.mrb[0].mxu0
    %v6834 = vadd.f32 %v6760, %v6833
    %v6835 = vpop.f32.mrb[0].mxu0
    %6836 = vdwg.mxu0
    %6837 = vmatprep.subr.mxu0 0.0
    %v6838 = vand.u32 %v57, 4294901760
    %6839 = vmatpush1.msra.mxu0 %v6838
    %6840 = vmatprep.subr.mxu0 0.0
    %6841 = vmatpush1.msra.mxu0 0.0
    %6842 = vmatprep.subr.mxu0 0.0
    %6843 = vmatpush1.msra.mxu0 0.0
    %6844 = vmatprep.subr.mxu0 0.0
    %6845 = vmatpush1.msra.mxu0 0.0
    %6846 = vmatprep.subr.mxu0 0.0
    %6847 = vmatpush1.msra.mxu0 0.0
    %6848 = vmatprep.subr.mxu0 0.0
    %6849 = vmatpush1.msra.mxu0 0.0
    %6850 = vmatprep.subr.mxu0 0.0
    %6851 = vmatpush1.msra.mxu0 0.0
    %6852 = vmatprep.subr.mxu0 0.0
    %6853 = vmatpush1.msra.mxu0 0.0
    %6854 = vmatprep.subr.mxu0 0.0
    %6855 = vmatpush1.msra.mxu0 0.0
    %6856 = vmatprep.subr.mxu0 0.0
    %6857 = vmatpush1.msra.mxu0 0.0
    %6858 = vmatprep.subr.mxu0 0.0
    %6859 = vmatpush1.msra.mxu0 0.0
    %6860 = vmatprep.subr.mxu0 0.0
    %6861 = vmatpush1.msra.mxu0 0.0
    %6862 = vmatprep.subr.mxu0 0.0
    %6863 = vmatpush1.msra.mxu0 0.0
    %6864 = vmatprep.subr.mxu0 0.0
    %6865 = vmatpush1.msra.mxu0 0.0
    %6866 = vmatprep.subr.mxu0 0.0
    %6867 = vmatpush1.msra.mxu0 0.0
    %6868 = vmatprep.subr.mxu0 0.0
    %6869 = vmatpush1.msra.mxu0 0.0
    %6870 = vmatprep.subr.mxu0 0.0
    %6871 = vmatpush1.msra.mxu0 0.0
    %6872 = vmatprep.subr.mxu0 0.0
    %6873 = vmatpush1.msra.mxu0 0.0
    %6874 = vmatprep.subr.mxu0 0.0
    %6875 = vmatpush1.msra.mxu0 0.0
    %6876 = vmatprep.subr.mxu0 0.0
    %6877 = vmatpush1.msra.mxu0 0.0
    %6878 = vmatprep.subr.mxu0 0.0
    %6879 = vmatpush1.msra.mxu0 0.0
    %6880 = vmatprep.subr.mxu0 0.0
    %6881 = vmatpush1.msra.mxu0 0.0
    %6882 = vmatprep.subr.mxu0 0.0
    %6883 = vmatpush1.msra.mxu0 0.0
    %6884 = vmatprep.subr.mxu0 0.0
    %6885 = vmatpush1.msra.mxu0 0.0
    %6886 = vmatprep.subr.mxu0 0.0
    %6887 = vmatpush1.msra.mxu0 0.0
    %6888 = vmatprep.subr.mxu0 0.0
    %6889 = vmatpush1.msra.mxu0 0.0
    %6890 = vmatprep.subr.mxu0 0.0
    %6891 = vmatpush1.msra.mxu0 0.0
    %6892 = vmatprep.subr.mxu0 0.0
    %6893 = vmatpush1.msra.mxu0 0.0
    %6894 = vmatprep.subr.mxu0 0.0
    %6895 = vmatpush1.msra.mxu0 0.0
    %6896 = vmatprep.subr.mxu0 0.0
    %6897 = vmatpush1.msra.mxu0 0.0
    %6898 = vmatprep.subr.mxu0 0.0
    %6899 = vmatpush1.msra.mxu0 0.0
    %6900 = vmatprep.subr.mxu0 0.0
    %6901 = vmatpush1.msra.mxu0 0.0
    %6902 = vmatprep.mubr.f32.mxu0 0.0
    %v6903 = vand.u32 %v6461, 4294901760
    %6904 = vmatmul.mubr.f32.gmra.mrb[0].mxu0 %v6903
    %v6905 = vpop.f32.mrb[0].mxu0
    %v6906 = vadd.f32 %v6834, %v6905
    %v6907 = vpop.f32.mrb[0].mxu0
    %6908 = vdwg.mxu0
    %v6910 = vsel %vm3765, %v3764, 0
    %6912 = vmatprep.subr.mxu0 0.0
    %v6913 = vand.u32 %v58, 4294901760
    %6914 = vmatpush1.msra.mxu0 %v6913
    %6915 = vmatprep.subr.mxu0 0.0
    %6916 = vmatpush1.msra.mxu0 0.0
    %6917 = vmatprep.subr.mxu0 0.0
    %6918 = vmatpush1.msra.mxu0 0.0
    %6919 = vmatprep.subr.mxu0 0.0
    %6920 = vmatpush1.msra.mxu0 0.0
    %6921 = vmatprep.subr.mxu0 0.0
    %6922 = vmatpush1.msra.mxu0 0.0
    %6923 = vmatprep.subr.mxu0 0.0
    %6924 = vmatpush1.msra.mxu0 0.0
    %6925 = vmatprep.subr.mxu0 0.0
    %6926 = vmatpush1.msra.mxu0 0.0
    %6927 = vmatprep.subr.mxu0 0.0
    %6928 = vmatpush1.msra.mxu0 0.0
    %6929 = vmatprep.subr.mxu0 0.0
    %6930 = vmatpush1.msra.mxu0 0.0
    %6931 = vmatprep.subr.mxu0 0.0
    %6932 = vmatpush1.msra.mxu0 0.0
    %6933 = vmatprep.subr.mxu0 0.0
    %6934 = vmatpush1.msra.mxu0 0.0
    %6935 = vmatprep.subr.mxu0 0.0
    %6936 = vmatpush1.msra.mxu0 0.0
    %6937 = vmatprep.subr.mxu0 0.0
    %6938 = vmatpush1.msra.mxu0 0.0
    %6939 = vmatprep.subr.mxu0 0.0
    %6940 = vmatpush1.msra.mxu0 0.0
    %6941 = vmatprep.subr.mxu0 0.0
    %6942 = vmatpush1.msra.mxu0 0.0
    %6943 = vmatprep.subr.mxu0 0.0
    %6944 = vmatpush1.msra.mxu0 0.0
    %6945 = vmatprep.subr.mxu0 0.0
    %6946 = vmatpush1.msra.mxu0 0.0
    %6947 = vmatprep.subr.mxu0 0.0
    %6948 = vmatpush1.msra.mxu0 0.0
    %6949 = vmatprep.subr.mxu0 0.0
    %6950 = vmatpush1.msra.mxu0 0.0
    %6951 = vmatprep.subr.mxu0 0.0
    %6952 = vmatpush1.msra.mxu0 0.0
    %6953 = vmatprep.subr.mxu0 0.0
    %6954 = vmatpush1.msra.mxu0 0.0
    %6955 = vmatprep.subr.mxu0 0.0
    %6956 = vmatpush1.msra.mxu0 0.0
    %6957 = vmatprep.subr.mxu0 0.0
    %6958 = vmatpush1.msra.mxu0 0.0
    %6959 = vmatprep.subr.mxu0 0.0
    %6960 = vmatpush1.msra.mxu0 0.0
    %6961 = vmatprep.subr.mxu0 0.0
    %6962 = vmatpush1.msra.mxu0 0.0
    %6963 = vmatprep.subr.mxu0 0.0
    %6964 = vmatpush1.msra.mxu0 0.0
    %6965 = vmatprep.subr.mxu0 0.0
    %6966 = vmatpush1.msra.mxu0 0.0
    %6967 = vmatprep.subr.mxu0 0.0
    %6968 = vmatpush1.msra.mxu0 0.0
    %6969 = vmatprep.subr.mxu0 0.0
    %6970 = vmatpush1.msra.mxu0 0.0
    %6971 = vmatprep.subr.mxu0 0.0
    %6972 = vmatpush1.msra.mxu0 0.0
    %6973 = vmatprep.subr.mxu0 0.0
    %6974 = vmatpush1.msra.mxu0 0.0
    %6975 = vmatprep.subr.mxu0 0.0
    %6976 = vmatpush1.msra.mxu0 0.0
    %6977 = vmatprep.mubr.f32.mxu0 0.0
    %v6978 = vand.u32 %v6910, 4294901760
    %v6979 = vsub.f32 %v6910, %v6978
    %v6980 = vand.u32 %v6979, 4294901760
    %v6981 = vsub.f32 %v6979, %v6980
    %v6982 = vand.u32 %v6981, 4294901760
    %6983 = vmatmul.mubr.f32.gmra.mrb[0].mxu0 %v6982
    %v6984 = vpop.f32.mrb[0].mxu0
    %v6985 = vadd.f32 0.0, %v6984
    %v6986 = vpop.f32.mrb[0].mxu0
    %6987 = vdwg.mxu0
    %6988 = vmatprep.subr.mxu0 0.0
    %v6989 = vand.u32 %v58, 4294901760
    %v6990 = vsub.f32 %v58, %v6989
    %v6991 = vand.u32 %v6990, 4294901760
    %v6992 = vsub.f32 %v6990, %v6991
    %v6993 = vand.u32 %v6992, 4294901760
    %6994 = vmatpush1.msra.mxu0 %v6993
    %6995 = vmatprep.subr.mxu0 0.0
    %6996 = vmatpush1.msra.mxu0 0.0
    %6997 = vmatprep.subr.mxu0 0.0
    %6998 = vmatpush1.msra.mxu0 0.0
    %6999 = vmatprep.subr.mxu0 0.0
    %7000 = vmatpush1.msra.mxu0 0.0
    %7001 = vmatprep.subr.mxu0 0.0
    %7002 = vmatpush1.msra.mxu0 0.0
    %7003 = vmatprep.subr.mxu0 0.0
    %7004 = vmatpush1.msra.mxu0 0.0
    %7005 = vmatprep.subr.mxu0 0.0
    %7006 = vmatpush1.msra.mxu0 0.0
    %7007 = vmatprep.subr.mxu0 0.0
    %7008 = vmatpush1.msra.mxu0 0.0
    %7009 = vmatprep.subr.mxu0 0.0
    %7010 = vmatpush1.msra.mxu0 0.0
    %7011 = vmatprep.subr.mxu0 0.0
    %7012 = vmatpush1.msra.mxu0 0.0
    %7013 = vmatprep.subr.mxu0 0.0
    %7014 = vmatpush1.msra.mxu0 0.0
    %7015 = vmatprep.subr.mxu0 0.0
    %7016 = vmatpush1.msra.mxu0 0.0
    %7017 = vmatprep.subr.mxu0 0.0
    %7018 = vmatpush1.msra.mxu0 0.0
    %7019 = vmatprep.subr.mxu0 0.0
    %7020 = vmatpush1.msra.mxu0 0.0
    %7021 = vmatprep.subr.mxu0 0.0
    %7022 = vmatpush1.msra.mxu0 0.0
    %7023 = vmatprep.subr.mxu0 0.0
    %7024 = vmatpush1.msra.mxu0 0.0
    %7025 = vmatprep.subr.mxu0 0.0
    %7026 = vmatpush1.msra.mxu0 0.0
    %7027 = vmatprep.subr.mxu0 0.0
    %7028 = vmatpush1.msra.mxu0 0.0
    %7029 = vmatprep.subr.mxu0 0.0
    %7030 = vmatpush1.msra.mxu0 0.0
    %7031 = vmatprep.subr.mxu0 0.0
    %7032 = vmatpush1.msra.mxu0 0.0
    %7033 = vmatprep.subr.mxu0 0.0
    %7034 = vmatpush1.msra.mxu0 0.0
    %7035 = vmatprep.subr.mxu0 0.0
    %7036 = vmatpush1.msra.mxu0 0.0
    %7037 = vmatprep.subr.mxu0 0.0
    %7038 = vmatpush1.msra.mxu0 0.0
    %7039 = vmatprep.subr.mxu0 0.0
    %7040 = vmatpush1.msra.mxu0 0.0
    %7041 = vmatprep.subr.mxu0 0.0
    %7042 = vmatpush1.msra.mxu0 0.0
    %7043 = vmatprep.subr.mxu0 0.0
    %7044 = vmatpush1.msra.mxu0 0.0
    %7045 = vmatprep.subr.mxu0 0.0
    %7046 = vmatpush1.msra.mxu0 0.0
    %7047 = vmatprep.subr.mxu0 0.0
    %7048 = vmatpush1.msra.mxu0 0.0
    %7049 = vmatprep.subr.mxu0 0.0
    %7050 = vmatpush1.msra.mxu0 0.0
    %7051 = vmatprep.subr.mxu0 0.0
    %7052 = vmatpush1.msra.mxu0 0.0
    %7053 = vmatprep.subr.mxu0 0.0
    %7054 = vmatpush1.msra.mxu0 0.0
    %7055 = vmatprep.subr.mxu0 0.0
    %7056 = vmatpush1.msra.mxu0 0.0
    %7057 = vmatprep.mubr.f32.mxu0 0.0
    %v7058 = vand.u32 %v6910, 4294901760
    %7059 = vmatmul.mubr.f32.gmra.mrb[0].mxu0 %v7058
    %v7060 = vpop.f32.mrb[0].mxu0
    %v7061 = vadd.f32 %v6985, %v7060
    %v7062 = vpop.f32.mrb[0].mxu0
    %7063 = vdwg.mxu0
    %7064 = vmatprep.subr.mxu0 0.0
    %v7065 = vand.u32 %v58, 4294901760
    %v7066 = vsub.f32 %v58, %v7065
    %7067 = vmatpush1.msra.mxu0 %v7066
    %7068 = vmatprep.subr.mxu0 0.0
    %7069 = vmatpush1.msra.mxu0 0.0
    %7070 = vmatprep.subr.mxu0 0.0
    %7071 = vmatpush1.msra.mxu0 0.0
    %7072 = vmatprep.subr.mxu0 0.0
    %7073 = vmatpush1.msra.mxu0 0.0
    %7074 = vmatprep.subr.mxu0 0.0
    %7075 = vmatpush1.msra.mxu0 0.0
    %7076 = vmatprep.subr.mxu0 0.0
    %7077 = vmatpush1.msra.mxu0 0.0
    %7078 = vmatprep.subr.mxu0 0.0
    %7079 = vmatpush1.msra.mxu0 0.0
    %7080 = vmatprep.subr.mxu0 0.0
    %7081 = vmatpush1.msra.mxu0 0.0
    %7082 = vmatprep.subr.mxu0 0.0
    %7083 = vmatpush1.msra.mxu0 0.0
    %7084 = vmatprep.subr.mxu0 0.0
    %7085 = vmatpush1.msra.mxu0 0.0
    %7086 = vmatprep.subr.mxu0 0.0
    %7087 = vmatpush1.msra.mxu0 0.0
    %7088 = vmatprep.subr.mxu0 0.0
    %7089 = vmatpush1.msra.mxu0 0.0
    %7090 = vmatprep.subr.mxu0 0.0
    %7091 = vmatpush1.msra.mxu0 0.0
    %7092 = vmatprep.subr.mxu0 0.0
    %7093 = vmatpush1.msra.mxu0 0.0
    %7094 = vmatprep.subr.mxu0 0.0
    %7095 = vmatpush1.msra.mxu0 0.0
    %7096 = vmatprep.subr.mxu0 0.0
    %7097 = vmatpush1.msra.mxu0 0.0
    %7098 = vmatprep.subr.mxu0 0.0
    %7099 = vmatpush1.msra.mxu0 0.0
    %7100 = vmatprep.subr.mxu0 0.0
    %7101 = vmatpush1.msra.mxu0 0.0
    %7102 = vmatprep.subr.mxu0 0.0
    %7103 = vmatpush1.msra.mxu0 0.0
    %7104 = vmatprep.subr.mxu0 0.0
    %7105 = vmatpush1.msra.mxu0 0.0
    %7106 = vmatprep.subr.mxu0 0.0
    %7107 = vmatpush1.msra.mxu0 0.0
    %7108 = vmatprep.subr.mxu0 0.0
    %7109 = vmatpush1.msra.mxu0 0.0
    %7110 = vmatprep.subr.mxu0 0.0
    %7111 = vmatpush1.msra.mxu0 0.0
    %7112 = vmatprep.subr.mxu0 0.0
    %7113 = vmatpush1.msra.mxu0 0.0
    %7114 = vmatprep.subr.mxu0 0.0
    %7115 = vmatpush1.msra.mxu0 0.0
    %7116 = vmatprep.subr.mxu0 0.0
    %7117 = vmatpush1.msra.mxu0 0.0
    %7118 = vmatprep.subr.mxu0 0.0
    %7119 = vmatpush1.msra.mxu0 0.0
    %7120 = vmatprep.subr.mxu0 0.0
    %7121 = vmatpush1.msra.mxu0 0.0
    %7122 = vmatprep.subr.mxu0 0.0
    %7123 = vmatpush1.msra.mxu0 0.0
    %7124 = vmatprep.subr.mxu0 0.0
    %7125 = vmatpush1.msra.mxu0 0.0
    %7126 = vmatprep.subr.mxu0 0.0
    %7127 = vmatpush1.msra.mxu0 0.0
    %7128 = vmatprep.subr.mxu0 0.0
    %7129 = vmatpush1.msra.mxu0 0.0
    %7130 = vmatprep.mubr.f32.mxu0 0.0
    %v7131 = vand.u32 %v6910, 4294901760
    %v7132 = vsub.f32 %v6910, %v7131
    %7133 = vmatmul.mubr.f32.gmra.mrb[0].mxu0 %v7132
    %v7134 = vpop.f32.mrb[0].mxu0
    %v7135 = vadd.f32 %v7061, %v7134
    %v7136 = vpop.f32.mrb[0].mxu0
    %7137 = vdwg.mxu0
    %7138 = vmatprep.subr.mxu0 0.0
    %v7139 = vand.u32 %v58, 4294901760
    %7140 = vmatpush1.msra.mxu0 %v7139
    %7141 = vmatprep.subr.mxu0 0.0
    %7142 = vmatpush1.msra.mxu0 0.0
    %7143 = vmatprep.subr.mxu0 0.0
    %7144 = vmatpush1.msra.mxu0 0.0
    %7145 = vmatprep.subr.mxu0 0.0
    %7146 = vmatpush1.msra.mxu0 0.0
    %7147 = vmatprep.subr.mxu0 0.0
    %7148 = vmatpush1.msra.mxu0 0.0
    %7149 = vmatprep.subr.mxu0 0.0
    %7150 = vmatpush1.msra.mxu0 0.0
    %7151 = vmatprep.subr.mxu0 0.0
    %7152 = vmatpush1.msra.mxu0 0.0
    %7153 = vmatprep.subr.mxu0 0.0
    %7154 = vmatpush1.msra.mxu0 0.0
    %7155 = vmatprep.subr.mxu0 0.0
    %7156 = vmatpush1.msra.mxu0 0.0
    %7157 = vmatprep.subr.mxu0 0.0
    %7158 = vmatpush1.msra.mxu0 0.0
    %7159 = vmatprep.subr.mxu0 0.0
    %7160 = vmatpush1.msra.mxu0 0.0
    %7161 = vmatprep.subr.mxu0 0.0
    %7162 = vmatpush1.msra.mxu0 0.0
    %7163 = vmatprep.subr.mxu0 0.0
    %7164 = vmatpush1.msra.mxu0 0.0
    %7165 = vmatprep.subr.mxu0 0.0
    %7166 = vmatpush1.msra.mxu0 0.0
    %7167 = vmatprep.subr.mxu0 0.0
    %7168 = vmatpush1.msra.mxu0 0.0
    %7169 = vmatprep.subr.mxu0 0.0
    %7170 = vmatpush1.msra.mxu0 0.0
    %7171 = vmatprep.subr.mxu0 0.0
    %7172 = vmatpush1.msra.mxu0 0.0
    %7173 = vmatprep.subr.mxu0 0.0
    %7174 = vmatpush1.msra.mxu0 0.0
    %7175 = vmatprep.subr.mxu0 0.0
    %7176 = vmatpush1.msra.mxu0 0.0
    %7177 = vmatprep.subr.mxu0 0.0
    %7178 = vmatpush1.msra.mxu0 0.0
    %7179 = vmatprep.subr.mxu0 0.0
    %7180 = vmatpush1.msra.mxu0 0.0
    %7181 = vmatprep.subr.mxu0 0.0
    %7182 = vmatpush1.msra.mxu0 0.0
    %7183 = vmatprep.subr.mxu0 0.0
    %7184 = vmatpush1.msra.mxu0 0.0
    %7185 = vmatprep.subr.mxu0 0.0
    %7186 = vmatpush1.msra.mxu0 0.0
    %7187 = vmatprep.subr.mxu0 0.0
    %7188 = vmatpush1.msra.mxu0 0.0
    %7189 = vmatprep.subr.mxu0 0.0
    %7190 = vmatpush1.msra.mxu0 0.0
    %7191 = vmatprep.subr.mxu0 0.0
    %7192 = vmatpush1.msra.mxu0 0.0
    %7193 = vmatprep.subr.mxu0 0.0
    %7194 = vmatpush1.msra.mxu0 0.0
    %7195 = vmatprep.subr.mxu0 0.0
    %7196 = vmatpush1.msra.mxu0 0.0
    %7197 = vmatprep.subr.mxu0 0.0
    %7198 = vmatpush1.msra.mxu0 0.0
    %7199 = vmatprep.subr.mxu0 0.0
    %7200 = vmatpush1.msra.mxu0 0.0
    %7201 = vmatprep.subr.mxu0 0.0
    %7202 = vmatpush1.msra.mxu0 0.0
    %7203 = vmatprep.mubr.f32.mxu0 0.0
    %v7204 = vand.u32 %v6910, 4294901760
    %v7205 = vsub.f32 %v6910, %v7204
    %v7206 = vand.u32 %v7205, 4294901760
    %7207 = vmatmul.mubr.f32.gmra.mrb[0].mxu0 %v7206
    %v7208 = vpop.f32.mrb[0].mxu0
    %v7209 = vadd.f32 %v7135, %v7208
    %v7210 = vpop.f32.mrb[0].mxu0
    %7211 = vdwg.mxu0
    %7212 = vmatprep.subr.mxu0 0.0
    %v7213 = vand.u32 %v58, 4294901760
    %v7214 = vsub.f32 %v58, %v7213
    %v7215 = vand.u32 %v7214, 4294901760
    %7216 = vmatpush1.msra.mxu0 %v7215
    %7217 = vmatprep.subr.mxu0 0.0
    %7218 = vmatpush1.msra.mxu0 0.0
    %7219 = vmatprep.subr.mxu0 0.0
    %7220 = vmatpush1.msra.mxu0 0.0
    %7221 = vmatprep.subr.mxu0 0.0
    %7222 = vmatpush1.msra.mxu0 0.0
    %7223 = vmatprep.subr.mxu0 0.0
    %7224 = vmatpush1.msra.mxu0 0.0
    %7225 = vmatprep.subr.mxu0 0.0
    %7226 = vmatpush1.msra.mxu0 0.0
    %7227 = vmatprep.subr.mxu0 0.0
    %7228 = vmatpush1.msra.mxu0 0.0
    %7229 = vmatprep.subr.mxu0 0.0
    %7230 = vmatpush1.msra.mxu0 0.0
    %7231 = vmatprep.subr.mxu0 0.0
    %7232 = vmatpush1.msra.mxu0 0.0
    %7233 = vmatprep.subr.mxu0 0.0
    %7234 = vmatpush1.msra.mxu0 0.0
    %7235 = vmatprep.subr.mxu0 0.0
    %7236 = vmatpush1.msra.mxu0 0.0
    %7237 = vmatprep.subr.mxu0 0.0
    %7238 = vmatpush1.msra.mxu0 0.0
    %7239 = vmatprep.subr.mxu0 0.0
    %7240 = vmatpush1.msra.mxu0 0.0
    %7241 = vmatprep.subr.mxu0 0.0
    %7242 = vmatpush1.msra.mxu0 0.0
    %7243 = vmatprep.subr.mxu0 0.0
    %7244 = vmatpush1.msra.mxu0 0.0
    %7245 = vmatprep.subr.mxu0 0.0
    %7246 = vmatpush1.msra.mxu0 0.0
    %7247 = vmatprep.subr.mxu0 0.0
    %7248 = vmatpush1.msra.mxu0 0.0
    %7249 = vmatprep.subr.mxu0 0.0
    %7250 = vmatpush1.msra.mxu0 0.0
    %7251 = vmatprep.subr.mxu0 0.0
    %7252 = vmatpush1.msra.mxu0 0.0
    %7253 = vmatprep.subr.mxu0 0.0
    %7254 = vmatpush1.msra.mxu0 0.0
    %7255 = vmatprep.subr.mxu0 0.0
    %7256 = vmatpush1.msra.mxu0 0.0
    %7257 = vmatprep.subr.mxu0 0.0
    %7258 = vmatpush1.msra.mxu0 0.0
    %7259 = vmatprep.subr.mxu0 0.0
    %7260 = vmatpush1.msra.mxu0 0.0
    %7261 = vmatprep.subr.mxu0 0.0
    %7262 = vmatpush1.msra.mxu0 0.0
    %7263 = vmatprep.subr.mxu0 0.0
    %7264 = vmatpush1.msra.mxu0 0.0
    %7265 = vmatprep.subr.mxu0 0.0
    %7266 = vmatpush1.msra.mxu0 0.0
    %7267 = vmatprep.subr.mxu0 0.0
    %7268 = vmatpush1.msra.mxu0 0.0
    %7269 = vmatprep.subr.mxu0 0.0
    %7270 = vmatpush1.msra.mxu0 0.0
    %7271 = vmatprep.subr.mxu0 0.0
    %7272 = vmatpush1.msra.mxu0 0.0
    %7273 = vmatprep.subr.mxu0 0.0
    %7274 = vmatpush1.msra.mxu0 0.0
    %7275 = vmatprep.subr.mxu0 0.0
    %7276 = vmatpush1.msra.mxu0 0.0
    %7277 = vmatprep.subr.mxu0 0.0
    %7278 = vmatpush1.msra.mxu0 0.0
    %7279 = vmatprep.mubr.f32.mxu0 0.0
    %v7280 = vand.u32 %v6910, 4294901760
    %7281 = vmatmul.mubr.f32.gmra.mrb[0].mxu0 %v7280
    %v7282 = vpop.f32.mrb[0].mxu0
    %v7283 = vadd.f32 %v7209, %v7282
    %v7284 = vpop.f32.mrb[0].mxu0
    %7285 = vdwg.mxu0
    %7286 = vmatprep.subr.mxu0 0.0
    %v7287 = vand.u32 %v58, 4294901760
    %7288 = vmatpush1.msra.mxu0 %v7287
    %7289 = vmatprep.subr.mxu0 0.0
    %7290 = vmatpush1.msra.mxu0 0.0
    %7291 = vmatprep.subr.mxu0 0.0
    %7292 = vmatpush1.msra.mxu0 0.0
    %7293 = vmatprep.subr.mxu0 0.0
    %7294 = vmatpush1.msra.mxu0 0.0
    %7295 = vmatprep.subr.mxu0 0.0
    %7296 = vmatpush1.msra.mxu0 0.0
    %7297 = vmatprep.subr.mxu0 0.0
    %7298 = vmatpush1.msra.mxu0 0.0
    %7299 = vmatprep.subr.mxu0 0.0
    %7300 = vmatpush1.msra.mxu0 0.0
    %7301 = vmatprep.subr.mxu0 0.0
    %7302 = vmatpush1.msra.mxu0 0.0
    %7303 = vmatprep.subr.mxu0 0.0
    %7304 = vmatpush1.msra.mxu0 0.0
    %7305 = vmatprep.subr.mxu0 0.0
    %7306 = vmatpush1.msra.mxu0 0.0
    %7307 = vmatprep.subr.mxu0 0.0
    %7308 = vmatpush1.msra.mxu0 0.0
    %7309 = vmatprep.subr.mxu0 0.0
    %7310 = vmatpush1.msra.mxu0 0.0
    %7311 = vmatprep.subr.mxu0 0.0
    %7312 = vmatpush1.msra.mxu0 0.0
    %7313 = vmatprep.subr.mxu0 0.0
    %7314 = vmatpush1.msra.mxu0 0.0
    %7315 = vmatprep.subr.mxu0 0.0
    %7316 = vmatpush1.msra.mxu0 0.0
    %7317 = vmatprep.subr.mxu0 0.0
    %7318 = vmatpush1.msra.mxu0 0.0
    %7319 = vmatprep.subr.mxu0 0.0
    %7320 = vmatpush1.msra.mxu0 0.0
    %7321 = vmatprep.subr.mxu0 0.0
    %7322 = vmatpush1.msra.mxu0 0.0
    %7323 = vmatprep.subr.mxu0 0.0
    %7324 = vmatpush1.msra.mxu0 0.0
    %7325 = vmatprep.subr.mxu0 0.0
    %7326 = vmatpush1.msra.mxu0 0.0
    %7327 = vmatprep.subr.mxu0 0.0
    %7328 = vmatpush1.msra.mxu0 0.0
    %7329 = vmatprep.subr.mxu0 0.0
    %7330 = vmatpush1.msra.mxu0 0.0
    %7331 = vmatprep.subr.mxu0 0.0
    %7332 = vmatpush1.msra.mxu0 0.0
    %7333 = vmatprep.subr.mxu0 0.0
    %7334 = vmatpush1.msra.mxu0 0.0
    %7335 = vmatprep.subr.mxu0 0.0
    %7336 = vmatpush1.msra.mxu0 0.0
    %7337 = vmatprep.subr.mxu0 0.0
    %7338 = vmatpush1.msra.mxu0 0.0
    %7339 = vmatprep.subr.mxu0 0.0
    %7340 = vmatpush1.msra.mxu0 0.0
    %7341 = vmatprep.subr.mxu0 0.0
    %7342 = vmatpush1.msra.mxu0 0.0
    %7343 = vmatprep.subr.mxu0 0.0
    %7344 = vmatpush1.msra.mxu0 0.0
    %7345 = vmatprep.subr.mxu0 0.0
    %7346 = vmatpush1.msra.mxu0 0.0
    %7347 = vmatprep.subr.mxu0 0.0
    %7348 = vmatpush1.msra.mxu0 0.0
    %7349 = vmatprep.subr.mxu0 0.0
    %7350 = vmatpush1.msra.mxu0 0.0
    %7351 = vmatprep.mubr.f32.mxu0 0.0
    %v7352 = vand.u32 %v6910, 4294901760
    %7353 = vmatmul.mubr.f32.gmra.mrb[0].mxu0 %v7352
    %v7354 = vpop.f32.mrb[0].mxu0
    %v7355 = vadd.f32 %v7283, %v7354
    %v7356 = vpop.f32.mrb[0].mxu0
    %7357 = vdwg.mxu0
    %vm7358 = vcmask 253952
    %7359 = vst.msk [vmem:[#allocation7] sm:$0x1] %vm7358, %v4212
    %7360 = vst.msk [vmem:[#allocation7 + $0x1] sm:$0x1] %vm7358, %v4661
    %7361 = vst.msk [vmem:[#allocation7 + $0x2] sm:$0x1] %vm7358, %v5110
    %7362 = vst.msk [vmem:[#allocation7 + $0x3] sm:$0x1] %vm7358, %v5559
    %7363 = vst.msk [vmem:[#allocation7 + $0x4] sm:$0x1] %vm7358, %v6008
    %7364 = vst.msk [vmem:[#allocation7 + $0x5] sm:$0x1] %vm7358, %v6457
    %7365 = vst.msk [vmem:[#allocation7 + $0x6] sm:$0x1] %vm7358, %v6906
    %7366 = vst.msk [vmem:[#allocation7 + $0x7] sm:$0x1] %vm7358, %v7355
    %7367 = vst.msk [vmem:[#allocation8] sm:$0x1] %vm3676, %v3750
    %7368 = vst.msk [vmem:[#allocation8 + $0x1] sm:$0x1] %vm3676, %v3752
    %7369 = vst.msk [vmem:[#allocation8 + $0x2] sm:$0x1] %vm3676, %v3754
    %7370 = vst.msk [vmem:[#allocation8 + $0x3] sm:$0x1] %vm3676, %v3756
    %7371 = vst.msk [vmem:[#allocation8 + $0x4] sm:$0x1] %vm3676, %v3758
    %7372 = vst.msk [vmem:[#allocation8 + $0x5] sm:$0x1] %vm3676, %v3760
    %7373 = vst.msk [vmem:[#allocation8 + $0x6] sm:$0x1] %vm3676, %v3762
    %7374 = vst.msk [vmem:[#allocation8 + $0x7] sm:$0x1] %vm3676, %v3764
    // Predicated region
    $region18: #{tpu_custom_call.1} parent=1 // pred_check
      _
    $region19: #{tpu_custom_call.1} parent=1 // pred_check_branch
      %7376 = sbr.rel (0) target = $region21
    $region20: #{tpu_custom_call.1} parent=1 // pred_region
      %s7378 = ssub.s32 128, 128
      %7379 = vsyncadd [#allocation4], %s7378
      %s7380 = sshll.u32 [#allocation7], 4
      %s7381 = int_to_ptr.vmem [resolvable:$true] %s7380
      %7386 = dma.vmem_to_hbm [thread:$0]  %s7381, 128, %s2, [#allocation4], 16, 16, 1
    $region21: #{tpu_custom_call.1} parent=1 // pred_fallthru
      _
    // Predicated region
    $region22: #{tpu_custom_call.1} parent=1 // pred_check
      _
    $region23: #{tpu_custom_call.1} parent=1 // pred_check_branch
      %7388 = sbr.rel (0) target = $region25
    $region24: #{tpu_custom_call.1} parent=1 // pred_region
      %s7390 = ssub.s32 128, 128
      %7391 = vsyncadd [#allocation9], %s7390
      %s7392 = sshll.u32 [#allocation8], 4
      %s7393 = int_to_ptr.vmem [resolvable:$true] %s7392
      %7398 = dma.vmem_to_hbm [thread:$0]  %s7393, 128, %s3, [#allocation9], 16, 16, 1
    $region25: #{tpu_custom_call.1} parent=1 // pred_fallthru
      _
    // Predicated region
    $region26: #{tpu_custom_call.1} parent=1 // pred_check
      _
    $region27: #{tpu_custom_call.1} parent=1 // pred_check_branch
      %7400 = sbr.rel (0) target = $region29
    $region28: #{tpu_custom_call.1} parent=1 // pred_region
      %7401 = dma.done [#allocation4], 128
    $region29: #{tpu_custom_call.1} parent=1 // pred_fallthru
      _
    // Predicated region
    $region30: #{tpu_custom_call.1} parent=1 // pred_check
      _
    $region31: #{tpu_custom_call.1} parent=1 // pred_check_branch
      %7403 = sbr.rel (0) target = $region33
    $region32: #{tpu_custom_call.1} parent=1 // pred_region
      %7404 = dma.done [#allocation9], 128
    $region33: #{tpu_custom_call.1} parent=1 // pred_fallthru
      _
    %7405 = vsyncpa [#allocation3], 1
    %7406 = vsyncpa [#allocation6], 1
    %7407 = vsyncpa [#allocation4], 1
    %7408 = vsyncpa [#allocation9], 1

</llo_original>
